<compile_context>
chip_gen: v6e
topology: v6e:2x2x1
jax: 0.10.0
libtpu: 0.0.40
codegen_flags: <defaults>
</compile_context>

<pallas_src>
import math
import jax
import jax.numpy as jnp
from jax.experimental import pallas as pl
from jax.experimental.pallas import tpu as pltpu

# ----- small, module-consistent hyperparameters -----
B, S, H = 2, 4, 32               # batch, seq (= 4 feature tracks), num_hiddens
FFN, NH, NLAYERS = 64, 4, 2      # ffn_num_hiddens, num_heads, num_layers
K, C = 3, 8                      # conv kernel_size, out_channels
OUT_FEATURE, NUM_TYPES = 16, 5
CON_LAYER = 2                    # Con_layer = (2, 2, 2, 2)
LINEAR_LAYER = 2
LN_EPS = 1e-5
BN_EPS = 1e-5
G = S                            # 4 conv branches (NBCP, SBCP, PSDCP, SSDCP)
L1, L2, L3 = H, H // 2, H // 4   # lengths after each conv(+pool) stage
DH = H // NH                     # per-head dim


def com_linearsize(linear_size, con_layer, kernel_size):
    for _ in range(con_layer):
        linear_size = int(((linear_size + 2 * 1 - kernel_size) / 1 + 1) // 2)
    if con_layer == 0:
        linear_size = 0
    return linear_size


LIN_SIZE = com_linearsize(H, CON_LAYER, K)
assert LIN_SIZE == L3
FEAT_IN = C * (LIN_SIZE * 4)     # out_channels * sum of 4 linear sizes


# ---------------------------------------------------------------------------
# In-kernel helpers (all constants built from iota -> no operand DMAs)
# ---------------------------------------------------------------------------
def _layer_norm(z, gamma, beta):
    mu = jnp.mean(z, axis=-1, keepdims=True)
    var = jnp.mean((z - mu) ** 2, axis=-1, keepdims=True)
    return (z - mu) * jax.lax.rsqrt(var + LN_EPS) * gamma + beta


def _shift_mats(length):
    # mats[k][l, m] == 1 iff l == m + k - 1  -> x @ mats[k] is the zero-padded,
    # stride-1, padding=1 shifted input used by the conv tap k.
    row = jax.lax.broadcasted_iota(jnp.int32, (length, length), 0)
    col = jax.lax.broadcasted_iota(jnp.int32, (length, length), 1)
    return [(row == col + (k - 1)).astype(jnp.float32) for k in range(K)]


def _pool_mats(length):
    # even[l, m] == 1 iff l == 2m ; odd[l, m] == 1 iff l == 2m + 1
    row = jax.lax.broadcasted_iota(jnp.int32, (length, length // 2), 0)
    col = jax.lax.broadcasted_iota(jnp.int32, (length, length // 2), 1)
    even = (row == 2 * col).astype(jnp.float32)
    odd = (row == 2 * col + 1).astype(jnp.float32)
    return even, odd


# ---------------------------------------------------------------------------
# The single fused forward kernel
# ---------------------------------------------------------------------------
def fused_forward_kernel(
        x_ref,
        wqkv_ref, wo_ref, ln1_ref, w1_ref, b1_ref, w2_ref, b2_ref, ln2_ref,
        cw1_ref, cb1_ref, cs1_ref, ct1_ref, cw2_ref, cb2_ref, cs2_ref, ct2_ref,
        fw1_ref, fb1_ref, fw2_ref, fb2_ref,
        out_ref):
    # ---------------- Transformer encoder (NLAYERS blocks) ----------------
    x = x_ref[...].astype(jnp.float32)                        # (B, S, H)
    scale = 1.0 / math.sqrt(DH)
    for l in range(NLAYERS):                                   # static unroll
        # stacked QKV projection: one (H, 3H) matmul instead of three
        qkv = jnp.einsum('bsh,hd->bsd', x, wqkv_ref[l],
                         preferred_element_type=jnp.float32)   # (B, S, 3H)
        q = qkv[..., 0:H]
        k = qkv[..., H:2 * H]
        v = qkv[..., 2 * H:3 * H]
        head_outs = []
        for h in range(NH):                                    # static heads
            sl = slice(h * DH, (h + 1) * DH)
            s = jnp.einsum('bqd,bkd->bqk', q[..., sl], k[..., sl],
                           preferred_element_type=jnp.float32) * scale
            s = s - jnp.max(s, axis=-1, keepdims=True)
            p = jnp.exp(s)
            p = p * pl.reciprocal(jnp.sum(p, axis=-1, keepdims=True),
                                  approx=True)                 # softmax (EUP)
            head_outs.append(jnp.einsum('bqk,bkd->bqd', p, v[..., sl],
                                        preferred_element_type=jnp.float32))
        # concat(heads) @ Wo in a single dense matmul
        attn = jnp.einsum('bsh,hd->bsd', jnp.concatenate(head_outs, axis=-1),
                          wo_ref[l], preferred_element_type=jnp.float32)
        ln1 = ln1_ref[l]
        y = _layer_norm(x + attn, ln1[0:1, :], ln1[1:2, :])    # AddNorm1
        hid = jnp.maximum(jnp.einsum('bsh,hf->bsf', y, w1_ref[l],
                                     preferred_element_type=jnp.float32)
                          + b1_ref[l], 0.0)
        ffn = jnp.einsum('bsf,fh->bsh', hid, w2_ref[l],
                         preferred_element_type=jnp.float32) + b2_ref[l]
        ln2 = ln2_ref[l]
        x = _layer_norm(y + ffn, ln2[0:1, :], ln2[1:2, :])     # AddNorm2

    # ------------- 4 conv branches (stacked on a leading G axis) ----------
    xb = jnp.stack([x[:, g, :] for g in range(G)], axis=0)     # (G, B, L1)

    # stage 1: Conv1d(1->C, pad=1) -> BN(eval) -> ReLU -> MaxPool(2)
    sm1 = _shift_mats(L1)
    acc = jnp.zeros((G, B, C, L1), jnp.float32)
    for kk in range(K):
        xs = jnp.einsum('gbl,lm->gbm', xb, sm1[kk],
                        preferred_element_type=jnp.float32)     # padded shift
        acc = acc + xs[:, :, None, :] * cw1_ref[kk][:, None, :, None]
    acc = acc + cb1_ref[...][:, None, :, None]
    acc = jnp.maximum(acc * cs1_ref[...][:, None, :, None]
                      + ct1_ref[...][:, None, :, None], 0.0)
    e1, o1 = _pool_mats(L1)
    p1 = jnp.maximum(
        jnp.einsum('gbcl,lm->gbcm', acc, e1, preferred_element_type=jnp.float32),
        jnp.einsum('gbcl,lm->gbcm', acc, o1, preferred_element_type=jnp.float32))

    # stage 2: Conv1d(C->C, pad=1) -> BN(eval) -> ReLU -> MaxPool(2)
    sm2 = _shift_mats(L2)
    acc2 = jnp.zeros((G, B, C, L2), jnp.float32)
    for kk in range(K):
        xs = jnp.einsum('gbil,lm->gbim', p1, sm2[kk],
                        preferred_element_type=jnp.float32)
        acc2 = acc2 + jnp.einsum('gbim,goi->gbom', xs, cw2_ref[kk],
                                 preferred_element_type=jnp.float32)
    acc2 = acc2 + cb2_ref[...][:, None, :, None]
    acc2 = jnp.maximum(acc2 * cs2_ref[...][:, None, :, None]
                       + ct2_ref[...][:, None, :, None], 0.0)
    e2, o2 = _pool_mats(L2)
    p2 = jnp.maximum(
        jnp.einsum('gbcl,lm->gbcm', acc2, e2, preferred_element_type=jnp.float32),
        jnp.einsum('gbcl,lm->gbcm', acc2, o2, preferred_element_type=jnp.float32))
    # p2: (G, B, C, L3)

    # ------- feature = torch.cat([x_g.view(B, C*L3) for g in branches], 1) -
    pieces = []
    for g in range(G):
        for c in range(C):
            pieces.append(p2[g, :, c, :])                      # (B, L3)
    feat = jnp.concatenate(pieces, axis=-1)                    # (B, G*C*L3)

    # ------- head: fc1 -> (dropout: identity) -> ReLU -> fc2 -> log_softmax
    hidf = jnp.maximum(jnp.dot(feat, fw1_ref[...],
                               preferred_element_type=jnp.float32)
                       + fb1_ref[...], 0.0)
    logits = jnp.dot(hidf, fw2_ref[...],
                     preferred_element_type=jnp.float32) + fb2_ref[...]
    m = jnp.max(logits, axis=-1, keepdims=True)
    lse = m + jnp.log(jnp.sum(jnp.exp(logits - m), axis=-1, keepdims=True))
    out_ref[...] = logits - lse                                # log_softmax(dim=1)


# ---------------------------------------------------------------------------
# Wrapper: one pallas_call, no grid, everything resident in VMEM
# ---------------------------------------------------------------------------
def montage_model_forward(X, params):
    enc, conv, head = params['encoder'], params['conv'], params['head']
    args = (X.astype(jnp.float32),
            enc['wqkv'], enc['wo'], enc['ln1'], enc['w1'], enc['b1'],
            enc['w2'], enc['b2'], enc['ln2'],
            conv['w1'], conv['b1'], conv['s1'], conv['t1'],
            conv['w2'], conv['b2'], conv['s2'], conv['t2'],
            head['w1'], head['b1'], head['w2'], head['b2'])
    vmem = pl.BlockSpec(memory_space=pltpu.MemorySpace.VMEM)
    return pl.pallas_call(
        fused_forward_kernel,
        out_shape=jax.ShapeDtypeStruct((B, NUM_TYPES), jnp.float32),
        in_specs=[vmem] * len(args),
        out_specs=vmem,
    )(*args)


# ---------------------------------------------------------------------------
# Deterministic parameter init (per-module __init__ shapes, layers stacked)
# ---------------------------------------------------------------------------
def init_params(key):
    keys = jax.random.split(key, 32)
    it = iter(keys)

    def dense(shape, fan_in):
        return jax.random.normal(next(it), shape, jnp.float32) / math.sqrt(fan_in)

    wqkv, wo, ln1, w1, b1, w2, b2, ln2 = ([] for _ in range(8))
    for _ in range(NLAYERS):
        wqkv.append(jnp.concatenate(
            [dense((H, H), H), dense((H, H), H), dense((H, H), H)], axis=1))
        wo.append(dense((H, H), H))                      # W_o (use_bias=False)
        ln1.append(jnp.stack([jnp.ones((H,), jnp.float32),
                              jnp.zeros((H,), jnp.float32)]))   # gamma / beta
        w1.append(dense((H, FFN), H))                    # FFN dense1
        b1.append(dense((1, FFN), H))
        w2.append(dense((FFN, H), FFN))                  # FFN dense2
        b2.append(dense((1, H), FFN))
        ln2.append(jnp.stack([jnp.ones((H,), jnp.float32),
                              jnp.zeros((H,), jnp.float32)]))
    encoder = dict(wqkv=jnp.stack(wqkv), wo=jnp.stack(wo), ln1=jnp.stack(ln1),
                   w1=jnp.stack(w1), b1=jnp.stack(b1),
                   w2=jnp.stack(w2), b2=jnp.stack(b2), ln2=jnp.stack(ln2))

    bn_scale = jnp.full((G, C), 1.0 / math.sqrt(1.0 + BN_EPS), jnp.float32)
    bn_shift = jnp.zeros((G, C), jnp.float32)
    conv = dict(
        w1=dense((K, G, C), 1 * K),      # Conv1d(1, C, K), one per branch
        b1=dense((G, C), 1 * K),
        s1=bn_scale, t1=bn_shift,        # BatchNorm1d folded (eval, default stats)
        w2=dense((K, G, C, C), C * K),   # Conv1d(C, C, K)
        b2=dense((G, C), C * K),
        s2=bn_scale, t2=bn_shift,
    )

    head = dict(
        w1=dense((FEAT_IN, OUT_FEATURE), FEAT_IN),             # fc1
        b1=dense((1, OUT_FEATURE), FEAT_IN),
        w2=dense((OUT_FEATURE, NUM_TYPES), OUT_FEATURE),       # fc2
        b2=dense((1, NUM_TYPES), OUT_FEATURE),
    )
    return dict(encoder=encoder, conv=conv, head=head)


if __name__ == "__main__":
    key = jax.random.PRNGKey(0)
    k_x, k_p = jax.random.split(key)
    X = jax.random.normal(k_x, (B, S, H), jnp.float32)
    params = init_params(k_p)
    fwd = jax.jit(montage_model_forward)
    out = jax.block_until_ready(fwd(X, params))
    assert out.shape == (B, NUM_TYPES)
    assert bool(jnp.all(jnp.isfinite(out)))
    # log_softmax rows must exponentiate-sum to 1
    assert bool(jnp.allclose(jnp.exp(out).sum(axis=1), 1.0, atol=1e-4))
    print("KERNEL_OK")
</pallas_src>

<mosaic_0001>
module attributes {stable_mosaic.version = 11 : i64} {
  func.func @fused_forward_kernel(%arg0: memref<2x4x32xf32, #tpu.memory_space<vmem>>, %arg1: memref<2x32x96xf32, #tpu.memory_space<vmem>>, %arg2: memref<2x32x32xf32, #tpu.memory_space<vmem>>, %arg3: memref<2x2x32xf32, #tpu.memory_space<vmem>>, %arg4: memref<2x32x64xf32, #tpu.memory_space<vmem>>, %arg5: memref<2x1x64xf32, #tpu.memory_space<vmem>>, %arg6: memref<2x64x32xf32, #tpu.memory_space<vmem>>, %arg7: memref<2x1x32xf32, #tpu.memory_space<vmem>>, %arg8: memref<2x2x32xf32, #tpu.memory_space<vmem>>, %arg9: memref<3x4x8xf32, #tpu.memory_space<vmem>>, %arg10: memref<4x8xf32, #tpu.memory_space<vmem>>, %arg11: memref<4x8xf32, #tpu.memory_space<vmem>>, %arg12: memref<4x8xf32, #tpu.memory_space<vmem>>, %arg13: memref<3x4x8x8xf32, #tpu.memory_space<vmem>>, %arg14: memref<4x8xf32, #tpu.memory_space<vmem>>, %arg15: memref<4x8xf32, #tpu.memory_space<vmem>>, %arg16: memref<4x8xf32, #tpu.memory_space<vmem>>, %arg17: memref<256x16xf32, #tpu.memory_space<vmem>>, %arg18: memref<1x16xf32, #tpu.memory_space<vmem>>, %arg19: memref<16x5xf32, #tpu.memory_space<vmem>>, %arg20: memref<1x5xf32, #tpu.memory_space<vmem>>, %arg21: memref<2x5xf32, #tpu.memory_space<vmem>>) attributes {dimension_semantics = [], scalar_prefetch = 0 : i64, scratch_operands = 0 : i64, tpu.core_type = #tpu.core_type<tc>} {
    %c0 = arith.constant 0 : index
    %c0_0 = arith.constant 0 : index
    %c0_1 = arith.constant 0 : index
    %0 = vector.load %arg0[%c0, %c0_0, %c0_1] : memref<2x4x32xf32, #tpu.memory_space<vmem>>, vector<2x4x32xf32>
    %c0_2 = arith.constant 0 : index
    %c0_3 = arith.constant 0 : index
    %c0_4 = arith.constant 0 : index
    %1 = vector.load %arg1[%c0_2, %c0_3, %c0_4] : memref<2x32x96xf32, #tpu.memory_space<vmem>>, vector<1x32x96xf32>
    %2 = vector.shape_cast %1 : vector<1x32x96xf32> to vector<32x96xf32>
    "tpu.trace_start"() <{level = 10 : i32, message = "bsh,hd->bsd"}> : () -> ()
    %cst = arith.constant dense<0.000000e+00> : vector<2x4x96xf32>
    %3 = tpu.matmul %0, %2, %cst {dimension_numbers = #tpu.dot_dimension_numbers<[2], [0], [0, 1], [1], [0, 0, 0, 1, 1, 1], [], []>} : vector<2x4x32xf32>, vector<32x96xf32>, vector<2x4x96xf32> -> vector<2x4x96xf32>
    "tpu.trace_stop"() : () -> ()
    %4 = vector.extract_strided_slice %3 {offsets = [0, 0, 0], sizes = [2, 4, 32], strides = [1, 1, 1]} : vector<2x4x96xf32> to vector<2x4x32xf32>
    %5 = vector.extract_strided_slice %3 {offsets = [0, 0, 32], sizes = [2, 4, 32], strides = [1, 1, 1]} : vector<2x4x96xf32> to vector<2x4x32xf32>
    %6 = vector.extract_strided_slice %3 {offsets = [0, 0, 64], sizes = [2, 4, 32], strides = [1, 1, 1]} : vector<2x4x96xf32> to vector<2x4x32xf32>
    %7 = vector.extract_strided_slice %4 {offsets = [0, 0, 0], sizes = [2, 4, 8], strides = [1, 1, 1]} : vector<2x4x32xf32> to vector<2x4x8xf32>
    %8 = vector.extract_strided_slice %5 {offsets = [0, 0, 0], sizes = [2, 4, 8], strides = [1, 1, 1]} : vector<2x4x32xf32> to vector<2x4x8xf32>
    "tpu.trace_start"() <{level = 10 : i32, message = "bqd,bkd->bqk"}> : () -> ()
    %cst_5 = arith.constant dense<0.000000e+00> : vector<2x4x4xf32>
    %9 = tpu.matmul %7, %8, %cst_5 {dimension_numbers = #tpu.dot_dimension_numbers<[2], [2], [1], [1], [0, 0, 0, 1, 1, 1], [0], [0]>} : vector<2x4x8xf32>, vector<2x4x8xf32>, vector<2x4x4xf32> -> vector<2x4x4xf32>
    "tpu.trace_stop"() : () -> ()
    %cst_6 = arith.constant 0.353553385 : f32
    %10 = vector.broadcast %cst_6 : f32 to vector<2x4x4xf32>
    %11 = arith.mulf %9, %10 : vector<2x4x4xf32>
    %cst_7 = arith.constant dense<0xFF800000> : vector<2x4xf32>
    %12 = vector.multi_reduction <maximumf>, %11, %cst_7 [2] : vector<2x4x4xf32> to vector<2x4xf32>
    %13 = vector.shape_cast %12 : vector<2x4xf32> to vector<2x4x1xf32>
    %14 = vector.broadcast %13 : vector<2x4x1xf32> to vector<2x4x4xf32>
    %15 = arith.subf %11, %14 : vector<2x4x4xf32>
    %16 = math.exp %15 : vector<2x4x4xf32>
    %cst_8 = arith.constant dense<0.000000e+00> : vector<2x4xf32>
    %17 = vector.multi_reduction <add>, %16, %cst_8 [2] : vector<2x4x4xf32> to vector<2x4xf32>
    %18 = vector.shape_cast %17 : vector<2x4xf32> to vector<2x4x1xf32>
    %19 = tpu.reciprocal %18 {approx = true} : vector<2x4x1xf32> -> vector<2x4x1xf32>
    %20 = vector.broadcast %19 : vector<2x4x1xf32> to vector<2x4x4xf32>
    %21 = arith.mulf %16, %20 : vector<2x4x4xf32>
    %22 = vector.extract_strided_slice %6 {offsets = [0, 0, 0], sizes = [2, 4, 8], strides = [1, 1, 1]} : vector<2x4x32xf32> to vector<2x4x8xf32>
    "tpu.trace_start"() <{level = 10 : i32, message = "bqk,bkd->bqd"}> : () -> ()
    %cst_9 = arith.constant dense<0.000000e+00> : vector<2x4x8xf32>
    %23 = tpu.matmul %21, %22, %cst_9 {dimension_numbers = #tpu.dot_dimension_numbers<[2], [1], [1], [2], [0, 0, 0, 1, 1, 2], [0], [0]>} : vector<2x4x4xf32>, vector<2x4x8xf32>, vector<2x4x8xf32> -> vector<2x4x8xf32>
    "tpu.trace_stop"() : () -> ()
    %24 = vector.extract_strided_slice %4 {offsets = [0, 0, 8], sizes = [2, 4, 8], strides = [1, 1, 1]} : vector<2x4x32xf32> to vector<2x4x8xf32>
    %25 = vector.extract_strided_slice %5 {offsets = [0, 0, 8], sizes = [2, 4, 8], strides = [1, 1, 1]} : vector<2x4x32xf32> to vector<2x4x8xf32>
    "tpu.trace_start"() <{level = 10 : i32, message = "bqd,bkd->bqk"}> : () -> ()
    %cst_10 = arith.constant dense<0.000000e+00> : vector<2x4x4xf32>
    %26 = tpu.matmul %24, %25, %cst_10 {dimension_numbers = #tpu.dot_dimension_numbers<[2], [2], [1], [1], [0, 0, 0, 1, 1, 1], [0], [0]>} : vector<2x4x8xf32>, vector<2x4x8xf32>, vector<2x4x4xf32> -> vector<2x4x4xf32>
    "tpu.trace_stop"() : () -> ()
    %cst_11 = arith.constant 0.353553385 : f32
    %27 = vector.broadcast %cst_11 : f32 to vector<2x4x4xf32>
    %28 = arith.mulf %26, %27 : vector<2x4x4xf32>
    %cst_12 = arith.constant dense<0xFF800000> : vector<2x4xf32>
    %29 = vector.multi_reduction <maximumf>, %28, %cst_12 [2] : vector<2x4x4xf32> to vector<2x4xf32>
    %30 = vector.shape_cast %29 : vector<2x4xf32> to vector<2x4x1xf32>
    %31 = vector.broadcast %30 : vector<2x4x1xf32> to vector<2x4x4xf32>
    %32 = arith.subf %28, %31 : vector<2x4x4xf32>
    %33 = math.exp %32 : vector<2x4x4xf32>
    %cst_13 = arith.constant dense<0.000000e+00> : vector<2x4xf32>
    %34 = vector.multi_reduction <add>, %33, %cst_13 [2] : vector<2x4x4xf32> to vector<2x4xf32>
    %35 = vector.shape_cast %34 : vector<2x4xf32> to vector<2x4x1xf32>
    %36 = tpu.reciprocal %35 {approx = true} : vector<2x4x1xf32> -> vector<2x4x1xf32>
    %37 = vector.broadcast %36 : vector<2x4x1xf32> to vector<2x4x4xf32>
    %38 = arith.mulf %33, %37 : vector<2x4x4xf32>
    %39 = vector.extract_strided_slice %6 {offsets = [0, 0, 8], sizes = [2, 4, 8], strides = [1, 1, 1]} : vector<2x4x32xf32> to vector<2x4x8xf32>
    "tpu.trace_start"() <{level = 10 : i32, message = "bqk,bkd->bqd"}> : () -> ()
    %cst_14 = arith.constant dense<0.000000e+00> : vector<2x4x8xf32>
    %40 = tpu.matmul %38, %39, %cst_14 {dimension_numbers = #tpu.dot_dimension_numbers<[2], [1], [1], [2], [0, 0, 0, 1, 1, 2], [0], [0]>} : vector<2x4x4xf32>, vector<2x4x8xf32>, vector<2x4x8xf32> -> vector<2x4x8xf32>
    "tpu.trace_stop"() : () -> ()
    %41 = vector.extract_strided_slice %4 {offsets = [0, 0, 16], sizes = [2, 4, 8], strides = [1, 1, 1]} : vector<2x4x32xf32> to vector<2x4x8xf32>
    %42 = vector.extract_strided_slice %5 {offsets = [0, 0, 16], sizes = [2, 4, 8], strides = [1, 1, 1]} : vector<2x4x32xf32> to vector<2x4x8xf32>
    "tpu.trace_start"() <{level = 10 : i32, message = "bqd,bkd->bqk"}> : () -> ()
    %cst_15 = arith.constant dense<0.000000e+00> : vector<2x4x4xf32>
    %43 = tpu.matmul %41, %42, %cst_15 {dimension_numbers = #tpu.dot_dimension_numbers<[2], [2], [1], [1], [0, 0, 0, 1, 1, 1], [0], [0]>} : vector<2x4x8xf32>, vector<2x4x8xf32>, vector<2x4x4xf32> -> vector<2x4x4xf32>
    "tpu.trace_stop"() : () -> ()
    %cst_16 = arith.constant 0.353553385 : f32
    %44 = vector.broadcast %cst_16 : f32 to vector<2x4x4xf32>
    %45 = arith.mulf %43, %44 : vector<2x4x4xf32>
    %cst_17 = arith.constant dense<0xFF800000> : vector<2x4xf32>
    %46 = vector.multi_reduction <maximumf>, %45, %cst_17 [2] : vector<2x4x4xf32> to vector<2x4xf32>
    %47 = vector.shape_cast %46 : vector<2x4xf32> to vector<2x4x1xf32>
    %48 = vector.broadcast %47 : vector<2x4x1xf32> to vector<2x4x4xf32>
    %49 = arith.subf %45, %48 : vector<2x4x4xf32>
    %50 = math.exp %49 : vector<2x4x4xf32>
    %cst_18 = arith.constant dense<0.000000e+00> : vector<2x4xf32>
    %51 = vector.multi_reduction <add>, %50, %cst_18 [2] : vector<2x4x4xf32> to vector<2x4xf32>
    %52 = vector.shape_cast %51 : vector<2x4xf32> to vector<2x4x1xf32>
    %53 = tpu.reciprocal %52 {approx = true} : vector<2x4x1xf32> -> vector<2x4x1xf32>
    %54 = vector.broadcast %53 : vector<2x4x1xf32> to vector<2x4x4xf32>
    %55 = arith.mulf %50, %54 : vector<2x4x4xf32>
    %56 = vector.extract_strided_slice %6 {offsets = [0, 0, 16], sizes = [2, 4, 8], strides = [1, 1, 1]} : vector<2x4x32xf32> to vector<2x4x8xf32>
    "tpu.trace_start"() <{level = 10 : i32, message = "bqk,bkd->bqd"}> : () -> ()
    %cst_19 = arith.constant dense<0.000000e+00> : vector<2x4x8xf32>
    %57 = tpu.matmul %55, %56, %cst_19 {dimension_numbers = #tpu.dot_dimension_numbers<[2], [1], [1], [2], [0, 0, 0, 1, 1, 2], [0], [0]>} : vector<2x4x4xf32>, vector<2x4x8xf32>, vector<2x4x8xf32> -> vector<2x4x8xf32>
    "tpu.trace_stop"() : () -> ()
    %58 = vector.extract_strided_slice %4 {offsets = [0, 0, 24], sizes = [2, 4, 8], strides = [1, 1, 1]} : vector<2x4x32xf32> to vector<2x4x8xf32>
    %59 = vector.extract_strided_slice %5 {offsets = [0, 0, 24], sizes = [2, 4, 8], strides = [1, 1, 1]} : vector<2x4x32xf32> to vector<2x4x8xf32>
    "tpu.trace_start"() <{level = 10 : i32, message = "bqd,bkd->bqk"}> : () -> ()
    %cst_20 = arith.constant dense<0.000000e+00> : vector<2x4x4xf32>
    %60 = tpu.matmul %58, %59, %cst_20 {dimension_numbers = #tpu.dot_dimension_numbers<[2], [2], [1], [1], [0, 0, 0, 1, 1, 1], [0], [0]>} : vector<2x4x8xf32>, vector<2x4x8xf32>, vector<2x4x4xf32> -> vector<2x4x4xf32>
    "tpu.trace_stop"() : () -> ()
    %cst_21 = arith.constant 0.353553385 : f32
    %61 = vector.broadcast %cst_21 : f32 to vector<2x4x4xf32>
    %62 = arith.mulf %60, %61 : vector<2x4x4xf32>
    %cst_22 = arith.constant dense<0xFF800000> : vector<2x4xf32>
    %63 = vector.multi_reduction <maximumf>, %62, %cst_22 [2] : vector<2x4x4xf32> to vector<2x4xf32>
    %64 = vector.shape_cast %63 : vector<2x4xf32> to vector<2x4x1xf32>
    %65 = vector.broadcast %64 : vector<2x4x1xf32> to vector<2x4x4xf32>
    %66 = arith.subf %62, %65 : vector<2x4x4xf32>
    %67 = math.exp %66 : vector<2x4x4xf32>
    %cst_23 = arith.constant dense<0.000000e+00> : vector<2x4xf32>
    %68 = vector.multi_reduction <add>, %67, %cst_23 [2] : vector<2x4x4xf32> to vector<2x4xf32>
    %69 = vector.shape_cast %68 : vector<2x4xf32> to vector<2x4x1xf32>
    %70 = tpu.reciprocal %69 {approx = true} : vector<2x4x1xf32> -> vector<2x4x1xf32>
    %71 = vector.broadcast %70 : vector<2x4x1xf32> to vector<2x4x4xf32>
    %72 = arith.mulf %67, %71 : vector<2x4x4xf32>
    %73 = vector.extract_strided_slice %6 {offsets = [0, 0, 24], sizes = [2, 4, 8], strides = [1, 1, 1]} : vector<2x4x32xf32> to vector<2x4x8xf32>
    "tpu.trace_start"() <{level = 10 : i32, message = "bqk,bkd->bqd"}> : () -> ()
    %cst_24 = arith.constant dense<0.000000e+00> : vector<2x4x8xf32>
    %74 = tpu.matmul %72, %73, %cst_24 {dimension_numbers = #tpu.dot_dimension_numbers<[2], [1], [1], [2], [0, 0, 0, 1, 1, 2], [0], [0]>} : vector<2x4x4xf32>, vector<2x4x8xf32>, vector<2x4x8xf32> -> vector<2x4x8xf32>
    "tpu.trace_stop"() : () -> ()
    %75 = tpu.concatenate %23, %40, %57, %74 in 2 : vector<2x4x8xf32>, vector<2x4x8xf32>, vector<2x4x8xf32>, vector<2x4x8xf32> -> vector<2x4x32xf32>
    %c0_25 = arith.constant 0 : index
    %c0_26 = arith.constant 0 : index
    %c0_27 = arith.constant 0 : index
    %76 = vector.load %arg2[%c0_25, %c0_26, %c0_27] : memref<2x32x32xf32, #tpu.memory_space<vmem>>, vector<1x32x32xf32>
    %77 = vector.shape_cast %76 : vector<1x32x32xf32> to vector<32x32xf32>
    "tpu.trace_start"() <{level = 10 : i32, message = "bsh,hd->bsd"}> : () -> ()
    %cst_28 = arith.constant dense<0.000000e+00> : vector<2x4x32xf32>
    %78 = tpu.matmul %75, %77, %cst_28 {dimension_numbers = #tpu.dot_dimension_numbers<[2], [0], [0, 1], [1], [0, 0, 0, 1, 1, 1], [], []>} : vector<2x4x32xf32>, vector<32x32xf32>, vector<2x4x32xf32> -> vector<2x4x32xf32>
    "tpu.trace_stop"() : () -> ()
    %c0_29 = arith.constant 0 : index
    %c0_30 = arith.constant 0 : index
    %c0_31 = arith.constant 0 : index
    %79 = vector.load %arg3[%c0_29, %c0_30, %c0_31] : memref<2x2x32xf32, #tpu.memory_space<vmem>>, vector<1x2x32xf32>
    %80 = vector.shape_cast %79 : vector<1x2x32xf32> to vector<2x32xf32>
    %81 = arith.addf %0, %78 : vector<2x4x32xf32>
    %82 = vector.extract_strided_slice %80 {offsets = [0, 0], sizes = [1, 32], strides = [1, 1]} : vector<2x32xf32> to vector<1x32xf32>
    %83 = vector.extract_strided_slice %80 {offsets = [1, 0], sizes = [1, 32], strides = [1, 1]} : vector<2x32xf32> to vector<1x32xf32>
    %cst_32 = arith.constant dense<0.000000e+00> : vector<2x4xf32>
    %84 = vector.multi_reduction <add>, %81, %cst_32 [2] : vector<2x4x32xf32> to vector<2x4xf32>
    %85 = vector.shape_cast %84 : vector<2x4xf32> to vector<2x4x1xf32>
    %cst_33 = arith.constant 3.200000e+01 : f32
    %86 = vector.broadcast %cst_33 : f32 to vector<2x4x1xf32>
    %87 = arith.divf %85, %86 : vector<2x4x1xf32>
    %88 = vector.broadcast %87 : vector<2x4x1xf32> to vector<2x4x32xf32>
    %89 = arith.subf %81, %88 : vector<2x4x32xf32>
    %90 = arith.mulf %89, %89 : vector<2x4x32xf32>
    %cst_34 = arith.constant dense<0.000000e+00> : vector<2x4xf32>
    %91 = vector.multi_reduction <add>, %90, %cst_34 [2] : vector<2x4x32xf32> to vector<2x4xf32>
    %92 = vector.shape_cast %91 : vector<2x4xf32> to vector<2x4x1xf32>
    %cst_35 = arith.constant 3.200000e+01 : f32
    %93 = vector.broadcast %cst_35 : f32 to vector<2x4x1xf32>
    %94 = arith.divf %92, %93 : vector<2x4x1xf32>
    %95 = vector.broadcast %87 : vector<2x4x1xf32> to vector<2x4x32xf32>
    %96 = arith.subf %81, %95 : vector<2x4x32xf32>
    %cst_36 = arith.constant 9.99999974E-6 : f32
    %97 = vector.broadcast %cst_36 : f32 to vector<2x4x1xf32>
    %98 = arith.addf %94, %97 : vector<2x4x1xf32>
    %99 = math.rsqrt %98 : vector<2x4x1xf32>
    %100 = vector.broadcast %99 : vector<2x4x1xf32> to vector<2x4x32xf32>
    %101 = arith.mulf %96, %100 : vector<2x4x32xf32>
    %102 = vector.shape_cast %82 : vector<1x32xf32> to vector<1x1x32xf32>
    %103 = vector.broadcast %102 : vector<1x1x32xf32> to vector<2x4x32xf32>
    %104 = arith.mulf %101, %103 : vector<2x4x32xf32>
    %105 = vector.shape_cast %83 : vector<1x32xf32> to vector<1x1x32xf32>
    %106 = vector.broadcast %105 : vector<1x1x32xf32> to vector<2x4x32xf32>
    %107 = arith.addf %104, %106 : vector<2x4x32xf32>
    %c0_37 = arith.constant 0 : index
    %c0_38 = arith.constant 0 : index
    %c0_39 = arith.constant 0 : index
    %108 = vector.load %arg4[%c0_37, %c0_38, %c0_39] : memref<2x32x64xf32, #tpu.memory_space<vmem>>, vector<1x32x64xf32>
    %109 = vector.shape_cast %108 : vector<1x32x64xf32> to vector<32x64xf32>
    "tpu.trace_start"() <{level = 10 : i32, message = "bsh,hf->bsf"}> : () -> ()
    %cst_40 = arith.constant dense<0.000000e+00> : vector<2x4x64xf32>
    %110 = tpu.matmul %107, %109, %cst_40 {dimension_numbers = #tpu.dot_dimension_numbers<[2], [0], [0, 1], [1], [0, 0, 0, 1, 1, 1], [], []>} : vector<2x4x32xf32>, vector<32x64xf32>, vector<2x4x64xf32> -> vector<2x4x64xf32>
    "tpu.trace_stop"() : () -> ()
    %c0_41 = arith.constant 0 : index
    %c0_42 = arith.constant 0 : index
    %c0_43 = arith.constant 0 : index
    %111 = vector.load %arg5[%c0_41, %c0_42, %c0_43] : memref<2x1x64xf32, #tpu.memory_space<vmem>>, vector<1x1x64xf32>
    %112 = vector.shape_cast %111 : vector<1x1x64xf32> to vector<1x64xf32>
    %113 = vector.shape_cast %112 : vector<1x64xf32> to vector<1x1x64xf32>
    %114 = vector.broadcast %113 : vector<1x1x64xf32> to vector<2x4x64xf32>
    %115 = arith.addf %110, %114 : vector<2x4x64xf32>
    %cst_44 = arith.constant 0.000000e+00 : f32
    %116 = vector.broadcast %cst_44 : f32 to vector<2x4x64xf32>
    %117 = arith.maximumf %115, %116 : vector<2x4x64xf32>
    %c0_45 = arith.constant 0 : index
    %c0_46 = arith.constant 0 : index
    %c0_47 = arith.constant 0 : index
    %118 = vector.load %arg6[%c0_45, %c0_46, %c0_47] : memref<2x64x32xf32, #tpu.memory_space<vmem>>, vector<1x64x32xf32>
    %119 = vector.shape_cast %118 : vector<1x64x32xf32> to vector<64x32xf32>
    "tpu.trace_start"() <{level = 10 : i32, message = "bsf,fh->bsh"}> : () -> ()
    %cst_48 = arith.constant dense<0.000000e+00> : vector<2x4x32xf32>
    %120 = tpu.matmul %117, %119, %cst_48 {dimension_numbers = #tpu.dot_dimension_numbers<[2], [0], [0, 1], [1], [0, 0, 0, 1, 1, 1], [], []>} : vector<2x4x64xf32>, vector<64x32xf32>, vector<2x4x32xf32> -> vector<2x4x32xf32>
    "tpu.trace_stop"() : () -> ()
    %c0_49 = arith.constant 0 : index
    %c0_50 = arith.constant 0 : index
    %c0_51 = arith.constant 0 : index
    %121 = vector.load %arg7[%c0_49, %c0_50, %c0_51] : memref<2x1x32xf32, #tpu.memory_space<vmem>>, vector<1x1x32xf32>
    %122 = vector.shape_cast %121 : vector<1x1x32xf32> to vector<1x32xf32>
    %123 = vector.shape_cast %122 : vector<1x32xf32> to vector<1x1x32xf32>
    %124 = vector.broadcast %123 : vector<1x1x32xf32> to vector<2x4x32xf32>
    %125 = arith.addf %120, %124 : vector<2x4x32xf32>
    %c0_52 = arith.constant 0 : index
    %c0_53 = arith.constant 0 : index
    %c0_54 = arith.constant 0 : index
    %126 = vector.load %arg8[%c0_52, %c0_53, %c0_54] : memref<2x2x32xf32, #tpu.memory_space<vmem>>, vector<1x2x32xf32>
    %127 = vector.shape_cast %126 : vector<1x2x32xf32> to vector<2x32xf32>
    %128 = arith.addf %107, %125 : vector<2x4x32xf32>
    %129 = vector.extract_strided_slice %127 {offsets = [0, 0], sizes = [1, 32], strides = [1, 1]} : vector<2x32xf32> to vector<1x32xf32>
    %130 = vector.extract_strided_slice %127 {offsets = [1, 0], sizes = [1, 32], strides = [1, 1]} : vector<2x32xf32> to vector<1x32xf32>
    %cst_55 = arith.constant dense<0.000000e+00> : vector<2x4xf32>
    %131 = vector.multi_reduction <add>, %128, %cst_55 [2] : vector<2x4x32xf32> to vector<2x4xf32>
    %132 = vector.shape_cast %131 : vector<2x4xf32> to vector<2x4x1xf32>
    %cst_56 = arith.constant 3.200000e+01 : f32
    %133 = vector.broadcast %cst_56 : f32 to vector<2x4x1xf32>
    %134 = arith.divf %132, %133 : vector<2x4x1xf32>
    %135 = vector.broadcast %134 : vector<2x4x1xf32> to vector<2x4x32xf32>
    %136 = arith.subf %128, %135 : vector<2x4x32xf32>
    %137 = arith.mulf %136, %136 : vector<2x4x32xf32>
    %cst_57 = arith.constant dense<0.000000e+00> : vector<2x4xf32>
    %138 = vector.multi_reduction <add>, %137, %cst_57 [2] : vector<2x4x32xf32> to vector<2x4xf32>
    %139 = vector.shape_cast %138 : vector<2x4xf32> to vector<2x4x1xf32>
    %cst_58 = arith.constant 3.200000e+01 : f32
    %140 = vector.broadcast %cst_58 : f32 to vector<2x4x1xf32>
    %141 = arith.divf %139, %140 : vector<2x4x1xf32>
    %142 = vector.broadcast %134 : vector<2x4x1xf32> to vector<2x4x32xf32>
    %143 = arith.subf %128, %142 : vector<2x4x32xf32>
    %cst_59 = arith.constant 9.99999974E-6 : f32
    %144 = vector.broadcast %cst_59 : f32 to vector<2x4x1xf32>
    %145 = arith.addf %141, %144 : vector<2x4x1xf32>
    %146 = math.rsqrt %145 : vector<2x4x1xf32>
    %147 = vector.broadcast %146 : vector<2x4x1xf32> to vector<2x4x32xf32>
    %148 = arith.mulf %143, %147 : vector<2x4x32xf32>
    %149 = vector.shape_cast %129 : vector<1x32xf32> to vector<1x1x32xf32>
    %150 = vector.broadcast %149 : vector<1x1x32xf32> to vector<2x4x32xf32>
    %151 = arith.mulf %148, %150 : vector<2x4x32xf32>
    %152 = vector.shape_cast %130 : vector<1x32xf32> to vector<1x1x32xf32>
    %153 = vector.broadcast %152 : vector<1x1x32xf32> to vector<2x4x32xf32>
    %154 = arith.addf %151, %153 : vector<2x4x32xf32>
    %c1 = arith.constant 1 : index
    %c0_60 = arith.constant 0 : index
    %c0_61 = arith.constant 0 : index
    %155 = vector.load %arg1[%c1, %c0_60, %c0_61] : memref<2x32x96xf32, #tpu.memory_space<vmem>>, vector<1x32x96xf32>
    %156 = vector.shape_cast %155 : vector<1x32x96xf32> to vector<32x96xf32>
    "tpu.trace_start"() <{level = 10 : i32, message = "bsh,hd->bsd"}> : () -> ()
    %cst_62 = arith.constant dense<0.000000e+00> : vector<2x4x96xf32>
    %157 = tpu.matmul %154, %156, %cst_62 {dimension_numbers = #tpu.dot_dimension_numbers<[2], [0], [0, 1], [1], [0, 0, 0, 1, 1, 1], [], []>} : vector<2x4x32xf32>, vector<32x96xf32>, vector<2x4x96xf32> -> vector<2x4x96xf32>
    "tpu.trace_stop"() : () -> ()
    %158 = vector.extract_strided_slice %157 {offsets = [0, 0, 0], sizes = [2, 4, 32], strides = [1, 1, 1]} : vector<2x4x96xf32> to vector<2x4x32xf32>
    %159 = vector.extract_strided_slice %157 {offsets = [0, 0, 32], sizes = [2, 4, 32], strides = [1, 1, 1]} : vector<2x4x96xf32> to vector<2x4x32xf32>
    %160 = vector.extract_strided_slice %157 {offsets = [0, 0, 64], sizes = [2, 4, 32], strides = [1, 1, 1]} : vector<2x4x96xf32> to vector<2x4x32xf32>
    %161 = vector.extract_strided_slice %158 {offsets = [0, 0, 0], sizes = [2, 4, 8], strides = [1, 1, 1]} : vector<2x4x32xf32> to vector<2x4x8xf32>
    %162 = vector.extract_strided_slice %159 {offsets = [0, 0, 0], sizes = [2, 4, 8], strides = [1, 1, 1]} : vector<2x4x32xf32> to vector<2x4x8xf32>
    "tpu.trace_start"() <{level = 10 : i32, message = "bqd,bkd->bqk"}> : () -> ()
    %cst_63 = arith.constant dense<0.000000e+00> : vector<2x4x4xf32>
    %163 = tpu.matmul %161, %162, %cst_63 {dimension_numbers = #tpu.dot_dimension_numbers<[2], [2], [1], [1], [0, 0, 0, 1, 1, 1], [0], [0]>} : vector<2x4x8xf32>, vector<2x4x8xf32>, vector<2x4x4xf32> -> vector<2x4x4xf32>
    "tpu.trace_stop"() : () -> ()
    %cst_64 = arith.constant 0.353553385 : f32
    %164 = vector.broadcast %cst_64 : f32 to vector<2x4x4xf32>
    %165 = arith.mulf %163, %164 : vector<2x4x4xf32>
    %cst_65 = arith.constant dense<0xFF800000> : vector<2x4xf32>
    %166 = vector.multi_reduction <maximumf>, %165, %cst_65 [2] : vector<2x4x4xf32> to vector<2x4xf32>
    %167 = vector.shape_cast %166 : vector<2x4xf32> to vector<2x4x1xf32>
    %168 = vector.broadcast %167 : vector<2x4x1xf32> to vector<2x4x4xf32>
    %169 = arith.subf %165, %168 : vector<2x4x4xf32>
    %170 = math.exp %169 : vector<2x4x4xf32>
    %cst_66 = arith.constant dense<0.000000e+00> : vector<2x4xf32>
    %171 = vector.multi_reduction <add>, %170, %cst_66 [2] : vector<2x4x4xf32> to vector<2x4xf32>
    %172 = vector.shape_cast %171 : vector<2x4xf32> to vector<2x4x1xf32>
    %173 = tpu.reciprocal %172 {approx = true} : vector<2x4x1xf32> -> vector<2x4x1xf32>
    %174 = vector.broadcast %173 : vector<2x4x1xf32> to vector<2x4x4xf32>
    %175 = arith.mulf %170, %174 : vector<2x4x4xf32>
    %176 = vector.extract_strided_slice %160 {offsets = [0, 0, 0], sizes = [2, 4, 8], strides = [1, 1, 1]} : vector<2x4x32xf32> to vector<2x4x8xf32>
    "tpu.trace_start"() <{level = 10 : i32, message = "bqk,bkd->bqd"}> : () -> ()
    %cst_67 = arith.constant dense<0.000000e+00> : vector<2x4x8xf32>
    %177 = tpu.matmul %175, %176, %cst_67 {dimension_numbers = #tpu.dot_dimension_numbers<[2], [1], [1], [2], [0, 0, 0, 1, 1, 2], [0], [0]>} : vector<2x4x4xf32>, vector<2x4x8xf32>, vector<2x4x8xf32> -> vector<2x4x8xf32>
    "tpu.trace_stop"() : () -> ()
    %178 = vector.extract_strided_slice %158 {offsets = [0, 0, 8], sizes = [2, 4, 8], strides = [1, 1, 1]} : vector<2x4x32xf32> to vector<2x4x8xf32>
    %179 = vector.extract_strided_slice %159 {offsets = [0, 0, 8], sizes = [2, 4, 8], strides = [1, 1, 1]} : vector<2x4x32xf32> to vector<2x4x8xf32>
    "tpu.trace_start"() <{level = 10 : i32, message = "bqd,bkd->bqk"}> : () -> ()
    %cst_68 = arith.constant dense<0.000000e+00> : vector<2x4x4xf32>
    %180 = tpu.matmul %178, %179, %cst_68 {dimension_numbers = #tpu.dot_dimension_numbers<[2], [2], [1], [1], [0, 0, 0, 1, 1, 1], [0], [0]>} : vector<2x4x8xf32>, vector<2x4x8xf32>, vector<2x4x4xf32> -> vector<2x4x4xf32>
    "tpu.trace_stop"() : () -> ()
    %cst_69 = arith.constant 0.353553385 : f32
    %181 = vector.broadcast %cst_69 : f32 to vector<2x4x4xf32>
    %182 = arith.mulf %180, %181 : vector<2x4x4xf32>
    %cst_70 = arith.constant dense<0xFF800000> : vector<2x4xf32>
    %183 = vector.multi_reduction <maximumf>, %182, %cst_70 [2] : vector<2x4x4xf32> to vector<2x4xf32>
    %184 = vector.shape_cast %183 : vector<2x4xf32> to vector<2x4x1xf32>
    %185 = vector.broadcast %184 : vector<2x4x1xf32> to vector<2x4x4xf32>
    %186 = arith.subf %182, %185 : vector<2x4x4xf32>
    %187 = math.exp %186 : vector<2x4x4xf32>
    %cst_71 = arith.constant dense<0.000000e+00> : vector<2x4xf32>
    %188 = vector.multi_reduction <add>, %187, %cst_71 [2] : vector<2x4x4xf32> to vector<2x4xf32>
    %189 = vector.shape_cast %188 : vector<2x4xf32> to vector<2x4x1xf32>
    %190 = tpu.reciprocal %189 {approx = true} : vector<2x4x1xf32> -> vector<2x4x1xf32>
    %191 = vector.broadcast %190 : vector<2x4x1xf32> to vector<2x4x4xf32>
    %192 = arith.mulf %187, %191 : vector<2x4x4xf32>
    %193 = vector.extract_strided_slice %160 {offsets = [0, 0, 8], sizes = [2, 4, 8], strides = [1, 1, 1]} : vector<2x4x32xf32> to vector<2x4x8xf32>
    "tpu.trace_start"() <{level = 10 : i32, message = "bqk,bkd->bqd"}> : () -> ()
    %cst_72 = arith.constant dense<0.000000e+00> : vector<2x4x8xf32>
    %194 = tpu.matmul %192, %193, %cst_72 {dimension_numbers = #tpu.dot_dimension_numbers<[2], [1], [1], [2], [0, 0, 0, 1, 1, 2], [0], [0]>} : vector<2x4x4xf32>, vector<2x4x8xf32>, vector<2x4x8xf32> -> vector<2x4x8xf32>
    "tpu.trace_stop"() : () -> ()
    %195 = vector.extract_strided_slice %158 {offsets = [0, 0, 16], sizes = [2, 4, 8], strides = [1, 1, 1]} : vector<2x4x32xf32> to vector<2x4x8xf32>
    %196 = vector.extract_strided_slice %159 {offsets = [0, 0, 16], sizes = [2, 4, 8], strides = [1, 1, 1]} : vector<2x4x32xf32> to vector<2x4x8xf32>
    "tpu.trace_start"() <{level = 10 : i32, message = "bqd,bkd->bqk"}> : () -> ()
    %cst_73 = arith.constant dense<0.000000e+00> : vector<2x4x4xf32>
    %197 = tpu.matmul %195, %196, %cst_73 {dimension_numbers = #tpu.dot_dimension_numbers<[2], [2], [1], [1], [0, 0, 0, 1, 1, 1], [0], [0]>} : vector<2x4x8xf32>, vector<2x4x8xf32>, vector<2x4x4xf32> -> vector<2x4x4xf32>
    "tpu.trace_stop"() : () -> ()
    %cst_74 = arith.constant 0.353553385 : f32
    %198 = vector.broadcast %cst_74 : f32 to vector<2x4x4xf32>
    %199 = arith.mulf %197, %198 : vector<2x4x4xf32>
    %cst_75 = arith.constant dense<0xFF800000> : vector<2x4xf32>
    %200 = vector.multi_reduction <maximumf>, %199, %cst_75 [2] : vector<2x4x4xf32> to vector<2x4xf32>
    %201 = vector.shape_cast %200 : vector<2x4xf32> to vector<2x4x1xf32>
    %202 = vector.broadcast %201 : vector<2x4x1xf32> to vector<2x4x4xf32>
    %203 = arith.subf %199, %202 : vector<2x4x4xf32>
    %204 = math.exp %203 : vector<2x4x4xf32>
    %cst_76 = arith.constant dense<0.000000e+00> : vector<2x4xf32>
    %205 = vector.multi_reduction <add>, %204, %cst_76 [2] : vector<2x4x4xf32> to vector<2x4xf32>
    %206 = vector.shape_cast %205 : vector<2x4xf32> to vector<2x4x1xf32>
    %207 = tpu.reciprocal %206 {approx = true} : vector<2x4x1xf32> -> vector<2x4x1xf32>
    %208 = vector.broadcast %207 : vector<2x4x1xf32> to vector<2x4x4xf32>
    %209 = arith.mulf %204, %208 : vector<2x4x4xf32>
    %210 = vector.extract_strided_slice %160 {offsets = [0, 0, 16], sizes = [2, 4, 8], strides = [1, 1, 1]} : vector<2x4x32xf32> to vector<2x4x8xf32>
    "tpu.trace_start"() <{level = 10 : i32, message = "bqk,bkd->bqd"}> : () -> ()
    %cst_77 = arith.constant dense<0.000000e+00> : vector<2x4x8xf32>
    %211 = tpu.matmul %209, %210, %cst_77 {dimension_numbers = #tpu.dot_dimension_numbers<[2], [1], [1], [2], [0, 0, 0, 1, 1, 2], [0], [0]>} : vector<2x4x4xf32>, vector<2x4x8xf32>, vector<2x4x8xf32> -> vector<2x4x8xf32>
    "tpu.trace_stop"() : () -> ()
    %212 = vector.extract_strided_slice %158 {offsets = [0, 0, 24], sizes = [2, 4, 8], strides = [1, 1, 1]} : vector<2x4x32xf32> to vector<2x4x8xf32>
    %213 = vector.extract_strided_slice %159 {offsets = [0, 0, 24], sizes = [2, 4, 8], strides = [1, 1, 1]} : vector<2x4x32xf32> to vector<2x4x8xf32>
    "tpu.trace_start"() <{level = 10 : i32, message = "bqd,bkd->bqk"}> : () -> ()
    %cst_78 = arith.constant dense<0.000000e+00> : vector<2x4x4xf32>
    %214 = tpu.matmul %212, %213, %cst_78 {dimension_numbers = #tpu.dot_dimension_numbers<[2], [2], [1], [1], [0, 0, 0, 1, 1, 1], [0], [0]>} : vector<2x4x8xf32>, vector<2x4x8xf32>, vector<2x4x4xf32> -> vector<2x4x4xf32>
    "tpu.trace_stop"() : () -> ()
    %cst_79 = arith.constant 0.353553385 : f32
    %215 = vector.broadcast %cst_79 : f32 to vector<2x4x4xf32>
    %216 = arith.mulf %214, %215 : vector<2x4x4xf32>
    %cst_80 = arith.constant dense<0xFF800000> : vector<2x4xf32>
    %217 = vector.multi_reduction <maximumf>, %216, %cst_80 [2] : vector<2x4x4xf32> to vector<2x4xf32>
    %218 = vector.shape_cast %217 : vector<2x4xf32> to vector<2x4x1xf32>
    %219 = vector.broadcast %218 : vector<2x4x1xf32> to vector<2x4x4xf32>
    %220 = arith.subf %216, %219 : vector<2x4x4xf32>
    %221 = math.exp %220 : vector<2x4x4xf32>
    %cst_81 = arith.constant dense<0.000000e+00> : vector<2x4xf32>
    %222 = vector.multi_reduction <add>, %221, %cst_81 [2] : vector<2x4x4xf32> to vector<2x4xf32>
    %223 = vector.shape_cast %222 : vector<2x4xf32> to vector<2x4x1xf32>
    %224 = tpu.reciprocal %223 {approx = true} : vector<2x4x1xf32> -> vector<2x4x1xf32>
    %225 = vector.broadcast %224 : vector<2x4x1xf32> to vector<2x4x4xf32>
    %226 = arith.mulf %221, %225 : vector<2x4x4xf32>
    %227 = vector.extract_strided_slice %160 {offsets = [0, 0, 24], sizes = [2, 4, 8], strides = [1, 1, 1]} : vector<2x4x32xf32> to vector<2x4x8xf32>
    "tpu.trace_start"() <{level = 10 : i32, message = "bqk,bkd->bqd"}> : () -> ()
    %cst_82 = arith.constant dense<0.000000e+00> : vector<2x4x8xf32>
    %228 = tpu.matmul %226, %227, %cst_82 {dimension_numbers = #tpu.dot_dimension_numbers<[2], [1], [1], [2], [0, 0, 0, 1, 1, 2], [0], [0]>} : vector<2x4x4xf32>, vector<2x4x8xf32>, vector<2x4x8xf32> -> vector<2x4x8xf32>
    "tpu.trace_stop"() : () -> ()
    %229 = tpu.concatenate %177, %194, %211, %228 in 2 : vector<2x4x8xf32>, vector<2x4x8xf32>, vector<2x4x8xf32>, vector<2x4x8xf32> -> vector<2x4x32xf32>
    %c1_83 = arith.constant 1 : index
    %c0_84 = arith.constant 0 : index
    %c0_85 = arith.constant 0 : index
    %230 = vector.load %arg2[%c1_83, %c0_84, %c0_85] : memref<2x32x32xf32, #tpu.memory_space<vmem>>, vector<1x32x32xf32>
    %231 = vector.shape_cast %230 : vector<1x32x32xf32> to vector<32x32xf32>
    "tpu.trace_start"() <{level = 10 : i32, message = "bsh,hd->bsd"}> : () -> ()
    %cst_86 = arith.constant dense<0.000000e+00> : vector<2x4x32xf32>
    %232 = tpu.matmul %229, %231, %cst_86 {dimension_numbers = #tpu.dot_dimension_numbers<[2], [0], [0, 1], [1], [0, 0, 0, 1, 1, 1], [], []>} : vector<2x4x32xf32>, vector<32x32xf32>, vector<2x4x32xf32> -> vector<2x4x32xf32>
    "tpu.trace_stop"() : () -> ()
    %c1_87 = arith.constant 1 : index
    %c0_88 = arith.constant 0 : index
    %c0_89 = arith.constant 0 : index
    %233 = vector.load %arg3[%c1_87, %c0_88, %c0_89] : memref<2x2x32xf32, #tpu.memory_space<vmem>>, vector<1x2x32xf32>
    %234 = vector.shape_cast %233 : vector<1x2x32xf32> to vector<2x32xf32>
    %235 = arith.addf %154, %232 : vector<2x4x32xf32>
    %236 = vector.extract_strided_slice %234 {offsets = [0, 0], sizes = [1, 32], strides = [1, 1]} : vector<2x32xf32> to vector<1x32xf32>
    %237 = vector.extract_strided_slice %234 {offsets = [1, 0], sizes = [1, 32], strides = [1, 1]} : vector<2x32xf32> to vector<1x32xf32>
    %cst_90 = arith.constant dense<0.000000e+00> : vector<2x4xf32>
    %238 = vector.multi_reduction <add>, %235, %cst_90 [2] : vector<2x4x32xf32> to vector<2x4xf32>
    %239 = vector.shape_cast %238 : vector<2x4xf32> to vector<2x4x1xf32>
    %cst_91 = arith.constant 3.200000e+01 : f32
    %240 = vector.broadcast %cst_91 : f32 to vector<2x4x1xf32>
    %241 = arith.divf %239, %240 : vector<2x4x1xf32>
    %242 = vector.broadcast %241 : vector<2x4x1xf32> to vector<2x4x32xf32>
    %243 = arith.subf %235, %242 : vector<2x4x32xf32>
    %244 = arith.mulf %243, %243 : vector<2x4x32xf32>
    %cst_92 = arith.constant dense<0.000000e+00> : vector<2x4xf32>
    %245 = vector.multi_reduction <add>, %244, %cst_92 [2] : vector<2x4x32xf32> to vector<2x4xf32>
    %246 = vector.shape_cast %245 : vector<2x4xf32> to vector<2x4x1xf32>
    %cst_93 = arith.constant 3.200000e+01 : f32
    %247 = vector.broadcast %cst_93 : f32 to vector<2x4x1xf32>
    %248 = arith.divf %246, %247 : vector<2x4x1xf32>
    %249 = vector.broadcast %241 : vector<2x4x1xf32> to vector<2x4x32xf32>
    %250 = arith.subf %235, %249 : vector<2x4x32xf32>
    %cst_94 = arith.constant 9.99999974E-6 : f32
    %251 = vector.broadcast %cst_94 : f32 to vector<2x4x1xf32>
    %252 = arith.addf %248, %251 : vector<2x4x1xf32>
    %253 = math.rsqrt %252 : vector<2x4x1xf32>
    %254 = vector.broadcast %253 : vector<2x4x1xf32> to vector<2x4x32xf32>
    %255 = arith.mulf %250, %254 : vector<2x4x32xf32>
    %256 = vector.shape_cast %236 : vector<1x32xf32> to vector<1x1x32xf32>
    %257 = vector.broadcast %256 : vector<1x1x32xf32> to vector<2x4x32xf32>
    %258 = arith.mulf %255, %257 : vector<2x4x32xf32>
    %259 = vector.shape_cast %237 : vector<1x32xf32> to vector<1x1x32xf32>
    %260 = vector.broadcast %259 : vector<1x1x32xf32> to vector<2x4x32xf32>
    %261 = arith.addf %258, %260 : vector<2x4x32xf32>
    %c1_95 = arith.constant 1 : index
    %c0_96 = arith.constant 0 : index
    %c0_97 = arith.constant 0 : index
    %262 = vector.load %arg4[%c1_95, %c0_96, %c0_97] : memref<2x32x64xf32, #tpu.memory_space<vmem>>, vector<1x32x64xf32>
    %263 = vector.shape_cast %262 : vector<1x32x64xf32> to vector<32x64xf32>
    "tpu.trace_start"() <{level = 10 : i32, message = "bsh,hf->bsf"}> : () -> ()
    %cst_98 = arith.constant dense<0.000000e+00> : vector<2x4x64xf32>
    %264 = tpu.matmul %261, %263, %cst_98 {dimension_numbers = #tpu.dot_dimension_numbers<[2], [0], [0, 1], [1], [0, 0, 0, 1, 1, 1], [], []>} : vector<2x4x32xf32>, vector<32x64xf32>, vector<2x4x64xf32> -> vector<2x4x64xf32>
    "tpu.trace_stop"() : () -> ()
    %c1_99 = arith.constant 1 : index
    %c0_100 = arith.constant 0 : index
    %c0_101 = arith.constant 0 : index
    %265 = vector.load %arg5[%c1_99, %c0_100, %c0_101] : memref<2x1x64xf32, #tpu.memory_space<vmem>>, vector<1x1x64xf32>
    %266 = vector.shape_cast %265 : vector<1x1x64xf32> to vector<1x64xf32>
    %267 = vector.shape_cast %266 : vector<1x64xf32> to vector<1x1x64xf32>
    %268 = vector.broadcast %267 : vector<1x1x64xf32> to vector<2x4x64xf32>
    %269 = arith.addf %264, %268 : vector<2x4x64xf32>
    %cst_102 = arith.constant 0.000000e+00 : f32
    %270 = vector.broadcast %cst_102 : f32 to vector<2x4x64xf32>
    %271 = arith.maximumf %269, %270 : vector<2x4x64xf32>
    %c1_103 = arith.constant 1 : index
    %c0_104 = arith.constant 0 : index
    %c0_105 = arith.constant 0 : index
    %272 = vector.load %arg6[%c1_103, %c0_104, %c0_105] : memref<2x64x32xf32, #tpu.memory_space<vmem>>, vector<1x64x32xf32>
    %273 = vector.shape_cast %272 : vector<1x64x32xf32> to vector<64x32xf32>
    "tpu.trace_start"() <{level = 10 : i32, message = "bsf,fh->bsh"}> : () -> ()
    %cst_106 = arith.constant dense<0.000000e+00> : vector<2x4x32xf32>
    %274 = tpu.matmul %271, %273, %cst_106 {dimension_numbers = #tpu.dot_dimension_numbers<[2], [0], [0, 1], [1], [0, 0, 0, 1, 1, 1], [], []>} : vector<2x4x64xf32>, vector<64x32xf32>, vector<2x4x32xf32> -> vector<2x4x32xf32>
    "tpu.trace_stop"() : () -> ()
    %c1_107 = arith.constant 1 : index
    %c0_108 = arith.constant 0 : index
    %c0_109 = arith.constant 0 : index
    %275 = vector.load %arg7[%c1_107, %c0_108, %c0_109] : memref<2x1x32xf32, #tpu.memory_space<vmem>>, vector<1x1x32xf32>
    %276 = vector.shape_cast %275 : vector<1x1x32xf32> to vector<1x32xf32>
    %277 = vector.shape_cast %276 : vector<1x32xf32> to vector<1x1x32xf32>
    %278 = vector.broadcast %277 : vector<1x1x32xf32> to vector<2x4x32xf32>
    %279 = arith.addf %274, %278 : vector<2x4x32xf32>
    %c1_110 = arith.constant 1 : index
    %c0_111 = arith.constant 0 : index
    %c0_112 = arith.constant 0 : index
    %280 = vector.load %arg8[%c1_110, %c0_111, %c0_112] : memref<2x2x32xf32, #tpu.memory_space<vmem>>, vector<1x2x32xf32>
    %281 = vector.shape_cast %280 : vector<1x2x32xf32> to vector<2x32xf32>
    %282 = arith.addf %261, %279 : vector<2x4x32xf32>
    %283 = vector.extract_strided_slice %281 {offsets = [0, 0], sizes = [1, 32], strides = [1, 1]} : vector<2x32xf32> to vector<1x32xf32>
    %284 = vector.extract_strided_slice %281 {offsets = [1, 0], sizes = [1, 32], strides = [1, 1]} : vector<2x32xf32> to vector<1x32xf32>
    %cst_113 = arith.constant dense<0.000000e+00> : vector<2x4xf32>
    %285 = vector.multi_reduction <add>, %282, %cst_113 [2] : vector<2x4x32xf32> to vector<2x4xf32>
    %286 = vector.shape_cast %285 : vector<2x4xf32> to vector<2x4x1xf32>
    %cst_114 = arith.constant 3.200000e+01 : f32
    %287 = vector.broadcast %cst_114 : f32 to vector<2x4x1xf32>
    %288 = arith.divf %286, %287 : vector<2x4x1xf32>
    %289 = vector.broadcast %288 : vector<2x4x1xf32> to vector<2x4x32xf32>
    %290 = arith.subf %282, %289 : vector<2x4x32xf32>
    %291 = arith.mulf %290, %290 : vector<2x4x32xf32>
    %cst_115 = arith.constant dense<0.000000e+00> : vector<2x4xf32>
    %292 = vector.multi_reduction <add>, %291, %cst_115 [2] : vector<2x4x32xf32> to vector<2x4xf32>
    %293 = vector.shape_cast %292 : vector<2x4xf32> to vector<2x4x1xf32>
    %cst_116 = arith.constant 3.200000e+01 : f32
    %294 = vector.broadcast %cst_116 : f32 to vector<2x4x1xf32>
    %295 = arith.divf %293, %294 : vector<2x4x1xf32>
    %296 = vector.broadcast %288 : vector<2x4x1xf32> to vector<2x4x32xf32>
    %297 = arith.subf %282, %296 : vector<2x4x32xf32>
    %cst_117 = arith.constant 9.99999974E-6 : f32
    %298 = vector.broadcast %cst_117 : f32 to vector<2x4x1xf32>
    %299 = arith.addf %295, %298 : vector<2x4x1xf32>
    %300 = math.rsqrt %299 : vector<2x4x1xf32>
    %301 = vector.broadcast %300 : vector<2x4x1xf32> to vector<2x4x32xf32>
    %302 = arith.mulf %297, %301 : vector<2x4x32xf32>
    %303 = vector.shape_cast %283 : vector<1x32xf32> to vector<1x1x32xf32>
    %304 = vector.broadcast %303 : vector<1x1x32xf32> to vector<2x4x32xf32>
    %305 = arith.mulf %302, %304 : vector<2x4x32xf32>
    %306 = vector.shape_cast %284 : vector<1x32xf32> to vector<1x1x32xf32>
    %307 = vector.broadcast %306 : vector<1x1x32xf32> to vector<2x4x32xf32>
    %308 = arith.addf %305, %307 : vector<2x4x32xf32>
    %309 = vector.extract_strided_slice %308 {offsets = [0, 0, 0], sizes = [2, 1, 32], strides = [1, 1, 1]} : vector<2x4x32xf32> to vector<2x1x32xf32>
    %310 = vector.shape_cast %309 : vector<2x1x32xf32> to vector<2x32xf32>
    %311 = vector.extract_strided_slice %308 {offsets = [0, 1, 0], sizes = [2, 1, 32], strides = [1, 1, 1]} : vector<2x4x32xf32> to vector<2x1x32xf32>
    %312 = vector.shape_cast %311 : vector<2x1x32xf32> to vector<2x32xf32>
    %313 = vector.extract_strided_slice %308 {offsets = [0, 2, 0], sizes = [2, 1, 32], strides = [1, 1, 1]} : vector<2x4x32xf32> to vector<2x1x32xf32>
    %314 = vector.shape_cast %313 : vector<2x1x32xf32> to vector<2x32xf32>
    %315 = vector.extract_strided_slice %308 {offsets = [0, 3, 0], sizes = [2, 1, 32], strides = [1, 1, 1]} : vector<2x4x32xf32> to vector<2x1x32xf32>
    %316 = vector.shape_cast %315 : vector<2x1x32xf32> to vector<2x32xf32>
    %317 = vector.shape_cast %310 : vector<2x32xf32> to vector<1x2x32xf32>
    %318 = vector.shape_cast %312 : vector<2x32xf32> to vector<1x2x32xf32>
    %319 = vector.shape_cast %314 : vector<2x32xf32> to vector<1x2x32xf32>
    %320 = vector.shape_cast %316 : vector<2x32xf32> to vector<1x2x32xf32>
    %321 = tpu.concatenate %317, %318, %319, %320 in 0 : vector<1x2x32xf32>, vector<1x2x32xf32>, vector<1x2x32xf32>, vector<1x2x32xf32> -> vector<4x2x32xf32>
    %322 = tpu.iota {dimensions = array<i32: 0>} : vector<32x32xi32>
    %323 = tpu.iota {dimensions = array<i32: 1>} : vector<32x32xi32>
    %c-1_i32 = arith.constant -1 : i32
    %324 = vector.broadcast %c-1_i32 : i32 to vector<32x32xi32>
    %325 = arith.addi %323, %324 : vector<32x32xi32>
    %326 = arith.cmpi eq, %322, %325 : vector<32x32xi32>
    %327 = arith.extui %326 : vector<32x32xi1> to vector<32x32xi32>
    %328 = arith.sitofp %327 : vector<32x32xi32> to vector<32x32xf32>
    %c0_i32 = arith.constant 0 : i32
    %329 = vector.broadcast %c0_i32 : i32 to vector<32x32xi32>
    %330 = arith.addi %323, %329 : vector<32x32xi32>
    %331 = arith.cmpi eq, %322, %330 : vector<32x32xi32>
    %332 = arith.extui %331 : vector<32x32xi1> to vector<32x32xi32>
    %333 = arith.sitofp %332 : vector<32x32xi32> to vector<32x32xf32>
    %c1_i32 = arith.constant 1 : i32
    %334 = vector.broadcast %c1_i32 : i32 to vector<32x32xi32>
    %335 = arith.addi %323, %334 : vector<32x32xi32>
    %336 = arith.cmpi eq, %322, %335 : vector<32x32xi32>
    %337 = arith.extui %336 : vector<32x32xi1> to vector<32x32xi32>
    %338 = arith.sitofp %337 : vector<32x32xi32> to vector<32x32xf32>
    %cst_118 = arith.constant 0.000000e+00 : f32
    %339 = vector.broadcast %cst_118 : f32 to vector<4x2x8x32xf32>
    "tpu.trace_start"() <{level = 10 : i32, message = "gbl,lm->gbm"}> : () -> ()
    %cst_119 = arith.constant dense<0.000000e+00> : vector<4x2x32xf32>
    %340 = tpu.matmul %321, %328, %cst_119 {dimension_numbers = #tpu.dot_dimension_numbers<[2], [0], [0, 1], [1], [0, 0, 0, 1, 1, 1], [], []>} : vector<4x2x32xf32>, vector<32x32xf32>, vector<4x2x32xf32> -> vector<4x2x32xf32>
    "tpu.trace_stop"() : () -> ()
    %341 = vector.shape_cast %340 : vector<4x2x32xf32> to vector<4x2x1x32xf32>
    %c0_120 = arith.constant 0 : index
    %c0_121 = arith.constant 0 : index
    %c0_122 = arith.constant 0 : index
    %342 = vector.load %arg9[%c0_120, %c0_121, %c0_122] : memref<3x4x8xf32, #tpu.memory_space<vmem>>, vector<1x4x8xf32>
    %343 = vector.shape_cast %342 : vector<1x4x8xf32> to vector<4x8xf32>
    %344 = vector.shape_cast %343 : vector<4x8xf32> to vector<4x1x8x1xf32>
    %345 = vector.broadcast %341 : vector<4x2x1x32xf32> to vector<4x2x8x32xf32>
    %346 = vector.broadcast %344 : vector<4x1x8x1xf32> to vector<4x2x8x32xf32>
    %347 = arith.mulf %345, %346 : vector<4x2x8x32xf32>
    %348 = arith.addf %339, %347 : vector<4x2x8x32xf32>
    "tpu.trace_start"() <{level = 10 : i32, message = "gbl,lm->gbm"}> : () -> ()
    %cst_123 = arith.constant dense<0.000000e+00> : vector<4x2x32xf32>
    %349 = tpu.matmul %321, %333, %cst_123 {dimension_numbers = #tpu.dot_dimension_numbers<[2], [0], [0, 1], [1], [0, 0, 0, 1, 1, 1], [], []>} : vector<4x2x32xf32>, vector<32x32xf32>, vector<4x2x32xf32> -> vector<4x2x32xf32>
    "tpu.trace_stop"() : () -> ()
    %350 = vector.shape_cast %349 : vector<4x2x32xf32> to vector<4x2x1x32xf32>
    %c1_124 = arith.constant 1 : index
    %c0_125 = arith.constant 0 : index
    %c0_126 = arith.constant 0 : index
    %351 = vector.load %arg9[%c1_124, %c0_125, %c0_126] : memref<3x4x8xf32, #tpu.memory_space<vmem>>, vector<1x4x8xf32>
    %352 = vector.shape_cast %351 : vector<1x4x8xf32> to vector<4x8xf32>
    %353 = vector.shape_cast %352 : vector<4x8xf32> to vector<4x1x8x1xf32>
    %354 = vector.broadcast %350 : vector<4x2x1x32xf32> to vector<4x2x8x32xf32>
    %355 = vector.broadcast %353 : vector<4x1x8x1xf32> to vector<4x2x8x32xf32>
    %356 = arith.mulf %354, %355 : vector<4x2x8x32xf32>
    %357 = arith.addf %348, %356 : vector<4x2x8x32xf32>
    "tpu.trace_start"() <{level = 10 : i32, message = "gbl,lm->gbm"}> : () -> ()
    %cst_127 = arith.constant dense<0.000000e+00> : vector<4x2x32xf32>
    %358 = tpu.matmul %321, %338, %cst_127 {dimension_numbers = #tpu.dot_dimension_numbers<[2], [0], [0, 1], [1], [0, 0, 0, 1, 1, 1], [], []>} : vector<4x2x32xf32>, vector<32x32xf32>, vector<4x2x32xf32> -> vector<4x2x32xf32>
    "tpu.trace_stop"() : () -> ()
    %359 = vector.shape_cast %358 : vector<4x2x32xf32> to vector<4x2x1x32xf32>
    %c2 = arith.constant 2 : index
    %c0_128 = arith.constant 0 : index
    %c0_129 = arith.constant 0 : index
    %360 = vector.load %arg9[%c2, %c0_128, %c0_129] : memref<3x4x8xf32, #tpu.memory_space<vmem>>, vector<1x4x8xf32>
    %361 = vector.shape_cast %360 : vector<1x4x8xf32> to vector<4x8xf32>
    %362 = vector.shape_cast %361 : vector<4x8xf32> to vector<4x1x8x1xf32>
    %363 = vector.broadcast %359 : vector<4x2x1x32xf32> to vector<4x2x8x32xf32>
    %364 = vector.broadcast %362 : vector<4x1x8x1xf32> to vector<4x2x8x32xf32>
    %365 = arith.mulf %363, %364 : vector<4x2x8x32xf32>
    %366 = arith.addf %357, %365 : vector<4x2x8x32xf32>
    %c0_130 = arith.constant 0 : index
    %c0_131 = arith.constant 0 : index
    %367 = vector.load %arg10[%c0_130, %c0_131] : memref<4x8xf32, #tpu.memory_space<vmem>>, vector<4x8xf32>
    %368 = vector.shape_cast %367 : vector<4x8xf32> to vector<4x1x8x1xf32>
    %369 = vector.broadcast %368 : vector<4x1x8x1xf32> to vector<4x2x8x32xf32>
    %370 = arith.addf %366, %369 : vector<4x2x8x32xf32>
    %c0_132 = arith.constant 0 : index
    %c0_133 = arith.constant 0 : index
    %371 = vector.load %arg11[%c0_132, %c0_133] : memref<4x8xf32, #tpu.memory_space<vmem>>, vector<4x8xf32>
    %372 = vector.shape_cast %371 : vector<4x8xf32> to vector<4x1x8x1xf32>
    %373 = vector.broadcast %372 : vector<4x1x8x1xf32> to vector<4x2x8x32xf32>
    %374 = arith.mulf %370, %373 : vector<4x2x8x32xf32>
    %c0_134 = arith.constant 0 : index
    %c0_135 = arith.constant 0 : index
    %375 = vector.load %arg12[%c0_134, %c0_135] : memref<4x8xf32, #tpu.memory_space<vmem>>, vector<4x8xf32>
    %376 = vector.shape_cast %375 : vector<4x8xf32> to vector<4x1x8x1xf32>
    %377 = vector.broadcast %376 : vector<4x1x8x1xf32> to vector<4x2x8x32xf32>
    %378 = arith.addf %374, %377 : vector<4x2x8x32xf32>
    %cst_136 = arith.constant 0.000000e+00 : f32
    %379 = vector.broadcast %cst_136 : f32 to vector<4x2x8x32xf32>
    %380 = arith.maximumf %378, %379 : vector<4x2x8x32xf32>
    %381 = tpu.iota {dimensions = array<i32: 0>} : vector<32x16xi32>
    %382 = tpu.iota {dimensions = array<i32: 1>} : vector<32x16xi32>
    %c2_i32 = arith.constant 2 : i32
    %383 = vector.broadcast %c2_i32 : i32 to vector<32x16xi32>
    %384 = arith.muli %383, %382 : vector<32x16xi32>
    %385 = arith.cmpi eq, %381, %384 : vector<32x16xi32>
    %386 = arith.extui %385 : vector<32x16xi1> to vector<32x16xi32>
    %387 = arith.sitofp %386 : vector<32x16xi32> to vector<32x16xf32>
    %c2_i32_137 = arith.constant 2 : i32
    %388 = vector.broadcast %c2_i32_137 : i32 to vector<32x16xi32>
    %389 = arith.muli %388, %382 : vector<32x16xi32>
    %c1_i32_138 = arith.constant 1 : i32
    %390 = vector.broadcast %c1_i32_138 : i32 to vector<32x16xi32>
    %391 = arith.addi %389, %390 : vector<32x16xi32>
    %392 = arith.cmpi eq, %381, %391 : vector<32x16xi32>
    %393 = arith.extui %392 : vector<32x16xi1> to vector<32x16xi32>
    %394 = arith.sitofp %393 : vector<32x16xi32> to vector<32x16xf32>
    "tpu.trace_start"() <{level = 10 : i32, message = "gbcl,lm->gbcm"}> : () -> ()
    %cst_139 = arith.constant dense<0.000000e+00> : vector<4x2x8x16xf32>
    %395 = tpu.matmul %380, %387, %cst_139 {dimension_numbers = #tpu.dot_dimension_numbers<[3], [0], [0, 1, 2], [1], [0, 0, 0, 1, 0, 2, 1, 1], [], []>} : vector<4x2x8x32xf32>, vector<32x16xf32>, vector<4x2x8x16xf32> -> vector<4x2x8x16xf32>
    %cst_140 = arith.constant dense<0.000000e+00> : vector<4x2x8x16xf32>
    %396 = tpu.matmul %380, %394, %cst_140 {dimension_numbers = #tpu.dot_dimension_numbers<[3], [0], [0, 1, 2], [1], [0, 0, 0, 1, 0, 2, 1, 1], [], []>} : vector<4x2x8x32xf32>, vector<32x16xf32>, vector<4x2x8x16xf32> -> vector<4x2x8x16xf32>
    "tpu.trace_stop"() : () -> ()
    %397 = arith.maximumf %395, %396 : vector<4x2x8x16xf32>
    %398 = tpu.iota {dimensions = array<i32: 0>} : vector<16x16xi32>
    %399 = tpu.iota {dimensions = array<i32: 1>} : vector<16x16xi32>
    %c-1_i32_141 = arith.constant -1 : i32
    %400 = vector.broadcast %c-1_i32_141 : i32 to vector<16x16xi32>
    %401 = arith.addi %399, %400 : vector<16x16xi32>
    %402 = arith.cmpi eq, %398, %401 : vector<16x16xi32>
    %403 = arith.extui %402 : vector<16x16xi1> to vector<16x16xi32>
    %404 = arith.sitofp %403 : vector<16x16xi32> to vector<16x16xf32>
    %c0_i32_142 = arith.constant 0 : i32
    %405 = vector.broadcast %c0_i32_142 : i32 to vector<16x16xi32>
    %406 = arith.addi %399, %405 : vector<16x16xi32>
    %407 = arith.cmpi eq, %398, %406 : vector<16x16xi32>
    %408 = arith.extui %407 : vector<16x16xi1> to vector<16x16xi32>
    %409 = arith.sitofp %408 : vector<16x16xi32> to vector<16x16xf32>
    %c1_i32_143 = arith.constant 1 : i32
    %410 = vector.broadcast %c1_i32_143 : i32 to vector<16x16xi32>
    %411 = arith.addi %399, %410 : vector<16x16xi32>
    %412 = arith.cmpi eq, %398, %411 : vector<16x16xi32>
    %413 = arith.extui %412 : vector<16x16xi1> to vector<16x16xi32>
    %414 = arith.sitofp %413 : vector<16x16xi32> to vector<16x16xf32>
    %cst_144 = arith.constant 0.000000e+00 : f32
    %415 = vector.broadcast %cst_144 : f32 to vector<4x2x8x16xf32>
    "tpu.trace_start"() <{level = 10 : i32, message = "gbil,lm->gbim"}> : () -> ()
    %cst_145 = arith.constant dense<0.000000e+00> : vector<4x2x8x16xf32>
    %416 = tpu.matmul %397, %404, %cst_145 {dimension_numbers = #tpu.dot_dimension_numbers<[3], [0], [0, 1, 2], [1], [0, 0, 0, 1, 0, 2, 1, 1], [], []>} : vector<4x2x8x16xf32>, vector<16x16xf32>, vector<4x2x8x16xf32> -> vector<4x2x8x16xf32>
    "tpu.trace_stop"() : () -> ()
    %c0_146 = arith.constant 0 : index
    %c0_147 = arith.constant 0 : index
    %c0_148 = arith.constant 0 : index
    %c0_149 = arith.constant 0 : index
    %417 = vector.load %arg13[%c0_146, %c0_147, %c0_148, %c0_149] : memref<3x4x8x8xf32, #tpu.memory_space<vmem>>, vector<1x4x8x8xf32>
    %418 = vector.shape_cast %417 : vector<1x4x8x8xf32> to vector<4x8x8xf32>
    "tpu.trace_start"() <{level = 10 : i32, message = "gbim,goi->gbom"}> : () -> ()
    %cst_150 = arith.constant dense<0.000000e+00> : vector<4x8x2x16xf32>
    %419 = tpu.matmul %418, %416, %cst_150 {dimension_numbers = #tpu.dot_dimension_numbers<[2], [2], [1], [1, 3], [0, 0, 0, 1, 1, 1, 1, 3], [0], [0]>} : vector<4x8x8xf32>, vector<4x2x8x16xf32>, vector<4x8x2x16xf32> -> vector<4x8x2x16xf32>
    %420 = tpu.transpose %419, [0, 2, 1, 3] : vector<4x8x2x16xf32> -> vector<4x2x8x16xf32>
    "tpu.trace_stop"() : () -> ()
    %421 = arith.addf %415, %420 : vector<4x2x8x16xf32>
    "tpu.trace_start"() <{level = 10 : i32, message = "gbil,lm->gbim"}> : () -> ()
    %cst_151 = arith.constant dense<0.000000e+00> : vector<4x2x8x16xf32>
    %422 = tpu.matmul %397, %409, %cst_151 {dimension_numbers = #tpu.dot_dimension_numbers<[3], [0], [0, 1, 2], [1], [0, 0, 0, 1, 0, 2, 1, 1], [], []>} : vector<4x2x8x16xf32>, vector<16x16xf32>, vector<4x2x8x16xf32> -> vector<4x2x8x16xf32>
    "tpu.trace_stop"() : () -> ()
    %c1_152 = arith.constant 1 : index
    %c0_153 = arith.constant 0 : index
    %c0_154 = arith.constant 0 : index
    %c0_155 = arith.constant 0 : index
    %423 = vector.load %arg13[%c1_152, %c0_153, %c0_154, %c0_155] : memref<3x4x8x8xf32, #tpu.memory_space<vmem>>, vector<1x4x8x8xf32>
    %424 = vector.shape_cast %423 : vector<1x4x8x8xf32> to vector<4x8x8xf32>
    "tpu.trace_start"() <{level = 10 : i32, message = "gbim,goi->gbom"}> : () -> ()
    %cst_156 = arith.constant dense<0.000000e+00> : vector<4x8x2x16xf32>
    %425 = tpu.matmul %424, %422, %cst_156 {dimension_numbers = #tpu.dot_dimension_numbers<[2], [2], [1], [1, 3], [0, 0, 0, 1, 1, 1, 1, 3], [0], [0]>} : vector<4x8x8xf32>, vector<4x2x8x16xf32>, vector<4x8x2x16xf32> -> vector<4x8x2x16xf32>
    %426 = tpu.transpose %425, [0, 2, 1, 3] : vector<4x8x2x16xf32> -> vector<4x2x8x16xf32>
    "tpu.trace_stop"() : () -> ()
    %427 = arith.addf %421, %426 : vector<4x2x8x16xf32>
    "tpu.trace_start"() <{level = 10 : i32, message = "gbil,lm->gbim"}> : () -> ()
    %cst_157 = arith.constant dense<0.000000e+00> : vector<4x2x8x16xf32>
    %428 = tpu.matmul %397, %414, %cst_157 {dimension_numbers = #tpu.dot_dimension_numbers<[3], [0], [0, 1, 2], [1], [0, 0, 0, 1, 0, 2, 1, 1], [], []>} : vector<4x2x8x16xf32>, vector<16x16xf32>, vector<4x2x8x16xf32> -> vector<4x2x8x16xf32>
    "tpu.trace_stop"() : () -> ()
    %c2_158 = arith.constant 2 : index
    %c0_159 = arith.constant 0 : index
    %c0_160 = arith.constant 0 : index
    %c0_161 = arith.constant 0 : index
    %429 = vector.load %arg13[%c2_158, %c0_159, %c0_160, %c0_161] : memref<3x4x8x8xf32, #tpu.memory_space<vmem>>, vector<1x4x8x8xf32>
    %430 = vector.shape_cast %429 : vector<1x4x8x8xf32> to vector<4x8x8xf32>
    "tpu.trace_start"() <{level = 10 : i32, message = "gbim,goi->gbom"}> : () -> ()
    %cst_162 = arith.constant dense<0.000000e+00> : vector<4x8x2x16xf32>
    %431 = tpu.matmul %430, %428, %cst_162 {dimension_numbers = #tpu.dot_dimension_numbers<[2], [2], [1], [1, 3], [0, 0, 0, 1, 1, 1, 1, 3], [0], [0]>} : vector<4x8x8xf32>, vector<4x2x8x16xf32>, vector<4x8x2x16xf32> -> vector<4x8x2x16xf32>
    %432 = tpu.transpose %431, [0, 2, 1, 3] : vector<4x8x2x16xf32> -> vector<4x2x8x16xf32>
    "tpu.trace_stop"() : () -> ()
    %433 = arith.addf %427, %432 : vector<4x2x8x16xf32>
    %c0_163 = arith.constant 0 : index
    %c0_164 = arith.constant 0 : index
    %434 = vector.load %arg14[%c0_163, %c0_164] : memref<4x8xf32, #tpu.memory_space<vmem>>, vector<4x8xf32>
    %435 = vector.shape_cast %434 : vector<4x8xf32> to vector<4x1x8x1xf32>
    %436 = vector.broadcast %435 : vector<4x1x8x1xf32> to vector<4x2x8x16xf32>
    %437 = arith.addf %433, %436 : vector<4x2x8x16xf32>
    %c0_165 = arith.constant 0 : index
    %c0_166 = arith.constant 0 : index
    %438 = vector.load %arg15[%c0_165, %c0_166] : memref<4x8xf32, #tpu.memory_space<vmem>>, vector<4x8xf32>
    %439 = vector.shape_cast %438 : vector<4x8xf32> to vector<4x1x8x1xf32>
    %440 = vector.broadcast %439 : vector<4x1x8x1xf32> to vector<4x2x8x16xf32>
    %441 = arith.mulf %437, %440 : vector<4x2x8x16xf32>
    %c0_167 = arith.constant 0 : index
    %c0_168 = arith.constant 0 : index
    %442 = vector.load %arg16[%c0_167, %c0_168] : memref<4x8xf32, #tpu.memory_space<vmem>>, vector<4x8xf32>
    %443 = vector.shape_cast %442 : vector<4x8xf32> to vector<4x1x8x1xf32>
    %444 = vector.broadcast %443 : vector<4x1x8x1xf32> to vector<4x2x8x16xf32>
    %445 = arith.addf %441, %444 : vector<4x2x8x16xf32>
    %cst_169 = arith.constant 0.000000e+00 : f32
    %446 = vector.broadcast %cst_169 : f32 to vector<4x2x8x16xf32>
    %447 = arith.maximumf %445, %446 : vector<4x2x8x16xf32>
    %448 = tpu.iota {dimensions = array<i32: 0>} : vector<16x8xi32>
    %449 = tpu.iota {dimensions = array<i32: 1>} : vector<16x8xi32>
    %c2_i32_170 = arith.constant 2 : i32
    %450 = vector.broadcast %c2_i32_170 : i32 to vector<16x8xi32>
    %451 = arith.muli %450, %449 : vector<16x8xi32>
    %452 = arith.cmpi eq, %448, %451 : vector<16x8xi32>
    %453 = arith.extui %452 : vector<16x8xi1> to vector<16x8xi32>
    %454 = arith.sitofp %453 : vector<16x8xi32> to vector<16x8xf32>
    %c2_i32_171 = arith.constant 2 : i32
    %455 = vector.broadcast %c2_i32_171 : i32 to vector<16x8xi32>
    %456 = arith.muli %455, %449 : vector<16x8xi32>
    %c1_i32_172 = arith.constant 1 : i32
    %457 = vector.broadcast %c1_i32_172 : i32 to vector<16x8xi32>
    %458 = arith.addi %456, %457 : vector<16x8xi32>
    %459 = arith.cmpi eq, %448, %458 : vector<16x8xi32>
    %460 = arith.extui %459 : vector<16x8xi1> to vector<16x8xi32>
    %461 = arith.sitofp %460 : vector<16x8xi32> to vector<16x8xf32>
    "tpu.trace_start"() <{level = 10 : i32, message = "gbcl,lm->gbcm"}> : () -> ()
    %cst_173 = arith.constant dense<0.000000e+00> : vector<4x2x8x8xf32>
    %462 = tpu.matmul %447, %454, %cst_173 {dimension_numbers = #tpu.dot_dimension_numbers<[3], [0], [0, 1, 2], [1], [0, 0, 0, 1, 0, 2, 1, 1], [], []>} : vector<4x2x8x16xf32>, vector<16x8xf32>, vector<4x2x8x8xf32> -> vector<4x2x8x8xf32>
    %cst_174 = arith.constant dense<0.000000e+00> : vector<4x2x8x8xf32>
    %463 = tpu.matmul %447, %461, %cst_174 {dimension_numbers = #tpu.dot_dimension_numbers<[3], [0], [0, 1, 2], [1], [0, 0, 0, 1, 0, 2, 1, 1], [], []>} : vector<4x2x8x16xf32>, vector<16x8xf32>, vector<4x2x8x8xf32> -> vector<4x2x8x8xf32>
    "tpu.trace_stop"() : () -> ()
    %464 = arith.maximumf %462, %463 : vector<4x2x8x8xf32>
    %465 = vector.extract_strided_slice %464 {offsets = [0, 0, 0, 0], sizes = [1, 2, 1, 8], strides = [1, 1, 1, 1]} : vector<4x2x8x8xf32> to vector<1x2x1x8xf32>
    %466 = vector.shape_cast %465 : vector<1x2x1x8xf32> to vector<2x8xf32>
    %467 = vector.extract_strided_slice %464 {offsets = [0, 0, 1, 0], sizes = [1, 2, 1, 8], strides = [1, 1, 1, 1]} : vector<4x2x8x8xf32> to vector<1x2x1x8xf32>
    %468 = vector.shape_cast %467 : vector<1x2x1x8xf32> to vector<2x8xf32>
    %469 = vector.extract_strided_slice %464 {offsets = [0, 0, 2, 0], sizes = [1, 2, 1, 8], strides = [1, 1, 1, 1]} : vector<4x2x8x8xf32> to vector<1x2x1x8xf32>
    %470 = vector.shape_cast %469 : vector<1x2x1x8xf32> to vector<2x8xf32>
    %471 = vector.extract_strided_slice %464 {offsets = [0, 0, 3, 0], sizes = [1, 2, 1, 8], strides = [1, 1, 1, 1]} : vector<4x2x8x8xf32> to vector<1x2x1x8xf32>
    %472 = vector.shape_cast %471 : vector<1x2x1x8xf32> to vector<2x8xf32>
    %473 = vector.extract_strided_slice %464 {offsets = [0, 0, 4, 0], sizes = [1, 2, 1, 8], strides = [1, 1, 1, 1]} : vector<4x2x8x8xf32> to vector<1x2x1x8xf32>
    %474 = vector.shape_cast %473 : vector<1x2x1x8xf32> to vector<2x8xf32>
    %475 = vector.extract_strided_slice %464 {offsets = [0, 0, 5, 0], sizes = [1, 2, 1, 8], strides = [1, 1, 1, 1]} : vector<4x2x8x8xf32> to vector<1x2x1x8xf32>
    %476 = vector.shape_cast %475 : vector<1x2x1x8xf32> to vector<2x8xf32>
    %477 = vector.extract_strided_slice %464 {offsets = [0, 0, 6, 0], sizes = [1, 2, 1, 8], strides = [1, 1, 1, 1]} : vector<4x2x8x8xf32> to vector<1x2x1x8xf32>
    %478 = vector.shape_cast %477 : vector<1x2x1x8xf32> to vector<2x8xf32>
    %479 = vector.extract_strided_slice %464 {offsets = [0, 0, 7, 0], sizes = [1, 2, 1, 8], strides = [1, 1, 1, 1]} : vector<4x2x8x8xf32> to vector<1x2x1x8xf32>
    %480 = vector.shape_cast %479 : vector<1x2x1x8xf32> to vector<2x8xf32>
    %481 = vector.extract_strided_slice %464 {offsets = [1, 0, 0, 0], sizes = [1, 2, 1, 8], strides = [1, 1, 1, 1]} : vector<4x2x8x8xf32> to vector<1x2x1x8xf32>
    %482 = vector.shape_cast %481 : vector<1x2x1x8xf32> to vector<2x8xf32>
    %483 = vector.extract_strided_slice %464 {offsets = [1, 0, 1, 0], sizes = [1, 2, 1, 8], strides = [1, 1, 1, 1]} : vector<4x2x8x8xf32> to vector<1x2x1x8xf32>
    %484 = vector.shape_cast %483 : vector<1x2x1x8xf32> to vector<2x8xf32>
    %485 = vector.extract_strided_slice %464 {offsets = [1, 0, 2, 0], sizes = [1, 2, 1, 8], strides = [1, 1, 1, 1]} : vector<4x2x8x8xf32> to vector<1x2x1x8xf32>
    %486 = vector.shape_cast %485 : vector<1x2x1x8xf32> to vector<2x8xf32>
    %487 = vector.extract_strided_slice %464 {offsets = [1, 0, 3, 0], sizes = [1, 2, 1, 8], strides = [1, 1, 1, 1]} : vector<4x2x8x8xf32> to vector<1x2x1x8xf32>
    %488 = vector.shape_cast %487 : vector<1x2x1x8xf32> to vector<2x8xf32>
    %489 = vector.extract_strided_slice %464 {offsets = [1, 0, 4, 0], sizes = [1, 2, 1, 8], strides = [1, 1, 1, 1]} : vector<4x2x8x8xf32> to vector<1x2x1x8xf32>
    %490 = vector.shape_cast %489 : vector<1x2x1x8xf32> to vector<2x8xf32>
    %491 = vector.extract_strided_slice %464 {offsets = [1, 0, 5, 0], sizes = [1, 2, 1, 8], strides = [1, 1, 1, 1]} : vector<4x2x8x8xf32> to vector<1x2x1x8xf32>
    %492 = vector.shape_cast %491 : vector<1x2x1x8xf32> to vector<2x8xf32>
    %493 = vector.extract_strided_slice %464 {offsets = [1, 0, 6, 0], sizes = [1, 2, 1, 8], strides = [1, 1, 1, 1]} : vector<4x2x8x8xf32> to vector<1x2x1x8xf32>
    %494 = vector.shape_cast %493 : vector<1x2x1x8xf32> to vector<2x8xf32>
    %495 = vector.extract_strided_slice %464 {offsets = [1, 0, 7, 0], sizes = [1, 2, 1, 8], strides = [1, 1, 1, 1]} : vector<4x2x8x8xf32> to vector<1x2x1x8xf32>
    %496 = vector.shape_cast %495 : vector<1x2x1x8xf32> to vector<2x8xf32>
    %497 = vector.extract_strided_slice %464 {offsets = [2, 0, 0, 0], sizes = [1, 2, 1, 8], strides = [1, 1, 1, 1]} : vector<4x2x8x8xf32> to vector<1x2x1x8xf32>
    %498 = vector.shape_cast %497 : vector<1x2x1x8xf32> to vector<2x8xf32>
    %499 = vector.extract_strided_slice %464 {offsets = [2, 0, 1, 0], sizes = [1, 2, 1, 8], strides = [1, 1, 1, 1]} : vector<4x2x8x8xf32> to vector<1x2x1x8xf32>
    %500 = vector.shape_cast %499 : vector<1x2x1x8xf32> to vector<2x8xf32>
    %501 = vector.extract_strided_slice %464 {offsets = [2, 0, 2, 0], sizes = [1, 2, 1, 8], strides = [1, 1, 1, 1]} : vector<4x2x8x8xf32> to vector<1x2x1x8xf32>
    %502 = vector.shape_cast %501 : vector<1x2x1x8xf32> to vector<2x8xf32>
    %503 = vector.extract_strided_slice %464 {offsets = [2, 0, 3, 0], sizes = [1, 2, 1, 8], strides = [1, 1, 1, 1]} : vector<4x2x8x8xf32> to vector<1x2x1x8xf32>
    %504 = vector.shape_cast %503 : vector<1x2x1x8xf32> to vector<2x8xf32>
    %505 = vector.extract_strided_slice %464 {offsets = [2, 0, 4, 0], sizes = [1, 2, 1, 8], strides = [1, 1, 1, 1]} : vector<4x2x8x8xf32> to vector<1x2x1x8xf32>
    %506 = vector.shape_cast %505 : vector<1x2x1x8xf32> to vector<2x8xf32>
    %507 = vector.extract_strided_slice %464 {offsets = [2, 0, 5, 0], sizes = [1, 2, 1, 8], strides = [1, 1, 1, 1]} : vector<4x2x8x8xf32> to vector<1x2x1x8xf32>
    %508 = vector.shape_cast %507 : vector<1x2x1x8xf32> to vector<2x8xf32>
    %509 = vector.extract_strided_slice %464 {offsets = [2, 0, 6, 0], sizes = [1, 2, 1, 8], strides = [1, 1, 1, 1]} : vector<4x2x8x8xf32> to vector<1x2x1x8xf32>
    %510 = vector.shape_cast %509 : vector<1x2x1x8xf32> to vector<2x8xf32>
    %511 = vector.extract_strided_slice %464 {offsets = [2, 0, 7, 0], sizes = [1, 2, 1, 8], strides = [1, 1, 1, 1]} : vector<4x2x8x8xf32> to vector<1x2x1x8xf32>
    %512 = vector.shape_cast %511 : vector<1x2x1x8xf32> to vector<2x8xf32>
    %513 = vector.extract_strided_slice %464 {offsets = [3, 0, 0, 0], sizes = [1, 2, 1, 8], strides = [1, 1, 1, 1]} : vector<4x2x8x8xf32> to vector<1x2x1x8xf32>
    %514 = vector.shape_cast %513 : vector<1x2x1x8xf32> to vector<2x8xf32>
    %515 = vector.extract_strided_slice %464 {offsets = [3, 0, 1, 0], sizes = [1, 2, 1, 8], strides = [1, 1, 1, 1]} : vector<4x2x8x8xf32> to vector<1x2x1x8xf32>
    %516 = vector.shape_cast %515 : vector<1x2x1x8xf32> to vector<2x8xf32>
    %517 = vector.extract_strided_slice %464 {offsets = [3, 0, 2, 0], sizes = [1, 2, 1, 8], strides = [1, 1, 1, 1]} : vector<4x2x8x8xf32> to vector<1x2x1x8xf32>
    %518 = vector.shape_cast %517 : vector<1x2x1x8xf32> to vector<2x8xf32>
    %519 = vector.extract_strided_slice %464 {offsets = [3, 0, 3, 0], sizes = [1, 2, 1, 8], strides = [1, 1, 1, 1]} : vector<4x2x8x8xf32> to vector<1x2x1x8xf32>
    %520 = vector.shape_cast %519 : vector<1x2x1x8xf32> to vector<2x8xf32>
    %521 = vector.extract_strided_slice %464 {offsets = [3, 0, 4, 0], sizes = [1, 2, 1, 8], strides = [1, 1, 1, 1]} : vector<4x2x8x8xf32> to vector<1x2x1x8xf32>
    %522 = vector.shape_cast %521 : vector<1x2x1x8xf32> to vector<2x8xf32>
    %523 = vector.extract_strided_slice %464 {offsets = [3, 0, 5, 0], sizes = [1, 2, 1, 8], strides = [1, 1, 1, 1]} : vector<4x2x8x8xf32> to vector<1x2x1x8xf32>
    %524 = vector.shape_cast %523 : vector<1x2x1x8xf32> to vector<2x8xf32>
    %525 = vector.extract_strided_slice %464 {offsets = [3, 0, 6, 0], sizes = [1, 2, 1, 8], strides = [1, 1, 1, 1]} : vector<4x2x8x8xf32> to vector<1x2x1x8xf32>
    %526 = vector.shape_cast %525 : vector<1x2x1x8xf32> to vector<2x8xf32>
    %527 = vector.extract_strided_slice %464 {offsets = [3, 0, 7, 0], sizes = [1, 2, 1, 8], strides = [1, 1, 1, 1]} : vector<4x2x8x8xf32> to vector<1x2x1x8xf32>
    %528 = vector.shape_cast %527 : vector<1x2x1x8xf32> to vector<2x8xf32>
    %529 = tpu.concatenate %466, %468, %470, %472, %474, %476, %478, %480, %482, %484, %486, %488, %490, %492, %494, %496 in 1 : vector<2x8xf32>, vector<2x8xf32>, vector<2x8xf32>, vector<2x8xf32>, vector<2x8xf32>, vector<2x8xf32>, vector<2x8xf32>, vector<2x8xf32>, vector<2x8xf32>, vector<2x8xf32>, vector<2x8xf32>, vector<2x8xf32>, vector<2x8xf32>, vector<2x8xf32>, vector<2x8xf32>, vector<2x8xf32> -> vector<2x128xf32>
    %530 = tpu.concatenate %498, %500, %502, %504, %506, %508, %510, %512, %514, %516, %518, %520, %522, %524, %526, %528 in 1 : vector<2x8xf32>, vector<2x8xf32>, vector<2x8xf32>, vector<2x8xf32>, vector<2x8xf32>, vector<2x8xf32>, vector<2x8xf32>, vector<2x8xf32>, vector<2x8xf32>, vector<2x8xf32>, vector<2x8xf32>, vector<2x8xf32>, vector<2x8xf32>, vector<2x8xf32>, vector<2x8xf32>, vector<2x8xf32> -> vector<2x128xf32>
    %531 = tpu.concatenate %529, %530 in 1 : vector<2x128xf32>, vector<2x128xf32> -> vector<2x256xf32>
    %c0_175 = arith.constant 0 : index
    %c0_176 = arith.constant 0 : index
    %532 = vector.load %arg17[%c0_175, %c0_176] : memref<256x16xf32, #tpu.memory_space<vmem>>, vector<256x16xf32>
    %cst_177 = arith.constant dense<0.000000e+00> : vector<2x16xf32>
    %533 = tpu.matmul %531, %532, %cst_177 {dimension_numbers = #tpu.dot_dimension_numbers<[1], [0], [0], [1], [0, 0, 1, 1], [], []>} : vector<2x256xf32>, vector<256x16xf32>, vector<2x16xf32> -> vector<2x16xf32>
    %c0_178 = arith.constant 0 : index
    %c0_179 = arith.constant 0 : index
    %534 = vector.load %arg18[%c0_178, %c0_179] : memref<1x16xf32, #tpu.memory_space<vmem>>, vector<1x16xf32>
    %535 = vector.broadcast %534 : vector<1x16xf32> to vector<2x16xf32>
    %536 = arith.addf %533, %535 : vector<2x16xf32>
    %cst_180 = arith.constant 0.000000e+00 : f32
    %537 = vector.broadcast %cst_180 : f32 to vector<2x16xf32>
    %538 = arith.maximumf %536, %537 : vector<2x16xf32>
    %c0_181 = arith.constant 0 : index
    %c0_182 = arith.constant 0 : index
    %539 = vector.load %arg19[%c0_181, %c0_182] : memref<16x5xf32, #tpu.memory_space<vmem>>, vector<16x5xf32>
    %cst_183 = arith.constant dense<0.000000e+00> : vector<2x5xf32>
    %540 = tpu.matmul %538, %539, %cst_183 {dimension_numbers = #tpu.dot_dimension_numbers<[1], [0], [0], [1], [0, 0, 1, 1], [], []>} : vector<2x16xf32>, vector<16x5xf32>, vector<2x5xf32> -> vector<2x5xf32>
    %c0_184 = arith.constant 0 : index
    %c0_185 = arith.constant 0 : index
    %541 = vector.load %arg20[%c0_184, %c0_185] : memref<1x5xf32, #tpu.memory_space<vmem>>, vector<1x5xf32>
    %542 = vector.broadcast %541 : vector<1x5xf32> to vector<2x5xf32>
    %543 = arith.addf %540, %542 : vector<2x5xf32>
    %cst_186 = arith.constant dense<0xFF800000> : vector<2xf32>
    %544 = vector.multi_reduction <maximumf>, %543, %cst_186 [1] : vector<2x5xf32> to vector<2xf32>
    %545 = vector.shape_cast %544 : vector<2xf32> to vector<2x1xf32>
    %546 = vector.broadcast %545 : vector<2x1xf32> to vector<2x5xf32>
    %547 = arith.subf %543, %546 : vector<2x5xf32>
    %548 = math.exp %547 : vector<2x5xf32>
    %cst_187 = arith.constant dense<0.000000e+00> : vector<2xf32>
    %549 = vector.multi_reduction <add>, %548, %cst_187 [1] : vector<2x5xf32> to vector<2xf32>
    %550 = vector.shape_cast %549 : vector<2xf32> to vector<2x1xf32>
    %551 = math.log %550 : vector<2x1xf32>
    %552 = arith.addf %545, %551 : vector<2x1xf32>
    %553 = vector.broadcast %552 : vector<2x1xf32> to vector<2x5xf32>
    %554 = arith.subf %543, %553 : vector<2x5xf32>
    %c0_188 = arith.constant 0 : index
    %c0_189 = arith.constant 0 : index
    %555 = vector.load %arg21[%c0_188, %c0_189] : memref<2x5xf32, #tpu.memory_space<vmem>>, vector<2x5xf32>
    tpu.vector_store %arg21[%c0_188, %c0_189], %554 {strides = array<i32>} : memref<2x5xf32, #tpu.memory_space<vmem>>, vector<2x5xf32>,
    return
  }
}

</mosaic_0001>

<llo_original>
// kernel: montage_model_forward.1
$region0: #{montage_model_forward.1}
  #allocation0 [shape = 'u32[]', space=smem, size = 0x4, offset = 0x4, fixed_abs, tag = 'smem constant byte address 0x4 - core index']
  #allocation1 [shape = 'u32[144,128]{1,0:T(1,128)}', space=vmem, size = 0x12000, scoped, tag = 'internal scratch']
  %s0 = inlined_call_operand.vmem [shape: f32[2,4,32], index: 0, kind: input, shape index: {}]
  %s1 = inlined_call_operand.vmem [shape: f32[2,32,96], index: 1, kind: input, shape index: {}]
  %s2 = inlined_call_operand.vmem [shape: f32[2,32,32], index: 2, kind: input, shape index: {}]
  %s3 = inlined_call_operand.vmem [shape: f32[2,2,32], index: 3, kind: input, shape index: {}]
  %s4 = inlined_call_operand.vmem [shape: f32[2,32,64], index: 4, kind: input, shape index: {}]
  %s5 = inlined_call_operand.vmem [shape: f32[2,1,64], index: 5, kind: input, shape index: {}]
  %s6 = inlined_call_operand.vmem [shape: f32[2,64,32], index: 6, kind: input, shape index: {}]
  %s7 = inlined_call_operand.vmem [shape: f32[2,1,32], index: 7, kind: input, shape index: {}]
  %s8 = inlined_call_operand.vmem [shape: f32[2,2,32], index: 8, kind: input, shape index: {}]
  %s9 = inlined_call_operand.vmem [shape: f32[3,4,8], index: 9, kind: input, shape index: {}]
  %s10 = inlined_call_operand.vmem [shape: f32[4,8], index: 10, kind: input, shape index: {}]
  %s11 = inlined_call_operand.vmem [shape: f32[4,8], index: 11, kind: input, shape index: {}]
  %s12 = inlined_call_operand.vmem [shape: f32[4,8], index: 12, kind: input, shape index: {}]
  %s13 = inlined_call_operand.vmem [shape: f32[3,4,8,8], index: 13, kind: input, shape index: {}]
  %s14 = inlined_call_operand.vmem [shape: f32[4,8], index: 14, kind: input, shape index: {}]
  %s15 = inlined_call_operand.vmem [shape: f32[4,8], index: 15, kind: input, shape index: {}]
  %s16 = inlined_call_operand.vmem [shape: f32[4,8], index: 16, kind: input, shape index: {}]
  %s17 = inlined_call_operand.vmem [shape: f32[256,16], index: 17, kind: input, shape index: {}]
  %s18 = inlined_call_operand.vmem [shape: f32[1,16], index: 18, kind: input, shape index: {}]
  %s19 = inlined_call_operand.vmem [shape: f32[16,5], index: 19, kind: input, shape index: {}]
  %s20 = inlined_call_operand.vmem [shape: f32[1,5], index: 20, kind: input, shape index: {}]
  %s21 = inlined_call_operand.hbm [shape: f32[2,5], index: 21, kind: output, shape index: {}]
  %s22 = sld [smem:[#allocation0]]
  $region94: #{montage_model_forward.1} parent=0
    _
  %s24 = ssub.s32 1, %s22
  %s25 = scalar_select 0, %s24, %s22
  $region1: #{montage_model_forward.1} parent=0
    #allocation2 [shape = 'u8[1024]{0}', space=vmem, size = 0x400, scoped, tag = 'output window, operand 0, single buffered']
    #allocation3 [shape = 's32[1]{0}', space=sflag, size = 0x4, scoped, tag = 'scoped memory for montage_model_forward.1']
    %26 = vsyncpa [#allocation3], 0
    // Predicated region
    $region2: #{montage_model_forward.1} parent=1 // pred_check
      _
    $region3: #{montage_model_forward.1} parent=1 // pred_check_branch
      %28 = sbr.rel (0) target = $region5
    $region4: #{montage_model_forward.1} parent=1 // pred_region
      _
    $region5: #{montage_model_forward.1} parent=1 // pred_fallthru
      _
    // Predicated region
    $region6: #{montage_model_forward.1} parent=1 // pred_check
      _
    $region7: #{montage_model_forward.1} parent=1 // pred_check_branch
      %30 = sbr.rel (0) target = $region9
    $region8: #{montage_model_forward.1} parent=1 // pred_region
      _
    $region9: #{montage_model_forward.1} parent=1 // pred_fallthru
      _
    // Predicated region
    $region10: #{montage_model_forward.1} parent=1 // pred_check
      _
    $region11: #{montage_model_forward.1} parent=1 // pred_check_branch
      %32 = sbr.rel (0) target = $region13
    $region12: #{montage_model_forward.1} parent=1 // pred_region
      _
    $region13: #{montage_model_forward.1} parent=1 // pred_fallthru
      _
    // Predicated region
    $region14: #{montage_model_forward.1} parent=1 // pred_check
      _
    $region15: #{montage_model_forward.1} parent=1 // pred_check_branch
      %34 = sbr.rel (0) target = $region17
    $region16: #{montage_model_forward.1} parent=1 // pred_region
      _
    $region17: #{montage_model_forward.1} parent=1 // pred_fallthru
      _
    // Predicated region
    $region18: #{montage_model_forward.1} parent=1 // pred_check
      _
    $region19: #{montage_model_forward.1} parent=1 // pred_check_branch
      %36 = sbr.rel (0) target = $region21
    $region20: #{montage_model_forward.1} parent=1 // pred_region
      _
    $region21: #{montage_model_forward.1} parent=1 // pred_fallthru
      _
    // Predicated region
    $region22: #{montage_model_forward.1} parent=1 // pred_check
      _
    $region23: #{montage_model_forward.1} parent=1 // pred_check_branch
      %38 = sbr.rel (0) target = $region25
    $region24: #{montage_model_forward.1} parent=1 // pred_region
      _
    $region25: #{montage_model_forward.1} parent=1 // pred_fallthru
      _
    // Predicated region
    $region26: #{montage_model_forward.1} parent=1 // pred_check
      _
    $region27: #{montage_model_forward.1} parent=1 // pred_check_branch
      %40 = sbr.rel (0) target = $region29
    $region28: #{montage_model_forward.1} parent=1 // pred_region
      _
    $region29: #{montage_model_forward.1} parent=1 // pred_fallthru
      _
    // Predicated region
    $region30: #{montage_model_forward.1} parent=1 // pred_check
      _
    $region31: #{montage_model_forward.1} parent=1 // pred_check_branch
      %42 = sbr.rel (0) target = $region33
    $region32: #{montage_model_forward.1} parent=1 // pred_region
      _
    $region33: #{montage_model_forward.1} parent=1 // pred_fallthru
      _
    // Predicated region
    $region34: #{montage_model_forward.1} parent=1 // pred_check
      _
    $region35: #{montage_model_forward.1} parent=1 // pred_check_branch
      %44 = sbr.rel (0) target = $region37
    $region36: #{montage_model_forward.1} parent=1 // pred_region
      _
    $region37: #{montage_model_forward.1} parent=1 // pred_fallthru
      _
    // Predicated region
    $region38: #{montage_model_forward.1} parent=1 // pred_check
      _
    $region39: #{montage_model_forward.1} parent=1 // pred_check_branch
      %46 = sbr.rel (0) target = $region41
    $region40: #{montage_model_forward.1} parent=1 // pred_region
      _
    $region41: #{montage_model_forward.1} parent=1 // pred_fallthru
      _
    // Predicated region
    $region42: #{montage_model_forward.1} parent=1 // pred_check
      _
    $region43: #{montage_model_forward.1} parent=1 // pred_check_branch
      %48 = sbr.rel (0) target = $region45
    $region44: #{montage_model_forward.1} parent=1 // pred_region
      _
    $region45: #{montage_model_forward.1} parent=1 // pred_fallthru
      _
    // Predicated region
    $region46: #{montage_model_forward.1} parent=1 // pred_check
      _
    $region47: #{montage_model_forward.1} parent=1 // pred_check_branch
      %50 = sbr.rel (0) target = $region49
    $region48: #{montage_model_forward.1} parent=1 // pred_region
      _
    $region49: #{montage_model_forward.1} parent=1 // pred_fallthru
      _
    // Predicated region
    $region50: #{montage_model_forward.1} parent=1 // pred_check
      _
    $region51: #{montage_model_forward.1} parent=1 // pred_check_branch
      %52 = sbr.rel (0) target = $region53
    $region52: #{montage_model_forward.1} parent=1 // pred_region
      _
    $region53: #{montage_model_forward.1} parent=1 // pred_fallthru
      _
    // Predicated region
    $region54: #{montage_model_forward.1} parent=1 // pred_check
      _
    $region55: #{montage_model_forward.1} parent=1 // pred_check_branch
      %54 = sbr.rel (0) target = $region57
    $region56: #{montage_model_forward.1} parent=1 // pred_region
      _
    $region57: #{montage_model_forward.1} parent=1 // pred_fallthru
      _
    // Predicated region
    $region58: #{montage_model_forward.1} parent=1 // pred_check
      _
    $region59: #{montage_model_forward.1} parent=1 // pred_check_branch
      %56 = sbr.rel (0) target = $region61
    $region60: #{montage_model_forward.1} parent=1 // pred_region
      _
    $region61: #{montage_model_forward.1} parent=1 // pred_fallthru
      _
    // Predicated region
    $region62: #{montage_model_forward.1} parent=1 // pred_check
      _
    $region63: #{montage_model_forward.1} parent=1 // pred_check_branch
      %58 = sbr.rel (0) target = $region65
    $region64: #{montage_model_forward.1} parent=1 // pred_region
      _
    $region65: #{montage_model_forward.1} parent=1 // pred_fallthru
      _
    // Predicated region
    $region66: #{montage_model_forward.1} parent=1 // pred_check
      _
    $region67: #{montage_model_forward.1} parent=1 // pred_check_branch
      %60 = sbr.rel (0) target = $region69
    $region68: #{montage_model_forward.1} parent=1 // pred_region
      _
    $region69: #{montage_model_forward.1} parent=1 // pred_fallthru
      _
    // Predicated region
    $region70: #{montage_model_forward.1} parent=1 // pred_check
      _
    $region71: #{montage_model_forward.1} parent=1 // pred_check_branch
      %62 = sbr.rel (0) target = $region73
    $region72: #{montage_model_forward.1} parent=1 // pred_region
      _
    $region73: #{montage_model_forward.1} parent=1 // pred_fallthru
      _
    // Predicated region
    $region74: #{montage_model_forward.1} parent=1 // pred_check
      _
    $region75: #{montage_model_forward.1} parent=1 // pred_check_branch
      %64 = sbr.rel (0) target = $region77
    $region76: #{montage_model_forward.1} parent=1 // pred_region
      _
    $region77: #{montage_model_forward.1} parent=1 // pred_fallthru
      _
    // Predicated region
    $region78: #{montage_model_forward.1} parent=1 // pred_check
      _
    $region79: #{montage_model_forward.1} parent=1 // pred_check_branch
      %66 = sbr.rel (0) target = $region81
    $region80: #{montage_model_forward.1} parent=1 // pred_region
      _
    $region81: #{montage_model_forward.1} parent=1 // pred_fallthru
      _
    // Predicated region
    $region82: #{montage_model_forward.1} parent=1 // pred_check
      _
    $region83: #{montage_model_forward.1} parent=1 // pred_check_branch
      %68 = sbr.rel (0) target = $region85
    $region84: #{montage_model_forward.1} parent=1 // pred_region
      _
    $region85: #{montage_model_forward.1} parent=1 // pred_fallthru
      _
    %v69 = vld [vmem:[%s0] sm:$0xf]
    %v70 = vld [vmem:[%s0 + $0x4] sm:$0xf]
    %v71 = vld [vmem:[%s1] sm:$0xff]
    %v72 = vld [vmem:[%s1 + $0x8] sm:$0xff]
    %v73 = vld [vmem:[%s1 + $0x10] sm:$0xff]
    %v74 = vld [vmem:[%s1 + $0x18] sm:$0xff]
    %v77 = vcombine.low %v69, %v70
    %vm78 = vcmask 261120
    %v79 = vsel %vm78, %v77, 0
    %81 = vmatprep.subr.mxu0 0.0
    %82 = vmatpush1.msra.mxu0 0.0
    %83 = vmatprep.subr.mxu0 0.0
    %84 = vmatpush1.msra.mxu0 0.0
    %85 = vmatprep.subr.mxu0 0.0
    %86 = vmatpush1.msra.mxu0 0.0
    %87 = vmatprep.subr.mxu0 0.0
    %88 = vmatpush1.msra.mxu0 0.0
    %89 = vmatprep.subr.mxu0 0.0
    %90 = vmatpush1.msra.mxu0 0.0
    %91 = vmatprep.subr.mxu0 0.0
    %92 = vmatpush1.msra.mxu0 0.0
    %93 = vmatprep.subr.mxu0 0.0
    %94 = vmatpush1.msra.mxu0 0.0
    %95 = vmatprep.subr.mxu0 0.0
    %96 = vmatpush1.msra.mxu0 0.0
    %97 = vmatprep.subr.mxu0 0.0
    %98 = vmatpush1.msra.mxu0 0.0
    %99 = vmatprep.subr.mxu0 0.0
    %100 = vmatpush1.msra.mxu0 0.0
    %101 = vmatprep.subr.mxu0 0.0
    %102 = vmatpush1.msra.mxu0 0.0
    %103 = vmatprep.subr.mxu0 0.0
    %104 = vmatpush1.msra.mxu0 0.0
    %105 = vmatprep.subr.mxu0 0.0
    %106 = vmatpush1.msra.mxu0 %v74
    %107 = vmatprep.subr.mxu0 0.0
    %108 = vmatpush1.msra.mxu0 %v73
    %109 = vmatprep.subr.mxu0 0.0
    %110 = vmatpush1.msra.mxu0 %v72
    %111 = vmatprep.subr.mxu0 0.0
    %112 = vmatpush1.msra.mxu0 %v71
    %113 = vmatprep.subr.mxu0 0.0
    %114 = vmatpush2.msra.mxu0 0.0
    %115 = vmatprep.subr.mxu0 0.0
    %116 = vmatpush2.msra.mxu0 0.0
    %117 = vmatprep.subr.mxu0 0.0
    %118 = vmatpush2.msra.mxu0 0.0
    %119 = vmatprep.subr.mxu0 0.0
    %120 = vmatpush2.msra.mxu0 0.0
    %121 = vmatprep.subr.mxu0 0.0
    %122 = vmatpush2.msra.mxu0 0.0
    %123 = vmatprep.subr.mxu0 0.0
    %124 = vmatpush2.msra.mxu0 0.0
    %125 = vmatprep.subr.mxu0 0.0
    %126 = vmatpush2.msra.mxu0 0.0
    %127 = vmatprep.subr.mxu0 0.0
    %128 = vmatpush2.msra.mxu0 0.0
    %129 = vmatprep.subr.mxu0 0.0
    %130 = vmatpush2.msra.mxu0 0.0
    %131 = vmatprep.subr.mxu0 0.0
    %132 = vmatpush2.msra.mxu0 0.0
    %133 = vmatprep.subr.mxu0 0.0
    %134 = vmatpush2.msra.mxu0 0.0
    %135 = vmatprep.subr.mxu0 0.0
    %136 = vmatpush2.msra.mxu0 0.0
    %137 = vmatprep.subr.mxu0 0.0
    %138 = vmatpush2.msra.mxu0 0.0
    %139 = vmatprep.subr.mxu0 0.0
    %140 = vmatpush2.msra.mxu0 0.0
    %141 = vmatprep.subr.mxu0 0.0
    %142 = vmatpush2.msra.mxu0 0.0
    %143 = vmatprep.subr.mxu0 0.0
    %144 = vmatpush2.msra.mxu0 0.0
    %145 = vmatprep.mubr.f32.mxu0 0.0
    %146 = vmatmul.mubr.f32.gmra.mxu0 %v79
    %v147 = vpop.f32.mrf.mxu0
    %v148 = vadd.f32 0.0, %v147
    %v149 = vpop.f32.mrf.mxu0
    %150 = vdwg.mxu0
    %v152 = vcombine.high %v148, %v148
    %153 = vrot.lane.b32.xlu0 %v148, 96
    %v154 = vpop.permute.xlu0 %153
    %vm155 = vcmask 64512
    %v156 = vsel %vm155, %v148, 0
    %v158 = vsel %vm155, %v154, 0
    %160 = vmatprep.subr.mxu0 0.0
    %161 = vmatpush1.xpose.msra.mxu0 0.0
    %162 = vmatprep.subr.mxu0 0.0
    %163 = vmatpush1.xpose.msra.mxu0 0.0
    %164 = vmatprep.subr.mxu0 0.0
    %165 = vmatpush1.xpose.msra.mxu0 0.0
    %166 = vmatprep.subr.mxu0 0.0
    %167 = vmatpush1.xpose.msra.mxu0 0.0
    %168 = vmatprep.subr.mxu0 0.0
    %169 = vmatpush1.xpose.msra.mxu0 0.0
    %170 = vmatprep.subr.mxu0 0.0
    %171 = vmatpush1.xpose.msra.mxu0 0.0
    %172 = vmatprep.subr.mxu0 0.0
    %173 = vmatpush1.xpose.msra.mxu0 0.0
    %174 = vmatprep.subr.mxu0 0.0
    %175 = vmatpush1.xpose.msra.mxu0 0.0
    %176 = vmatprep.subr.mxu0 0.0
    %177 = vmatpush1.xpose.msra.mxu0 0.0
    %178 = vmatprep.subr.mxu0 0.0
    %179 = vmatpush1.xpose.msra.mxu0 0.0
    %180 = vmatprep.subr.mxu0 0.0
    %181 = vmatpush1.xpose.msra.mxu0 0.0
    %182 = vmatprep.subr.mxu0 0.0
    %183 = vmatpush1.xpose.msra.mxu0 0.0
    %184 = vmatprep.subr.mxu0 0.0
    %185 = vmatpush1.xpose.msra.mxu0 0.0
    %186 = vmatprep.subr.mxu0 0.0
    %187 = vmatpush1.xpose.msra.mxu0 0.0
    %188 = vmatprep.subr.mxu0 0.0
    %189 = vmatpush1.xpose.msra.mxu0 0.0
    %190 = vmatprep.subr.mxu0 0.0
    %191 = vmatpush1.xpose.msra.mxu0 %v158
    %192 = vmatprep.subr.mxu0 0.0
    %193 = vmatpush2.xpose.msra.mxu0 0.0
    %194 = vmatprep.subr.mxu0 0.0
    %195 = vmatpush2.xpose.msra.mxu0 0.0
    %196 = vmatprep.subr.mxu0 0.0
    %197 = vmatpush2.xpose.msra.mxu0 0.0
    %198 = vmatprep.subr.mxu0 0.0
    %199 = vmatpush2.xpose.msra.mxu0 0.0
    %200 = vmatprep.subr.mxu0 0.0
    %201 = vmatpush2.xpose.msra.mxu0 0.0
    %202 = vmatprep.subr.mxu0 0.0
    %203 = vmatpush2.xpose.msra.mxu0 0.0
    %204 = vmatprep.subr.mxu0 0.0
    %205 = vmatpush2.xpose.msra.mxu0 0.0
    %206 = vmatprep.subr.mxu0 0.0
    %207 = vmatpush2.xpose.msra.mxu0 0.0
    %208 = vmatprep.subr.mxu0 0.0
    %209 = vmatpush2.xpose.msra.mxu0 0.0
    %210 = vmatprep.subr.mxu0 0.0
    %211 = vmatpush2.xpose.msra.mxu0 0.0
    %212 = vmatprep.subr.mxu0 0.0
    %213 = vmatpush2.xpose.msra.mxu0 0.0
    %214 = vmatprep.subr.mxu0 0.0
    %215 = vmatpush2.xpose.msra.mxu0 0.0
    %216 = vmatprep.subr.mxu0 0.0
    %217 = vmatpush2.xpose.msra.mxu0 0.0
    %218 = vmatprep.subr.mxu0 0.0
    %219 = vmatpush2.xpose.msra.mxu0 0.0
    %220 = vmatprep.subr.mxu0 0.0
    %221 = vmatpush2.xpose.msra.mxu0 0.0
    %222 = vmatprep.subr.mxu0 0.0
    %223 = vmatpush2.xpose.msra.mxu0 0.0
    %224 = vmatprep.mubr.f32.mxu0 0.0
    %225 = vmatmul.mubr.f32.gmra.mxu0 %v156
    %v226 = vpop.f32.mrf.mxu0
    %v227 = vadd.f32 0.0, %v226
    %v228 = vpop.f32.mrf.mxu0
    %229 = vdwg.mxu0
    %230 = vrot.lane.b32.xlu0 %v152, 96
    %v231 = vpop.permute.xlu0 %230
    %v232 = vsel %vm155, %v152, 0
    %v234 = vsel %vm155, %v231, 0
    %236 = vmatprep.subr.mxu0 0.0
    %237 = vmatpush1.xpose.msra.mxu0 0.0
    %238 = vmatprep.subr.mxu0 0.0
    %239 = vmatpush1.xpose.msra.mxu0 0.0
    %240 = vmatprep.subr.mxu0 0.0
    %241 = vmatpush1.xpose.msra.mxu0 0.0
    %242 = vmatprep.subr.mxu0 0.0
    %243 = vmatpush1.xpose.msra.mxu0 0.0
    %244 = vmatprep.subr.mxu0 0.0
    %245 = vmatpush1.xpose.msra.mxu0 0.0
    %246 = vmatprep.subr.mxu0 0.0
    %247 = vmatpush1.xpose.msra.mxu0 0.0
    %248 = vmatprep.subr.mxu0 0.0
    %249 = vmatpush1.xpose.msra.mxu0 0.0
    %250 = vmatprep.subr.mxu0 0.0
    %251 = vmatpush1.xpose.msra.mxu0 0.0
    %252 = vmatprep.subr.mxu0 0.0
    %253 = vmatpush1.xpose.msra.mxu0 0.0
    %254 = vmatprep.subr.mxu0 0.0
    %255 = vmatpush1.xpose.msra.mxu0 0.0
    %256 = vmatprep.subr.mxu0 0.0
    %257 = vmatpush1.xpose.msra.mxu0 0.0
    %258 = vmatprep.subr.mxu0 0.0
    %259 = vmatpush1.xpose.msra.mxu0 0.0
    %260 = vmatprep.subr.mxu0 0.0
    %261 = vmatpush1.xpose.msra.mxu0 0.0
    %262 = vmatprep.subr.mxu0 0.0
    %263 = vmatpush1.xpose.msra.mxu0 0.0
    %264 = vmatprep.subr.mxu0 0.0
    %265 = vmatpush1.xpose.msra.mxu0 0.0
    %266 = vmatprep.subr.mxu0 0.0
    %267 = vmatpush1.xpose.msra.mxu0 %v234
    %268 = vmatprep.subr.mxu0 0.0
    %269 = vmatpush2.xpose.msra.mxu0 0.0
    %270 = vmatprep.subr.mxu0 0.0
    %271 = vmatpush2.xpose.msra.mxu0 0.0
    %272 = vmatprep.subr.mxu0 0.0
    %273 = vmatpush2.xpose.msra.mxu0 0.0
    %274 = vmatprep.subr.mxu0 0.0
    %275 = vmatpush2.xpose.msra.mxu0 0.0
    %276 = vmatprep.subr.mxu0 0.0
    %277 = vmatpush2.xpose.msra.mxu0 0.0
    %278 = vmatprep.subr.mxu0 0.0
    %279 = vmatpush2.xpose.msra.mxu0 0.0
    %280 = vmatprep.subr.mxu0 0.0
    %281 = vmatpush2.xpose.msra.mxu0 0.0
    %282 = vmatprep.subr.mxu0 0.0
    %283 = vmatpush2.xpose.msra.mxu0 0.0
    %284 = vmatprep.subr.mxu0 0.0
    %285 = vmatpush2.xpose.msra.mxu0 0.0
    %286 = vmatprep.subr.mxu0 0.0
    %287 = vmatpush2.xpose.msra.mxu0 0.0
    %288 = vmatprep.subr.mxu0 0.0
    %289 = vmatpush2.xpose.msra.mxu0 0.0
    %290 = vmatprep.subr.mxu0 0.0
    %291 = vmatpush2.xpose.msra.mxu0 0.0
    %292 = vmatprep.subr.mxu0 0.0
    %293 = vmatpush2.xpose.msra.mxu0 0.0
    %294 = vmatprep.subr.mxu0 0.0
    %295 = vmatpush2.xpose.msra.mxu0 0.0
    %296 = vmatprep.subr.mxu0 0.0
    %297 = vmatpush2.xpose.msra.mxu0 0.0
    %298 = vmatprep.subr.mxu0 0.0
    %299 = vmatpush2.xpose.msra.mxu0 0.0
    %300 = vmatprep.mubr.f32.mxu0 0.0
    %301 = vmatmul.mubr.f32.gmra.mxu0 %v232
    %v302 = vpop.f32.mrf.mxu0
    %v303 = vadd.f32 0.0, %v302
    %v304 = vpop.f32.mrf.mxu0
    %305 = vdwg.mxu0
    %v306 = vmul.f32 %v227, 0.35355338
    %v307 = vmul.f32 %v303, 0.35355338
    %vm308 = vcmask 27648
    %v309 = vsel %vm308, %v306, -inf
    %310 = vmax.xlane.f32.xlu0 %v309
    %v311 = vpop.xlane.xlu0 %310
    %v312 = vsel %vm308, %v307, -inf
    %313 = vmax.xlane.f32.xlu0 %v312
    %v314 = vpop.xlane.xlu0 %313
    %v315 = vsub.f32 %v306, %v311
    %v316 = vsub.f32 %v307, %v314
    %v317 = vmul.f32 %v315, 1.442695
    %v318 = vpow.pop %v317
    %v319 = vmul.f32 %v316, 1.442695
    %v320 = vpow.pop %v319
    %v321 = vsel %vm308, %v318, 0.0
    %322 = vadd.xlane.f32.xlu0 %v321
    %v323 = vpop.xlane.xlu0 %322
    %v324 = vsel %vm308, %v320, 0.0
    %325 = vadd.xlane.f32.xlu0 %v324
    %v326 = vpop.xlane.xlu0 %325
    %v327 = vrcp.pop %v323
    %v328 = vrcp.pop %v326
    %v329 = vmul.f32 %v318, %v327
    %v330 = vmul.f32 %v320, %v328
    %331 = vrot.lane.b32.xlu0 %v148, 64
    %v332 = vpop.permute.xlu0 %331
    %vm333 = vcmask 31744
    %v335 = vsel %vm333, %v329, 0
    %vm337 = vcmask 1043456
    %v338 = vsel %vm337, %v332, 0
    %340 = vmatprep.subr.mxu0 0.0
    %341 = vmatpush1.msra.mxu0 0.0
    %342 = vmatprep.subr.mxu0 0.0
    %343 = vmatpush1.msra.mxu0 0.0
    %344 = vmatprep.subr.mxu0 0.0
    %345 = vmatpush1.msra.mxu0 0.0
    %346 = vmatprep.subr.mxu0 0.0
    %347 = vmatpush1.msra.mxu0 0.0
    %348 = vmatprep.subr.mxu0 0.0
    %349 = vmatpush1.msra.mxu0 0.0
    %350 = vmatprep.subr.mxu0 0.0
    %351 = vmatpush1.msra.mxu0 0.0
    %352 = vmatprep.subr.mxu0 0.0
    %353 = vmatpush1.msra.mxu0 0.0
    %354 = vmatprep.subr.mxu0 0.0
    %355 = vmatpush1.msra.mxu0 0.0
    %356 = vmatprep.subr.mxu0 0.0
    %357 = vmatpush1.msra.mxu0 0.0
    %358 = vmatprep.subr.mxu0 0.0
    %359 = vmatpush1.msra.mxu0 0.0
    %360 = vmatprep.subr.mxu0 0.0
    %361 = vmatpush1.msra.mxu0 0.0
    %362 = vmatprep.subr.mxu0 0.0
    %363 = vmatpush1.msra.mxu0 0.0
    %364 = vmatprep.subr.mxu0 0.0
    %365 = vmatpush1.msra.mxu0 0.0
    %366 = vmatprep.subr.mxu0 0.0
    %367 = vmatpush1.msra.mxu0 0.0
    %368 = vmatprep.subr.mxu0 0.0
    %369 = vmatpush1.msra.mxu0 0.0
    %370 = vmatprep.subr.mxu0 0.0
    %371 = vmatpush1.msra.mxu0 %v338
    %372 = vmatprep.subr.mxu0 0.0
    %373 = vmatpush2.msra.mxu0 0.0
    %374 = vmatprep.subr.mxu0 0.0
    %375 = vmatpush2.msra.mxu0 0.0
    %376 = vmatprep.subr.mxu0 0.0
    %377 = vmatpush2.msra.mxu0 0.0
    %378 = vmatprep.subr.mxu0 0.0
    %379 = vmatpush2.msra.mxu0 0.0
    %380 = vmatprep.subr.mxu0 0.0
    %381 = vmatpush2.msra.mxu0 0.0
    %382 = vmatprep.subr.mxu0 0.0
    %383 = vmatpush2.msra.mxu0 0.0
    %384 = vmatprep.subr.mxu0 0.0
    %385 = vmatpush2.msra.mxu0 0.0
    %386 = vmatprep.subr.mxu0 0.0
    %387 = vmatpush2.msra.mxu0 0.0
    %388 = vmatprep.subr.mxu0 0.0
    %389 = vmatpush2.msra.mxu0 0.0
    %390 = vmatprep.subr.mxu0 0.0
    %391 = vmatpush2.msra.mxu0 0.0
    %392 = vmatprep.subr.mxu0 0.0
    %393 = vmatpush2.msra.mxu0 0.0
    %394 = vmatprep.subr.mxu0 0.0
    %395 = vmatpush2.msra.mxu0 0.0
    %396 = vmatprep.subr.mxu0 0.0
    %397 = vmatpush2.msra.mxu0 0.0
    %398 = vmatprep.subr.mxu0 0.0
    %399 = vmatpush2.msra.mxu0 0.0
    %400 = vmatprep.subr.mxu0 0.0
    %401 = vmatpush2.msra.mxu0 0.0
    %402 = vmatprep.subr.mxu0 0.0
    %403 = vmatpush2.msra.mxu0 0.0
    %404 = vmatprep.mubr.f32.mxu0 0.0
    %405 = vmatmul.mubr.f32.gmra.mxu0 %v335
    %v406 = vpop.f32.mrf.mxu0
    %v407 = vadd.f32 0.0, %v406
    %v408 = vpop.f32.mrf.mxu0
    %409 = vdwg.mxu0
    %410 = vrot.lane.b32.xlu0 %v152, 64
    %v411 = vpop.permute.xlu0 %410
    %v413 = vsel %vm333, %v330, 0
    %v415 = vsel %vm337, %v411, 0
    %417 = vmatprep.subr.mxu0 0.0
    %418 = vmatpush1.msra.mxu0 0.0
    %419 = vmatprep.subr.mxu0 0.0
    %420 = vmatpush1.msra.mxu0 0.0
    %421 = vmatprep.subr.mxu0 0.0
    %422 = vmatpush1.msra.mxu0 0.0
    %423 = vmatprep.subr.mxu0 0.0
    %424 = vmatpush1.msra.mxu0 0.0
    %425 = vmatprep.subr.mxu0 0.0
    %426 = vmatpush1.msra.mxu0 0.0
    %427 = vmatprep.subr.mxu0 0.0
    %428 = vmatpush1.msra.mxu0 0.0
    %429 = vmatprep.subr.mxu0 0.0
    %430 = vmatpush1.msra.mxu0 0.0
    %431 = vmatprep.subr.mxu0 0.0
    %432 = vmatpush1.msra.mxu0 0.0
    %433 = vmatprep.subr.mxu0 0.0
    %434 = vmatpush1.msra.mxu0 0.0
    %435 = vmatprep.subr.mxu0 0.0
    %436 = vmatpush1.msra.mxu0 0.0
    %437 = vmatprep.subr.mxu0 0.0
    %438 = vmatpush1.msra.mxu0 0.0
    %439 = vmatprep.subr.mxu0 0.0
    %440 = vmatpush1.msra.mxu0 0.0
    %441 = vmatprep.subr.mxu0 0.0
    %442 = vmatpush1.msra.mxu0 0.0
    %443 = vmatprep.subr.mxu0 0.0
    %444 = vmatpush1.msra.mxu0 0.0
    %445 = vmatprep.subr.mxu0 0.0
    %446 = vmatpush1.msra.mxu0 0.0
    %447 = vmatprep.subr.mxu0 0.0
    %448 = vmatpush1.msra.mxu0 %v415
    %449 = vmatprep.subr.mxu0 0.0
    %450 = vmatpush2.msra.mxu0 0.0
    %451 = vmatprep.subr.mxu0 0.0
    %452 = vmatpush2.msra.mxu0 0.0
    %453 = vmatprep.subr.mxu0 0.0
    %454 = vmatpush2.msra.mxu0 0.0
    %455 = vmatprep.subr.mxu0 0.0
    %456 = vmatpush2.msra.mxu0 0.0
    %457 = vmatprep.subr.mxu0 0.0
    %458 = vmatpush2.msra.mxu0 0.0
    %459 = vmatprep.subr.mxu0 0.0
    %460 = vmatpush2.msra.mxu0 0.0
    %461 = vmatprep.subr.mxu0 0.0
    %462 = vmatpush2.msra.mxu0 0.0
    %463 = vmatprep.subr.mxu0 0.0
    %464 = vmatpush2.msra.mxu0 0.0
    %465 = vmatprep.subr.mxu0 0.0
    %466 = vmatpush2.msra.mxu0 0.0
    %467 = vmatprep.subr.mxu0 0.0
    %468 = vmatpush2.msra.mxu0 0.0
    %469 = vmatprep.subr.mxu0 0.0
    %470 = vmatpush2.msra.mxu0 0.0
    %471 = vmatprep.subr.mxu0 0.0
    %472 = vmatpush2.msra.mxu0 0.0
    %473 = vmatprep.subr.mxu0 0.0
    %474 = vmatpush2.msra.mxu0 0.0
    %475 = vmatprep.subr.mxu0 0.0
    %476 = vmatpush2.msra.mxu0 0.0
    %477 = vmatprep.subr.mxu0 0.0
    %478 = vmatpush2.msra.mxu0 0.0
    %479 = vmatprep.subr.mxu0 0.0
    %480 = vmatpush2.msra.mxu0 0.0
    %481 = vmatprep.mubr.f32.mxu0 0.0
    %482 = vmatmul.mubr.f32.gmra.mxu0 %v413
    %v483 = vpop.f32.mrf.mxu0
    %v484 = vadd.f32 0.0, %v483
    %v485 = vpop.f32.mrf.mxu0
    %486 = vdwg.mxu0
    %487 = vrot.lane.b32.xlu0 %v148, 120
    %v488 = vpop.permute.xlu0 %487
    %489 = vrot.lane.b32.xlu0 %v148, 88
    %v490 = vpop.permute.xlu0 %489
    %v491 = vsel %vm155, %v488, 0
    %v493 = vsel %vm155, %v490, 0
    %495 = vmatprep.subr.mxu0 0.0
    %496 = vmatpush1.xpose.msra.mxu0 0.0
    %497 = vmatprep.subr.mxu0 0.0
    %498 = vmatpush1.xpose.msra.mxu0 0.0
    %499 = vmatprep.subr.mxu0 0.0
    %500 = vmatpush1.xpose.msra.mxu0 0.0
    %501 = vmatprep.subr.mxu0 0.0
    %502 = vmatpush1.xpose.msra.mxu0 0.0
    %503 = vmatprep.subr.mxu0 0.0
    %504 = vmatpush1.xpose.msra.mxu0 0.0
    %505 = vmatprep.subr.mxu0 0.0
    %506 = vmatpush1.xpose.msra.mxu0 0.0
    %507 = vmatprep.subr.mxu0 0.0
    %508 = vmatpush1.xpose.msra.mxu0 0.0
    %509 = vmatprep.subr.mxu0 0.0
    %510 = vmatpush1.xpose.msra.mxu0 0.0
    %511 = vmatprep.subr.mxu0 0.0
    %512 = vmatpush1.xpose.msra.mxu0 0.0
    %513 = vmatprep.subr.mxu0 0.0
    %514 = vmatpush1.xpose.msra.mxu0 0.0
    %515 = vmatprep.subr.mxu0 0.0
    %516 = vmatpush1.xpose.msra.mxu0 0.0
    %517 = vmatprep.subr.mxu0 0.0
    %518 = vmatpush1.xpose.msra.mxu0 0.0
    %519 = vmatprep.subr.mxu0 0.0
    %520 = vmatpush1.xpose.msra.mxu0 0.0
    %521 = vmatprep.subr.mxu0 0.0
    %522 = vmatpush1.xpose.msra.mxu0 0.0
    %523 = vmatprep.subr.mxu0 0.0
    %524 = vmatpush1.xpose.msra.mxu0 0.0
    %525 = vmatprep.subr.mxu0 0.0
    %526 = vmatpush1.xpose.msra.mxu0 %v493
    %527 = vmatprep.subr.mxu0 0.0
    %528 = vmatpush2.xpose.msra.mxu0 0.0
    %529 = vmatprep.subr.mxu0 0.0
    %530 = vmatpush2.xpose.msra.mxu0 0.0
    %531 = vmatprep.subr.mxu0 0.0
    %532 = vmatpush2.xpose.msra.mxu0 0.0
    %533 = vmatprep.subr.mxu0 0.0
    %534 = vmatpush2.xpose.msra.mxu0 0.0
    %535 = vmatprep.subr.mxu0 0.0
    %536 = vmatpush2.xpose.msra.mxu0 0.0
    %537 = vmatprep.subr.mxu0 0.0
    %538 = vmatpush2.xpose.msra.mxu0 0.0
    %539 = vmatprep.subr.mxu0 0.0
    %540 = vmatpush2.xpose.msra.mxu0 0.0
    %541 = vmatprep.subr.mxu0 0.0
    %542 = vmatpush2.xpose.msra.mxu0 0.0
    %543 = vmatprep.subr.mxu0 0.0
    %544 = vmatpush2.xpose.msra.mxu0 0.0
    %545 = vmatprep.subr.mxu0 0.0
    %546 = vmatpush2.xpose.msra.mxu0 0.0
    %547 = vmatprep.subr.mxu0 0.0
    %548 = vmatpush2.xpose.msra.mxu0 0.0
    %549 = vmatprep.subr.mxu0 0.0
    %550 = vmatpush2.xpose.msra.mxu0 0.0
    %551 = vmatprep.subr.mxu0 0.0
    %552 = vmatpush2.xpose.msra.mxu0 0.0
    %553 = vmatprep.subr.mxu0 0.0
    %554 = vmatpush2.xpose.msra.mxu0 0.0
    %555 = vmatprep.subr.mxu0 0.0
    %556 = vmatpush2.xpose.msra.mxu0 0.0
    %557 = vmatprep.subr.mxu0 0.0
    %558 = vmatpush2.xpose.msra.mxu0 0.0
    %559 = vmatprep.mubr.f32.mxu0 0.0
    %560 = vmatmul.mubr.f32.gmra.mxu0 %v491
    %v561 = vpop.f32.mrf.mxu0
    %v562 = vadd.f32 0.0, %v561
    %v563 = vpop.f32.mrf.mxu0
    %564 = vdwg.mxu0
    %565 = vrot.lane.b32.xlu0 %v152, 120
    %v566 = vpop.permute.xlu0 %565
    %567 = vrot.lane.b32.xlu0 %v152, 88
    %v568 = vpop.permute.xlu0 %567
    %v569 = vsel %vm155, %v566, 0
    %v571 = vsel %vm155, %v568, 0
    %573 = vmatprep.subr.mxu0 0.0
    %574 = vmatpush1.xpose.msra.mxu0 0.0
    %575 = vmatprep.subr.mxu0 0.0
    %576 = vmatpush1.xpose.msra.mxu0 0.0
    %577 = vmatprep.subr.mxu0 0.0
    %578 = vmatpush1.xpose.msra.mxu0 0.0
    %579 = vmatprep.subr.mxu0 0.0
    %580 = vmatpush1.xpose.msra.mxu0 0.0
    %581 = vmatprep.subr.mxu0 0.0
    %582 = vmatpush1.xpose.msra.mxu0 0.0
    %583 = vmatprep.subr.mxu0 0.0
    %584 = vmatpush1.xpose.msra.mxu0 0.0
    %585 = vmatprep.subr.mxu0 0.0
    %586 = vmatpush1.xpose.msra.mxu0 0.0
    %587 = vmatprep.subr.mxu0 0.0
    %588 = vmatpush1.xpose.msra.mxu0 0.0
    %589 = vmatprep.subr.mxu0 0.0
    %590 = vmatpush1.xpose.msra.mxu0 0.0
    %591 = vmatprep.subr.mxu0 0.0
    %592 = vmatpush1.xpose.msra.mxu0 0.0
    %593 = vmatprep.subr.mxu0 0.0
    %594 = vmatpush1.xpose.msra.mxu0 0.0
    %595 = vmatprep.subr.mxu0 0.0
    %596 = vmatpush1.xpose.msra.mxu0 0.0
    %597 = vmatprep.subr.mxu0 0.0
    %598 = vmatpush1.xpose.msra.mxu0 0.0
    %599 = vmatprep.subr.mxu0 0.0
    %600 = vmatpush1.xpose.msra.mxu0 0.0
    %601 = vmatprep.subr.mxu0 0.0
    %602 = vmatpush1.xpose.msra.mxu0 0.0
    %603 = vmatprep.subr.mxu0 0.0
    %604 = vmatpush1.xpose.msra.mxu0 %v571
    %605 = vmatprep.subr.mxu0 0.0
    %606 = vmatpush2.xpose.msra.mxu0 0.0
    %607 = vmatprep.subr.mxu0 0.0
    %608 = vmatpush2.xpose.msra.mxu0 0.0
    %609 = vmatprep.subr.mxu0 0.0
    %610 = vmatpush2.xpose.msra.mxu0 0.0
    %611 = vmatprep.subr.mxu0 0.0
    %612 = vmatpush2.xpose.msra.mxu0 0.0
    %613 = vmatprep.subr.mxu0 0.0
    %614 = vmatpush2.xpose.msra.mxu0 0.0
    %615 = vmatprep.subr.mxu0 0.0
    %616 = vmatpush2.xpose.msra.mxu0 0.0
    %617 = vmatprep.subr.mxu0 0.0
    %618 = vmatpush2.xpose.msra.mxu0 0.0
    %619 = vmatprep.subr.mxu0 0.0
    %620 = vmatpush2.xpose.msra.mxu0 0.0
    %621 = vmatprep.subr.mxu0 0.0
    %622 = vmatpush2.xpose.msra.mxu0 0.0
    %623 = vmatprep.subr.mxu0 0.0
    %624 = vmatpush2.xpose.msra.mxu0 0.0
    %625 = vmatprep.subr.mxu0 0.0
    %626 = vmatpush2.xpose.msra.mxu0 0.0
    %627 = vmatprep.subr.mxu0 0.0
    %628 = vmatpush2.xpose.msra.mxu0 0.0
    %629 = vmatprep.subr.mxu0 0.0
    %630 = vmatpush2.xpose.msra.mxu0 0.0
    %631 = vmatprep.subr.mxu0 0.0
    %632 = vmatpush2.xpose.msra.mxu0 0.0
    %633 = vmatprep.subr.mxu0 0.0
    %634 = vmatpush2.xpose.msra.mxu0 0.0
    %635 = vmatprep.subr.mxu0 0.0
    %636 = vmatpush2.xpose.msra.mxu0 0.0
    %637 = vmatprep.mubr.f32.mxu0 0.0
    %638 = vmatmul.mubr.f32.gmra.mxu0 %v569
    %v639 = vpop.f32.mrf.mxu0
    %v640 = vadd.f32 0.0, %v639
    %v641 = vpop.f32.mrf.mxu0
    %642 = vdwg.mxu0
    %v643 = vmul.f32 %v562, 0.35355338
    %v644 = vmul.f32 %v640, 0.35355338
    %v645 = vsel %vm308, %v643, -inf
    %646 = vmax.xlane.f32.xlu0 %v645
    %v647 = vpop.xlane.xlu0 %646
    %v648 = vsel %vm308, %v644, -inf
    %649 = vmax.xlane.f32.xlu0 %v648
    %v650 = vpop.xlane.xlu0 %649
    %v651 = vsub.f32 %v643, %v647
    %v652 = vsub.f32 %v644, %v650
    %v653 = vmul.f32 %v651, 1.442695
    %v654 = vpow.pop %v653
    %v655 = vmul.f32 %v652, 1.442695
    %v656 = vpow.pop %v655
    %v657 = vsel %vm308, %v654, 0.0
    %658 = vadd.xlane.f32.xlu0 %v657
    %v659 = vpop.xlane.xlu0 %658
    %v660 = vsel %vm308, %v656, 0.0
    %661 = vadd.xlane.f32.xlu0 %v660
    %v662 = vpop.xlane.xlu0 %661
    %v663 = vrcp.pop %v659
    %v664 = vrcp.pop %v662
    %v665 = vmul.f32 %v654, %v663
    %v666 = vmul.f32 %v656, %v664
    %667 = vrot.lane.b32.xlu0 %v148, 56
    %v668 = vpop.permute.xlu0 %667
    %v670 = vsel %vm333, %v665, 0
    %v672 = vsel %vm337, %v668, 0
    %674 = vmatprep.subr.mxu0 0.0
    %675 = vmatpush1.msra.mxu0 0.0
    %676 = vmatprep.subr.mxu0 0.0
    %677 = vmatpush1.msra.mxu0 0.0
    %678 = vmatprep.subr.mxu0 0.0
    %679 = vmatpush1.msra.mxu0 0.0
    %680 = vmatprep.subr.mxu0 0.0
    %681 = vmatpush1.msra.mxu0 0.0
    %682 = vmatprep.subr.mxu0 0.0
    %683 = vmatpush1.msra.mxu0 0.0
    %684 = vmatprep.subr.mxu0 0.0
    %685 = vmatpush1.msra.mxu0 0.0
    %686 = vmatprep.subr.mxu0 0.0
    %687 = vmatpush1.msra.mxu0 0.0
    %688 = vmatprep.subr.mxu0 0.0
    %689 = vmatpush1.msra.mxu0 0.0
    %690 = vmatprep.subr.mxu0 0.0
    %691 = vmatpush1.msra.mxu0 0.0
    %692 = vmatprep.subr.mxu0 0.0
    %693 = vmatpush1.msra.mxu0 0.0
    %694 = vmatprep.subr.mxu0 0.0
    %695 = vmatpush1.msra.mxu0 0.0
    %696 = vmatprep.subr.mxu0 0.0
    %697 = vmatpush1.msra.mxu0 0.0
    %698 = vmatprep.subr.mxu0 0.0
    %699 = vmatpush1.msra.mxu0 0.0
    %700 = vmatprep.subr.mxu0 0.0
    %701 = vmatpush1.msra.mxu0 0.0
    %702 = vmatprep.subr.mxu0 0.0
    %703 = vmatpush1.msra.mxu0 0.0
    %704 = vmatprep.subr.mxu0 0.0
    %705 = vmatpush1.msra.mxu0 %v672
    %706 = vmatprep.subr.mxu0 0.0
    %707 = vmatpush2.msra.mxu0 0.0
    %708 = vmatprep.subr.mxu0 0.0
    %709 = vmatpush2.msra.mxu0 0.0
    %710 = vmatprep.subr.mxu0 0.0
    %711 = vmatpush2.msra.mxu0 0.0
    %712 = vmatprep.subr.mxu0 0.0
    %713 = vmatpush2.msra.mxu0 0.0
    %714 = vmatprep.subr.mxu0 0.0
    %715 = vmatpush2.msra.mxu0 0.0
    %716 = vmatprep.subr.mxu0 0.0
    %717 = vmatpush2.msra.mxu0 0.0
    %718 = vmatprep.subr.mxu0 0.0
    %719 = vmatpush2.msra.mxu0 0.0
    %720 = vmatprep.subr.mxu0 0.0
    %721 = vmatpush2.msra.mxu0 0.0
    %722 = vmatprep.subr.mxu0 0.0
    %723 = vmatpush2.msra.mxu0 0.0
    %724 = vmatprep.subr.mxu0 0.0
    %725 = vmatpush2.msra.mxu0 0.0
    %726 = vmatprep.subr.mxu0 0.0
    %727 = vmatpush2.msra.mxu0 0.0
    %728 = vmatprep.subr.mxu0 0.0
    %729 = vmatpush2.msra.mxu0 0.0
    %730 = vmatprep.subr.mxu0 0.0
    %731 = vmatpush2.msra.mxu0 0.0
    %732 = vmatprep.subr.mxu0 0.0
    %733 = vmatpush2.msra.mxu0 0.0
    %734 = vmatprep.subr.mxu0 0.0
    %735 = vmatpush2.msra.mxu0 0.0
    %736 = vmatprep.subr.mxu0 0.0
    %737 = vmatpush2.msra.mxu0 0.0
    %738 = vmatprep.mubr.f32.mxu0 0.0
    %739 = vmatmul.mubr.f32.gmra.mxu0 %v670
    %v740 = vpop.f32.mrf.mxu0
    %v741 = vadd.f32 0.0, %v740
    %v742 = vpop.f32.mrf.mxu0
    %743 = vdwg.mxu0
    %744 = vrot.lane.b32.xlu0 %v152, 56
    %v745 = vpop.permute.xlu0 %744
    %v747 = vsel %vm333, %v666, 0
    %v749 = vsel %vm337, %v745, 0
    %751 = vmatprep.subr.mxu0 0.0
    %752 = vmatpush1.msra.mxu0 0.0
    %753 = vmatprep.subr.mxu0 0.0
    %754 = vmatpush1.msra.mxu0 0.0
    %755 = vmatprep.subr.mxu0 0.0
    %756 = vmatpush1.msra.mxu0 0.0
    %757 = vmatprep.subr.mxu0 0.0
    %758 = vmatpush1.msra.mxu0 0.0
    %759 = vmatprep.subr.mxu0 0.0
    %760 = vmatpush1.msra.mxu0 0.0
    %761 = vmatprep.subr.mxu0 0.0
    %762 = vmatpush1.msra.mxu0 0.0
    %763 = vmatprep.subr.mxu0 0.0
    %764 = vmatpush1.msra.mxu0 0.0
    %765 = vmatprep.subr.mxu0 0.0
    %766 = vmatpush1.msra.mxu0 0.0
    %767 = vmatprep.subr.mxu0 0.0
    %768 = vmatpush1.msra.mxu0 0.0
    %769 = vmatprep.subr.mxu0 0.0
    %770 = vmatpush1.msra.mxu0 0.0
    %771 = vmatprep.subr.mxu0 0.0
    %772 = vmatpush1.msra.mxu0 0.0
    %773 = vmatprep.subr.mxu0 0.0
    %774 = vmatpush1.msra.mxu0 0.0
    %775 = vmatprep.subr.mxu0 0.0
    %776 = vmatpush1.msra.mxu0 0.0
    %777 = vmatprep.subr.mxu0 0.0
    %778 = vmatpush1.msra.mxu0 0.0
    %779 = vmatprep.subr.mxu0 0.0
    %780 = vmatpush1.msra.mxu0 0.0
    %781 = vmatprep.subr.mxu0 0.0
    %782 = vmatpush1.msra.mxu0 %v749
    %783 = vmatprep.subr.mxu0 0.0
    %784 = vmatpush2.msra.mxu0 0.0
    %785 = vmatprep.subr.mxu0 0.0
    %786 = vmatpush2.msra.mxu0 0.0
    %787 = vmatprep.subr.mxu0 0.0
    %788 = vmatpush2.msra.mxu0 0.0
    %789 = vmatprep.subr.mxu0 0.0
    %790 = vmatpush2.msra.mxu0 0.0
    %791 = vmatprep.subr.mxu0 0.0
    %792 = vmatpush2.msra.mxu0 0.0
    %793 = vmatprep.subr.mxu0 0.0
    %794 = vmatpush2.msra.mxu0 0.0
    %795 = vmatprep.subr.mxu0 0.0
    %796 = vmatpush2.msra.mxu0 0.0
    %797 = vmatprep.subr.mxu0 0.0
    %798 = vmatpush2.msra.mxu0 0.0
    %799 = vmatprep.subr.mxu0 0.0
    %800 = vmatpush2.msra.mxu0 0.0
    %801 = vmatprep.subr.mxu0 0.0
    %802 = vmatpush2.msra.mxu0 0.0
    %803 = vmatprep.subr.mxu0 0.0
    %804 = vmatpush2.msra.mxu0 0.0
    %805 = vmatprep.subr.mxu0 0.0
    %806 = vmatpush2.msra.mxu0 0.0
    %807 = vmatprep.subr.mxu0 0.0
    %808 = vmatpush2.msra.mxu0 0.0
    %809 = vmatprep.subr.mxu0 0.0
    %810 = vmatpush2.msra.mxu0 0.0
    %811 = vmatprep.subr.mxu0 0.0
    %812 = vmatpush2.msra.mxu0 0.0
    %813 = vmatprep.subr.mxu0 0.0
    %814 = vmatpush2.msra.mxu0 0.0
    %815 = vmatprep.mubr.f32.mxu0 0.0
    %816 = vmatmul.mubr.f32.gmra.mxu0 %v747
    %v817 = vpop.f32.mrf.mxu0
    %v818 = vadd.f32 0.0, %v817
    %v819 = vpop.f32.mrf.mxu0
    %820 = vdwg.mxu0
    %821 = vrot.lane.b32.xlu0 %v148, 112
    %v822 = vpop.permute.xlu0 %821
    %823 = vrot.lane.b32.xlu0 %v148, 80
    %v824 = vpop.permute.xlu0 %823
    %v825 = vsel %vm155, %v822, 0
    %v827 = vsel %vm155, %v824, 0
    %829 = vmatprep.subr.mxu0 0.0
    %830 = vmatpush1.xpose.msra.mxu0 0.0
    %831 = vmatprep.subr.mxu0 0.0
    %832 = vmatpush1.xpose.msra.mxu0 0.0
    %833 = vmatprep.subr.mxu0 0.0
    %834 = vmatpush1.xpose.msra.mxu0 0.0
    %835 = vmatprep.subr.mxu0 0.0
    %836 = vmatpush1.xpose.msra.mxu0 0.0
    %837 = vmatprep.subr.mxu0 0.0
    %838 = vmatpush1.xpose.msra.mxu0 0.0
    %839 = vmatprep.subr.mxu0 0.0
    %840 = vmatpush1.xpose.msra.mxu0 0.0
    %841 = vmatprep.subr.mxu0 0.0
    %842 = vmatpush1.xpose.msra.mxu0 0.0
    %843 = vmatprep.subr.mxu0 0.0
    %844 = vmatpush1.xpose.msra.mxu0 0.0
    %845 = vmatprep.subr.mxu0 0.0
    %846 = vmatpush1.xpose.msra.mxu0 0.0
    %847 = vmatprep.subr.mxu0 0.0
    %848 = vmatpush1.xpose.msra.mxu0 0.0
    %849 = vmatprep.subr.mxu0 0.0
    %850 = vmatpush1.xpose.msra.mxu0 0.0
    %851 = vmatprep.subr.mxu0 0.0
    %852 = vmatpush1.xpose.msra.mxu0 0.0
    %853 = vmatprep.subr.mxu0 0.0
    %854 = vmatpush1.xpose.msra.mxu0 0.0
    %855 = vmatprep.subr.mxu0 0.0
    %856 = vmatpush1.xpose.msra.mxu0 0.0
    %857 = vmatprep.subr.mxu0 0.0
    %858 = vmatpush1.xpose.msra.mxu0 0.0
    %859 = vmatprep.subr.mxu0 0.0
    %860 = vmatpush1.xpose.msra.mxu0 %v827
    %861 = vmatprep.subr.mxu0 0.0
    %862 = vmatpush2.xpose.msra.mxu0 0.0
    %863 = vmatprep.subr.mxu0 0.0
    %864 = vmatpush2.xpose.msra.mxu0 0.0
    %865 = vmatprep.subr.mxu0 0.0
    %866 = vmatpush2.xpose.msra.mxu0 0.0
    %867 = vmatprep.subr.mxu0 0.0
    %868 = vmatpush2.xpose.msra.mxu0 0.0
    %869 = vmatprep.subr.mxu0 0.0
    %870 = vmatpush2.xpose.msra.mxu0 0.0
    %871 = vmatprep.subr.mxu0 0.0
    %872 = vmatpush2.xpose.msra.mxu0 0.0
    %873 = vmatprep.subr.mxu0 0.0
    %874 = vmatpush2.xpose.msra.mxu0 0.0
    %875 = vmatprep.subr.mxu0 0.0
    %876 = vmatpush2.xpose.msra.mxu0 0.0
    %877 = vmatprep.subr.mxu0 0.0
    %878 = vmatpush2.xpose.msra.mxu0 0.0
    %879 = vmatprep.subr.mxu0 0.0
    %880 = vmatpush2.xpose.msra.mxu0 0.0
    %881 = vmatprep.subr.mxu0 0.0
    %882 = vmatpush2.xpose.msra.mxu0 0.0
    %883 = vmatprep.subr.mxu0 0.0
    %884 = vmatpush2.xpose.msra.mxu0 0.0
    %885 = vmatprep.subr.mxu0 0.0
    %886 = vmatpush2.xpose.msra.mxu0 0.0
    %887 = vmatprep.subr.mxu0 0.0
    %888 = vmatpush2.xpose.msra.mxu0 0.0
    %889 = vmatprep.subr.mxu0 0.0
    %890 = vmatpush2.xpose.msra.mxu0 0.0
    %891 = vmatprep.subr.mxu0 0.0
    %892 = vmatpush2.xpose.msra.mxu0 0.0
    %893 = vmatprep.mubr.f32.mxu0 0.0
    %894 = vmatmul.mubr.f32.gmra.mxu0 %v825
    %v895 = vpop.f32.mrf.mxu0
    %v896 = vadd.f32 0.0, %v895
    %v897 = vpop.f32.mrf.mxu0
    %898 = vdwg.mxu0
    %899 = vrot.lane.b32.xlu0 %v152, 112
    %v900 = vpop.permute.xlu0 %899
    %901 = vrot.lane.b32.xlu0 %v152, 80
    %v902 = vpop.permute.xlu0 %901
    %v903 = vsel %vm155, %v900, 0
    %v905 = vsel %vm155, %v902, 0
    %907 = vmatprep.subr.mxu0 0.0
    %908 = vmatpush1.xpose.msra.mxu0 0.0
    %909 = vmatprep.subr.mxu0 0.0
    %910 = vmatpush1.xpose.msra.mxu0 0.0
    %911 = vmatprep.subr.mxu0 0.0
    %912 = vmatpush1.xpose.msra.mxu0 0.0
    %913 = vmatprep.subr.mxu0 0.0
    %914 = vmatpush1.xpose.msra.mxu0 0.0
    %915 = vmatprep.subr.mxu0 0.0
    %916 = vmatpush1.xpose.msra.mxu0 0.0
    %917 = vmatprep.subr.mxu0 0.0
    %918 = vmatpush1.xpose.msra.mxu0 0.0
    %919 = vmatprep.subr.mxu0 0.0
    %920 = vmatpush1.xpose.msra.mxu0 0.0
    %921 = vmatprep.subr.mxu0 0.0
    %922 = vmatpush1.xpose.msra.mxu0 0.0
    %923 = vmatprep.subr.mxu0 0.0
    %924 = vmatpush1.xpose.msra.mxu0 0.0
    %925 = vmatprep.subr.mxu0 0.0
    %926 = vmatpush1.xpose.msra.mxu0 0.0
    %927 = vmatprep.subr.mxu0 0.0
    %928 = vmatpush1.xpose.msra.mxu0 0.0
    %929 = vmatprep.subr.mxu0 0.0
    %930 = vmatpush1.xpose.msra.mxu0 0.0
    %931 = vmatprep.subr.mxu0 0.0
    %932 = vmatpush1.xpose.msra.mxu0 0.0
    %933 = vmatprep.subr.mxu0 0.0
    %934 = vmatpush1.xpose.msra.mxu0 0.0
    %935 = vmatprep.subr.mxu0 0.0
    %936 = vmatpush1.xpose.msra.mxu0 0.0
    %937 = vmatprep.subr.mxu0 0.0
    %938 = vmatpush1.xpose.msra.mxu0 %v905
    %939 = vmatprep.subr.mxu0 0.0
    %940 = vmatpush2.xpose.msra.mxu0 0.0
    %941 = vmatprep.subr.mxu0 0.0
    %942 = vmatpush2.xpose.msra.mxu0 0.0
    %943 = vmatprep.subr.mxu0 0.0
    %944 = vmatpush2.xpose.msra.mxu0 0.0
    %945 = vmatprep.subr.mxu0 0.0
    %946 = vmatpush2.xpose.msra.mxu0 0.0
    %947 = vmatprep.subr.mxu0 0.0
    %948 = vmatpush2.xpose.msra.mxu0 0.0
    %949 = vmatprep.subr.mxu0 0.0
    %950 = vmatpush2.xpose.msra.mxu0 0.0
    %951 = vmatprep.subr.mxu0 0.0
    %952 = vmatpush2.xpose.msra.mxu0 0.0
    %953 = vmatprep.subr.mxu0 0.0
    %954 = vmatpush2.xpose.msra.mxu0 0.0
    %955 = vmatprep.subr.mxu0 0.0
    %956 = vmatpush2.xpose.msra.mxu0 0.0
    %957 = vmatprep.subr.mxu0 0.0
    %958 = vmatpush2.xpose.msra.mxu0 0.0
    %959 = vmatprep.subr.mxu0 0.0
    %960 = vmatpush2.xpose.msra.mxu0 0.0
    %961 = vmatprep.subr.mxu0 0.0
    %962 = vmatpush2.xpose.msra.mxu0 0.0
    %963 = vmatprep.subr.mxu0 0.0
    %964 = vmatpush2.xpose.msra.mxu0 0.0
    %965 = vmatprep.subr.mxu0 0.0
    %966 = vmatpush2.xpose.msra.mxu0 0.0
    %967 = vmatprep.subr.mxu0 0.0
    %968 = vmatpush2.xpose.msra.mxu0 0.0
    %969 = vmatprep.subr.mxu0 0.0
    %970 = vmatpush2.xpose.msra.mxu0 0.0
    %971 = vmatprep.mubr.f32.mxu0 0.0
    %972 = vmatmul.mubr.f32.gmra.mxu0 %v903
    %v973 = vpop.f32.mrf.mxu0
    %v974 = vadd.f32 0.0, %v973
    %v975 = vpop.f32.mrf.mxu0
    %976 = vdwg.mxu0
    %v977 = vmul.f32 %v896, 0.35355338
    %v978 = vmul.f32 %v974, 0.35355338
    %v979 = vsel %vm308, %v977, -inf
    %980 = vmax.xlane.f32.xlu0 %v979
    %v981 = vpop.xlane.xlu0 %980
    %v982 = vsel %vm308, %v978, -inf
    %983 = vmax.xlane.f32.xlu0 %v982
    %v984 = vpop.xlane.xlu0 %983
    %v985 = vsub.f32 %v977, %v981
    %v986 = vsub.f32 %v978, %v984
    %v987 = vmul.f32 %v985, 1.442695
    %v988 = vpow.pop %v987
    %v989 = vmul.f32 %v986, 1.442695
    %v990 = vpow.pop %v989
    %v991 = vsel %vm308, %v988, 0.0
    %992 = vadd.xlane.f32.xlu0 %v991
    %v993 = vpop.xlane.xlu0 %992
    %v994 = vsel %vm308, %v990, 0.0
    %995 = vadd.xlane.f32.xlu0 %v994
    %v996 = vpop.xlane.xlu0 %995
    %v997 = vrcp.pop %v993
    %v998 = vrcp.pop %v996
    %v999 = vmul.f32 %v988, %v997
    %v1000 = vmul.f32 %v990, %v998
    %1001 = vrot.lane.b32.xlu0 %v148, 48
    %v1002 = vpop.permute.xlu0 %1001
    %v1004 = vsel %vm333, %v999, 0
    %v1006 = vsel %vm337, %v1002, 0
    %1008 = vmatprep.subr.mxu0 0.0
    %1009 = vmatpush1.msra.mxu0 0.0
    %1010 = vmatprep.subr.mxu0 0.0
    %1011 = vmatpush1.msra.mxu0 0.0
    %1012 = vmatprep.subr.mxu0 0.0
    %1013 = vmatpush1.msra.mxu0 0.0
    %1014 = vmatprep.subr.mxu0 0.0
    %1015 = vmatpush1.msra.mxu0 0.0
    %1016 = vmatprep.subr.mxu0 0.0
    %1017 = vmatpush1.msra.mxu0 0.0
    %1018 = vmatprep.subr.mxu0 0.0
    %1019 = vmatpush1.msra.mxu0 0.0
    %1020 = vmatprep.subr.mxu0 0.0
    %1021 = vmatpush1.msra.mxu0 0.0
    %1022 = vmatprep.subr.mxu0 0.0
    %1023 = vmatpush1.msra.mxu0 0.0
    %1024 = vmatprep.subr.mxu0 0.0
    %1025 = vmatpush1.msra.mxu0 0.0
    %1026 = vmatprep.subr.mxu0 0.0
    %1027 = vmatpush1.msra.mxu0 0.0
    %1028 = vmatprep.subr.mxu0 0.0
    %1029 = vmatpush1.msra.mxu0 0.0
    %1030 = vmatprep.subr.mxu0 0.0
    %1031 = vmatpush1.msra.mxu0 0.0
    %1032 = vmatprep.subr.mxu0 0.0
    %1033 = vmatpush1.msra.mxu0 0.0
    %1034 = vmatprep.subr.mxu0 0.0
    %1035 = vmatpush1.msra.mxu0 0.0
    %1036 = vmatprep.subr.mxu0 0.0
    %1037 = vmatpush1.msra.mxu0 0.0
    %1038 = vmatprep.subr.mxu0 0.0
    %1039 = vmatpush1.msra.mxu0 %v1006
    %1040 = vmatprep.subr.mxu0 0.0
    %1041 = vmatpush2.msra.mxu0 0.0
    %1042 = vmatprep.subr.mxu0 0.0
    %1043 = vmatpush2.msra.mxu0 0.0
    %1044 = vmatprep.subr.mxu0 0.0
    %1045 = vmatpush2.msra.mxu0 0.0
    %1046 = vmatprep.subr.mxu0 0.0
    %1047 = vmatpush2.msra.mxu0 0.0
    %1048 = vmatprep.subr.mxu0 0.0
    %1049 = vmatpush2.msra.mxu0 0.0
    %1050 = vmatprep.subr.mxu0 0.0
    %1051 = vmatpush2.msra.mxu0 0.0
    %1052 = vmatprep.subr.mxu0 0.0
    %1053 = vmatpush2.msra.mxu0 0.0
    %1054 = vmatprep.subr.mxu0 0.0
    %1055 = vmatpush2.msra.mxu0 0.0
    %1056 = vmatprep.subr.mxu0 0.0
    %1057 = vmatpush2.msra.mxu0 0.0
    %1058 = vmatprep.subr.mxu0 0.0
    %1059 = vmatpush2.msra.mxu0 0.0
    %1060 = vmatprep.subr.mxu0 0.0
    %1061 = vmatpush2.msra.mxu0 0.0
    %1062 = vmatprep.subr.mxu0 0.0
    %1063 = vmatpush2.msra.mxu0 0.0
    %1064 = vmatprep.subr.mxu0 0.0
    %1065 = vmatpush2.msra.mxu0 0.0
    %1066 = vmatprep.subr.mxu0 0.0
    %1067 = vmatpush2.msra.mxu0 0.0
    %1068 = vmatprep.subr.mxu0 0.0
    %1069 = vmatpush2.msra.mxu0 0.0
    %1070 = vmatprep.subr.mxu0 0.0
    %1071 = vmatpush2.msra.mxu0 0.0
    %1072 = vmatprep.mubr.f32.mxu0 0.0
    %1073 = vmatmul.mubr.f32.gmra.mxu0 %v1004
    %v1074 = vpop.f32.mrf.mxu0
    %v1075 = vadd.f32 0.0, %v1074
    %v1076 = vpop.f32.mrf.mxu0
    %1077 = vdwg.mxu0
    %1078 = vrot.lane.b32.xlu0 %v152, 48
    %v1079 = vpop.permute.xlu0 %1078
    %v1081 = vsel %vm333, %v1000, 0
    %v1083 = vsel %vm337, %v1079, 0
    %1085 = vmatprep.subr.mxu0 0.0
    %1086 = vmatpush1.msra.mxu0 0.0
    %1087 = vmatprep.subr.mxu0 0.0
    %1088 = vmatpush1.msra.mxu0 0.0
    %1089 = vmatprep.subr.mxu0 0.0
    %1090 = vmatpush1.msra.mxu0 0.0
    %1091 = vmatprep.subr.mxu0 0.0
    %1092 = vmatpush1.msra.mxu0 0.0
    %1093 = vmatprep.subr.mxu0 0.0
    %1094 = vmatpush1.msra.mxu0 0.0
    %1095 = vmatprep.subr.mxu0 0.0
    %1096 = vmatpush1.msra.mxu0 0.0
    %1097 = vmatprep.subr.mxu0 0.0
    %1098 = vmatpush1.msra.mxu0 0.0
    %1099 = vmatprep.subr.mxu0 0.0
    %1100 = vmatpush1.msra.mxu0 0.0
    %1101 = vmatprep.subr.mxu0 0.0
    %1102 = vmatpush1.msra.mxu0 0.0
    %1103 = vmatprep.subr.mxu0 0.0
    %1104 = vmatpush1.msra.mxu0 0.0
    %1105 = vmatprep.subr.mxu0 0.0
    %1106 = vmatpush1.msra.mxu0 0.0
    %1107 = vmatprep.subr.mxu0 0.0
    %1108 = vmatpush1.msra.mxu0 0.0
    %1109 = vmatprep.subr.mxu0 0.0
    %1110 = vmatpush1.msra.mxu0 0.0
    %1111 = vmatprep.subr.mxu0 0.0
    %1112 = vmatpush1.msra.mxu0 0.0
    %1113 = vmatprep.subr.mxu0 0.0
    %1114 = vmatpush1.msra.mxu0 0.0
    %1115 = vmatprep.subr.mxu0 0.0
    %1116 = vmatpush1.msra.mxu0 %v1083
    %1117 = vmatprep.subr.mxu0 0.0
    %1118 = vmatpush2.msra.mxu0 0.0
    %1119 = vmatprep.subr.mxu0 0.0
    %1120 = vmatpush2.msra.mxu0 0.0
    %1121 = vmatprep.subr.mxu0 0.0
    %1122 = vmatpush2.msra.mxu0 0.0
    %1123 = vmatprep.subr.mxu0 0.0
    %1124 = vmatpush2.msra.mxu0 0.0
    %1125 = vmatprep.subr.mxu0 0.0
    %1126 = vmatpush2.msra.mxu0 0.0
    %1127 = vmatprep.subr.mxu0 0.0
    %1128 = vmatpush2.msra.mxu0 0.0
    %1129 = vmatprep.subr.mxu0 0.0
    %1130 = vmatpush2.msra.mxu0 0.0
    %1131 = vmatprep.subr.mxu0 0.0
    %1132 = vmatpush2.msra.mxu0 0.0
    %1133 = vmatprep.subr.mxu0 0.0
    %1134 = vmatpush2.msra.mxu0 0.0
    %1135 = vmatprep.subr.mxu0 0.0
    %1136 = vmatpush2.msra.mxu0 0.0
    %1137 = vmatprep.subr.mxu0 0.0
    %1138 = vmatpush2.msra.mxu0 0.0
    %1139 = vmatprep.subr.mxu0 0.0
    %1140 = vmatpush2.msra.mxu0 0.0
    %1141 = vmatprep.subr.mxu0 0.0
    %1142 = vmatpush2.msra.mxu0 0.0
    %1143 = vmatprep.subr.mxu0 0.0
    %1144 = vmatpush2.msra.mxu0 0.0
    %1145 = vmatprep.subr.mxu0 0.0
    %1146 = vmatpush2.msra.mxu0 0.0
    %1147 = vmatprep.subr.mxu0 0.0
    %1148 = vmatpush2.msra.mxu0 0.0
    %1149 = vmatprep.mubr.f32.mxu0 0.0
    %1150 = vmatmul.mubr.f32.gmra.mxu0 %v1081
    %v1151 = vpop.f32.mrf.mxu0
    %v1152 = vadd.f32 0.0, %v1151
    %v1153 = vpop.f32.mrf.mxu0
    %1154 = vdwg.mxu0
    %1155 = vrot.lane.b32.xlu0 %v148, 104
    %v1156 = vpop.permute.xlu0 %1155
    %1157 = vrot.lane.b32.xlu0 %v148, 72
    %v1158 = vpop.permute.xlu0 %1157
    %v1159 = vsel %vm155, %v1156, 0
    %v1161 = vsel %vm155, %v1158, 0
    %1163 = vmatprep.subr.mxu0 0.0
    %1164 = vmatpush1.xpose.msra.mxu0 0.0
    %1165 = vmatprep.subr.mxu0 0.0
    %1166 = vmatpush1.xpose.msra.mxu0 0.0
    %1167 = vmatprep.subr.mxu0 0.0
    %1168 = vmatpush1.xpose.msra.mxu0 0.0
    %1169 = vmatprep.subr.mxu0 0.0
    %1170 = vmatpush1.xpose.msra.mxu0 0.0
    %1171 = vmatprep.subr.mxu0 0.0
    %1172 = vmatpush1.xpose.msra.mxu0 0.0
    %1173 = vmatprep.subr.mxu0 0.0
    %1174 = vmatpush1.xpose.msra.mxu0 0.0
    %1175 = vmatprep.subr.mxu0 0.0
    %1176 = vmatpush1.xpose.msra.mxu0 0.0
    %1177 = vmatprep.subr.mxu0 0.0
    %1178 = vmatpush1.xpose.msra.mxu0 0.0
    %1179 = vmatprep.subr.mxu0 0.0
    %1180 = vmatpush1.xpose.msra.mxu0 0.0
    %1181 = vmatprep.subr.mxu0 0.0
    %1182 = vmatpush1.xpose.msra.mxu0 0.0
    %1183 = vmatprep.subr.mxu0 0.0
    %1184 = vmatpush1.xpose.msra.mxu0 0.0
    %1185 = vmatprep.subr.mxu0 0.0
    %1186 = vmatpush1.xpose.msra.mxu0 0.0
    %1187 = vmatprep.subr.mxu0 0.0
    %1188 = vmatpush1.xpose.msra.mxu0 0.0
    %1189 = vmatprep.subr.mxu0 0.0
    %1190 = vmatpush1.xpose.msra.mxu0 0.0
    %1191 = vmatprep.subr.mxu0 0.0
    %1192 = vmatpush1.xpose.msra.mxu0 0.0
    %1193 = vmatprep.subr.mxu0 0.0
    %1194 = vmatpush1.xpose.msra.mxu0 %v1161
    %1195 = vmatprep.subr.mxu0 0.0
    %1196 = vmatpush2.xpose.msra.mxu0 0.0
    %1197 = vmatprep.subr.mxu0 0.0
    %1198 = vmatpush2.xpose.msra.mxu0 0.0
    %1199 = vmatprep.subr.mxu0 0.0
    %1200 = vmatpush2.xpose.msra.mxu0 0.0
    %1201 = vmatprep.subr.mxu0 0.0
    %1202 = vmatpush2.xpose.msra.mxu0 0.0
    %1203 = vmatprep.subr.mxu0 0.0
    %1204 = vmatpush2.xpose.msra.mxu0 0.0
    %1205 = vmatprep.subr.mxu0 0.0
    %1206 = vmatpush2.xpose.msra.mxu0 0.0
    %1207 = vmatprep.subr.mxu0 0.0
    %1208 = vmatpush2.xpose.msra.mxu0 0.0
    %1209 = vmatprep.subr.mxu0 0.0
    %1210 = vmatpush2.xpose.msra.mxu0 0.0
    %1211 = vmatprep.subr.mxu0 0.0
    %1212 = vmatpush2.xpose.msra.mxu0 0.0
    %1213 = vmatprep.subr.mxu0 0.0
    %1214 = vmatpush2.xpose.msra.mxu0 0.0
    %1215 = vmatprep.subr.mxu0 0.0
    %1216 = vmatpush2.xpose.msra.mxu0 0.0
    %1217 = vmatprep.subr.mxu0 0.0
    %1218 = vmatpush2.xpose.msra.mxu0 0.0
    %1219 = vmatprep.subr.mxu0 0.0
    %1220 = vmatpush2.xpose.msra.mxu0 0.0
    %1221 = vmatprep.subr.mxu0 0.0
    %1222 = vmatpush2.xpose.msra.mxu0 0.0
    %1223 = vmatprep.subr.mxu0 0.0
    %1224 = vmatpush2.xpose.msra.mxu0 0.0
    %1225 = vmatprep.subr.mxu0 0.0
    %1226 = vmatpush2.xpose.msra.mxu0 0.0
    %1227 = vmatprep.mubr.f32.mxu0 0.0
    %1228 = vmatmul.mubr.f32.gmra.mxu0 %v1159
    %v1229 = vpop.f32.mrf.mxu0
    %v1230 = vadd.f32 0.0, %v1229
    %v1231 = vpop.f32.mrf.mxu0
    %1232 = vdwg.mxu0
    %1233 = vrot.lane.b32.xlu0 %v152, 104
    %v1234 = vpop.permute.xlu0 %1233
    %1235 = vrot.lane.b32.xlu0 %v152, 72
    %v1236 = vpop.permute.xlu0 %1235
    %v1237 = vsel %vm155, %v1234, 0
    %v1239 = vsel %vm155, %v1236, 0
    %1241 = vmatprep.subr.mxu0 0.0
    %1242 = vmatpush1.xpose.msra.mxu0 0.0
    %1243 = vmatprep.subr.mxu0 0.0
    %1244 = vmatpush1.xpose.msra.mxu0 0.0
    %1245 = vmatprep.subr.mxu0 0.0
    %1246 = vmatpush1.xpose.msra.mxu0 0.0
    %1247 = vmatprep.subr.mxu0 0.0
    %1248 = vmatpush1.xpose.msra.mxu0 0.0
    %1249 = vmatprep.subr.mxu0 0.0
    %1250 = vmatpush1.xpose.msra.mxu0 0.0
    %1251 = vmatprep.subr.mxu0 0.0
    %1252 = vmatpush1.xpose.msra.mxu0 0.0
    %1253 = vmatprep.subr.mxu0 0.0
    %1254 = vmatpush1.xpose.msra.mxu0 0.0
    %1255 = vmatprep.subr.mxu0 0.0
    %1256 = vmatpush1.xpose.msra.mxu0 0.0
    %1257 = vmatprep.subr.mxu0 0.0
    %1258 = vmatpush1.xpose.msra.mxu0 0.0
    %1259 = vmatprep.subr.mxu0 0.0
    %1260 = vmatpush1.xpose.msra.mxu0 0.0
    %1261 = vmatprep.subr.mxu0 0.0
    %1262 = vmatpush1.xpose.msra.mxu0 0.0
    %1263 = vmatprep.subr.mxu0 0.0
    %1264 = vmatpush1.xpose.msra.mxu0 0.0
    %1265 = vmatprep.subr.mxu0 0.0
    %1266 = vmatpush1.xpose.msra.mxu0 0.0
    %1267 = vmatprep.subr.mxu0 0.0
    %1268 = vmatpush1.xpose.msra.mxu0 0.0
    %1269 = vmatprep.subr.mxu0 0.0
    %1270 = vmatpush1.xpose.msra.mxu0 0.0
    %1271 = vmatprep.subr.mxu0 0.0
    %1272 = vmatpush1.xpose.msra.mxu0 %v1239
    %1273 = vmatprep.subr.mxu0 0.0
    %1274 = vmatpush2.xpose.msra.mxu0 0.0
    %1275 = vmatprep.subr.mxu0 0.0
    %1276 = vmatpush2.xpose.msra.mxu0 0.0
    %1277 = vmatprep.subr.mxu0 0.0
    %1278 = vmatpush2.xpose.msra.mxu0 0.0
    %1279 = vmatprep.subr.mxu0 0.0
    %1280 = vmatpush2.xpose.msra.mxu0 0.0
    %1281 = vmatprep.subr.mxu0 0.0
    %1282 = vmatpush2.xpose.msra.mxu0 0.0
    %1283 = vmatprep.subr.mxu0 0.0
    %1284 = vmatpush2.xpose.msra.mxu0 0.0
    %1285 = vmatprep.subr.mxu0 0.0
    %1286 = vmatpush2.xpose.msra.mxu0 0.0
    %1287 = vmatprep.subr.mxu0 0.0
    %1288 = vmatpush2.xpose.msra.mxu0 0.0
    %1289 = vmatprep.subr.mxu0 0.0
    %1290 = vmatpush2.xpose.msra.mxu0 0.0
    %1291 = vmatprep.subr.mxu0 0.0
    %1292 = vmatpush2.xpose.msra.mxu0 0.0
    %1293 = vmatprep.subr.mxu0 0.0
    %1294 = vmatpush2.xpose.msra.mxu0 0.0
    %1295 = vmatprep.subr.mxu0 0.0
    %1296 = vmatpush2.xpose.msra.mxu0 0.0
    %1297 = vmatprep.subr.mxu0 0.0
    %1298 = vmatpush2.xpose.msra.mxu0 0.0
    %1299 = vmatprep.subr.mxu0 0.0
    %1300 = vmatpush2.xpose.msra.mxu0 0.0
    %1301 = vmatprep.subr.mxu0 0.0
    %1302 = vmatpush2.xpose.msra.mxu0 0.0
    %1303 = vmatprep.subr.mxu0 0.0
    %1304 = vmatpush2.xpose.msra.mxu0 0.0
    %1305 = vmatprep.mubr.f32.mxu0 0.0
    %1306 = vmatmul.mubr.f32.gmra.mxu0 %v1237
    %v1307 = vpop.f32.mrf.mxu0
    %v1308 = vadd.f32 0.0, %v1307
    %v1309 = vpop.f32.mrf.mxu0
    %1310 = vdwg.mxu0
    %v1311 = vmul.f32 %v1230, 0.35355338
    %v1312 = vmul.f32 %v1308, 0.35355338
    %v1313 = vsel %vm308, %v1311, -inf
    %1314 = vmax.xlane.f32.xlu0 %v1313
    %v1315 = vpop.xlane.xlu0 %1314
    %v1316 = vsel %vm308, %v1312, -inf
    %1317 = vmax.xlane.f32.xlu0 %v1316
    %v1318 = vpop.xlane.xlu0 %1317
    %v1319 = vsub.f32 %v1311, %v1315
    %v1320 = vsub.f32 %v1312, %v1318
    %v1321 = vmul.f32 %v1319, 1.442695
    %v1322 = vpow.pop %v1321
    %v1323 = vmul.f32 %v1320, 1.442695
    %v1324 = vpow.pop %v1323
    %v1325 = vsel %vm308, %v1322, 0.0
    %1326 = vadd.xlane.f32.xlu0 %v1325
    %v1327 = vpop.xlane.xlu0 %1326
    %v1328 = vsel %vm308, %v1324, 0.0
    %1329 = vadd.xlane.f32.xlu0 %v1328
    %v1330 = vpop.xlane.xlu0 %1329
    %v1331 = vrcp.pop %v1327
    %v1332 = vrcp.pop %v1330
    %v1333 = vmul.f32 %v1322, %v1331
    %v1334 = vmul.f32 %v1324, %v1332
    %1335 = vrot.lane.b32.xlu0 %v148, 40
    %v1336 = vpop.permute.xlu0 %1335
    %v1338 = vsel %vm333, %v1333, 0
    %v1340 = vsel %vm337, %v1336, 0
    %1342 = vmatprep.subr.mxu0 0.0
    %1343 = vmatpush1.msra.mxu0 0.0
    %1344 = vmatprep.subr.mxu0 0.0
    %1345 = vmatpush1.msra.mxu0 0.0
    %1346 = vmatprep.subr.mxu0 0.0
    %1347 = vmatpush1.msra.mxu0 0.0
    %1348 = vmatprep.subr.mxu0 0.0
    %1349 = vmatpush1.msra.mxu0 0.0
    %1350 = vmatprep.subr.mxu0 0.0
    %1351 = vmatpush1.msra.mxu0 0.0
    %1352 = vmatprep.subr.mxu0 0.0
    %1353 = vmatpush1.msra.mxu0 0.0
    %1354 = vmatprep.subr.mxu0 0.0
    %1355 = vmatpush1.msra.mxu0 0.0
    %1356 = vmatprep.subr.mxu0 0.0
    %1357 = vmatpush1.msra.mxu0 0.0
    %1358 = vmatprep.subr.mxu0 0.0
    %1359 = vmatpush1.msra.mxu0 0.0
    %1360 = vmatprep.subr.mxu0 0.0
    %1361 = vmatpush1.msra.mxu0 0.0
    %1362 = vmatprep.subr.mxu0 0.0
    %1363 = vmatpush1.msra.mxu0 0.0
    %1364 = vmatprep.subr.mxu0 0.0
    %1365 = vmatpush1.msra.mxu0 0.0
    %1366 = vmatprep.subr.mxu0 0.0
    %1367 = vmatpush1.msra.mxu0 0.0
    %1368 = vmatprep.subr.mxu0 0.0
    %1369 = vmatpush1.msra.mxu0 0.0
    %1370 = vmatprep.subr.mxu0 0.0
    %1371 = vmatpush1.msra.mxu0 0.0
    %1372 = vmatprep.subr.mxu0 0.0
    %1373 = vmatpush1.msra.mxu0 %v1340
    %1374 = vmatprep.subr.mxu0 0.0
    %1375 = vmatpush2.msra.mxu0 0.0
    %1376 = vmatprep.subr.mxu0 0.0
    %1377 = vmatpush2.msra.mxu0 0.0
    %1378 = vmatprep.subr.mxu0 0.0
    %1379 = vmatpush2.msra.mxu0 0.0
    %1380 = vmatprep.subr.mxu0 0.0
    %1381 = vmatpush2.msra.mxu0 0.0
    %1382 = vmatprep.subr.mxu0 0.0
    %1383 = vmatpush2.msra.mxu0 0.0
    %1384 = vmatprep.subr.mxu0 0.0
    %1385 = vmatpush2.msra.mxu0 0.0
    %1386 = vmatprep.subr.mxu0 0.0
    %1387 = vmatpush2.msra.mxu0 0.0
    %1388 = vmatprep.subr.mxu0 0.0
    %1389 = vmatpush2.msra.mxu0 0.0
    %1390 = vmatprep.subr.mxu0 0.0
    %1391 = vmatpush2.msra.mxu0 0.0
    %1392 = vmatprep.subr.mxu0 0.0
    %1393 = vmatpush2.msra.mxu0 0.0
    %1394 = vmatprep.subr.mxu0 0.0
    %1395 = vmatpush2.msra.mxu0 0.0
    %1396 = vmatprep.subr.mxu0 0.0
    %1397 = vmatpush2.msra.mxu0 0.0
    %1398 = vmatprep.subr.mxu0 0.0
    %1399 = vmatpush2.msra.mxu0 0.0
    %1400 = vmatprep.subr.mxu0 0.0
    %1401 = vmatpush2.msra.mxu0 0.0
    %1402 = vmatprep.subr.mxu0 0.0
    %1403 = vmatpush2.msra.mxu0 0.0
    %1404 = vmatprep.subr.mxu0 0.0
    %1405 = vmatpush2.msra.mxu0 0.0
    %1406 = vmatprep.mubr.f32.mxu0 0.0
    %1407 = vmatmul.mubr.f32.gmra.mxu0 %v1338
    %v1408 = vpop.f32.mrf.mxu0
    %v1409 = vadd.f32 0.0, %v1408
    %v1410 = vpop.f32.mrf.mxu0
    %1411 = vdwg.mxu0
    %1412 = vrot.lane.b32.xlu0 %v152, 40
    %v1413 = vpop.permute.xlu0 %1412
    %v1415 = vsel %vm333, %v1334, 0
    %v1417 = vsel %vm337, %v1413, 0
    %1419 = vmatprep.subr.mxu0 0.0
    %1420 = vmatpush1.msra.mxu0 0.0
    %1421 = vmatprep.subr.mxu0 0.0
    %1422 = vmatpush1.msra.mxu0 0.0
    %1423 = vmatprep.subr.mxu0 0.0
    %1424 = vmatpush1.msra.mxu0 0.0
    %1425 = vmatprep.subr.mxu0 0.0
    %1426 = vmatpush1.msra.mxu0 0.0
    %1427 = vmatprep.subr.mxu0 0.0
    %1428 = vmatpush1.msra.mxu0 0.0
    %1429 = vmatprep.subr.mxu0 0.0
    %1430 = vmatpush1.msra.mxu0 0.0
    %1431 = vmatprep.subr.mxu0 0.0
    %1432 = vmatpush1.msra.mxu0 0.0
    %1433 = vmatprep.subr.mxu0 0.0
    %1434 = vmatpush1.msra.mxu0 0.0
    %1435 = vmatprep.subr.mxu0 0.0
    %1436 = vmatpush1.msra.mxu0 0.0
    %1437 = vmatprep.subr.mxu0 0.0
    %1438 = vmatpush1.msra.mxu0 0.0
    %1439 = vmatprep.subr.mxu0 0.0
    %1440 = vmatpush1.msra.mxu0 0.0
    %1441 = vmatprep.subr.mxu0 0.0
    %1442 = vmatpush1.msra.mxu0 0.0
    %1443 = vmatprep.subr.mxu0 0.0
    %1444 = vmatpush1.msra.mxu0 0.0
    %1445 = vmatprep.subr.mxu0 0.0
    %1446 = vmatpush1.msra.mxu0 0.0
    %1447 = vmatprep.subr.mxu0 0.0
    %1448 = vmatpush1.msra.mxu0 0.0
    %1449 = vmatprep.subr.mxu0 0.0
    %1450 = vmatpush1.msra.mxu0 %v1417
    %1451 = vmatprep.subr.mxu0 0.0
    %1452 = vmatpush2.msra.mxu0 0.0
    %1453 = vmatprep.subr.mxu0 0.0
    %1454 = vmatpush2.msra.mxu0 0.0
    %1455 = vmatprep.subr.mxu0 0.0
    %1456 = vmatpush2.msra.mxu0 0.0
    %1457 = vmatprep.subr.mxu0 0.0
    %1458 = vmatpush2.msra.mxu0 0.0
    %1459 = vmatprep.subr.mxu0 0.0
    %1460 = vmatpush2.msra.mxu0 0.0
    %1461 = vmatprep.subr.mxu0 0.0
    %1462 = vmatpush2.msra.mxu0 0.0
    %1463 = vmatprep.subr.mxu0 0.0
    %1464 = vmatpush2.msra.mxu0 0.0
    %1465 = vmatprep.subr.mxu0 0.0
    %1466 = vmatpush2.msra.mxu0 0.0
    %1467 = vmatprep.subr.mxu0 0.0
    %1468 = vmatpush2.msra.mxu0 0.0
    %1469 = vmatprep.subr.mxu0 0.0
    %1470 = vmatpush2.msra.mxu0 0.0
    %1471 = vmatprep.subr.mxu0 0.0
    %1472 = vmatpush2.msra.mxu0 0.0
    %1473 = vmatprep.subr.mxu0 0.0
    %1474 = vmatpush2.msra.mxu0 0.0
    %1475 = vmatprep.subr.mxu0 0.0
    %1476 = vmatpush2.msra.mxu0 0.0
    %1477 = vmatprep.subr.mxu0 0.0
    %1478 = vmatpush2.msra.mxu0 0.0
    %1479 = vmatprep.subr.mxu0 0.0
    %1480 = vmatpush2.msra.mxu0 0.0
    %1481 = vmatprep.subr.mxu0 0.0
    %1482 = vmatpush2.msra.mxu0 0.0
    %1483 = vmatprep.mubr.f32.mxu0 0.0
    %1484 = vmatmul.mubr.f32.gmra.mxu0 %v1415
    %v1485 = vpop.f32.mrf.mxu0
    %v1486 = vadd.f32 0.0, %v1485
    %v1487 = vpop.f32.mrf.mxu0
    %1488 = vdwg.mxu0
    %1491 = vrot.lane.b32.xlu0 %v741, 8
    %v1492 = vpop.permute.xlu0 %1491
    %1493 = vrot.lane.b32.xlu0 %v818, 8
    %v1494 = vpop.permute.xlu0 %1493
    %1499 = vrot.lane.b32.xlu0 %v1075, 16
    %v1500 = vpop.permute.xlu0 %1499
    %1501 = vrot.lane.b32.xlu0 %v1152, 16
    %v1502 = vpop.permute.xlu0 %1501
    %1507 = vrot.lane.b32.xlu0 %v1409, 24
    %v1508 = vpop.permute.xlu0 %1507
    %1509 = vrot.lane.b32.xlu0 %v1486, 24
    %v1510 = vpop.permute.xlu0 %1509
    %v1513 = vsel %vm155, %v407, %v1492
    %v1514 = vsel %vm155, %v484, %v1494
    %vm1515 = vcmask 130048
    %v1516 = vsel %vm1515, %v1513, %v1500
    %v1517 = vsel %vm1515, %v1514, %v1502
    %vm1518 = vcmask 195584
    %v1519 = vsel %vm1518, %v1516, %v1508
    %v1520 = vsel %vm1518, %v1517, %v1510
    %v1521 = vld [vmem:[%s2] sm:$0xff]
    %v1522 = vld [vmem:[%s2 + $0x8] sm:$0xff]
    %v1523 = vld [vmem:[%s2 + $0x10] sm:$0xff]
    %v1524 = vld [vmem:[%s2 + $0x18] sm:$0xff]
    %v1527 = vcombine.low %v1519, %v1520
    %v1528 = vsel %vm78, %v1527, 0
    %1530 = vmatprep.subr.mxu0 0.0
    %1531 = vmatpush1.msra.mxu0 0.0
    %1532 = vmatprep.subr.mxu0 0.0
    %1533 = vmatpush1.msra.mxu0 0.0
    %1534 = vmatprep.subr.mxu0 0.0
    %1535 = vmatpush1.msra.mxu0 0.0
    %1536 = vmatprep.subr.mxu0 0.0
    %1537 = vmatpush1.msra.mxu0 0.0
    %1538 = vmatprep.subr.mxu0 0.0
    %1539 = vmatpush1.msra.mxu0 0.0
    %1540 = vmatprep.subr.mxu0 0.0
    %1541 = vmatpush1.msra.mxu0 0.0
    %1542 = vmatprep.subr.mxu0 0.0
    %1543 = vmatpush1.msra.mxu0 0.0
    %1544 = vmatprep.subr.mxu0 0.0
    %1545 = vmatpush1.msra.mxu0 0.0
    %1546 = vmatprep.subr.mxu0 0.0
    %1547 = vmatpush1.msra.mxu0 0.0
    %1548 = vmatprep.subr.mxu0 0.0
    %1549 = vmatpush1.msra.mxu0 0.0
    %1550 = vmatprep.subr.mxu0 0.0
    %1551 = vmatpush1.msra.mxu0 0.0
    %1552 = vmatprep.subr.mxu0 0.0
    %1553 = vmatpush1.msra.mxu0 0.0
    %1554 = vmatprep.subr.mxu0 0.0
    %1555 = vmatpush1.msra.mxu0 %v1524
    %1556 = vmatprep.subr.mxu0 0.0
    %1557 = vmatpush1.msra.mxu0 %v1523
    %1558 = vmatprep.subr.mxu0 0.0
    %1559 = vmatpush1.msra.mxu0 %v1522
    %1560 = vmatprep.subr.mxu0 0.0
    %1561 = vmatpush1.msra.mxu0 %v1521
    %1562 = vmatprep.subr.mxu0 0.0
    %1563 = vmatpush2.msra.mxu0 0.0
    %1564 = vmatprep.subr.mxu0 0.0
    %1565 = vmatpush2.msra.mxu0 0.0
    %1566 = vmatprep.subr.mxu0 0.0
    %1567 = vmatpush2.msra.mxu0 0.0
    %1568 = vmatprep.subr.mxu0 0.0
    %1569 = vmatpush2.msra.mxu0 0.0
    %1570 = vmatprep.subr.mxu0 0.0
    %1571 = vmatpush2.msra.mxu0 0.0
    %1572 = vmatprep.subr.mxu0 0.0
    %1573 = vmatpush2.msra.mxu0 0.0
    %1574 = vmatprep.subr.mxu0 0.0
    %1575 = vmatpush2.msra.mxu0 0.0
    %1576 = vmatprep.subr.mxu0 0.0
    %1577 = vmatpush2.msra.mxu0 0.0
    %1578 = vmatprep.subr.mxu0 0.0
    %1579 = vmatpush2.msra.mxu0 0.0
    %1580 = vmatprep.subr.mxu0 0.0
    %1581 = vmatpush2.msra.mxu0 0.0
    %1582 = vmatprep.subr.mxu0 0.0
    %1583 = vmatpush2.msra.mxu0 0.0
    %1584 = vmatprep.subr.mxu0 0.0
    %1585 = vmatpush2.msra.mxu0 0.0
    %1586 = vmatprep.subr.mxu0 0.0
    %1587 = vmatpush2.msra.mxu0 0.0
    %1588 = vmatprep.subr.mxu0 0.0
    %1589 = vmatpush2.msra.mxu0 0.0
    %1590 = vmatprep.subr.mxu0 0.0
    %1591 = vmatpush2.msra.mxu0 0.0
    %1592 = vmatprep.subr.mxu0 0.0
    %1593 = vmatpush2.msra.mxu0 0.0
    %1594 = vmatprep.mubr.f32.mxu0 0.0
    %1595 = vmatmul.mubr.f32.gmra.mxu0 %v1528
    %v1596 = vpop.f32.mrf.mxu0
    %v1597 = vadd.f32 0.0, %v1596
    %v1598 = vpop.f32.mrf.mxu0
    %1599 = vdwg.mxu0
    %v1601 = vcombine.high %v1597, %v1597
    %v1603 = vld [vmem:[%s3] sm:$0x3]
    %v1604 = vadd.f32 %v69, %v1597
    %v1605 = vadd.f32 %v70, %v1601
    %vm1606 = vcmask 257024
    %v1607 = vsel %vm1606, %v1604, 0.0
    %1608 = vadd.xlane.f32.xlu0 %v1607
    %v1609 = vpop.xlane.xlu0 %1608
    %v1610 = vsel %vm1606, %v1605, 0.0
    %1611 = vadd.xlane.f32.xlu0 %v1610
    %v1612 = vpop.xlane.xlu0 %1611
    %v1613 = vrcp.pop 32.0
    %v1614 = vmul.f32 %v1609, %v1613
    %v1615 = vmul.f32 %v1612, %v1613
    %v1616 = vsub.f32 %v1604, %v1614
    %v1617 = vsub.f32 %v1605, %v1615
    %v1618 = vmul.f32 %v1616, %v1616
    %v1619 = vmul.f32 %v1617, %v1617
    %v1620 = vsel %vm1606, %v1618, 0.0
    %1621 = vadd.xlane.f32.xlu0 %v1620
    %v1622 = vpop.xlane.xlu0 %1621
    %v1623 = vsel %vm1606, %v1619, 0.0
    %1624 = vadd.xlane.f32.xlu0 %v1623
    %v1625 = vpop.xlane.xlu0 %1624
    %v1626 = vmul.f32 %v1622, %v1613
    %v1627 = vmul.f32 %v1625, %v1613
    %v1628 = vadd.f32 %v1626, 1e-05
    %v1629 = vadd.f32 %v1627, 1e-05
    %v1630 = vrsqrt.pop %v1628
    %v1631 = vrsqrt.pop %v1629
    %v1632 = vmul.f32 %v1616, %v1630
    %v1633 = vmul.f32 %v1617, %v1631
    %v1634 = vlaneseq
    %v1635 = vshrl.u32 %v1634, 7
    %v1636 = vsub.s32 0, %v1635
    %v1637 = vrot.slane %v1603, %v1636
    %v1638 = vmul.f32 %v1632, %v1637
    %v1639 = vmul.f32 %v1633, %v1637
    %v1640 = vlaneseq
    %v1641 = vshrl.u32 %v1640, 7
    %v1642 = vsub.s32 1, %v1641
    %v1643 = vrot.slane %v1603, %v1642
    %v1644 = vadd.f32 %v1638, %v1643
    %v1645 = vadd.f32 %v1639, %v1643
    %v1646 = vld [vmem:[%s4] sm:$0xff]
    %v1647 = vld [vmem:[%s4 + $0x8] sm:$0xff]
    %v1648 = vld [vmem:[%s4 + $0x10] sm:$0xff]
    %v1649 = vld [vmem:[%s4 + $0x18] sm:$0xff]
    %v1650 = vld [vmem:[%s5] sm:$0x1]
    %v1652 = vlaneseq
    %v1653 = vshrl.u32 %v1652, 7
    %v1654 = vsub.s32 0, %v1653
    %v1655 = vrot.slane %v1650, %v1654
    %v1658 = vcombine.low %v1644, %v1645
    %v1659 = vcombine.low %v1655, %v1655
    %v1661 = vsel %vm78, %v1658, 0
    %1663 = vmatprep.subr.mxu0 0.0
    %1664 = vmatpush1.msra.mxu0 0.0
    %1665 = vmatprep.subr.mxu0 0.0
    %1666 = vmatpush1.msra.mxu0 0.0
    %1667 = vmatprep.subr.mxu0 0.0
    %1668 = vmatpush1.msra.mxu0 0.0
    %1669 = vmatprep.subr.mxu0 0.0
    %1670 = vmatpush1.msra.mxu0 0.0
    %1671 = vmatprep.subr.mxu0 0.0
    %1672 = vmatpush1.msra.mxu0 0.0
    %1673 = vmatprep.subr.mxu0 0.0
    %1674 = vmatpush1.msra.mxu0 0.0
    %1675 = vmatprep.subr.mxu0 0.0
    %1676 = vmatpush1.msra.mxu0 0.0
    %1677 = vmatprep.subr.mxu0 0.0
    %1678 = vmatpush1.msra.mxu0 0.0
    %1679 = vmatprep.subr.mxu0 0.0
    %1680 = vmatpush1.msra.mxu0 0.0
    %1681 = vmatprep.subr.mxu0 0.0
    %1682 = vmatpush1.msra.mxu0 0.0
    %1683 = vmatprep.subr.mxu0 0.0
    %1684 = vmatpush1.msra.mxu0 0.0
    %1685 = vmatprep.subr.mxu0 0.0
    %1686 = vmatpush1.msra.mxu0 0.0
    %1687 = vmatprep.subr.mxu0 0.0
    %1688 = vmatpush1.msra.mxu0 %v1649
    %1689 = vmatprep.subr.mxu0 0.0
    %1690 = vmatpush1.msra.mxu0 %v1648
    %1691 = vmatprep.subr.mxu0 0.0
    %1692 = vmatpush1.msra.mxu0 %v1647
    %1693 = vmatprep.subr.mxu0 0.0
    %1694 = vmatpush1.msra.mxu0 %v1646
    %1695 = vmatprep.subr.mxu0 0.0
    %1696 = vmatpush2.msra.mxu0 0.0
    %1697 = vmatprep.subr.mxu0 0.0
    %1698 = vmatpush2.msra.mxu0 0.0
    %1699 = vmatprep.subr.mxu0 0.0
    %1700 = vmatpush2.msra.mxu0 0.0
    %1701 = vmatprep.subr.mxu0 0.0
    %1702 = vmatpush2.msra.mxu0 0.0
    %1703 = vmatprep.subr.mxu0 0.0
    %1704 = vmatpush2.msra.mxu0 0.0
    %1705 = vmatprep.subr.mxu0 0.0
    %1706 = vmatpush2.msra.mxu0 0.0
    %1707 = vmatprep.subr.mxu0 0.0
    %1708 = vmatpush2.msra.mxu0 0.0
    %1709 = vmatprep.subr.mxu0 0.0
    %1710 = vmatpush2.msra.mxu0 0.0
    %1711 = vmatprep.subr.mxu0 0.0
    %1712 = vmatpush2.msra.mxu0 0.0
    %1713 = vmatprep.subr.mxu0 0.0
    %1714 = vmatpush2.msra.mxu0 0.0
    %1715 = vmatprep.subr.mxu0 0.0
    %1716 = vmatpush2.msra.mxu0 0.0
    %1717 = vmatprep.subr.mxu0 0.0
    %1718 = vmatpush2.msra.mxu0 0.0
    %1719 = vmatprep.subr.mxu0 0.0
    %1720 = vmatpush2.msra.mxu0 0.0
    %1721 = vmatprep.subr.mxu0 0.0
    %1722 = vmatpush2.msra.mxu0 0.0
    %1723 = vmatprep.subr.mxu0 0.0
    %1724 = vmatpush2.msra.mxu0 0.0
    %1725 = vmatprep.subr.mxu0 0.0
    %1726 = vmatpush2.msra.mxu0 0.0
    %1727 = vmatprep.mubr.f32.mxu0 0.0
    %1728 = vmatmul.mubr.f32.gmra.mxu0 %v1661
    %v1729 = vpop.f32.mrf.mxu0
    %v1730 = vadd.f32 %v1659, %v1729
    %v1731 = vpop.f32.mrf.mxu0
    %1732 = vdwg.mxu0
    %v1734 = vcombine.high %v1730, %v1730
    %v1736 = vmax.f32 %v1730, 0.0
    %v1737 = vmax.f32 %v1734, 0.0
    %v1738 = vld [vmem:[%s6] sm:$0xff]
    %v1739 = vld [vmem:[%s6 + $0x8] sm:$0xff]
    %v1740 = vld [vmem:[%s6 + $0x10] sm:$0xff]
    %v1741 = vld [vmem:[%s6 + $0x18] sm:$0xff]
    %v1742 = vld [vmem:[%s6 + $0x20] sm:$0xff]
    %v1743 = vld [vmem:[%s6 + $0x28] sm:$0xff]
    %v1744 = vld [vmem:[%s6 + $0x30] sm:$0xff]
    %v1745 = vld [vmem:[%s6 + $0x38] sm:$0xff]
    %v1746 = vld [vmem:[%s7] sm:$0x1]
    %v1748 = vlaneseq
    %v1749 = vshrl.u32 %v1748, 7
    %v1750 = vsub.s32 0, %v1749
    %v1751 = vrot.slane %v1746, %v1750
    %v1754 = vcombine.low %v1736, %v1737
    %v1755 = vcombine.low %v1751, %v1751
    %vm1757 = vcmask 523264
    %v1758 = vsel %vm1757, %v1754, 0
    %1760 = vmatprep.subr.mxu0 0.0
    %1761 = vmatpush1.msra.mxu0 0.0
    %1762 = vmatprep.subr.mxu0 0.0
    %1763 = vmatpush1.msra.mxu0 0.0
    %1764 = vmatprep.subr.mxu0 0.0
    %1765 = vmatpush1.msra.mxu0 0.0
    %1766 = vmatprep.subr.mxu0 0.0
    %1767 = vmatpush1.msra.mxu0 0.0
    %1768 = vmatprep.subr.mxu0 0.0
    %1769 = vmatpush1.msra.mxu0 0.0
    %1770 = vmatprep.subr.mxu0 0.0
    %1771 = vmatpush1.msra.mxu0 0.0
    %1772 = vmatprep.subr.mxu0 0.0
    %1773 = vmatpush1.msra.mxu0 0.0
    %1774 = vmatprep.subr.mxu0 0.0
    %1775 = vmatpush1.msra.mxu0 0.0
    %1776 = vmatprep.subr.mxu0 0.0
    %1777 = vmatpush1.msra.mxu0 %v1745
    %1778 = vmatprep.subr.mxu0 0.0
    %1779 = vmatpush1.msra.mxu0 %v1744
    %1780 = vmatprep.subr.mxu0 0.0
    %1781 = vmatpush1.msra.mxu0 %v1743
    %1782 = vmatprep.subr.mxu0 0.0
    %1783 = vmatpush1.msra.mxu0 %v1742
    %1784 = vmatprep.subr.mxu0 0.0
    %1785 = vmatpush1.msra.mxu0 %v1741
    %1786 = vmatprep.subr.mxu0 0.0
    %1787 = vmatpush1.msra.mxu0 %v1740
    %1788 = vmatprep.subr.mxu0 0.0
    %1789 = vmatpush1.msra.mxu0 %v1739
    %1790 = vmatprep.subr.mxu0 0.0
    %1791 = vmatpush1.msra.mxu0 %v1738
    %1792 = vmatprep.subr.mxu0 0.0
    %1793 = vmatpush2.msra.mxu0 0.0
    %1794 = vmatprep.subr.mxu0 0.0
    %1795 = vmatpush2.msra.mxu0 0.0
    %1796 = vmatprep.subr.mxu0 0.0
    %1797 = vmatpush2.msra.mxu0 0.0
    %1798 = vmatprep.subr.mxu0 0.0
    %1799 = vmatpush2.msra.mxu0 0.0
    %1800 = vmatprep.subr.mxu0 0.0
    %1801 = vmatpush2.msra.mxu0 0.0
    %1802 = vmatprep.subr.mxu0 0.0
    %1803 = vmatpush2.msra.mxu0 0.0
    %1804 = vmatprep.subr.mxu0 0.0
    %1805 = vmatpush2.msra.mxu0 0.0
    %1806 = vmatprep.subr.mxu0 0.0
    %1807 = vmatpush2.msra.mxu0 0.0
    %1808 = vmatprep.subr.mxu0 0.0
    %1809 = vmatpush2.msra.mxu0 0.0
    %1810 = vmatprep.subr.mxu0 0.0
    %1811 = vmatpush2.msra.mxu0 0.0
    %1812 = vmatprep.subr.mxu0 0.0
    %1813 = vmatpush2.msra.mxu0 0.0
    %1814 = vmatprep.subr.mxu0 0.0
    %1815 = vmatpush2.msra.mxu0 0.0
    %1816 = vmatprep.subr.mxu0 0.0
    %1817 = vmatpush2.msra.mxu0 0.0
    %1818 = vmatprep.subr.mxu0 0.0
    %1819 = vmatpush2.msra.mxu0 0.0
    %1820 = vmatprep.subr.mxu0 0.0
    %1821 = vmatpush2.msra.mxu0 0.0
    %1822 = vmatprep.subr.mxu0 0.0
    %1823 = vmatpush2.msra.mxu0 0.0
    %1824 = vmatprep.mubr.f32.mxu0 0.0
    %1825 = vmatmul.mubr.f32.gmra.mxu0 %v1758
    %v1826 = vpop.f32.mrf.mxu0
    %v1827 = vadd.f32 %v1755, %v1826
    %v1828 = vpop.f32.mrf.mxu0
    %1829 = vdwg.mxu0
    %v1831 = vcombine.high %v1827, %v1827
    %v1833 = vld [vmem:[%s8] sm:$0x3]
    %v1834 = vadd.f32 %v1644, %v1827
    %v1835 = vadd.f32 %v1645, %v1831
    %v1836 = vsel %vm1606, %v1834, 0.0
    %1837 = vadd.xlane.f32.xlu0 %v1836
    %v1838 = vpop.xlane.xlu0 %1837
    %v1839 = vsel %vm1606, %v1835, 0.0
    %1840 = vadd.xlane.f32.xlu0 %v1839
    %v1841 = vpop.xlane.xlu0 %1840
    %v1842 = vmul.f32 %v1838, %v1613
    %v1843 = vmul.f32 %v1841, %v1613
    %v1844 = vsub.f32 %v1834, %v1842
    %v1845 = vsub.f32 %v1835, %v1843
    %v1846 = vmul.f32 %v1844, %v1844
    %v1847 = vmul.f32 %v1845, %v1845
    %v1848 = vsel %vm1606, %v1846, 0.0
    %1849 = vadd.xlane.f32.xlu0 %v1848
    %v1850 = vpop.xlane.xlu0 %1849
    %v1851 = vsel %vm1606, %v1847, 0.0
    %1852 = vadd.xlane.f32.xlu0 %v1851
    %v1853 = vpop.xlane.xlu0 %1852
    %v1854 = vmul.f32 %v1850, %v1613
    %v1855 = vmul.f32 %v1853, %v1613
    %v1856 = vadd.f32 %v1854, 1e-05
    %v1857 = vadd.f32 %v1855, 1e-05
    %v1858 = vrsqrt.pop %v1856
    %v1859 = vrsqrt.pop %v1857
    %v1860 = vmul.f32 %v1844, %v1858
    %v1861 = vmul.f32 %v1845, %v1859
    %v1862 = vlaneseq
    %v1863 = vshrl.u32 %v1862, 7
    %v1864 = vsub.s32 0, %v1863
    %v1865 = vrot.slane %v1833, %v1864
    %v1866 = vmul.f32 %v1860, %v1865
    %v1867 = vmul.f32 %v1861, %v1865
    %v1868 = vlaneseq
    %v1869 = vshrl.u32 %v1868, 7
    %v1870 = vsub.s32 1, %v1869
    %v1871 = vrot.slane %v1833, %v1870
    %v1872 = vadd.f32 %v1866, %v1871
    %v1873 = vadd.f32 %v1867, %v1871
    %s1874 = scalar_lea.vmem %s1, 32
    %v1875 = vld [vmem:[%s1874] sm:$0xff]
    %v1876 = vld [vmem:[%s1874 + $0x8] sm:$0xff]
    %v1877 = vld [vmem:[%s1874 + $0x10] sm:$0xff]
    %v1878 = vld [vmem:[%s1874 + $0x18] sm:$0xff]
    %v1881 = vcombine.low %v1872, %v1873
    %v1882 = vsel %vm78, %v1881, 0
    %1884 = vmatprep.subr.mxu0 0.0
    %1885 = vmatpush1.msra.mxu0 0.0
    %1886 = vmatprep.subr.mxu0 0.0
    %1887 = vmatpush1.msra.mxu0 0.0
    %1888 = vmatprep.subr.mxu0 0.0
    %1889 = vmatpush1.msra.mxu0 0.0
    %1890 = vmatprep.subr.mxu0 0.0
    %1891 = vmatpush1.msra.mxu0 0.0
    %1892 = vmatprep.subr.mxu0 0.0
    %1893 = vmatpush1.msra.mxu0 0.0
    %1894 = vmatprep.subr.mxu0 0.0
    %1895 = vmatpush1.msra.mxu0 0.0
    %1896 = vmatprep.subr.mxu0 0.0
    %1897 = vmatpush1.msra.mxu0 0.0
    %1898 = vmatprep.subr.mxu0 0.0
    %1899 = vmatpush1.msra.mxu0 0.0
    %1900 = vmatprep.subr.mxu0 0.0
    %1901 = vmatpush1.msra.mxu0 0.0
    %1902 = vmatprep.subr.mxu0 0.0
    %1903 = vmatpush1.msra.mxu0 0.0
    %1904 = vmatprep.subr.mxu0 0.0
    %1905 = vmatpush1.msra.mxu0 0.0
    %1906 = vmatprep.subr.mxu0 0.0
    %1907 = vmatpush1.msra.mxu0 0.0
    %1908 = vmatprep.subr.mxu0 0.0
    %1909 = vmatpush1.msra.mxu0 %v1878
    %1910 = vmatprep.subr.mxu0 0.0
    %1911 = vmatpush1.msra.mxu0 %v1877
    %1912 = vmatprep.subr.mxu0 0.0
    %1913 = vmatpush1.msra.mxu0 %v1876
    %1914 = vmatprep.subr.mxu0 0.0
    %1915 = vmatpush1.msra.mxu0 %v1875
    %1916 = vmatprep.subr.mxu0 0.0
    %1917 = vmatpush2.msra.mxu0 0.0
    %1918 = vmatprep.subr.mxu0 0.0
    %1919 = vmatpush2.msra.mxu0 0.0
    %1920 = vmatprep.subr.mxu0 0.0
    %1921 = vmatpush2.msra.mxu0 0.0
    %1922 = vmatprep.subr.mxu0 0.0
    %1923 = vmatpush2.msra.mxu0 0.0
    %1924 = vmatprep.subr.mxu0 0.0
    %1925 = vmatpush2.msra.mxu0 0.0
    %1926 = vmatprep.subr.mxu0 0.0
    %1927 = vmatpush2.msra.mxu0 0.0
    %1928 = vmatprep.subr.mxu0 0.0
    %1929 = vmatpush2.msra.mxu0 0.0
    %1930 = vmatprep.subr.mxu0 0.0
    %1931 = vmatpush2.msra.mxu0 0.0
    %1932 = vmatprep.subr.mxu0 0.0
    %1933 = vmatpush2.msra.mxu0 0.0
    %1934 = vmatprep.subr.mxu0 0.0
    %1935 = vmatpush2.msra.mxu0 0.0
    %1936 = vmatprep.subr.mxu0 0.0
    %1937 = vmatpush2.msra.mxu0 0.0
    %1938 = vmatprep.subr.mxu0 0.0
    %1939 = vmatpush2.msra.mxu0 0.0
    %1940 = vmatprep.subr.mxu0 0.0
    %1941 = vmatpush2.msra.mxu0 0.0
    %1942 = vmatprep.subr.mxu0 0.0
    %1943 = vmatpush2.msra.mxu0 0.0
    %1944 = vmatprep.subr.mxu0 0.0
    %1945 = vmatpush2.msra.mxu0 0.0
    %1946 = vmatprep.subr.mxu0 0.0
    %1947 = vmatpush2.msra.mxu0 0.0
    %1948 = vmatprep.mubr.f32.mxu0 0.0
    %1949 = vmatmul.mubr.f32.gmra.mxu0 %v1882
    %v1950 = vpop.f32.mrf.mxu0
    %v1951 = vadd.f32 0.0, %v1950
    %v1952 = vpop.f32.mrf.mxu0
    %1953 = vdwg.mxu0
    %v1955 = vcombine.high %v1951, %v1951
    %1956 = vrot.lane.b32.xlu0 %v1951, 96
    %v1957 = vpop.permute.xlu0 %1956
    %v1958 = vsel %vm155, %v1951, 0
    %v1960 = vsel %vm155, %v1957, 0
    %1962 = vmatprep.subr.mxu0 0.0
    %1963 = vmatpush1.xpose.msra.mxu0 0.0
    %1964 = vmatprep.subr.mxu0 0.0
    %1965 = vmatpush1.xpose.msra.mxu0 0.0
    %1966 = vmatprep.subr.mxu0 0.0
    %1967 = vmatpush1.xpose.msra.mxu0 0.0
    %1968 = vmatprep.subr.mxu0 0.0
    %1969 = vmatpush1.xpose.msra.mxu0 0.0
    %1970 = vmatprep.subr.mxu0 0.0
    %1971 = vmatpush1.xpose.msra.mxu0 0.0
    %1972 = vmatprep.subr.mxu0 0.0
    %1973 = vmatpush1.xpose.msra.mxu0 0.0
    %1974 = vmatprep.subr.mxu0 0.0
    %1975 = vmatpush1.xpose.msra.mxu0 0.0
    %1976 = vmatprep.subr.mxu0 0.0
    %1977 = vmatpush1.xpose.msra.mxu0 0.0
    %1978 = vmatprep.subr.mxu0 0.0
    %1979 = vmatpush1.xpose.msra.mxu0 0.0
    %1980 = vmatprep.subr.mxu0 0.0
    %1981 = vmatpush1.xpose.msra.mxu0 0.0
    %1982 = vmatprep.subr.mxu0 0.0
    %1983 = vmatpush1.xpose.msra.mxu0 0.0
    %1984 = vmatprep.subr.mxu0 0.0
    %1985 = vmatpush1.xpose.msra.mxu0 0.0
    %1986 = vmatprep.subr.mxu0 0.0
    %1987 = vmatpush1.xpose.msra.mxu0 0.0
    %1988 = vmatprep.subr.mxu0 0.0
    %1989 = vmatpush1.xpose.msra.mxu0 0.0
    %1990 = vmatprep.subr.mxu0 0.0
    %1991 = vmatpush1.xpose.msra.mxu0 0.0
    %1992 = vmatprep.subr.mxu0 0.0
    %1993 = vmatpush1.xpose.msra.mxu0 %v1960
    %1994 = vmatprep.subr.mxu0 0.0
    %1995 = vmatpush2.xpose.msra.mxu0 0.0
    %1996 = vmatprep.subr.mxu0 0.0
    %1997 = vmatpush2.xpose.msra.mxu0 0.0
    %1998 = vmatprep.subr.mxu0 0.0
    %1999 = vmatpush2.xpose.msra.mxu0 0.0
    %2000 = vmatprep.subr.mxu0 0.0
    %2001 = vmatpush2.xpose.msra.mxu0 0.0
    %2002 = vmatprep.subr.mxu0 0.0
    %2003 = vmatpush2.xpose.msra.mxu0 0.0
    %2004 = vmatprep.subr.mxu0 0.0
    %2005 = vmatpush2.xpose.msra.mxu0 0.0
    %2006 = vmatprep.subr.mxu0 0.0
    %2007 = vmatpush2.xpose.msra.mxu0 0.0
    %2008 = vmatprep.subr.mxu0 0.0
    %2009 = vmatpush2.xpose.msra.mxu0 0.0
    %2010 = vmatprep.subr.mxu0 0.0
    %2011 = vmatpush2.xpose.msra.mxu0 0.0
    %2012 = vmatprep.subr.mxu0 0.0
    %2013 = vmatpush2.xpose.msra.mxu0 0.0
    %2014 = vmatprep.subr.mxu0 0.0
    %2015 = vmatpush2.xpose.msra.mxu0 0.0
    %2016 = vmatprep.subr.mxu0 0.0
    %2017 = vmatpush2.xpose.msra.mxu0 0.0
    %2018 = vmatprep.subr.mxu0 0.0
    %2019 = vmatpush2.xpose.msra.mxu0 0.0
    %2020 = vmatprep.subr.mxu0 0.0
    %2021 = vmatpush2.xpose.msra.mxu0 0.0
    %2022 = vmatprep.subr.mxu0 0.0
    %2023 = vmatpush2.xpose.msra.mxu0 0.0
    %2024 = vmatprep.subr.mxu0 0.0
    %2025 = vmatpush2.xpose.msra.mxu0 0.0
    %2026 = vmatprep.mubr.f32.mxu0 0.0
    %2027 = vmatmul.mubr.f32.gmra.mxu0 %v1958
    %v2028 = vpop.f32.mrf.mxu0
    %v2029 = vadd.f32 0.0, %v2028
    %v2030 = vpop.f32.mrf.mxu0
    %2031 = vdwg.mxu0
    %2032 = vrot.lane.b32.xlu0 %v1955, 96
    %v2033 = vpop.permute.xlu0 %2032
    %v2034 = vsel %vm155, %v1955, 0
    %v2036 = vsel %vm155, %v2033, 0
    %2038 = vmatprep.subr.mxu0 0.0
    %2039 = vmatpush1.xpose.msra.mxu0 0.0
    %2040 = vmatprep.subr.mxu0 0.0
    %2041 = vmatpush1.xpose.msra.mxu0 0.0
    %2042 = vmatprep.subr.mxu0 0.0
    %2043 = vmatpush1.xpose.msra.mxu0 0.0
    %2044 = vmatprep.subr.mxu0 0.0
    %2045 = vmatpush1.xpose.msra.mxu0 0.0
    %2046 = vmatprep.subr.mxu0 0.0
    %2047 = vmatpush1.xpose.msra.mxu0 0.0
    %2048 = vmatprep.subr.mxu0 0.0
    %2049 = vmatpush1.xpose.msra.mxu0 0.0
    %2050 = vmatprep.subr.mxu0 0.0
    %2051 = vmatpush1.xpose.msra.mxu0 0.0
    %2052 = vmatprep.subr.mxu0 0.0
    %2053 = vmatpush1.xpose.msra.mxu0 0.0
    %2054 = vmatprep.subr.mxu0 0.0
    %2055 = vmatpush1.xpose.msra.mxu0 0.0
    %2056 = vmatprep.subr.mxu0 0.0
    %2057 = vmatpush1.xpose.msra.mxu0 0.0
    %2058 = vmatprep.subr.mxu0 0.0
    %2059 = vmatpush1.xpose.msra.mxu0 0.0
    %2060 = vmatprep.subr.mxu0 0.0
    %2061 = vmatpush1.xpose.msra.mxu0 0.0
    %2062 = vmatprep.subr.mxu0 0.0
    %2063 = vmatpush1.xpose.msra.mxu0 0.0
    %2064 = vmatprep.subr.mxu0 0.0
    %2065 = vmatpush1.xpose.msra.mxu0 0.0
    %2066 = vmatprep.subr.mxu0 0.0
    %2067 = vmatpush1.xpose.msra.mxu0 0.0
    %2068 = vmatprep.subr.mxu0 0.0
    %2069 = vmatpush1.xpose.msra.mxu0 %v2036
    %2070 = vmatprep.subr.mxu0 0.0
    %2071 = vmatpush2.xpose.msra.mxu0 0.0
    %2072 = vmatprep.subr.mxu0 0.0
    %2073 = vmatpush2.xpose.msra.mxu0 0.0
    %2074 = vmatprep.subr.mxu0 0.0
    %2075 = vmatpush2.xpose.msra.mxu0 0.0
    %2076 = vmatprep.subr.mxu0 0.0
    %2077 = vmatpush2.xpose.msra.mxu0 0.0
    %2078 = vmatprep.subr.mxu0 0.0
    %2079 = vmatpush2.xpose.msra.mxu0 0.0
    %2080 = vmatprep.subr.mxu0 0.0
    %2081 = vmatpush2.xpose.msra.mxu0 0.0
    %2082 = vmatprep.subr.mxu0 0.0
    %2083 = vmatpush2.xpose.msra.mxu0 0.0
    %2084 = vmatprep.subr.mxu0 0.0
    %2085 = vmatpush2.xpose.msra.mxu0 0.0
    %2086 = vmatprep.subr.mxu0 0.0
    %2087 = vmatpush2.xpose.msra.mxu0 0.0
    %2088 = vmatprep.subr.mxu0 0.0
    %2089 = vmatpush2.xpose.msra.mxu0 0.0
    %2090 = vmatprep.subr.mxu0 0.0
    %2091 = vmatpush2.xpose.msra.mxu0 0.0
    %2092 = vmatprep.subr.mxu0 0.0
    %2093 = vmatpush2.xpose.msra.mxu0 0.0
    %2094 = vmatprep.subr.mxu0 0.0
    %2095 = vmatpush2.xpose.msra.mxu0 0.0
    %2096 = vmatprep.subr.mxu0 0.0
    %2097 = vmatpush2.xpose.msra.mxu0 0.0
    %2098 = vmatprep.subr.mxu0 0.0
    %2099 = vmatpush2.xpose.msra.mxu0 0.0
    %2100 = vmatprep.subr.mxu0 0.0
    %2101 = vmatpush2.xpose.msra.mxu0 0.0
    %2102 = vmatprep.mubr.f32.mxu0 0.0
    %2103 = vmatmul.mubr.f32.gmra.mxu0 %v2034
    %v2104 = vpop.f32.mrf.mxu0
    %v2105 = vadd.f32 0.0, %v2104
    %v2106 = vpop.f32.mrf.mxu0
    %2107 = vdwg.mxu0
    %v2108 = vmul.f32 %v2029, 0.35355338
    %v2109 = vmul.f32 %v2105, 0.35355338
    %v2110 = vsel %vm308, %v2108, -inf
    %2111 = vmax.xlane.f32.xlu0 %v2110
    %v2112 = vpop.xlane.xlu0 %2111
    %v2113 = vsel %vm308, %v2109, -inf
    %2114 = vmax.xlane.f32.xlu0 %v2113
    %v2115 = vpop.xlane.xlu0 %2114
    %v2116 = vsub.f32 %v2108, %v2112
    %v2117 = vsub.f32 %v2109, %v2115
    %v2118 = vmul.f32 %v2116, 1.442695
    %v2119 = vpow.pop %v2118
    %v2120 = vmul.f32 %v2117, 1.442695
    %v2121 = vpow.pop %v2120
    %v2122 = vsel %vm308, %v2119, 0.0
    %2123 = vadd.xlane.f32.xlu0 %v2122
    %v2124 = vpop.xlane.xlu0 %2123
    %v2125 = vsel %vm308, %v2121, 0.0
    %2126 = vadd.xlane.f32.xlu0 %v2125
    %v2127 = vpop.xlane.xlu0 %2126
    %v2128 = vrcp.pop %v2124
    %v2129 = vrcp.pop %v2127
    %v2130 = vmul.f32 %v2119, %v2128
    %v2131 = vmul.f32 %v2121, %v2129
    %2132 = vrot.lane.b32.xlu0 %v1951, 64
    %v2133 = vpop.permute.xlu0 %2132
    %v2135 = vsel %vm333, %v2130, 0
    %v2137 = vsel %vm337, %v2133, 0
    %2139 = vmatprep.subr.mxu0 0.0
    %2140 = vmatpush1.msra.mxu0 0.0
    %2141 = vmatprep.subr.mxu0 0.0
    %2142 = vmatpush1.msra.mxu0 0.0
    %2143 = vmatprep.subr.mxu0 0.0
    %2144 = vmatpush1.msra.mxu0 0.0
    %2145 = vmatprep.subr.mxu0 0.0
    %2146 = vmatpush1.msra.mxu0 0.0
    %2147 = vmatprep.subr.mxu0 0.0
    %2148 = vmatpush1.msra.mxu0 0.0
    %2149 = vmatprep.subr.mxu0 0.0
    %2150 = vmatpush1.msra.mxu0 0.0
    %2151 = vmatprep.subr.mxu0 0.0
    %2152 = vmatpush1.msra.mxu0 0.0
    %2153 = vmatprep.subr.mxu0 0.0
    %2154 = vmatpush1.msra.mxu0 0.0
    %2155 = vmatprep.subr.mxu0 0.0
    %2156 = vmatpush1.msra.mxu0 0.0
    %2157 = vmatprep.subr.mxu0 0.0
    %2158 = vmatpush1.msra.mxu0 0.0
    %2159 = vmatprep.subr.mxu0 0.0
    %2160 = vmatpush1.msra.mxu0 0.0
    %2161 = vmatprep.subr.mxu0 0.0
    %2162 = vmatpush1.msra.mxu0 0.0
    %2163 = vmatprep.subr.mxu0 0.0
    %2164 = vmatpush1.msra.mxu0 0.0
    %2165 = vmatprep.subr.mxu0 0.0
    %2166 = vmatpush1.msra.mxu0 0.0
    %2167 = vmatprep.subr.mxu0 0.0
    %2168 = vmatpush1.msra.mxu0 0.0
    %2169 = vmatprep.subr.mxu0 0.0
    %2170 = vmatpush1.msra.mxu0 %v2137
    %2171 = vmatprep.subr.mxu0 0.0
    %2172 = vmatpush2.msra.mxu0 0.0
    %2173 = vmatprep.subr.mxu0 0.0
    %2174 = vmatpush2.msra.mxu0 0.0
    %2175 = vmatprep.subr.mxu0 0.0
    %2176 = vmatpush2.msra.mxu0 0.0
    %2177 = vmatprep.subr.mxu0 0.0
    %2178 = vmatpush2.msra.mxu0 0.0
    %2179 = vmatprep.subr.mxu0 0.0
    %2180 = vmatpush2.msra.mxu0 0.0
    %2181 = vmatprep.subr.mxu0 0.0
    %2182 = vmatpush2.msra.mxu0 0.0
    %2183 = vmatprep.subr.mxu0 0.0
    %2184 = vmatpush2.msra.mxu0 0.0
    %2185 = vmatprep.subr.mxu0 0.0
    %2186 = vmatpush2.msra.mxu0 0.0
    %2187 = vmatprep.subr.mxu0 0.0
    %2188 = vmatpush2.msra.mxu0 0.0
    %2189 = vmatprep.subr.mxu0 0.0
    %2190 = vmatpush2.msra.mxu0 0.0
    %2191 = vmatprep.subr.mxu0 0.0
    %2192 = vmatpush2.msra.mxu0 0.0
    %2193 = vmatprep.subr.mxu0 0.0
    %2194 = vmatpush2.msra.mxu0 0.0
    %2195 = vmatprep.subr.mxu0 0.0
    %2196 = vmatpush2.msra.mxu0 0.0
    %2197 = vmatprep.subr.mxu0 0.0
    %2198 = vmatpush2.msra.mxu0 0.0
    %2199 = vmatprep.subr.mxu0 0.0
    %2200 = vmatpush2.msra.mxu0 0.0
    %2201 = vmatprep.subr.mxu0 0.0
    %2202 = vmatpush2.msra.mxu0 0.0
    %2203 = vmatprep.mubr.f32.mxu0 0.0
    %2204 = vmatmul.mubr.f32.gmra.mxu0 %v2135
    %v2205 = vpop.f32.mrf.mxu0
    %v2206 = vadd.f32 0.0, %v2205
    %v2207 = vpop.f32.mrf.mxu0
    %2208 = vdwg.mxu0
    %2209 = vrot.lane.b32.xlu0 %v1955, 64
    %v2210 = vpop.permute.xlu0 %2209
    %v2212 = vsel %vm333, %v2131, 0
    %v2214 = vsel %vm337, %v2210, 0
    %2216 = vmatprep.subr.mxu0 0.0
    %2217 = vmatpush1.msra.mxu0 0.0
    %2218 = vmatprep.subr.mxu0 0.0
    %2219 = vmatpush1.msra.mxu0 0.0
    %2220 = vmatprep.subr.mxu0 0.0
    %2221 = vmatpush1.msra.mxu0 0.0
    %2222 = vmatprep.subr.mxu0 0.0
    %2223 = vmatpush1.msra.mxu0 0.0
    %2224 = vmatprep.subr.mxu0 0.0
    %2225 = vmatpush1.msra.mxu0 0.0
    %2226 = vmatprep.subr.mxu0 0.0
    %2227 = vmatpush1.msra.mxu0 0.0
    %2228 = vmatprep.subr.mxu0 0.0
    %2229 = vmatpush1.msra.mxu0 0.0
    %2230 = vmatprep.subr.mxu0 0.0
    %2231 = vmatpush1.msra.mxu0 0.0
    %2232 = vmatprep.subr.mxu0 0.0
    %2233 = vmatpush1.msra.mxu0 0.0
    %2234 = vmatprep.subr.mxu0 0.0
    %2235 = vmatpush1.msra.mxu0 0.0
    %2236 = vmatprep.subr.mxu0 0.0
    %2237 = vmatpush1.msra.mxu0 0.0
    %2238 = vmatprep.subr.mxu0 0.0
    %2239 = vmatpush1.msra.mxu0 0.0
    %2240 = vmatprep.subr.mxu0 0.0
    %2241 = vmatpush1.msra.mxu0 0.0
    %2242 = vmatprep.subr.mxu0 0.0
    %2243 = vmatpush1.msra.mxu0 0.0
    %2244 = vmatprep.subr.mxu0 0.0
    %2245 = vmatpush1.msra.mxu0 0.0
    %2246 = vmatprep.subr.mxu0 0.0
    %2247 = vmatpush1.msra.mxu0 %v2214
    %2248 = vmatprep.subr.mxu0 0.0
    %2249 = vmatpush2.msra.mxu0 0.0
    %2250 = vmatprep.subr.mxu0 0.0
    %2251 = vmatpush2.msra.mxu0 0.0
    %2252 = vmatprep.subr.mxu0 0.0
    %2253 = vmatpush2.msra.mxu0 0.0
    %2254 = vmatprep.subr.mxu0 0.0
    %2255 = vmatpush2.msra.mxu0 0.0
    %2256 = vmatprep.subr.mxu0 0.0
    %2257 = vmatpush2.msra.mxu0 0.0
    %2258 = vmatprep.subr.mxu0 0.0
    %2259 = vmatpush2.msra.mxu0 0.0
    %2260 = vmatprep.subr.mxu0 0.0
    %2261 = vmatpush2.msra.mxu0 0.0
    %2262 = vmatprep.subr.mxu0 0.0
    %2263 = vmatpush2.msra.mxu0 0.0
    %2264 = vmatprep.subr.mxu0 0.0
    %2265 = vmatpush2.msra.mxu0 0.0
    %2266 = vmatprep.subr.mxu0 0.0
    %2267 = vmatpush2.msra.mxu0 0.0
    %2268 = vmatprep.subr.mxu0 0.0
    %2269 = vmatpush2.msra.mxu0 0.0
    %2270 = vmatprep.subr.mxu0 0.0
    %2271 = vmatpush2.msra.mxu0 0.0
    %2272 = vmatprep.subr.mxu0 0.0
    %2273 = vmatpush2.msra.mxu0 0.0
    %2274 = vmatprep.subr.mxu0 0.0
    %2275 = vmatpush2.msra.mxu0 0.0
    %2276 = vmatprep.subr.mxu0 0.0
    %2277 = vmatpush2.msra.mxu0 0.0
    %2278 = vmatprep.subr.mxu0 0.0
    %2279 = vmatpush2.msra.mxu0 0.0
    %2280 = vmatprep.mubr.f32.mxu0 0.0
    %2281 = vmatmul.mubr.f32.gmra.mxu0 %v2212
    %v2282 = vpop.f32.mrf.mxu0
    %v2283 = vadd.f32 0.0, %v2282
    %v2284 = vpop.f32.mrf.mxu0
    %2285 = vdwg.mxu0
    %2286 = vrot.lane.b32.xlu0 %v1951, 120
    %v2287 = vpop.permute.xlu0 %2286
    %2288 = vrot.lane.b32.xlu0 %v1951, 88
    %v2289 = vpop.permute.xlu0 %2288
    %v2290 = vsel %vm155, %v2287, 0
    %v2292 = vsel %vm155, %v2289, 0
    %2294 = vmatprep.subr.mxu0 0.0
    %2295 = vmatpush1.xpose.msra.mxu0 0.0
    %2296 = vmatprep.subr.mxu0 0.0
    %2297 = vmatpush1.xpose.msra.mxu0 0.0
    %2298 = vmatprep.subr.mxu0 0.0
    %2299 = vmatpush1.xpose.msra.mxu0 0.0
    %2300 = vmatprep.subr.mxu0 0.0
    %2301 = vmatpush1.xpose.msra.mxu0 0.0
    %2302 = vmatprep.subr.mxu0 0.0
    %2303 = vmatpush1.xpose.msra.mxu0 0.0
    %2304 = vmatprep.subr.mxu0 0.0
    %2305 = vmatpush1.xpose.msra.mxu0 0.0
    %2306 = vmatprep.subr.mxu0 0.0
    %2307 = vmatpush1.xpose.msra.mxu0 0.0
    %2308 = vmatprep.subr.mxu0 0.0
    %2309 = vmatpush1.xpose.msra.mxu0 0.0
    %2310 = vmatprep.subr.mxu0 0.0
    %2311 = vmatpush1.xpose.msra.mxu0 0.0
    %2312 = vmatprep.subr.mxu0 0.0
    %2313 = vmatpush1.xpose.msra.mxu0 0.0
    %2314 = vmatprep.subr.mxu0 0.0
    %2315 = vmatpush1.xpose.msra.mxu0 0.0
    %2316 = vmatprep.subr.mxu0 0.0
    %2317 = vmatpush1.xpose.msra.mxu0 0.0
    %2318 = vmatprep.subr.mxu0 0.0
    %2319 = vmatpush1.xpose.msra.mxu0 0.0
    %2320 = vmatprep.subr.mxu0 0.0
    %2321 = vmatpush1.xpose.msra.mxu0 0.0
    %2322 = vmatprep.subr.mxu0 0.0
    %2323 = vmatpush1.xpose.msra.mxu0 0.0
    %2324 = vmatprep.subr.mxu0 0.0
    %2325 = vmatpush1.xpose.msra.mxu0 %v2292
    %2326 = vmatprep.subr.mxu0 0.0
    %2327 = vmatpush2.xpose.msra.mxu0 0.0
    %2328 = vmatprep.subr.mxu0 0.0
    %2329 = vmatpush2.xpose.msra.mxu0 0.0
    %2330 = vmatprep.subr.mxu0 0.0
    %2331 = vmatpush2.xpose.msra.mxu0 0.0
    %2332 = vmatprep.subr.mxu0 0.0
    %2333 = vmatpush2.xpose.msra.mxu0 0.0
    %2334 = vmatprep.subr.mxu0 0.0
    %2335 = vmatpush2.xpose.msra.mxu0 0.0
    %2336 = vmatprep.subr.mxu0 0.0
    %2337 = vmatpush2.xpose.msra.mxu0 0.0
    %2338 = vmatprep.subr.mxu0 0.0
    %2339 = vmatpush2.xpose.msra.mxu0 0.0
    %2340 = vmatprep.subr.mxu0 0.0
    %2341 = vmatpush2.xpose.msra.mxu0 0.0
    %2342 = vmatprep.subr.mxu0 0.0
    %2343 = vmatpush2.xpose.msra.mxu0 0.0
    %2344 = vmatprep.subr.mxu0 0.0
    %2345 = vmatpush2.xpose.msra.mxu0 0.0
    %2346 = vmatprep.subr.mxu0 0.0
    %2347 = vmatpush2.xpose.msra.mxu0 0.0
    %2348 = vmatprep.subr.mxu0 0.0
    %2349 = vmatpush2.xpose.msra.mxu0 0.0
    %2350 = vmatprep.subr.mxu0 0.0
    %2351 = vmatpush2.xpose.msra.mxu0 0.0
    %2352 = vmatprep.subr.mxu0 0.0
    %2353 = vmatpush2.xpose.msra.mxu0 0.0
    %2354 = vmatprep.subr.mxu0 0.0
    %2355 = vmatpush2.xpose.msra.mxu0 0.0
    %2356 = vmatprep.subr.mxu0 0.0
    %2357 = vmatpush2.xpose.msra.mxu0 0.0
    %2358 = vmatprep.mubr.f32.mxu0 0.0
    %2359 = vmatmul.mubr.f32.gmra.mxu0 %v2290
    %v2360 = vpop.f32.mrf.mxu0
    %v2361 = vadd.f32 0.0, %v2360
    %v2362 = vpop.f32.mrf.mxu0
    %2363 = vdwg.mxu0
    %2364 = vrot.lane.b32.xlu0 %v1955, 120
    %v2365 = vpop.permute.xlu0 %2364
    %2366 = vrot.lane.b32.xlu0 %v1955, 88
    %v2367 = vpop.permute.xlu0 %2366
    %v2368 = vsel %vm155, %v2365, 0
    %v2370 = vsel %vm155, %v2367, 0
    %2372 = vmatprep.subr.mxu0 0.0
    %2373 = vmatpush1.xpose.msra.mxu0 0.0
    %2374 = vmatprep.subr.mxu0 0.0
    %2375 = vmatpush1.xpose.msra.mxu0 0.0
    %2376 = vmatprep.subr.mxu0 0.0
    %2377 = vmatpush1.xpose.msra.mxu0 0.0
    %2378 = vmatprep.subr.mxu0 0.0
    %2379 = vmatpush1.xpose.msra.mxu0 0.0
    %2380 = vmatprep.subr.mxu0 0.0
    %2381 = vmatpush1.xpose.msra.mxu0 0.0
    %2382 = vmatprep.subr.mxu0 0.0
    %2383 = vmatpush1.xpose.msra.mxu0 0.0
    %2384 = vmatprep.subr.mxu0 0.0
    %2385 = vmatpush1.xpose.msra.mxu0 0.0
    %2386 = vmatprep.subr.mxu0 0.0
    %2387 = vmatpush1.xpose.msra.mxu0 0.0
    %2388 = vmatprep.subr.mxu0 0.0
    %2389 = vmatpush1.xpose.msra.mxu0 0.0
    %2390 = vmatprep.subr.mxu0 0.0
    %2391 = vmatpush1.xpose.msra.mxu0 0.0
    %2392 = vmatprep.subr.mxu0 0.0
    %2393 = vmatpush1.xpose.msra.mxu0 0.0
    %2394 = vmatprep.subr.mxu0 0.0
    %2395 = vmatpush1.xpose.msra.mxu0 0.0
    %2396 = vmatprep.subr.mxu0 0.0
    %2397 = vmatpush1.xpose.msra.mxu0 0.0
    %2398 = vmatprep.subr.mxu0 0.0
    %2399 = vmatpush1.xpose.msra.mxu0 0.0
    %2400 = vmatprep.subr.mxu0 0.0
    %2401 = vmatpush1.xpose.msra.mxu0 0.0
    %2402 = vmatprep.subr.mxu0 0.0
    %2403 = vmatpush1.xpose.msra.mxu0 %v2370
    %2404 = vmatprep.subr.mxu0 0.0
    %2405 = vmatpush2.xpose.msra.mxu0 0.0
    %2406 = vmatprep.subr.mxu0 0.0
    %2407 = vmatpush2.xpose.msra.mxu0 0.0
    %2408 = vmatprep.subr.mxu0 0.0
    %2409 = vmatpush2.xpose.msra.mxu0 0.0
    %2410 = vmatprep.subr.mxu0 0.0
    %2411 = vmatpush2.xpose.msra.mxu0 0.0
    %2412 = vmatprep.subr.mxu0 0.0
    %2413 = vmatpush2.xpose.msra.mxu0 0.0
    %2414 = vmatprep.subr.mxu0 0.0
    %2415 = vmatpush2.xpose.msra.mxu0 0.0
    %2416 = vmatprep.subr.mxu0 0.0
    %2417 = vmatpush2.xpose.msra.mxu0 0.0
    %2418 = vmatprep.subr.mxu0 0.0
    %2419 = vmatpush2.xpose.msra.mxu0 0.0
    %2420 = vmatprep.subr.mxu0 0.0
    %2421 = vmatpush2.xpose.msra.mxu0 0.0
    %2422 = vmatprep.subr.mxu0 0.0
    %2423 = vmatpush2.xpose.msra.mxu0 0.0
    %2424 = vmatprep.subr.mxu0 0.0
    %2425 = vmatpush2.xpose.msra.mxu0 0.0
    %2426 = vmatprep.subr.mxu0 0.0
    %2427 = vmatpush2.xpose.msra.mxu0 0.0
    %2428 = vmatprep.subr.mxu0 0.0
    %2429 = vmatpush2.xpose.msra.mxu0 0.0
    %2430 = vmatprep.subr.mxu0 0.0
    %2431 = vmatpush2.xpose.msra.mxu0 0.0
    %2432 = vmatprep.subr.mxu0 0.0
    %2433 = vmatpush2.xpose.msra.mxu0 0.0
    %2434 = vmatprep.subr.mxu0 0.0
    %2435 = vmatpush2.xpose.msra.mxu0 0.0
    %2436 = vmatprep.mubr.f32.mxu0 0.0
    %2437 = vmatmul.mubr.f32.gmra.mxu0 %v2368
    %v2438 = vpop.f32.mrf.mxu0
    %v2439 = vadd.f32 0.0, %v2438
    %v2440 = vpop.f32.mrf.mxu0
    %2441 = vdwg.mxu0
    %v2442 = vmul.f32 %v2361, 0.35355338
    %v2443 = vmul.f32 %v2439, 0.35355338
    %v2444 = vsel %vm308, %v2442, -inf
    %2445 = vmax.xlane.f32.xlu0 %v2444
    %v2446 = vpop.xlane.xlu0 %2445
    %v2447 = vsel %vm308, %v2443, -inf
    %2448 = vmax.xlane.f32.xlu0 %v2447
    %v2449 = vpop.xlane.xlu0 %2448
    %v2450 = vsub.f32 %v2442, %v2446
    %v2451 = vsub.f32 %v2443, %v2449
    %v2452 = vmul.f32 %v2450, 1.442695
    %v2453 = vpow.pop %v2452
    %v2454 = vmul.f32 %v2451, 1.442695
    %v2455 = vpow.pop %v2454
    %v2456 = vsel %vm308, %v2453, 0.0
    %2457 = vadd.xlane.f32.xlu0 %v2456
    %v2458 = vpop.xlane.xlu0 %2457
    %v2459 = vsel %vm308, %v2455, 0.0
    %2460 = vadd.xlane.f32.xlu0 %v2459
    %v2461 = vpop.xlane.xlu0 %2460
    %v2462 = vrcp.pop %v2458
    %v2463 = vrcp.pop %v2461
    %v2464 = vmul.f32 %v2453, %v2462
    %v2465 = vmul.f32 %v2455, %v2463
    %2466 = vrot.lane.b32.xlu0 %v1951, 56
    %v2467 = vpop.permute.xlu0 %2466
    %v2469 = vsel %vm333, %v2464, 0
    %v2471 = vsel %vm337, %v2467, 0
    %2473 = vmatprep.subr.mxu0 0.0
    %2474 = vmatpush1.msra.mxu0 0.0
    %2475 = vmatprep.subr.mxu0 0.0
    %2476 = vmatpush1.msra.mxu0 0.0
    %2477 = vmatprep.subr.mxu0 0.0
    %2478 = vmatpush1.msra.mxu0 0.0
    %2479 = vmatprep.subr.mxu0 0.0
    %2480 = vmatpush1.msra.mxu0 0.0
    %2481 = vmatprep.subr.mxu0 0.0
    %2482 = vmatpush1.msra.mxu0 0.0
    %2483 = vmatprep.subr.mxu0 0.0
    %2484 = vmatpush1.msra.mxu0 0.0
    %2485 = vmatprep.subr.mxu0 0.0
    %2486 = vmatpush1.msra.mxu0 0.0
    %2487 = vmatprep.subr.mxu0 0.0
    %2488 = vmatpush1.msra.mxu0 0.0
    %2489 = vmatprep.subr.mxu0 0.0
    %2490 = vmatpush1.msra.mxu0 0.0
    %2491 = vmatprep.subr.mxu0 0.0
    %2492 = vmatpush1.msra.mxu0 0.0
    %2493 = vmatprep.subr.mxu0 0.0
    %2494 = vmatpush1.msra.mxu0 0.0
    %2495 = vmatprep.subr.mxu0 0.0
    %2496 = vmatpush1.msra.mxu0 0.0
    %2497 = vmatprep.subr.mxu0 0.0
    %2498 = vmatpush1.msra.mxu0 0.0
    %2499 = vmatprep.subr.mxu0 0.0
    %2500 = vmatpush1.msra.mxu0 0.0
    %2501 = vmatprep.subr.mxu0 0.0
    %2502 = vmatpush1.msra.mxu0 0.0
    %2503 = vmatprep.subr.mxu0 0.0
    %2504 = vmatpush1.msra.mxu0 %v2471
    %2505 = vmatprep.subr.mxu0 0.0
    %2506 = vmatpush2.msra.mxu0 0.0
    %2507 = vmatprep.subr.mxu0 0.0
    %2508 = vmatpush2.msra.mxu0 0.0
    %2509 = vmatprep.subr.mxu0 0.0
    %2510 = vmatpush2.msra.mxu0 0.0
    %2511 = vmatprep.subr.mxu0 0.0
    %2512 = vmatpush2.msra.mxu0 0.0
    %2513 = vmatprep.subr.mxu0 0.0
    %2514 = vmatpush2.msra.mxu0 0.0
    %2515 = vmatprep.subr.mxu0 0.0
    %2516 = vmatpush2.msra.mxu0 0.0
    %2517 = vmatprep.subr.mxu0 0.0
    %2518 = vmatpush2.msra.mxu0 0.0
    %2519 = vmatprep.subr.mxu0 0.0
    %2520 = vmatpush2.msra.mxu0 0.0
    %2521 = vmatprep.subr.mxu0 0.0
    %2522 = vmatpush2.msra.mxu0 0.0
    %2523 = vmatprep.subr.mxu0 0.0
    %2524 = vmatpush2.msra.mxu0 0.0
    %2525 = vmatprep.subr.mxu0 0.0
    %2526 = vmatpush2.msra.mxu0 0.0
    %2527 = vmatprep.subr.mxu0 0.0
    %2528 = vmatpush2.msra.mxu0 0.0
    %2529 = vmatprep.subr.mxu0 0.0
    %2530 = vmatpush2.msra.mxu0 0.0
    %2531 = vmatprep.subr.mxu0 0.0
    %2532 = vmatpush2.msra.mxu0 0.0
    %2533 = vmatprep.subr.mxu0 0.0
    %2534 = vmatpush2.msra.mxu0 0.0
    %2535 = vmatprep.subr.mxu0 0.0
    %2536 = vmatpush2.msra.mxu0 0.0
    %2537 = vmatprep.mubr.f32.mxu0 0.0
    %2538 = vmatmul.mubr.f32.gmra.mxu0 %v2469
    %v2539 = vpop.f32.mrf.mxu0
    %v2540 = vadd.f32 0.0, %v2539
    %v2541 = vpop.f32.mrf.mxu0
    %2542 = vdwg.mxu0
    %2543 = vrot.lane.b32.xlu0 %v1955, 56
    %v2544 = vpop.permute.xlu0 %2543
    %v2546 = vsel %vm333, %v2465, 0
    %v2548 = vsel %vm337, %v2544, 0
    %2550 = vmatprep.subr.mxu0 0.0
    %2551 = vmatpush1.msra.mxu0 0.0
    %2552 = vmatprep.subr.mxu0 0.0
    %2553 = vmatpush1.msra.mxu0 0.0
    %2554 = vmatprep.subr.mxu0 0.0
    %2555 = vmatpush1.msra.mxu0 0.0
    %2556 = vmatprep.subr.mxu0 0.0
    %2557 = vmatpush1.msra.mxu0 0.0
    %2558 = vmatprep.subr.mxu0 0.0
    %2559 = vmatpush1.msra.mxu0 0.0
    %2560 = vmatprep.subr.mxu0 0.0
    %2561 = vmatpush1.msra.mxu0 0.0
    %2562 = vmatprep.subr.mxu0 0.0
    %2563 = vmatpush1.msra.mxu0 0.0
    %2564 = vmatprep.subr.mxu0 0.0
    %2565 = vmatpush1.msra.mxu0 0.0
    %2566 = vmatprep.subr.mxu0 0.0
    %2567 = vmatpush1.msra.mxu0 0.0
    %2568 = vmatprep.subr.mxu0 0.0
    %2569 = vmatpush1.msra.mxu0 0.0
    %2570 = vmatprep.subr.mxu0 0.0
    %2571 = vmatpush1.msra.mxu0 0.0
    %2572 = vmatprep.subr.mxu0 0.0
    %2573 = vmatpush1.msra.mxu0 0.0
    %2574 = vmatprep.subr.mxu0 0.0
    %2575 = vmatpush1.msra.mxu0 0.0
    %2576 = vmatprep.subr.mxu0 0.0
    %2577 = vmatpush1.msra.mxu0 0.0
    %2578 = vmatprep.subr.mxu0 0.0
    %2579 = vmatpush1.msra.mxu0 0.0
    %2580 = vmatprep.subr.mxu0 0.0
    %2581 = vmatpush1.msra.mxu0 %v2548
    %2582 = vmatprep.subr.mxu0 0.0
    %2583 = vmatpush2.msra.mxu0 0.0
    %2584 = vmatprep.subr.mxu0 0.0
    %2585 = vmatpush2.msra.mxu0 0.0
    %2586 = vmatprep.subr.mxu0 0.0
    %2587 = vmatpush2.msra.mxu0 0.0
    %2588 = vmatprep.subr.mxu0 0.0
    %2589 = vmatpush2.msra.mxu0 0.0
    %2590 = vmatprep.subr.mxu0 0.0
    %2591 = vmatpush2.msra.mxu0 0.0
    %2592 = vmatprep.subr.mxu0 0.0
    %2593 = vmatpush2.msra.mxu0 0.0
    %2594 = vmatprep.subr.mxu0 0.0
    %2595 = vmatpush2.msra.mxu0 0.0
    %2596 = vmatprep.subr.mxu0 0.0
    %2597 = vmatpush2.msra.mxu0 0.0
    %2598 = vmatprep.subr.mxu0 0.0
    %2599 = vmatpush2.msra.mxu0 0.0
    %2600 = vmatprep.subr.mxu0 0.0
    %2601 = vmatpush2.msra.mxu0 0.0
    %2602 = vmatprep.subr.mxu0 0.0
    %2603 = vmatpush2.msra.mxu0 0.0
    %2604 = vmatprep.subr.mxu0 0.0
    %2605 = vmatpush2.msra.mxu0 0.0
    %2606 = vmatprep.subr.mxu0 0.0
    %2607 = vmatpush2.msra.mxu0 0.0
    %2608 = vmatprep.subr.mxu0 0.0
    %2609 = vmatpush2.msra.mxu0 0.0
    %2610 = vmatprep.subr.mxu0 0.0
    %2611 = vmatpush2.msra.mxu0 0.0
    %2612 = vmatprep.subr.mxu0 0.0
    %2613 = vmatpush2.msra.mxu0 0.0
    %2614 = vmatprep.mubr.f32.mxu0 0.0
    %2615 = vmatmul.mubr.f32.gmra.mxu0 %v2546
    %v2616 = vpop.f32.mrf.mxu0
    %v2617 = vadd.f32 0.0, %v2616
    %v2618 = vpop.f32.mrf.mxu0
    %2619 = vdwg.mxu0
    %2620 = vrot.lane.b32.xlu0 %v1951, 112
    %v2621 = vpop.permute.xlu0 %2620
    %2622 = vrot.lane.b32.xlu0 %v1951, 80
    %v2623 = vpop.permute.xlu0 %2622
    %v2624 = vsel %vm155, %v2621, 0
    %v2626 = vsel %vm155, %v2623, 0
    %2628 = vmatprep.subr.mxu0 0.0
    %2629 = vmatpush1.xpose.msra.mxu0 0.0
    %2630 = vmatprep.subr.mxu0 0.0
    %2631 = vmatpush1.xpose.msra.mxu0 0.0
    %2632 = vmatprep.subr.mxu0 0.0
    %2633 = vmatpush1.xpose.msra.mxu0 0.0
    %2634 = vmatprep.subr.mxu0 0.0
    %2635 = vmatpush1.xpose.msra.mxu0 0.0
    %2636 = vmatprep.subr.mxu0 0.0
    %2637 = vmatpush1.xpose.msra.mxu0 0.0
    %2638 = vmatprep.subr.mxu0 0.0
    %2639 = vmatpush1.xpose.msra.mxu0 0.0
    %2640 = vmatprep.subr.mxu0 0.0
    %2641 = vmatpush1.xpose.msra.mxu0 0.0
    %2642 = vmatprep.subr.mxu0 0.0
    %2643 = vmatpush1.xpose.msra.mxu0 0.0
    %2644 = vmatprep.subr.mxu0 0.0
    %2645 = vmatpush1.xpose.msra.mxu0 0.0
    %2646 = vmatprep.subr.mxu0 0.0
    %2647 = vmatpush1.xpose.msra.mxu0 0.0
    %2648 = vmatprep.subr.mxu0 0.0
    %2649 = vmatpush1.xpose.msra.mxu0 0.0
    %2650 = vmatprep.subr.mxu0 0.0
    %2651 = vmatpush1.xpose.msra.mxu0 0.0
    %2652 = vmatprep.subr.mxu0 0.0
    %2653 = vmatpush1.xpose.msra.mxu0 0.0
    %2654 = vmatprep.subr.mxu0 0.0
    %2655 = vmatpush1.xpose.msra.mxu0 0.0
    %2656 = vmatprep.subr.mxu0 0.0
    %2657 = vmatpush1.xpose.msra.mxu0 0.0
    %2658 = vmatprep.subr.mxu0 0.0
    %2659 = vmatpush1.xpose.msra.mxu0 %v2626
    %2660 = vmatprep.subr.mxu0 0.0
    %2661 = vmatpush2.xpose.msra.mxu0 0.0
    %2662 = vmatprep.subr.mxu0 0.0
    %2663 = vmatpush2.xpose.msra.mxu0 0.0
    %2664 = vmatprep.subr.mxu0 0.0
    %2665 = vmatpush2.xpose.msra.mxu0 0.0
    %2666 = vmatprep.subr.mxu0 0.0
    %2667 = vmatpush2.xpose.msra.mxu0 0.0
    %2668 = vmatprep.subr.mxu0 0.0
    %2669 = vmatpush2.xpose.msra.mxu0 0.0
    %2670 = vmatprep.subr.mxu0 0.0
    %2671 = vmatpush2.xpose.msra.mxu0 0.0
    %2672 = vmatprep.subr.mxu0 0.0
    %2673 = vmatpush2.xpose.msra.mxu0 0.0
    %2674 = vmatprep.subr.mxu0 0.0
    %2675 = vmatpush2.xpose.msra.mxu0 0.0
    %2676 = vmatprep.subr.mxu0 0.0
    %2677 = vmatpush2.xpose.msra.mxu0 0.0
    %2678 = vmatprep.subr.mxu0 0.0
    %2679 = vmatpush2.xpose.msra.mxu0 0.0
    %2680 = vmatprep.subr.mxu0 0.0
    %2681 = vmatpush2.xpose.msra.mxu0 0.0
    %2682 = vmatprep.subr.mxu0 0.0
    %2683 = vmatpush2.xpose.msra.mxu0 0.0
    %2684 = vmatprep.subr.mxu0 0.0
    %2685 = vmatpush2.xpose.msra.mxu0 0.0
    %2686 = vmatprep.subr.mxu0 0.0
    %2687 = vmatpush2.xpose.msra.mxu0 0.0
    %2688 = vmatprep.subr.mxu0 0.0
    %2689 = vmatpush2.xpose.msra.mxu0 0.0
    %2690 = vmatprep.subr.mxu0 0.0
    %2691 = vmatpush2.xpose.msra.mxu0 0.0
    %2692 = vmatprep.mubr.f32.mxu0 0.0
    %2693 = vmatmul.mubr.f32.gmra.mxu0 %v2624
    %v2694 = vpop.f32.mrf.mxu0
    %v2695 = vadd.f32 0.0, %v2694
    %v2696 = vpop.f32.mrf.mxu0
    %2697 = vdwg.mxu0
    %2698 = vrot.lane.b32.xlu0 %v1955, 112
    %v2699 = vpop.permute.xlu0 %2698
    %2700 = vrot.lane.b32.xlu0 %v1955, 80
    %v2701 = vpop.permute.xlu0 %2700
    %v2702 = vsel %vm155, %v2699, 0
    %v2704 = vsel %vm155, %v2701, 0
    %2706 = vmatprep.subr.mxu0 0.0
    %2707 = vmatpush1.xpose.msra.mxu0 0.0
    %2708 = vmatprep.subr.mxu0 0.0
    %2709 = vmatpush1.xpose.msra.mxu0 0.0
    %2710 = vmatprep.subr.mxu0 0.0
    %2711 = vmatpush1.xpose.msra.mxu0 0.0
    %2712 = vmatprep.subr.mxu0 0.0
    %2713 = vmatpush1.xpose.msra.mxu0 0.0
    %2714 = vmatprep.subr.mxu0 0.0
    %2715 = vmatpush1.xpose.msra.mxu0 0.0
    %2716 = vmatprep.subr.mxu0 0.0
    %2717 = vmatpush1.xpose.msra.mxu0 0.0
    %2718 = vmatprep.subr.mxu0 0.0
    %2719 = vmatpush1.xpose.msra.mxu0 0.0
    %2720 = vmatprep.subr.mxu0 0.0
    %2721 = vmatpush1.xpose.msra.mxu0 0.0
    %2722 = vmatprep.subr.mxu0 0.0
    %2723 = vmatpush1.xpose.msra.mxu0 0.0
    %2724 = vmatprep.subr.mxu0 0.0
    %2725 = vmatpush1.xpose.msra.mxu0 0.0
    %2726 = vmatprep.subr.mxu0 0.0
    %2727 = vmatpush1.xpose.msra.mxu0 0.0
    %2728 = vmatprep.subr.mxu0 0.0
    %2729 = vmatpush1.xpose.msra.mxu0 0.0
    %2730 = vmatprep.subr.mxu0 0.0
    %2731 = vmatpush1.xpose.msra.mxu0 0.0
    %2732 = vmatprep.subr.mxu0 0.0
    %2733 = vmatpush1.xpose.msra.mxu0 0.0
    %2734 = vmatprep.subr.mxu0 0.0
    %2735 = vmatpush1.xpose.msra.mxu0 0.0
    %2736 = vmatprep.subr.mxu0 0.0
    %2737 = vmatpush1.xpose.msra.mxu0 %v2704
    %2738 = vmatprep.subr.mxu0 0.0
    %2739 = vmatpush2.xpose.msra.mxu0 0.0
    %2740 = vmatprep.subr.mxu0 0.0
    %2741 = vmatpush2.xpose.msra.mxu0 0.0
    %2742 = vmatprep.subr.mxu0 0.0
    %2743 = vmatpush2.xpose.msra.mxu0 0.0
    %2744 = vmatprep.subr.mxu0 0.0
    %2745 = vmatpush2.xpose.msra.mxu0 0.0
    %2746 = vmatprep.subr.mxu0 0.0
    %2747 = vmatpush2.xpose.msra.mxu0 0.0
    %2748 = vmatprep.subr.mxu0 0.0
    %2749 = vmatpush2.xpose.msra.mxu0 0.0
    %2750 = vmatprep.subr.mxu0 0.0
    %2751 = vmatpush2.xpose.msra.mxu0 0.0
    %2752 = vmatprep.subr.mxu0 0.0
    %2753 = vmatpush2.xpose.msra.mxu0 0.0
    %2754 = vmatprep.subr.mxu0 0.0
    %2755 = vmatpush2.xpose.msra.mxu0 0.0
    %2756 = vmatprep.subr.mxu0 0.0
    %2757 = vmatpush2.xpose.msra.mxu0 0.0
    %2758 = vmatprep.subr.mxu0 0.0
    %2759 = vmatpush2.xpose.msra.mxu0 0.0
    %2760 = vmatprep.subr.mxu0 0.0
    %2761 = vmatpush2.xpose.msra.mxu0 0.0
    %2762 = vmatprep.subr.mxu0 0.0
    %2763 = vmatpush2.xpose.msra.mxu0 0.0
    %2764 = vmatprep.subr.mxu0 0.0
    %2765 = vmatpush2.xpose.msra.mxu0 0.0
    %2766 = vmatprep.subr.mxu0 0.0
    %2767 = vmatpush2.xpose.msra.mxu0 0.0
    %2768 = vmatprep.subr.mxu0 0.0
    %2769 = vmatpush2.xpose.msra.mxu0 0.0
    %2770 = vmatprep.mubr.f32.mxu0 0.0
    %2771 = vmatmul.mubr.f32.gmra.mxu0 %v2702
    %v2772 = vpop.f32.mrf.mxu0
    %v2773 = vadd.f32 0.0, %v2772
    %v2774 = vpop.f32.mrf.mxu0
    %2775 = vdwg.mxu0
    %v2776 = vmul.f32 %v2695, 0.35355338
    %v2777 = vmul.f32 %v2773, 0.35355338
    %v2778 = vsel %vm308, %v2776, -inf
    %2779 = vmax.xlane.f32.xlu0 %v2778
    %v2780 = vpop.xlane.xlu0 %2779
    %v2781 = vsel %vm308, %v2777, -inf
    %2782 = vmax.xlane.f32.xlu0 %v2781
    %v2783 = vpop.xlane.xlu0 %2782
    %v2784 = vsub.f32 %v2776, %v2780
    %v2785 = vsub.f32 %v2777, %v2783
    %v2786 = vmul.f32 %v2784, 1.442695
    %v2787 = vpow.pop %v2786
    %v2788 = vmul.f32 %v2785, 1.442695
    %v2789 = vpow.pop %v2788
    %v2790 = vsel %vm308, %v2787, 0.0
    %2791 = vadd.xlane.f32.xlu0 %v2790
    %v2792 = vpop.xlane.xlu0 %2791
    %v2793 = vsel %vm308, %v2789, 0.0
    %2794 = vadd.xlane.f32.xlu0 %v2793
    %v2795 = vpop.xlane.xlu0 %2794
    %v2796 = vrcp.pop %v2792
    %v2797 = vrcp.pop %v2795
    %v2798 = vmul.f32 %v2787, %v2796
    %v2799 = vmul.f32 %v2789, %v2797
    %2800 = vrot.lane.b32.xlu0 %v1951, 48
    %v2801 = vpop.permute.xlu0 %2800
    %v2803 = vsel %vm333, %v2798, 0
    %v2805 = vsel %vm337, %v2801, 0
    %2807 = vmatprep.subr.mxu0 0.0
    %2808 = vmatpush1.msra.mxu0 0.0
    %2809 = vmatprep.subr.mxu0 0.0
    %2810 = vmatpush1.msra.mxu0 0.0
    %2811 = vmatprep.subr.mxu0 0.0
    %2812 = vmatpush1.msra.mxu0 0.0
    %2813 = vmatprep.subr.mxu0 0.0
    %2814 = vmatpush1.msra.mxu0 0.0
    %2815 = vmatprep.subr.mxu0 0.0
    %2816 = vmatpush1.msra.mxu0 0.0
    %2817 = vmatprep.subr.mxu0 0.0
    %2818 = vmatpush1.msra.mxu0 0.0
    %2819 = vmatprep.subr.mxu0 0.0
    %2820 = vmatpush1.msra.mxu0 0.0
    %2821 = vmatprep.subr.mxu0 0.0
    %2822 = vmatpush1.msra.mxu0 0.0
    %2823 = vmatprep.subr.mxu0 0.0
    %2824 = vmatpush1.msra.mxu0 0.0
    %2825 = vmatprep.subr.mxu0 0.0
    %2826 = vmatpush1.msra.mxu0 0.0
    %2827 = vmatprep.subr.mxu0 0.0
    %2828 = vmatpush1.msra.mxu0 0.0
    %2829 = vmatprep.subr.mxu0 0.0
    %2830 = vmatpush1.msra.mxu0 0.0
    %2831 = vmatprep.subr.mxu0 0.0
    %2832 = vmatpush1.msra.mxu0 0.0
    %2833 = vmatprep.subr.mxu0 0.0
    %2834 = vmatpush1.msra.mxu0 0.0
    %2835 = vmatprep.subr.mxu0 0.0
    %2836 = vmatpush1.msra.mxu0 0.0
    %2837 = vmatprep.subr.mxu0 0.0
    %2838 = vmatpush1.msra.mxu0 %v2805
    %2839 = vmatprep.subr.mxu0 0.0
    %2840 = vmatpush2.msra.mxu0 0.0
    %2841 = vmatprep.subr.mxu0 0.0
    %2842 = vmatpush2.msra.mxu0 0.0
    %2843 = vmatprep.subr.mxu0 0.0
    %2844 = vmatpush2.msra.mxu0 0.0
    %2845 = vmatprep.subr.mxu0 0.0
    %2846 = vmatpush2.msra.mxu0 0.0
    %2847 = vmatprep.subr.mxu0 0.0
    %2848 = vmatpush2.msra.mxu0 0.0
    %2849 = vmatprep.subr.mxu0 0.0
    %2850 = vmatpush2.msra.mxu0 0.0
    %2851 = vmatprep.subr.mxu0 0.0
    %2852 = vmatpush2.msra.mxu0 0.0
    %2853 = vmatprep.subr.mxu0 0.0
    %2854 = vmatpush2.msra.mxu0 0.0
    %2855 = vmatprep.subr.mxu0 0.0
    %2856 = vmatpush2.msra.mxu0 0.0
    %2857 = vmatprep.subr.mxu0 0.0
    %2858 = vmatpush2.msra.mxu0 0.0
    %2859 = vmatprep.subr.mxu0 0.0
    %2860 = vmatpush2.msra.mxu0 0.0
    %2861 = vmatprep.subr.mxu0 0.0
    %2862 = vmatpush2.msra.mxu0 0.0
    %2863 = vmatprep.subr.mxu0 0.0
    %2864 = vmatpush2.msra.mxu0 0.0
    %2865 = vmatprep.subr.mxu0 0.0
    %2866 = vmatpush2.msra.mxu0 0.0
    %2867 = vmatprep.subr.mxu0 0.0
    %2868 = vmatpush2.msra.mxu0 0.0
    %2869 = vmatprep.subr.mxu0 0.0
    %2870 = vmatpush2.msra.mxu0 0.0
    %2871 = vmatprep.mubr.f32.mxu0 0.0
    %2872 = vmatmul.mubr.f32.gmra.mxu0 %v2803
    %v2873 = vpop.f32.mrf.mxu0
    %v2874 = vadd.f32 0.0, %v2873
    %v2875 = vpop.f32.mrf.mxu0
    %2876 = vdwg.mxu0
    %2877 = vrot.lane.b32.xlu0 %v1955, 48
    %v2878 = vpop.permute.xlu0 %2877
    %v2880 = vsel %vm333, %v2799, 0
    %v2882 = vsel %vm337, %v2878, 0
    %2884 = vmatprep.subr.mxu0 0.0
    %2885 = vmatpush1.msra.mxu0 0.0
    %2886 = vmatprep.subr.mxu0 0.0
    %2887 = vmatpush1.msra.mxu0 0.0
    %2888 = vmatprep.subr.mxu0 0.0
    %2889 = vmatpush1.msra.mxu0 0.0
    %2890 = vmatprep.subr.mxu0 0.0
    %2891 = vmatpush1.msra.mxu0 0.0
    %2892 = vmatprep.subr.mxu0 0.0
    %2893 = vmatpush1.msra.mxu0 0.0
    %2894 = vmatprep.subr.mxu0 0.0
    %2895 = vmatpush1.msra.mxu0 0.0
    %2896 = vmatprep.subr.mxu0 0.0
    %2897 = vmatpush1.msra.mxu0 0.0
    %2898 = vmatprep.subr.mxu0 0.0
    %2899 = vmatpush1.msra.mxu0 0.0
    %2900 = vmatprep.subr.mxu0 0.0
    %2901 = vmatpush1.msra.mxu0 0.0
    %2902 = vmatprep.subr.mxu0 0.0
    %2903 = vmatpush1.msra.mxu0 0.0
    %2904 = vmatprep.subr.mxu0 0.0
    %2905 = vmatpush1.msra.mxu0 0.0
    %2906 = vmatprep.subr.mxu0 0.0
    %2907 = vmatpush1.msra.mxu0 0.0
    %2908 = vmatprep.subr.mxu0 0.0
    %2909 = vmatpush1.msra.mxu0 0.0
    %2910 = vmatprep.subr.mxu0 0.0
    %2911 = vmatpush1.msra.mxu0 0.0
    %2912 = vmatprep.subr.mxu0 0.0
    %2913 = vmatpush1.msra.mxu0 0.0
    %2914 = vmatprep.subr.mxu0 0.0
    %2915 = vmatpush1.msra.mxu0 %v2882
    %2916 = vmatprep.subr.mxu0 0.0
    %2917 = vmatpush2.msra.mxu0 0.0
    %2918 = vmatprep.subr.mxu0 0.0
    %2919 = vmatpush2.msra.mxu0 0.0
    %2920 = vmatprep.subr.mxu0 0.0
    %2921 = vmatpush2.msra.mxu0 0.0
    %2922 = vmatprep.subr.mxu0 0.0
    %2923 = vmatpush2.msra.mxu0 0.0
    %2924 = vmatprep.subr.mxu0 0.0
    %2925 = vmatpush2.msra.mxu0 0.0
    %2926 = vmatprep.subr.mxu0 0.0
    %2927 = vmatpush2.msra.mxu0 0.0
    %2928 = vmatprep.subr.mxu0 0.0
    %2929 = vmatpush2.msra.mxu0 0.0
    %2930 = vmatprep.subr.mxu0 0.0
    %2931 = vmatpush2.msra.mxu0 0.0
    %2932 = vmatprep.subr.mxu0 0.0
    %2933 = vmatpush2.msra.mxu0 0.0
    %2934 = vmatprep.subr.mxu0 0.0
    %2935 = vmatpush2.msra.mxu0 0.0
    %2936 = vmatprep.subr.mxu0 0.0
    %2937 = vmatpush2.msra.mxu0 0.0
    %2938 = vmatprep.subr.mxu0 0.0
    %2939 = vmatpush2.msra.mxu0 0.0
    %2940 = vmatprep.subr.mxu0 0.0
    %2941 = vmatpush2.msra.mxu0 0.0
    %2942 = vmatprep.subr.mxu0 0.0
    %2943 = vmatpush2.msra.mxu0 0.0
    %2944 = vmatprep.subr.mxu0 0.0
    %2945 = vmatpush2.msra.mxu0 0.0
    %2946 = vmatprep.subr.mxu0 0.0
    %2947 = vmatpush2.msra.mxu0 0.0
    %2948 = vmatprep.mubr.f32.mxu0 0.0
    %2949 = vmatmul.mubr.f32.gmra.mxu0 %v2880
    %v2950 = vpop.f32.mrf.mxu0
    %v2951 = vadd.f32 0.0, %v2950
    %v2952 = vpop.f32.mrf.mxu0
    %2953 = vdwg.mxu0
    %2954 = vrot.lane.b32.xlu0 %v1951, 104
    %v2955 = vpop.permute.xlu0 %2954
    %2956 = vrot.lane.b32.xlu0 %v1951, 72
    %v2957 = vpop.permute.xlu0 %2956
    %v2958 = vsel %vm155, %v2955, 0
    %v2960 = vsel %vm155, %v2957, 0
    %2962 = vmatprep.subr.mxu0 0.0
    %2963 = vmatpush1.xpose.msra.mxu0 0.0
    %2964 = vmatprep.subr.mxu0 0.0
    %2965 = vmatpush1.xpose.msra.mxu0 0.0
    %2966 = vmatprep.subr.mxu0 0.0
    %2967 = vmatpush1.xpose.msra.mxu0 0.0
    %2968 = vmatprep.subr.mxu0 0.0
    %2969 = vmatpush1.xpose.msra.mxu0 0.0
    %2970 = vmatprep.subr.mxu0 0.0
    %2971 = vmatpush1.xpose.msra.mxu0 0.0
    %2972 = vmatprep.subr.mxu0 0.0
    %2973 = vmatpush1.xpose.msra.mxu0 0.0
    %2974 = vmatprep.subr.mxu0 0.0
    %2975 = vmatpush1.xpose.msra.mxu0 0.0
    %2976 = vmatprep.subr.mxu0 0.0
    %2977 = vmatpush1.xpose.msra.mxu0 0.0
    %2978 = vmatprep.subr.mxu0 0.0
    %2979 = vmatpush1.xpose.msra.mxu0 0.0
    %2980 = vmatprep.subr.mxu0 0.0
    %2981 = vmatpush1.xpose.msra.mxu0 0.0
    %2982 = vmatprep.subr.mxu0 0.0
    %2983 = vmatpush1.xpose.msra.mxu0 0.0
    %2984 = vmatprep.subr.mxu0 0.0
    %2985 = vmatpush1.xpose.msra.mxu0 0.0
    %2986 = vmatprep.subr.mxu0 0.0
    %2987 = vmatpush1.xpose.msra.mxu0 0.0
    %2988 = vmatprep.subr.mxu0 0.0
    %2989 = vmatpush1.xpose.msra.mxu0 0.0
    %2990 = vmatprep.subr.mxu0 0.0
    %2991 = vmatpush1.xpose.msra.mxu0 0.0
    %2992 = vmatprep.subr.mxu0 0.0
    %2993 = vmatpush1.xpose.msra.mxu0 %v2960
    %2994 = vmatprep.subr.mxu0 0.0
    %2995 = vmatpush2.xpose.msra.mxu0 0.0
    %2996 = vmatprep.subr.mxu0 0.0
    %2997 = vmatpush2.xpose.msra.mxu0 0.0
    %2998 = vmatprep.subr.mxu0 0.0
    %2999 = vmatpush2.xpose.msra.mxu0 0.0
    %3000 = vmatprep.subr.mxu0 0.0
    %3001 = vmatpush2.xpose.msra.mxu0 0.0
    %3002 = vmatprep.subr.mxu0 0.0
    %3003 = vmatpush2.xpose.msra.mxu0 0.0
    %3004 = vmatprep.subr.mxu0 0.0
    %3005 = vmatpush2.xpose.msra.mxu0 0.0
    %3006 = vmatprep.subr.mxu0 0.0
    %3007 = vmatpush2.xpose.msra.mxu0 0.0
    %3008 = vmatprep.subr.mxu0 0.0
    %3009 = vmatpush2.xpose.msra.mxu0 0.0
    %3010 = vmatprep.subr.mxu0 0.0
    %3011 = vmatpush2.xpose.msra.mxu0 0.0
    %3012 = vmatprep.subr.mxu0 0.0
    %3013 = vmatpush2.xpose.msra.mxu0 0.0
    %3014 = vmatprep.subr.mxu0 0.0
    %3015 = vmatpush2.xpose.msra.mxu0 0.0
    %3016 = vmatprep.subr.mxu0 0.0
    %3017 = vmatpush2.xpose.msra.mxu0 0.0
    %3018 = vmatprep.subr.mxu0 0.0
    %3019 = vmatpush2.xpose.msra.mxu0 0.0
    %3020 = vmatprep.subr.mxu0 0.0
    %3021 = vmatpush2.xpose.msra.mxu0 0.0
    %3022 = vmatprep.subr.mxu0 0.0
    %3023 = vmatpush2.xpose.msra.mxu0 0.0
    %3024 = vmatprep.subr.mxu0 0.0
    %3025 = vmatpush2.xpose.msra.mxu0 0.0
    %3026 = vmatprep.mubr.f32.mxu0 0.0
    %3027 = vmatmul.mubr.f32.gmra.mxu0 %v2958
    %v3028 = vpop.f32.mrf.mxu0
    %v3029 = vadd.f32 0.0, %v3028
    %v3030 = vpop.f32.mrf.mxu0
    %3031 = vdwg.mxu0
    %3032 = vrot.lane.b32.xlu0 %v1955, 104
    %v3033 = vpop.permute.xlu0 %3032
    %3034 = vrot.lane.b32.xlu0 %v1955, 72
    %v3035 = vpop.permute.xlu0 %3034
    %v3036 = vsel %vm155, %v3033, 0
    %v3038 = vsel %vm155, %v3035, 0
    %3040 = vmatprep.subr.mxu0 0.0
    %3041 = vmatpush1.xpose.msra.mxu0 0.0
    %3042 = vmatprep.subr.mxu0 0.0
    %3043 = vmatpush1.xpose.msra.mxu0 0.0
    %3044 = vmatprep.subr.mxu0 0.0
    %3045 = vmatpush1.xpose.msra.mxu0 0.0
    %3046 = vmatprep.subr.mxu0 0.0
    %3047 = vmatpush1.xpose.msra.mxu0 0.0
    %3048 = vmatprep.subr.mxu0 0.0
    %3049 = vmatpush1.xpose.msra.mxu0 0.0
    %3050 = vmatprep.subr.mxu0 0.0
    %3051 = vmatpush1.xpose.msra.mxu0 0.0
    %3052 = vmatprep.subr.mxu0 0.0
    %3053 = vmatpush1.xpose.msra.mxu0 0.0
    %3054 = vmatprep.subr.mxu0 0.0
    %3055 = vmatpush1.xpose.msra.mxu0 0.0
    %3056 = vmatprep.subr.mxu0 0.0
    %3057 = vmatpush1.xpose.msra.mxu0 0.0
    %3058 = vmatprep.subr.mxu0 0.0
    %3059 = vmatpush1.xpose.msra.mxu0 0.0
    %3060 = vmatprep.subr.mxu0 0.0
    %3061 = vmatpush1.xpose.msra.mxu0 0.0
    %3062 = vmatprep.subr.mxu0 0.0
    %3063 = vmatpush1.xpose.msra.mxu0 0.0
    %3064 = vmatprep.subr.mxu0 0.0
    %3065 = vmatpush1.xpose.msra.mxu0 0.0
    %3066 = vmatprep.subr.mxu0 0.0
    %3067 = vmatpush1.xpose.msra.mxu0 0.0
    %3068 = vmatprep.subr.mxu0 0.0
    %3069 = vmatpush1.xpose.msra.mxu0 0.0
    %3070 = vmatprep.subr.mxu0 0.0
    %3071 = vmatpush1.xpose.msra.mxu0 %v3038
    %3072 = vmatprep.subr.mxu0 0.0
    %3073 = vmatpush2.xpose.msra.mxu0 0.0
    %3074 = vmatprep.subr.mxu0 0.0
    %3075 = vmatpush2.xpose.msra.mxu0 0.0
    %3076 = vmatprep.subr.mxu0 0.0
    %3077 = vmatpush2.xpose.msra.mxu0 0.0
    %3078 = vmatprep.subr.mxu0 0.0
    %3079 = vmatpush2.xpose.msra.mxu0 0.0
    %3080 = vmatprep.subr.mxu0 0.0
    %3081 = vmatpush2.xpose.msra.mxu0 0.0
    %3082 = vmatprep.subr.mxu0 0.0
    %3083 = vmatpush2.xpose.msra.mxu0 0.0
    %3084 = vmatprep.subr.mxu0 0.0
    %3085 = vmatpush2.xpose.msra.mxu0 0.0
    %3086 = vmatprep.subr.mxu0 0.0
    %3087 = vmatpush2.xpose.msra.mxu0 0.0
    %3088 = vmatprep.subr.mxu0 0.0
    %3089 = vmatpush2.xpose.msra.mxu0 0.0
    %3090 = vmatprep.subr.mxu0 0.0
    %3091 = vmatpush2.xpose.msra.mxu0 0.0
    %3092 = vmatprep.subr.mxu0 0.0
    %3093 = vmatpush2.xpose.msra.mxu0 0.0
    %3094 = vmatprep.subr.mxu0 0.0
    %3095 = vmatpush2.xpose.msra.mxu0 0.0
    %3096 = vmatprep.subr.mxu0 0.0
    %3097 = vmatpush2.xpose.msra.mxu0 0.0
    %3098 = vmatprep.subr.mxu0 0.0
    %3099 = vmatpush2.xpose.msra.mxu0 0.0
    %3100 = vmatprep.subr.mxu0 0.0
    %3101 = vmatpush2.xpose.msra.mxu0 0.0
    %3102 = vmatprep.subr.mxu0 0.0
    %3103 = vmatpush2.xpose.msra.mxu0 0.0
    %3104 = vmatprep.mubr.f32.mxu0 0.0
    %3105 = vmatmul.mubr.f32.gmra.mxu0 %v3036
    %v3106 = vpop.f32.mrf.mxu0
    %v3107 = vadd.f32 0.0, %v3106
    %v3108 = vpop.f32.mrf.mxu0
    %3109 = vdwg.mxu0
    %v3110 = vmul.f32 %v3029, 0.35355338
    %v3111 = vmul.f32 %v3107, 0.35355338
    %v3112 = vsel %vm308, %v3110, -inf
    %3113 = vmax.xlane.f32.xlu0 %v3112
    %v3114 = vpop.xlane.xlu0 %3113
    %v3115 = vsel %vm308, %v3111, -inf
    %3116 = vmax.xlane.f32.xlu0 %v3115
    %v3117 = vpop.xlane.xlu0 %3116
    %v3118 = vsub.f32 %v3110, %v3114
    %v3119 = vsub.f32 %v3111, %v3117
    %v3120 = vmul.f32 %v3118, 1.442695
    %v3121 = vpow.pop %v3120
    %v3122 = vmul.f32 %v3119, 1.442695
    %v3123 = vpow.pop %v3122
    %v3124 = vsel %vm308, %v3121, 0.0
    %3125 = vadd.xlane.f32.xlu0 %v3124
    %v3126 = vpop.xlane.xlu0 %3125
    %v3127 = vsel %vm308, %v3123, 0.0
    %3128 = vadd.xlane.f32.xlu0 %v3127
    %v3129 = vpop.xlane.xlu0 %3128
    %v3130 = vrcp.pop %v3126
    %v3131 = vrcp.pop %v3129
    %v3132 = vmul.f32 %v3121, %v3130
    %v3133 = vmul.f32 %v3123, %v3131
    %3134 = vrot.lane.b32.xlu0 %v1951, 40
    %v3135 = vpop.permute.xlu0 %3134
    %v3137 = vsel %vm333, %v3132, 0
    %v3139 = vsel %vm337, %v3135, 0
    %3141 = vmatprep.subr.mxu0 0.0
    %3142 = vmatpush1.msra.mxu0 0.0
    %3143 = vmatprep.subr.mxu0 0.0
    %3144 = vmatpush1.msra.mxu0 0.0
    %3145 = vmatprep.subr.mxu0 0.0
    %3146 = vmatpush1.msra.mxu0 0.0
    %3147 = vmatprep.subr.mxu0 0.0
    %3148 = vmatpush1.msra.mxu0 0.0
    %3149 = vmatprep.subr.mxu0 0.0
    %3150 = vmatpush1.msra.mxu0 0.0
    %3151 = vmatprep.subr.mxu0 0.0
    %3152 = vmatpush1.msra.mxu0 0.0
    %3153 = vmatprep.subr.mxu0 0.0
    %3154 = vmatpush1.msra.mxu0 0.0
    %3155 = vmatprep.subr.mxu0 0.0
    %3156 = vmatpush1.msra.mxu0 0.0
    %3157 = vmatprep.subr.mxu0 0.0
    %3158 = vmatpush1.msra.mxu0 0.0
    %3159 = vmatprep.subr.mxu0 0.0
    %3160 = vmatpush1.msra.mxu0 0.0
    %3161 = vmatprep.subr.mxu0 0.0
    %3162 = vmatpush1.msra.mxu0 0.0
    %3163 = vmatprep.subr.mxu0 0.0
    %3164 = vmatpush1.msra.mxu0 0.0
    %3165 = vmatprep.subr.mxu0 0.0
    %3166 = vmatpush1.msra.mxu0 0.0
    %3167 = vmatprep.subr.mxu0 0.0
    %3168 = vmatpush1.msra.mxu0 0.0
    %3169 = vmatprep.subr.mxu0 0.0
    %3170 = vmatpush1.msra.mxu0 0.0
    %3171 = vmatprep.subr.mxu0 0.0
    %3172 = vmatpush1.msra.mxu0 %v3139
    %3173 = vmatprep.subr.mxu0 0.0
    %3174 = vmatpush2.msra.mxu0 0.0
    %3175 = vmatprep.subr.mxu0 0.0
    %3176 = vmatpush2.msra.mxu0 0.0
    %3177 = vmatprep.subr.mxu0 0.0
    %3178 = vmatpush2.msra.mxu0 0.0
    %3179 = vmatprep.subr.mxu0 0.0
    %3180 = vmatpush2.msra.mxu0 0.0
    %3181 = vmatprep.subr.mxu0 0.0
    %3182 = vmatpush2.msra.mxu0 0.0
    %3183 = vmatprep.subr.mxu0 0.0
    %3184 = vmatpush2.msra.mxu0 0.0
    %3185 = vmatprep.subr.mxu0 0.0
    %3186 = vmatpush2.msra.mxu0 0.0
    %3187 = vmatprep.subr.mxu0 0.0
    %3188 = vmatpush2.msra.mxu0 0.0
    %3189 = vmatprep.subr.mxu0 0.0
    %3190 = vmatpush2.msra.mxu0 0.0
    %3191 = vmatprep.subr.mxu0 0.0
    %3192 = vmatpush2.msra.mxu0 0.0
    %3193 = vmatprep.subr.mxu0 0.0
    %3194 = vmatpush2.msra.mxu0 0.0
    %3195 = vmatprep.subr.mxu0 0.0
    %3196 = vmatpush2.msra.mxu0 0.0
    %3197 = vmatprep.subr.mxu0 0.0
    %3198 = vmatpush2.msra.mxu0 0.0
    %3199 = vmatprep.subr.mxu0 0.0
    %3200 = vmatpush2.msra.mxu0 0.0
    %3201 = vmatprep.subr.mxu0 0.0
    %3202 = vmatpush2.msra.mxu0 0.0
    %3203 = vmatprep.subr.mxu0 0.0
    %3204 = vmatpush2.msra.mxu0 0.0
    %3205 = vmatprep.mubr.f32.mxu0 0.0
    %3206 = vmatmul.mubr.f32.gmra.mxu0 %v3137
    %v3207 = vpop.f32.mrf.mxu0
    %v3208 = vadd.f32 0.0, %v3207
    %v3209 = vpop.f32.mrf.mxu0
    %3210 = vdwg.mxu0
    %3211 = vrot.lane.b32.xlu0 %v1955, 40
    %v3212 = vpop.permute.xlu0 %3211
    %v3214 = vsel %vm333, %v3133, 0
    %v3216 = vsel %vm337, %v3212, 0
    %3218 = vmatprep.subr.mxu0 0.0
    %3219 = vmatpush1.msra.mxu0 0.0
    %3220 = vmatprep.subr.mxu0 0.0
    %3221 = vmatpush1.msra.mxu0 0.0
    %3222 = vmatprep.subr.mxu0 0.0
    %3223 = vmatpush1.msra.mxu0 0.0
    %3224 = vmatprep.subr.mxu0 0.0
    %3225 = vmatpush1.msra.mxu0 0.0
    %3226 = vmatprep.subr.mxu0 0.0
    %3227 = vmatpush1.msra.mxu0 0.0
    %3228 = vmatprep.subr.mxu0 0.0
    %3229 = vmatpush1.msra.mxu0 0.0
    %3230 = vmatprep.subr.mxu0 0.0
    %3231 = vmatpush1.msra.mxu0 0.0
    %3232 = vmatprep.subr.mxu0 0.0
    %3233 = vmatpush1.msra.mxu0 0.0
    %3234 = vmatprep.subr.mxu0 0.0
    %3235 = vmatpush1.msra.mxu0 0.0
    %3236 = vmatprep.subr.mxu0 0.0
    %3237 = vmatpush1.msra.mxu0 0.0
    %3238 = vmatprep.subr.mxu0 0.0
    %3239 = vmatpush1.msra.mxu0 0.0
    %3240 = vmatprep.subr.mxu0 0.0
    %3241 = vmatpush1.msra.mxu0 0.0
    %3242 = vmatprep.subr.mxu0 0.0
    %3243 = vmatpush1.msra.mxu0 0.0
    %3244 = vmatprep.subr.mxu0 0.0
    %3245 = vmatpush1.msra.mxu0 0.0
    %3246 = vmatprep.subr.mxu0 0.0
    %3247 = vmatpush1.msra.mxu0 0.0
    %3248 = vmatprep.subr.mxu0 0.0
    %3249 = vmatpush1.msra.mxu0 %v3216
    %3250 = vmatprep.subr.mxu0 0.0
    %3251 = vmatpush2.msra.mxu0 0.0
    %3252 = vmatprep.subr.mxu0 0.0
    %3253 = vmatpush2.msra.mxu0 0.0
    %3254 = vmatprep.subr.mxu0 0.0
    %3255 = vmatpush2.msra.mxu0 0.0
    %3256 = vmatprep.subr.mxu0 0.0
    %3257 = vmatpush2.msra.mxu0 0.0
    %3258 = vmatprep.subr.mxu0 0.0
    %3259 = vmatpush2.msra.mxu0 0.0
    %3260 = vmatprep.subr.mxu0 0.0
    %3261 = vmatpush2.msra.mxu0 0.0
    %3262 = vmatprep.subr.mxu0 0.0
    %3263 = vmatpush2.msra.mxu0 0.0
    %3264 = vmatprep.subr.mxu0 0.0
    %3265 = vmatpush2.msra.mxu0 0.0
    %3266 = vmatprep.subr.mxu0 0.0
    %3267 = vmatpush2.msra.mxu0 0.0
    %3268 = vmatprep.subr.mxu0 0.0
    %3269 = vmatpush2.msra.mxu0 0.0
    %3270 = vmatprep.subr.mxu0 0.0
    %3271 = vmatpush2.msra.mxu0 0.0
    %3272 = vmatprep.subr.mxu0 0.0
    %3273 = vmatpush2.msra.mxu0 0.0
    %3274 = vmatprep.subr.mxu0 0.0
    %3275 = vmatpush2.msra.mxu0 0.0
    %3276 = vmatprep.subr.mxu0 0.0
    %3277 = vmatpush2.msra.mxu0 0.0
    %3278 = vmatprep.subr.mxu0 0.0
    %3279 = vmatpush2.msra.mxu0 0.0
    %3280 = vmatprep.subr.mxu0 0.0
    %3281 = vmatpush2.msra.mxu0 0.0
    %3282 = vmatprep.mubr.f32.mxu0 0.0
    %3283 = vmatmul.mubr.f32.gmra.mxu0 %v3214
    %v3284 = vpop.f32.mrf.mxu0
    %v3285 = vadd.f32 0.0, %v3284
    %v3286 = vpop.f32.mrf.mxu0
    %3287 = vdwg.mxu0
    %3290 = vrot.lane.b32.xlu0 %v2540, 8
    %v3291 = vpop.permute.xlu0 %3290
    %3292 = vrot.lane.b32.xlu0 %v2617, 8
    %v3293 = vpop.permute.xlu0 %3292
    %3298 = vrot.lane.b32.xlu0 %v2874, 16
    %v3299 = vpop.permute.xlu0 %3298
    %3300 = vrot.lane.b32.xlu0 %v2951, 16
    %v3301 = vpop.permute.xlu0 %3300
    %3306 = vrot.lane.b32.xlu0 %v3208, 24
    %v3307 = vpop.permute.xlu0 %3306
    %3308 = vrot.lane.b32.xlu0 %v3285, 24
    %v3309 = vpop.permute.xlu0 %3308
    %v3312 = vsel %vm155, %v2206, %v3291
    %v3313 = vsel %vm155, %v2283, %v3293
    %v3314 = vsel %vm1515, %v3312, %v3299
    %v3315 = vsel %vm1515, %v3313, %v3301
    %v3316 = vsel %vm1518, %v3314, %v3307
    %v3317 = vsel %vm1518, %v3315, %v3309
    %s3318 = scalar_lea.vmem %s2, 32
    %v3319 = vld [vmem:[%s3318] sm:$0xff]
    %v3320 = vld [vmem:[%s3318 + $0x8] sm:$0xff]
    %v3321 = vld [vmem:[%s3318 + $0x10] sm:$0xff]
    %v3322 = vld [vmem:[%s3318 + $0x18] sm:$0xff]
    %v3325 = vcombine.low %v3316, %v3317
    %v3326 = vsel %vm78, %v3325, 0
    %3328 = vmatprep.subr.mxu0 0.0
    %3329 = vmatpush1.msra.mxu0 0.0
    %3330 = vmatprep.subr.mxu0 0.0
    %3331 = vmatpush1.msra.mxu0 0.0
    %3332 = vmatprep.subr.mxu0 0.0
    %3333 = vmatpush1.msra.mxu0 0.0
    %3334 = vmatprep.subr.mxu0 0.0
    %3335 = vmatpush1.msra.mxu0 0.0
    %3336 = vmatprep.subr.mxu0 0.0
    %3337 = vmatpush1.msra.mxu0 0.0
    %3338 = vmatprep.subr.mxu0 0.0
    %3339 = vmatpush1.msra.mxu0 0.0
    %3340 = vmatprep.subr.mxu0 0.0
    %3341 = vmatpush1.msra.mxu0 0.0
    %3342 = vmatprep.subr.mxu0 0.0
    %3343 = vmatpush1.msra.mxu0 0.0
    %3344 = vmatprep.subr.mxu0 0.0
    %3345 = vmatpush1.msra.mxu0 0.0
    %3346 = vmatprep.subr.mxu0 0.0
    %3347 = vmatpush1.msra.mxu0 0.0
    %3348 = vmatprep.subr.mxu0 0.0
    %3349 = vmatpush1.msra.mxu0 0.0
    %3350 = vmatprep.subr.mxu0 0.0
    %3351 = vmatpush1.msra.mxu0 0.0
    %3352 = vmatprep.subr.mxu0 0.0
    %3353 = vmatpush1.msra.mxu0 %v3322
    %3354 = vmatprep.subr.mxu0 0.0
    %3355 = vmatpush1.msra.mxu0 %v3321
    %3356 = vmatprep.subr.mxu0 0.0
    %3357 = vmatpush1.msra.mxu0 %v3320
    %3358 = vmatprep.subr.mxu0 0.0
    %3359 = vmatpush1.msra.mxu0 %v3319
    %3360 = vmatprep.subr.mxu0 0.0
    %3361 = vmatpush2.msra.mxu0 0.0
    %3362 = vmatprep.subr.mxu0 0.0
    %3363 = vmatpush2.msra.mxu0 0.0
    %3364 = vmatprep.subr.mxu0 0.0
    %3365 = vmatpush2.msra.mxu0 0.0
    %3366 = vmatprep.subr.mxu0 0.0
    %3367 = vmatpush2.msra.mxu0 0.0
    %3368 = vmatprep.subr.mxu0 0.0
    %3369 = vmatpush2.msra.mxu0 0.0
    %3370 = vmatprep.subr.mxu0 0.0
    %3371 = vmatpush2.msra.mxu0 0.0
    %3372 = vmatprep.subr.mxu0 0.0
    %3373 = vmatpush2.msra.mxu0 0.0
    %3374 = vmatprep.subr.mxu0 0.0
    %3375 = vmatpush2.msra.mxu0 0.0
    %3376 = vmatprep.subr.mxu0 0.0
    %3377 = vmatpush2.msra.mxu0 0.0
    %3378 = vmatprep.subr.mxu0 0.0
    %3379 = vmatpush2.msra.mxu0 0.0
    %3380 = vmatprep.subr.mxu0 0.0
    %3381 = vmatpush2.msra.mxu0 0.0
    %3382 = vmatprep.subr.mxu0 0.0
    %3383 = vmatpush2.msra.mxu0 0.0
    %3384 = vmatprep.subr.mxu0 0.0
    %3385 = vmatpush2.msra.mxu0 0.0
    %3386 = vmatprep.subr.mxu0 0.0
    %3387 = vmatpush2.msra.mxu0 0.0
    %3388 = vmatprep.subr.mxu0 0.0
    %3389 = vmatpush2.msra.mxu0 0.0
    %3390 = vmatprep.subr.mxu0 0.0
    %3391 = vmatpush2.msra.mxu0 0.0
    %3392 = vmatprep.mubr.f32.mxu0 0.0
    %3393 = vmatmul.mubr.f32.gmra.mxu0 %v3326
    %v3394 = vpop.f32.mrf.mxu0
    %v3395 = vadd.f32 0.0, %v3394
    %v3396 = vpop.f32.mrf.mxu0
    %3397 = vdwg.mxu0
    %v3399 = vcombine.high %v3395, %v3395
    %s3401 = scalar_lea.vmem %s3, 2
    %v3402 = vld [vmem:[%s3401] sm:$0x3]
    %v3403 = vadd.f32 %v1872, %v3395
    %v3404 = vadd.f32 %v1873, %v3399
    %v3405 = vsel %vm1606, %v3403, 0.0
    %3406 = vadd.xlane.f32.xlu0 %v3405
    %v3407 = vpop.xlane.xlu0 %3406
    %v3408 = vsel %vm1606, %v3404, 0.0
    %3409 = vadd.xlane.f32.xlu0 %v3408
    %v3410 = vpop.xlane.xlu0 %3409
    %v3411 = vmul.f32 %v3407, %v1613
    %v3412 = vmul.f32 %v3410, %v1613
    %v3413 = vsub.f32 %v3403, %v3411
    %v3414 = vsub.f32 %v3404, %v3412
    %v3415 = vmul.f32 %v3413, %v3413
    %v3416 = vmul.f32 %v3414, %v3414
    %v3417 = vsel %vm1606, %v3415, 0.0
    %3418 = vadd.xlane.f32.xlu0 %v3417
    %v3419 = vpop.xlane.xlu0 %3418
    %v3420 = vsel %vm1606, %v3416, 0.0
    %3421 = vadd.xlane.f32.xlu0 %v3420
    %v3422 = vpop.xlane.xlu0 %3421
    %v3423 = vmul.f32 %v3419, %v1613
    %v3424 = vmul.f32 %v3422, %v1613
    %v3425 = vadd.f32 %v3423, 1e-05
    %v3426 = vadd.f32 %v3424, 1e-05
    %v3427 = vrsqrt.pop %v3425
    %v3428 = vrsqrt.pop %v3426
    %v3429 = vmul.f32 %v3413, %v3427
    %v3430 = vmul.f32 %v3414, %v3428
    %v3431 = vlaneseq
    %v3432 = vshrl.u32 %v3431, 7
    %v3433 = vsub.s32 0, %v3432
    %v3434 = vrot.slane %v3402, %v3433
    %v3435 = vmul.f32 %v3429, %v3434
    %v3436 = vmul.f32 %v3430, %v3434
    %v3437 = vlaneseq
    %v3438 = vshrl.u32 %v3437, 7
    %v3439 = vsub.s32 1, %v3438
    %v3440 = vrot.slane %v3402, %v3439
    %v3441 = vadd.f32 %v3435, %v3440
    %v3442 = vadd.f32 %v3436, %v3440
    %s3443 = scalar_lea.vmem %s4, 32
    %v3444 = vld [vmem:[%s3443] sm:$0xff]
    %v3445 = vld [vmem:[%s3443 + $0x8] sm:$0xff]
    %v3446 = vld [vmem:[%s3443 + $0x10] sm:$0xff]
    %v3447 = vld [vmem:[%s3443 + $0x18] sm:$0xff]
    %s3448 = scalar_lea.vmem %s5, 1
    %v3449 = vld [vmem:[%s3448] sm:$0x1]
    %v3451 = vlaneseq
    %v3452 = vshrl.u32 %v3451, 7
    %v3453 = vsub.s32 0, %v3452
    %v3454 = vrot.slane %v3449, %v3453
    %v3457 = vcombine.low %v3441, %v3442
    %v3458 = vcombine.low %v3454, %v3454
    %v3460 = vsel %vm78, %v3457, 0
    %3462 = vmatprep.subr.mxu0 0.0
    %3463 = vmatpush1.msra.mxu0 0.0
    %3464 = vmatprep.subr.mxu0 0.0
    %3465 = vmatpush1.msra.mxu0 0.0
    %3466 = vmatprep.subr.mxu0 0.0
    %3467 = vmatpush1.msra.mxu0 0.0
    %3468 = vmatprep.subr.mxu0 0.0
    %3469 = vmatpush1.msra.mxu0 0.0
    %3470 = vmatprep.subr.mxu0 0.0
    %3471 = vmatpush1.msra.mxu0 0.0
    %3472 = vmatprep.subr.mxu0 0.0
    %3473 = vmatpush1.msra.mxu0 0.0
    %3474 = vmatprep.subr.mxu0 0.0
    %3475 = vmatpush1.msra.mxu0 0.0
    %3476 = vmatprep.subr.mxu0 0.0
    %3477 = vmatpush1.msra.mxu0 0.0
    %3478 = vmatprep.subr.mxu0 0.0
    %3479 = vmatpush1.msra.mxu0 0.0
    %3480 = vmatprep.subr.mxu0 0.0
    %3481 = vmatpush1.msra.mxu0 0.0
    %3482 = vmatprep.subr.mxu0 0.0
    %3483 = vmatpush1.msra.mxu0 0.0
    %3484 = vmatprep.subr.mxu0 0.0
    %3485 = vmatpush1.msra.mxu0 0.0
    %3486 = vmatprep.subr.mxu0 0.0
    %3487 = vmatpush1.msra.mxu0 %v3447
    %3488 = vmatprep.subr.mxu0 0.0
    %3489 = vmatpush1.msra.mxu0 %v3446
    %3490 = vmatprep.subr.mxu0 0.0
    %3491 = vmatpush1.msra.mxu0 %v3445
    %3492 = vmatprep.subr.mxu0 0.0
    %3493 = vmatpush1.msra.mxu0 %v3444
    %3494 = vmatprep.subr.mxu0 0.0
    %3495 = vmatpush2.msra.mxu0 0.0
    %3496 = vmatprep.subr.mxu0 0.0
    %3497 = vmatpush2.msra.mxu0 0.0
    %3498 = vmatprep.subr.mxu0 0.0
    %3499 = vmatpush2.msra.mxu0 0.0
    %3500 = vmatprep.subr.mxu0 0.0
    %3501 = vmatpush2.msra.mxu0 0.0
    %3502 = vmatprep.subr.mxu0 0.0
    %3503 = vmatpush2.msra.mxu0 0.0
    %3504 = vmatprep.subr.mxu0 0.0
    %3505 = vmatpush2.msra.mxu0 0.0
    %3506 = vmatprep.subr.mxu0 0.0
    %3507 = vmatpush2.msra.mxu0 0.0
    %3508 = vmatprep.subr.mxu0 0.0
    %3509 = vmatpush2.msra.mxu0 0.0
    %3510 = vmatprep.subr.mxu0 0.0
    %3511 = vmatpush2.msra.mxu0 0.0
    %3512 = vmatprep.subr.mxu0 0.0
    %3513 = vmatpush2.msra.mxu0 0.0
    %3514 = vmatprep.subr.mxu0 0.0
    %3515 = vmatpush2.msra.mxu0 0.0
    %3516 = vmatprep.subr.mxu0 0.0
    %3517 = vmatpush2.msra.mxu0 0.0
    %3518 = vmatprep.subr.mxu0 0.0
    %3519 = vmatpush2.msra.mxu0 0.0
    %3520 = vmatprep.subr.mxu0 0.0
    %3521 = vmatpush2.msra.mxu0 0.0
    %3522 = vmatprep.subr.mxu0 0.0
    %3523 = vmatpush2.msra.mxu0 0.0
    %3524 = vmatprep.subr.mxu0 0.0
    %3525 = vmatpush2.msra.mxu0 0.0
    %3526 = vmatprep.mubr.f32.mxu0 0.0
    %3527 = vmatmul.mubr.f32.gmra.mxu0 %v3460
    %v3528 = vpop.f32.mrf.mxu0
    %v3529 = vadd.f32 %v3458, %v3528
    %v3530 = vpop.f32.mrf.mxu0
    %3531 = vdwg.mxu0
    %v3533 = vcombine.high %v3529, %v3529
    %v3535 = vmax.f32 %v3529, 0.0
    %v3536 = vmax.f32 %v3533, 0.0
    %s3537 = scalar_lea.vmem %s6, 64
    %v3538 = vld [vmem:[%s3537] sm:$0xff]
    %v3539 = vld [vmem:[%s3537 + $0x8] sm:$0xff]
    %v3540 = vld [vmem:[%s3537 + $0x10] sm:$0xff]
    %v3541 = vld [vmem:[%s3537 + $0x18] sm:$0xff]
    %v3542 = vld [vmem:[%s3537 + $0x20] sm:$0xff]
    %v3543 = vld [vmem:[%s3537 + $0x28] sm:$0xff]
    %v3544 = vld [vmem:[%s3537 + $0x30] sm:$0xff]
    %v3545 = vld [vmem:[%s3537 + $0x38] sm:$0xff]
    %s3546 = scalar_lea.vmem %s7, 1
    %v3547 = vld [vmem:[%s3546] sm:$0x1]
    %v3549 = vlaneseq
    %v3550 = vshrl.u32 %v3549, 7
    %v3551 = vsub.s32 0, %v3550
    %v3552 = vrot.slane %v3547, %v3551
    %v3555 = vcombine.low %v3535, %v3536
    %v3556 = vcombine.low %v3552, %v3552
    %v3558 = vsel %vm1757, %v3555, 0
    %3560 = vmatprep.subr.mxu0 0.0
    %3561 = vmatpush1.msra.mxu0 0.0
    %3562 = vmatprep.subr.mxu0 0.0
    %3563 = vmatpush1.msra.mxu0 0.0
    %3564 = vmatprep.subr.mxu0 0.0
    %3565 = vmatpush1.msra.mxu0 0.0
    %3566 = vmatprep.subr.mxu0 0.0
    %3567 = vmatpush1.msra.mxu0 0.0
    %3568 = vmatprep.subr.mxu0 0.0
    %3569 = vmatpush1.msra.mxu0 0.0
    %3570 = vmatprep.subr.mxu0 0.0
    %3571 = vmatpush1.msra.mxu0 0.0
    %3572 = vmatprep.subr.mxu0 0.0
    %3573 = vmatpush1.msra.mxu0 0.0
    %3574 = vmatprep.subr.mxu0 0.0
    %3575 = vmatpush1.msra.mxu0 0.0
    %3576 = vmatprep.subr.mxu0 0.0
    %3577 = vmatpush1.msra.mxu0 %v3545
    %3578 = vmatprep.subr.mxu0 0.0
    %3579 = vmatpush1.msra.mxu0 %v3544
    %3580 = vmatprep.subr.mxu0 0.0
    %3581 = vmatpush1.msra.mxu0 %v3543
    %3582 = vmatprep.subr.mxu0 0.0
    %3583 = vmatpush1.msra.mxu0 %v3542
    %3584 = vmatprep.subr.mxu0 0.0
    %3585 = vmatpush1.msra.mxu0 %v3541
    %3586 = vmatprep.subr.mxu0 0.0
    %3587 = vmatpush1.msra.mxu0 %v3540
    %3588 = vmatprep.subr.mxu0 0.0
    %3589 = vmatpush1.msra.mxu0 %v3539
    %3590 = vmatprep.subr.mxu0 0.0
    %3591 = vmatpush1.msra.mxu0 %v3538
    %3592 = vmatprep.subr.mxu0 0.0
    %3593 = vmatpush2.msra.mxu0 0.0
    %3594 = vmatprep.subr.mxu0 0.0
    %3595 = vmatpush2.msra.mxu0 0.0
    %3596 = vmatprep.subr.mxu0 0.0
    %3597 = vmatpush2.msra.mxu0 0.0
    %3598 = vmatprep.subr.mxu0 0.0
    %3599 = vmatpush2.msra.mxu0 0.0
    %3600 = vmatprep.subr.mxu0 0.0
    %3601 = vmatpush2.msra.mxu0 0.0
    %3602 = vmatprep.subr.mxu0 0.0
    %3603 = vmatpush2.msra.mxu0 0.0
    %3604 = vmatprep.subr.mxu0 0.0
    %3605 = vmatpush2.msra.mxu0 0.0
    %3606 = vmatprep.subr.mxu0 0.0
    %3607 = vmatpush2.msra.mxu0 0.0
    %3608 = vmatprep.subr.mxu0 0.0
    %3609 = vmatpush2.msra.mxu0 0.0
    %3610 = vmatprep.subr.mxu0 0.0
    %3611 = vmatpush2.msra.mxu0 0.0
    %3612 = vmatprep.subr.mxu0 0.0
    %3613 = vmatpush2.msra.mxu0 0.0
    %3614 = vmatprep.subr.mxu0 0.0
    %3615 = vmatpush2.msra.mxu0 0.0
    %3616 = vmatprep.subr.mxu0 0.0
    %3617 = vmatpush2.msra.mxu0 0.0
    %3618 = vmatprep.subr.mxu0 0.0
    %3619 = vmatpush2.msra.mxu0 0.0
    %3620 = vmatprep.subr.mxu0 0.0
    %3621 = vmatpush2.msra.mxu0 0.0
    %3622 = vmatprep.subr.mxu0 0.0
    %3623 = vmatpush2.msra.mxu0 0.0
    %3624 = vmatprep.mubr.f32.mxu0 0.0
    %3625 = vmatmul.mubr.f32.gmra.mxu0 %v3558
    %v3626 = vpop.f32.mrf.mxu0
    %v3627 = vadd.f32 %v3556, %v3626
    %v3628 = vpop.f32.mrf.mxu0
    %3629 = vdwg.mxu0
    %v3631 = vcombine.high %v3627, %v3627
    %s3633 = scalar_lea.vmem %s8, 2
    %v3634 = vld [vmem:[%s3633] sm:$0x3]
    %v3635 = vadd.f32 %v3441, %v3627
    %v3636 = vadd.f32 %v3442, %v3631
    %v3637 = vsel %vm1606, %v3635, 0.0
    %3638 = vadd.xlane.f32.xlu0 %v3637
    %v3639 = vpop.xlane.xlu0 %3638
    %v3640 = vsel %vm1606, %v3636, 0.0
    %3641 = vadd.xlane.f32.xlu0 %v3640
    %v3642 = vpop.xlane.xlu0 %3641
    %v3643 = vmul.f32 %v3639, %v1613
    %v3644 = vmul.f32 %v3642, %v1613
    %v3645 = vsub.f32 %v3635, %v3643
    %v3646 = vsub.f32 %v3636, %v3644
    %v3647 = vmul.f32 %v3645, %v3645
    %v3648 = vmul.f32 %v3646, %v3646
    %v3649 = vsel %vm1606, %v3647, 0.0
    %3650 = vadd.xlane.f32.xlu0 %v3649
    %v3651 = vpop.xlane.xlu0 %3650
    %v3652 = vsel %vm1606, %v3648, 0.0
    %3653 = vadd.xlane.f32.xlu0 %v3652
    %v3654 = vpop.xlane.xlu0 %3653
    %v3655 = vmul.f32 %v3651, %v1613
    %v3656 = vmul.f32 %v3654, %v1613
    %v3657 = vadd.f32 %v3655, 1e-05
    %v3658 = vadd.f32 %v3656, 1e-05
    %v3659 = vrsqrt.pop %v3657
    %v3660 = vrsqrt.pop %v3658
    %v3661 = vmul.f32 %v3645, %v3659
    %v3662 = vmul.f32 %v3646, %v3660
    %v3663 = vlaneseq
    %v3664 = vshrl.u32 %v3663, 7
    %v3665 = vsub.s32 0, %v3664
    %v3666 = vrot.slane %v3634, %v3665
    %v3667 = vmul.f32 %v3661, %v3666
    %v3668 = vmul.f32 %v3662, %v3666
    %v3669 = vlaneseq
    %v3670 = vshrl.u32 %v3669, 7
    %v3671 = vsub.s32 1, %v3670
    %v3672 = vrot.slane %v3634, %v3671
    %v3673 = vadd.f32 %v3667, %v3672
    %v3674 = vadd.f32 %v3668, %v3672
    %v3677 = vrot.slane %v3673, 1
    %v3678 = vrot.slane %v3674, 1
    %v3679 = vrot.slane %v3673, 2
    %v3680 = vrot.slane %v3674, 2
    %v3681 = vrot.slane %v3673, 3
    %v3682 = vrot.slane %v3674, 3
    %v3683 = vlaneseq
    %v3684 = vshrl.u32 %v3683, 7
    %v3685 = vadd.s32 %v3684, 8
    %v3686 = vadd.s32 %v3684, 16
    %v3687 = vadd.s32 %v3684, 24
    %v3688 = vlaneseq
    %v3689 = vand.u32 %v3688, 127
    %v3690 = vadd.s32 %v3689, 4294967295
    %vm3691 = vcmp.eq.s32.totalorder %v3684, %v3690
    %vm3692 = vcmp.eq.s32.totalorder %v3685, %v3690
    %vm3693 = vcmp.eq.s32.totalorder %v3686, %v3690
    %vm3694 = vcmp.eq.s32.totalorder %v3687, %v3690
    %v3695 = vsel %vm3691, 1, 0
    %v3696 = vsel %vm3692, 1, 0
    %v3697 = vsel %vm3693, 1, 0
    %v3698 = vsel %vm3694, 1, 0
    %v3699 = vcvt.s32.f32 %v3695
    %v3700 = vcvt.s32.f32 %v3696
    %v3701 = vcvt.s32.f32 %v3697
    %v3702 = vcvt.s32.f32 %v3698
    %vm3703 = vcmp.eq.s32.totalorder %v3684, %v3689
    %vm3704 = vcmp.eq.s32.totalorder %v3685, %v3689
    %vm3705 = vcmp.eq.s32.totalorder %v3686, %v3689
    %vm3706 = vcmp.eq.s32.totalorder %v3687, %v3689
    %v3707 = vsel %vm3703, 1, 0
    %v3708 = vsel %vm3704, 1, 0
    %v3709 = vsel %vm3705, 1, 0
    %v3710 = vsel %vm3706, 1, 0
    %v3711 = vcvt.s32.f32 %v3707
    %v3712 = vcvt.s32.f32 %v3708
    %v3713 = vcvt.s32.f32 %v3709
    %v3714 = vcvt.s32.f32 %v3710
    %v3715 = vadd.s32 %v3689, 1
    %vm3716 = vcmp.eq.s32.totalorder %v3684, %v3715
    %vm3717 = vcmp.eq.s32.totalorder %v3685, %v3715
    %vm3718 = vcmp.eq.s32.totalorder %v3686, %v3715
    %vm3719 = vcmp.eq.s32.totalorder %v3687, %v3715
    %v3720 = vsel %vm3716, 1, 0
    %v3721 = vsel %vm3717, 1, 0
    %v3722 = vsel %vm3718, 1, 0
    %v3723 = vsel %vm3719, 1, 0
    %v3724 = vcvt.s32.f32 %v3720
    %v3725 = vcvt.s32.f32 %v3721
    %v3726 = vcvt.s32.f32 %v3722
    %v3727 = vcvt.s32.f32 %v3723
    %v3728 = vrot.slane %v3674, 7
    %vm3729 = vcmask 1041409
    %v3730 = vsel %vm3729, %v3728, %v3673
    %v3731 = vrot.slane %v3677, 6
    %vm3732 = vcmask 1042434
    %v3733 = vsel %vm3732, %v3731, %v3730
    %v3734 = vrot.slane %v3678, 5
    %vm3735 = vcmask 1043459
    %v3736 = vsel %vm3735, %v3734, %v3733
    %v3737 = vrot.slane %v3679, 4
    %vm3738 = vcmask 1044484
    %v3739 = vsel %vm3738, %v3737, %v3736
    %v3740 = vrot.slane %v3680, 3
    %vm3741 = vcmask 1045509
    %v3742 = vsel %vm3741, %v3740, %v3739
    %v3743 = vrot.slane %v3681, 2
    %vm3744 = vcmask 1046534
    %v3745 = vsel %vm3744, %v3743, %v3742
    %v3746 = vrot.slane %v3682, 1
    %vm3747 = vcmask 1047559
    %v3748 = vsel %vm3747, %v3746, %v3745
    %v3749 = vsel %vm78, %v3748, 0
    %3751 = vmatprep.subr.mxu0 0.0
    %3752 = vmatpush1.msra.mxu0 0.0
    %3753 = vmatprep.subr.mxu0 0.0
    %3754 = vmatpush1.msra.mxu0 0.0
    %3755 = vmatprep.subr.mxu0 0.0
    %3756 = vmatpush1.msra.mxu0 0.0
    %3757 = vmatprep.subr.mxu0 0.0
    %3758 = vmatpush1.msra.mxu0 0.0
    %3759 = vmatprep.subr.mxu0 0.0
    %3760 = vmatpush1.msra.mxu0 0.0
    %3761 = vmatprep.subr.mxu0 0.0
    %3762 = vmatpush1.msra.mxu0 0.0
    %3763 = vmatprep.subr.mxu0 0.0
    %3764 = vmatpush1.msra.mxu0 0.0
    %3765 = vmatprep.subr.mxu0 0.0
    %3766 = vmatpush1.msra.mxu0 0.0
    %3767 = vmatprep.subr.mxu0 0.0
    %3768 = vmatpush1.msra.mxu0 0.0
    %3769 = vmatprep.subr.mxu0 0.0
    %3770 = vmatpush1.msra.mxu0 0.0
    %3771 = vmatprep.subr.mxu0 0.0
    %3772 = vmatpush1.msra.mxu0 0.0
    %3773 = vmatprep.subr.mxu0 0.0
    %3774 = vmatpush1.msra.mxu0 0.0
    %3775 = vmatprep.subr.mxu0 0.0
    %3776 = vmatpush1.msra.mxu0 %v3702
    %3777 = vmatprep.subr.mxu0 0.0
    %3778 = vmatpush1.msra.mxu0 %v3701
    %3779 = vmatprep.subr.mxu0 0.0
    %3780 = vmatpush1.msra.mxu0 %v3700
    %3781 = vmatprep.subr.mxu0 0.0
    %3782 = vmatpush1.msra.mxu0 %v3699
    %3783 = vmatprep.subr.mxu0 0.0
    %3784 = vmatpush2.msra.mxu0 0.0
    %3785 = vmatprep.subr.mxu0 0.0
    %3786 = vmatpush2.msra.mxu0 0.0
    %3787 = vmatprep.subr.mxu0 0.0
    %3788 = vmatpush2.msra.mxu0 0.0
    %3789 = vmatprep.subr.mxu0 0.0
    %3790 = vmatpush2.msra.mxu0 0.0
    %3791 = vmatprep.subr.mxu0 0.0
    %3792 = vmatpush2.msra.mxu0 0.0
    %3793 = vmatprep.subr.mxu0 0.0
    %3794 = vmatpush2.msra.mxu0 0.0
    %3795 = vmatprep.subr.mxu0 0.0
    %3796 = vmatpush2.msra.mxu0 0.0
    %3797 = vmatprep.subr.mxu0 0.0
    %3798 = vmatpush2.msra.mxu0 0.0
    %3799 = vmatprep.subr.mxu0 0.0
    %3800 = vmatpush2.msra.mxu0 0.0
    %3801 = vmatprep.subr.mxu0 0.0
    %3802 = vmatpush2.msra.mxu0 0.0
    %3803 = vmatprep.subr.mxu0 0.0
    %3804 = vmatpush2.msra.mxu0 0.0
    %3805 = vmatprep.subr.mxu0 0.0
    %3806 = vmatpush2.msra.mxu0 0.0
    %3807 = vmatprep.subr.mxu0 0.0
    %3808 = vmatpush2.msra.mxu0 0.0
    %3809 = vmatprep.subr.mxu0 0.0
    %3810 = vmatpush2.msra.mxu0 0.0
    %3811 = vmatprep.subr.mxu0 0.0
    %3812 = vmatpush2.msra.mxu0 0.0
    %3813 = vmatprep.subr.mxu0 0.0
    %3814 = vmatpush2.msra.mxu0 0.0
    %3815 = vmatprep.mubr.f32.mxu0 0.0
    %3816 = vmatmul.mubr.f32.gmra.mxu0 %v3749
    %v3817 = vpop.f32.mrf.mxu0
    %v3818 = vadd.f32 0.0, %v3817
    %v3819 = vpop.f32.mrf.mxu0
    %3820 = vdwg.mxu0
    %v3822 = vcombine.high %v3818, %v3818
    %v3824 = vunpack.c.l.s4 1966171168
    %v3825 = vunpack.c.0.s8 %v3824
    %v3826 = vlaneseq
    %v3827 = vshrl.u32 %v3826, 7
    %v3828 = vsub.s32 %v3825, %v3827
    %v3829 = vrot.slane %v3818, %v3828
    %v3831 = vunpack.c.l.s4 1966171168
    %v3832 = vunpack.c.0.s8 %v3831
    %v3833 = vlaneseq
    %v3834 = vshrl.u32 %v3833, 7
    %v3835 = vsub.s32 %v3832, %v3834
    %v3836 = vrot.slane %v3822, %v3835
    %v3837 = vcombine.high %v3829, %v3829
    %v3838 = vcombine.high %v3836, %v3836
    %v3840 = vunpack.c.l.s4 1966171168
    %v3841 = vunpack.c.0.s8 %v3840
    %v3842 = vlaneseq
    %v3843 = vshrl.u32 %v3842, 7
    %v3844 = vsub.s32 %v3841, %v3843
    %v3845 = vrot.slane %v3829, %v3844
    %v3847 = vunpack.c.l.s4 1966171168
    %v3848 = vunpack.c.0.s8 %v3847
    %v3849 = vlaneseq
    %v3850 = vshrl.u32 %v3849, 7
    %v3851 = vsub.s32 %v3848, %v3850
    %v3852 = vrot.slane %v3836, %v3851
    %v3854 = vunpack.c.l.s4 1966171168
    %v3855 = vunpack.c.0.s8 %v3854
    %v3856 = vlaneseq
    %v3857 = vshrl.u32 %v3856, 7
    %v3858 = vsub.s32 %v3855, %v3857
    %v3859 = vrot.slane %v3837, %v3858
    %v3861 = vunpack.c.l.s4 1966171168
    %v3862 = vunpack.c.0.s8 %v3861
    %v3863 = vlaneseq
    %v3864 = vshrl.u32 %v3863, 7
    %v3865 = vsub.s32 %v3862, %v3864
    %v3866 = vrot.slane %v3838, %v3865
    %v3867 = vcombine.high %v3845, %v3845
    %v3868 = vcombine.high %v3852, %v3852
    %v3869 = vcombine.high %v3859, %v3859
    %v3870 = vcombine.high %v3866, %v3866
    %v3871 = vld [vmem:[%s9] sm:$0xf]
    %v3872 = vlaneseq
    %v3873 = vshrl.u32 %v3872, 7
    %v3874 = vsub.s32 0, %v3873
    %v3875 = vrot.slane %v3871, %v3874
    %3877 = vbcast.lane.b32.xlu0 %v3875, 256
    %v3878 = vpop.permute.xlu0 %3877
    %v3879 = vlaneseq
    %v3880 = vshrl.u32 %v3879, 7
    %v3881 = vsub.s32 1, %v3880
    %v3882 = vrot.slane %v3871, %v3881
    %3884 = vbcast.lane.b32.xlu0 %v3882, 256
    %v3885 = vpop.permute.xlu0 %3884
    %v3886 = vlaneseq
    %v3887 = vshrl.u32 %v3886, 7
    %v3888 = vsub.s32 2, %v3887
    %v3889 = vrot.slane %v3871, %v3888
    %3891 = vbcast.lane.b32.xlu0 %v3889, 256
    %v3892 = vpop.permute.xlu0 %3891
    %v3893 = vlaneseq
    %v3894 = vshrl.u32 %v3893, 7
    %v3895 = vsub.s32 3, %v3894
    %v3896 = vrot.slane %v3871, %v3895
    %3898 = vbcast.lane.b32.xlu0 %v3896, 256
    %v3899 = vpop.permute.xlu0 %3898
    %v3900 = vlaneseq
    %v3901 = vshrl.u32 %v3900, 7
    %v3902 = vsub.s32 0, %v3901
    %v3903 = vrot.slane %v3845, %v3902
    %v3904 = vlaneseq
    %v3905 = vshrl.u32 %v3904, 7
    %v3906 = vsub.s32 0, %v3905
    %v3907 = vrot.slane %v3859, %v3906
    %v3908 = vlaneseq
    %v3909 = vshrl.u32 %v3908, 7
    %v3910 = vsub.s32 0, %v3909
    %v3911 = vrot.slane %v3867, %v3910
    %v3912 = vlaneseq
    %v3913 = vshrl.u32 %v3912, 7
    %v3914 = vsub.s32 0, %v3913
    %v3915 = vrot.slane %v3869, %v3914
    %v3916 = vlaneseq
    %v3917 = vshrl.u32 %v3916, 7
    %v3918 = vsub.s32 0, %v3917
    %v3919 = vrot.slane %v3852, %v3918
    %v3920 = vlaneseq
    %v3921 = vshrl.u32 %v3920, 7
    %v3922 = vsub.s32 0, %v3921
    %v3923 = vrot.slane %v3866, %v3922
    %v3924 = vlaneseq
    %v3925 = vshrl.u32 %v3924, 7
    %v3926 = vsub.s32 0, %v3925
    %v3927 = vrot.slane %v3868, %v3926
    %v3928 = vlaneseq
    %v3929 = vshrl.u32 %v3928, 7
    %v3930 = vsub.s32 0, %v3929
    %v3931 = vrot.slane %v3870, %v3930
    %v3940 = vmul.f32 %v3903, %v3878
    %v3941 = vmul.f32 %v3907, %v3878
    %v3942 = vmul.f32 %v3911, %v3885
    %v3943 = vmul.f32 %v3915, %v3885
    %v3944 = vmul.f32 %v3919, %v3892
    %v3945 = vmul.f32 %v3923, %v3892
    %v3946 = vmul.f32 %v3927, %v3899
    %v3947 = vmul.f32 %v3931, %v3899
    %v3948 = vadd.f32 %v3940, 0.0
    %v3949 = vadd.f32 %v3941, 0.0
    %v3950 = vadd.f32 %v3942, 0.0
    %v3951 = vadd.f32 %v3943, 0.0
    %v3952 = vadd.f32 %v3944, 0.0
    %v3953 = vadd.f32 %v3945, 0.0
    %v3954 = vadd.f32 %v3946, 0.0
    %v3955 = vadd.f32 %v3947, 0.0
    %3956 = vmatprep.subr.mxu0 0.0
    %3957 = vmatpush1.msra.mxu0 0.0
    %3958 = vmatprep.subr.mxu0 0.0
    %3959 = vmatpush1.msra.mxu0 0.0
    %3960 = vmatprep.subr.mxu0 0.0
    %3961 = vmatpush1.msra.mxu0 0.0
    %3962 = vmatprep.subr.mxu0 0.0
    %3963 = vmatpush1.msra.mxu0 0.0
    %3964 = vmatprep.subr.mxu0 0.0
    %3965 = vmatpush1.msra.mxu0 0.0
    %3966 = vmatprep.subr.mxu0 0.0
    %3967 = vmatpush1.msra.mxu0 0.0
    %3968 = vmatprep.subr.mxu0 0.0
    %3969 = vmatpush1.msra.mxu0 0.0
    %3970 = vmatprep.subr.mxu0 0.0
    %3971 = vmatpush1.msra.mxu0 0.0
    %3972 = vmatprep.subr.mxu0 0.0
    %3973 = vmatpush1.msra.mxu0 0.0
    %3974 = vmatprep.subr.mxu0 0.0
    %3975 = vmatpush1.msra.mxu0 0.0
    %3976 = vmatprep.subr.mxu0 0.0
    %3977 = vmatpush1.msra.mxu0 0.0
    %3978 = vmatprep.subr.mxu0 0.0
    %3979 = vmatpush1.msra.mxu0 0.0
    %3980 = vmatprep.subr.mxu0 0.0
    %3981 = vmatpush1.msra.mxu0 %v3714
    %3982 = vmatprep.subr.mxu0 0.0
    %3983 = vmatpush1.msra.mxu0 %v3713
    %3984 = vmatprep.subr.mxu0 0.0
    %3985 = vmatpush1.msra.mxu0 %v3712
    %3986 = vmatprep.subr.mxu0 0.0
    %3987 = vmatpush1.msra.mxu0 %v3711
    %3988 = vmatprep.subr.mxu0 0.0
    %3989 = vmatpush2.msra.mxu0 0.0
    %3990 = vmatprep.subr.mxu0 0.0
    %3991 = vmatpush2.msra.mxu0 0.0
    %3992 = vmatprep.subr.mxu0 0.0
    %3993 = vmatpush2.msra.mxu0 0.0
    %3994 = vmatprep.subr.mxu0 0.0
    %3995 = vmatpush2.msra.mxu0 0.0
    %3996 = vmatprep.subr.mxu0 0.0
    %3997 = vmatpush2.msra.mxu0 0.0
    %3998 = vmatprep.subr.mxu0 0.0
    %3999 = vmatpush2.msra.mxu0 0.0
    %4000 = vmatprep.subr.mxu0 0.0
    %4001 = vmatpush2.msra.mxu0 0.0
    %4002 = vmatprep.subr.mxu0 0.0
    %4003 = vmatpush2.msra.mxu0 0.0
    %4004 = vmatprep.subr.mxu0 0.0
    %4005 = vmatpush2.msra.mxu0 0.0
    %4006 = vmatprep.subr.mxu0 0.0
    %4007 = vmatpush2.msra.mxu0 0.0
    %4008 = vmatprep.subr.mxu0 0.0
    %4009 = vmatpush2.msra.mxu0 0.0
    %4010 = vmatprep.subr.mxu0 0.0
    %4011 = vmatpush2.msra.mxu0 0.0
    %4012 = vmatprep.subr.mxu0 0.0
    %4013 = vmatpush2.msra.mxu0 0.0
    %4014 = vmatprep.subr.mxu0 0.0
    %4015 = vmatpush2.msra.mxu0 0.0
    %4016 = vmatprep.subr.mxu0 0.0
    %4017 = vmatpush2.msra.mxu0 0.0
    %4018 = vmatprep.subr.mxu0 0.0
    %4019 = vmatpush2.msra.mxu0 0.0
    %4020 = vmatprep.mubr.f32.mxu0 0.0
    %4021 = vmatmul.mubr.f32.gmra.mxu0 %v3749
    %v4022 = vpop.f32.mrf.mxu0
    %v4023 = vadd.f32 0.0, %v4022
    %v4024 = vpop.f32.mrf.mxu0
    %4025 = vdwg.mxu0
    %v4027 = vcombine.high %v4023, %v4023
    %v4029 = vunpack.c.l.s4 1966171168
    %v4030 = vunpack.c.0.s8 %v4029
    %v4031 = vlaneseq
    %v4032 = vshrl.u32 %v4031, 7
    %v4033 = vsub.s32 %v4030, %v4032
    %v4034 = vrot.slane %v4023, %v4033
    %v4036 = vunpack.c.l.s4 1966171168
    %v4037 = vunpack.c.0.s8 %v4036
    %v4038 = vlaneseq
    %v4039 = vshrl.u32 %v4038, 7
    %v4040 = vsub.s32 %v4037, %v4039
    %v4041 = vrot.slane %v4027, %v4040
    %v4042 = vcombine.high %v4034, %v4034
    %v4043 = vcombine.high %v4041, %v4041
    %v4045 = vunpack.c.l.s4 1966171168
    %v4046 = vunpack.c.0.s8 %v4045
    %v4047 = vlaneseq
    %v4048 = vshrl.u32 %v4047, 7
    %v4049 = vsub.s32 %v4046, %v4048
    %v4050 = vrot.slane %v4034, %v4049
    %v4052 = vunpack.c.l.s4 1966171168
    %v4053 = vunpack.c.0.s8 %v4052
    %v4054 = vlaneseq
    %v4055 = vshrl.u32 %v4054, 7
    %v4056 = vsub.s32 %v4053, %v4055
    %v4057 = vrot.slane %v4041, %v4056
    %v4059 = vunpack.c.l.s4 1966171168
    %v4060 = vunpack.c.0.s8 %v4059
    %v4061 = vlaneseq
    %v4062 = vshrl.u32 %v4061, 7
    %v4063 = vsub.s32 %v4060, %v4062
    %v4064 = vrot.slane %v4042, %v4063
    %v4066 = vunpack.c.l.s4 1966171168
    %v4067 = vunpack.c.0.s8 %v4066
    %v4068 = vlaneseq
    %v4069 = vshrl.u32 %v4068, 7
    %v4070 = vsub.s32 %v4067, %v4069
    %v4071 = vrot.slane %v4043, %v4070
    %v4072 = vcombine.high %v4050, %v4050
    %v4073 = vcombine.high %v4057, %v4057
    %v4074 = vcombine.high %v4064, %v4064
    %v4075 = vcombine.high %v4071, %v4071
    %s4076 = scalar_lea.vmem %s9, 4
    %v4077 = vld [vmem:[%s4076] sm:$0xf]
    %v4078 = vlaneseq
    %v4079 = vshrl.u32 %v4078, 7
    %v4080 = vsub.s32 0, %v4079
    %v4081 = vrot.slane %v4077, %v4080
    %4083 = vbcast.lane.b32.xlu0 %v4081, 256
    %v4084 = vpop.permute.xlu0 %4083
    %v4085 = vlaneseq
    %v4086 = vshrl.u32 %v4085, 7
    %v4087 = vsub.s32 1, %v4086
    %v4088 = vrot.slane %v4077, %v4087
    %4090 = vbcast.lane.b32.xlu0 %v4088, 256
    %v4091 = vpop.permute.xlu0 %4090
    %v4092 = vlaneseq
    %v4093 = vshrl.u32 %v4092, 7
    %v4094 = vsub.s32 2, %v4093
    %v4095 = vrot.slane %v4077, %v4094
    %4097 = vbcast.lane.b32.xlu0 %v4095, 256
    %v4098 = vpop.permute.xlu0 %4097
    %v4099 = vlaneseq
    %v4100 = vshrl.u32 %v4099, 7
    %v4101 = vsub.s32 3, %v4100
    %v4102 = vrot.slane %v4077, %v4101
    %4104 = vbcast.lane.b32.xlu0 %v4102, 256
    %v4105 = vpop.permute.xlu0 %4104
    %v4106 = vlaneseq
    %v4107 = vshrl.u32 %v4106, 7
    %v4108 = vsub.s32 0, %v4107
    %v4109 = vrot.slane %v4050, %v4108
    %v4110 = vlaneseq
    %v4111 = vshrl.u32 %v4110, 7
    %v4112 = vsub.s32 0, %v4111
    %v4113 = vrot.slane %v4064, %v4112
    %v4114 = vlaneseq
    %v4115 = vshrl.u32 %v4114, 7
    %v4116 = vsub.s32 0, %v4115
    %v4117 = vrot.slane %v4072, %v4116
    %v4118 = vlaneseq
    %v4119 = vshrl.u32 %v4118, 7
    %v4120 = vsub.s32 0, %v4119
    %v4121 = vrot.slane %v4074, %v4120
    %v4122 = vlaneseq
    %v4123 = vshrl.u32 %v4122, 7
    %v4124 = vsub.s32 0, %v4123
    %v4125 = vrot.slane %v4057, %v4124
    %v4126 = vlaneseq
    %v4127 = vshrl.u32 %v4126, 7
    %v4128 = vsub.s32 0, %v4127
    %v4129 = vrot.slane %v4071, %v4128
    %v4130 = vlaneseq
    %v4131 = vshrl.u32 %v4130, 7
    %v4132 = vsub.s32 0, %v4131
    %v4133 = vrot.slane %v4073, %v4132
    %v4134 = vlaneseq
    %v4135 = vshrl.u32 %v4134, 7
    %v4136 = vsub.s32 0, %v4135
    %v4137 = vrot.slane %v4075, %v4136
    %v4146 = vmul.f32 %v4109, %v4084
    %v4147 = vmul.f32 %v4113, %v4084
    %v4148 = vmul.f32 %v4117, %v4091
    %v4149 = vmul.f32 %v4121, %v4091
    %v4150 = vmul.f32 %v4125, %v4098
    %v4151 = vmul.f32 %v4129, %v4098
    %v4152 = vmul.f32 %v4133, %v4105
    %v4153 = vmul.f32 %v4137, %v4105
    %v4154 = vadd.f32 %v3948, %v4146
    %v4155 = vadd.f32 %v3949, %v4147
    %v4156 = vadd.f32 %v3950, %v4148
    %v4157 = vadd.f32 %v3951, %v4149
    %v4158 = vadd.f32 %v3952, %v4150
    %v4159 = vadd.f32 %v3953, %v4151
    %v4160 = vadd.f32 %v3954, %v4152
    %v4161 = vadd.f32 %v3955, %v4153
    %4162 = vmatprep.subr.mxu0 0.0
    %4163 = vmatpush1.msra.mxu0 0.0
    %4164 = vmatprep.subr.mxu0 0.0
    %4165 = vmatpush1.msra.mxu0 0.0
    %4166 = vmatprep.subr.mxu0 0.0
    %4167 = vmatpush1.msra.mxu0 0.0
    %4168 = vmatprep.subr.mxu0 0.0
    %4169 = vmatpush1.msra.mxu0 0.0
    %4170 = vmatprep.subr.mxu0 0.0
    %4171 = vmatpush1.msra.mxu0 0.0
    %4172 = vmatprep.subr.mxu0 0.0
    %4173 = vmatpush1.msra.mxu0 0.0
    %4174 = vmatprep.subr.mxu0 0.0
    %4175 = vmatpush1.msra.mxu0 0.0
    %4176 = vmatprep.subr.mxu0 0.0
    %4177 = vmatpush1.msra.mxu0 0.0
    %4178 = vmatprep.subr.mxu0 0.0
    %4179 = vmatpush1.msra.mxu0 0.0
    %4180 = vmatprep.subr.mxu0 0.0
    %4181 = vmatpush1.msra.mxu0 0.0
    %4182 = vmatprep.subr.mxu0 0.0
    %4183 = vmatpush1.msra.mxu0 0.0
    %4184 = vmatprep.subr.mxu0 0.0
    %4185 = vmatpush1.msra.mxu0 0.0
    %4186 = vmatprep.subr.mxu0 0.0
    %4187 = vmatpush1.msra.mxu0 %v3727
    %4188 = vmatprep.subr.mxu0 0.0
    %4189 = vmatpush1.msra.mxu0 %v3726
    %4190 = vmatprep.subr.mxu0 0.0
    %4191 = vmatpush1.msra.mxu0 %v3725
    %4192 = vmatprep.subr.mxu0 0.0
    %4193 = vmatpush1.msra.mxu0 %v3724
    %4194 = vmatprep.subr.mxu0 0.0
    %4195 = vmatpush2.msra.mxu0 0.0
    %4196 = vmatprep.subr.mxu0 0.0
    %4197 = vmatpush2.msra.mxu0 0.0
    %4198 = vmatprep.subr.mxu0 0.0
    %4199 = vmatpush2.msra.mxu0 0.0
    %4200 = vmatprep.subr.mxu0 0.0
    %4201 = vmatpush2.msra.mxu0 0.0
    %4202 = vmatprep.subr.mxu0 0.0
    %4203 = vmatpush2.msra.mxu0 0.0
    %4204 = vmatprep.subr.mxu0 0.0
    %4205 = vmatpush2.msra.mxu0 0.0
    %4206 = vmatprep.subr.mxu0 0.0
    %4207 = vmatpush2.msra.mxu0 0.0
    %4208 = vmatprep.subr.mxu0 0.0
    %4209 = vmatpush2.msra.mxu0 0.0
    %4210 = vmatprep.subr.mxu0 0.0
    %4211 = vmatpush2.msra.mxu0 0.0
    %4212 = vmatprep.subr.mxu0 0.0
    %4213 = vmatpush2.msra.mxu0 0.0
    %4214 = vmatprep.subr.mxu0 0.0
    %4215 = vmatpush2.msra.mxu0 0.0
    %4216 = vmatprep.subr.mxu0 0.0
    %4217 = vmatpush2.msra.mxu0 0.0
    %4218 = vmatprep.subr.mxu0 0.0
    %4219 = vmatpush2.msra.mxu0 0.0
    %4220 = vmatprep.subr.mxu0 0.0
    %4221 = vmatpush2.msra.mxu0 0.0
    %4222 = vmatprep.subr.mxu0 0.0
    %4223 = vmatpush2.msra.mxu0 0.0
    %4224 = vmatprep.subr.mxu0 0.0
    %4225 = vmatpush2.msra.mxu0 0.0
    %4226 = vmatprep.mubr.f32.mxu0 0.0
    %4227 = vmatmul.mubr.f32.gmra.mxu0 %v3749
    %v4228 = vpop.f32.mrf.mxu0
    %v4229 = vadd.f32 0.0, %v4228
    %v4230 = vpop.f32.mrf.mxu0
    %4231 = vdwg.mxu0
    %v4233 = vcombine.high %v4229, %v4229
    %v4235 = vunpack.c.l.s4 1966171168
    %v4236 = vunpack.c.0.s8 %v4235
    %v4237 = vlaneseq
    %v4238 = vshrl.u32 %v4237, 7
    %v4239 = vsub.s32 %v4236, %v4238
    %v4240 = vrot.slane %v4229, %v4239
    %v4242 = vunpack.c.l.s4 1966171168
    %v4243 = vunpack.c.0.s8 %v4242
    %v4244 = vlaneseq
    %v4245 = vshrl.u32 %v4244, 7
    %v4246 = vsub.s32 %v4243, %v4245
    %v4247 = vrot.slane %v4233, %v4246
    %v4248 = vcombine.high %v4240, %v4240
    %v4249 = vcombine.high %v4247, %v4247
    %v4251 = vunpack.c.l.s4 1966171168
    %v4252 = vunpack.c.0.s8 %v4251
    %v4253 = vlaneseq
    %v4254 = vshrl.u32 %v4253, 7
    %v4255 = vsub.s32 %v4252, %v4254
    %v4256 = vrot.slane %v4240, %v4255
    %v4258 = vunpack.c.l.s4 1966171168
    %v4259 = vunpack.c.0.s8 %v4258
    %v4260 = vlaneseq
    %v4261 = vshrl.u32 %v4260, 7
    %v4262 = vsub.s32 %v4259, %v4261
    %v4263 = vrot.slane %v4247, %v4262
    %v4265 = vunpack.c.l.s4 1966171168
    %v4266 = vunpack.c.0.s8 %v4265
    %v4267 = vlaneseq
    %v4268 = vshrl.u32 %v4267, 7
    %v4269 = vsub.s32 %v4266, %v4268
    %v4270 = vrot.slane %v4248, %v4269
    %v4272 = vunpack.c.l.s4 1966171168
    %v4273 = vunpack.c.0.s8 %v4272
    %v4274 = vlaneseq
    %v4275 = vshrl.u32 %v4274, 7
    %v4276 = vsub.s32 %v4273, %v4275
    %v4277 = vrot.slane %v4249, %v4276
    %v4278 = vcombine.high %v4256, %v4256
    %v4279 = vcombine.high %v4263, %v4263
    %v4280 = vcombine.high %v4270, %v4270
    %v4281 = vcombine.high %v4277, %v4277
    %s4282 = scalar_lea.vmem %s9, 8
    %v4283 = vld [vmem:[%s4282] sm:$0xf]
    %v4284 = vlaneseq
    %v4285 = vshrl.u32 %v4284, 7
    %v4286 = vsub.s32 0, %v4285
    %v4287 = vrot.slane %v4283, %v4286
    %4289 = vbcast.lane.b32.xlu0 %v4287, 256
    %v4290 = vpop.permute.xlu0 %4289
    %v4291 = vlaneseq
    %v4292 = vshrl.u32 %v4291, 7
    %v4293 = vsub.s32 1, %v4292
    %v4294 = vrot.slane %v4283, %v4293
    %4296 = vbcast.lane.b32.xlu0 %v4294, 256
    %v4297 = vpop.permute.xlu0 %4296
    %v4298 = vlaneseq
    %v4299 = vshrl.u32 %v4298, 7
    %v4300 = vsub.s32 2, %v4299
    %v4301 = vrot.slane %v4283, %v4300
    %4303 = vbcast.lane.b32.xlu0 %v4301, 256
    %v4304 = vpop.permute.xlu0 %4303
    %v4305 = vlaneseq
    %v4306 = vshrl.u32 %v4305, 7
    %v4307 = vsub.s32 3, %v4306
    %v4308 = vrot.slane %v4283, %v4307
    %4310 = vbcast.lane.b32.xlu0 %v4308, 256
    %v4311 = vpop.permute.xlu0 %4310
    %v4312 = vlaneseq
    %v4313 = vshrl.u32 %v4312, 7
    %v4314 = vsub.s32 0, %v4313
    %v4315 = vrot.slane %v4256, %v4314
    %v4316 = vlaneseq
    %v4317 = vshrl.u32 %v4316, 7
    %v4318 = vsub.s32 0, %v4317
    %v4319 = vrot.slane %v4270, %v4318
    %v4320 = vlaneseq
    %v4321 = vshrl.u32 %v4320, 7
    %v4322 = vsub.s32 0, %v4321
    %v4323 = vrot.slane %v4278, %v4322
    %v4324 = vlaneseq
    %v4325 = vshrl.u32 %v4324, 7
    %v4326 = vsub.s32 0, %v4325
    %v4327 = vrot.slane %v4280, %v4326
    %v4328 = vlaneseq
    %v4329 = vshrl.u32 %v4328, 7
    %v4330 = vsub.s32 0, %v4329
    %v4331 = vrot.slane %v4263, %v4330
    %v4332 = vlaneseq
    %v4333 = vshrl.u32 %v4332, 7
    %v4334 = vsub.s32 0, %v4333
    %v4335 = vrot.slane %v4277, %v4334
    %v4336 = vlaneseq
    %v4337 = vshrl.u32 %v4336, 7
    %v4338 = vsub.s32 0, %v4337
    %v4339 = vrot.slane %v4279, %v4338
    %v4340 = vlaneseq
    %v4341 = vshrl.u32 %v4340, 7
    %v4342 = vsub.s32 0, %v4341
    %v4343 = vrot.slane %v4281, %v4342
    %v4352 = vmul.f32 %v4315, %v4290
    %v4353 = vmul.f32 %v4319, %v4290
    %v4354 = vmul.f32 %v4323, %v4297
    %v4355 = vmul.f32 %v4327, %v4297
    %v4356 = vmul.f32 %v4331, %v4304
    %v4357 = vmul.f32 %v4335, %v4304
    %v4358 = vmul.f32 %v4339, %v4311
    %v4359 = vmul.f32 %v4343, %v4311
    %v4360 = vadd.f32 %v4154, %v4352
    %v4361 = vadd.f32 %v4155, %v4353
    %v4362 = vadd.f32 %v4156, %v4354
    %v4363 = vadd.f32 %v4157, %v4355
    %v4364 = vadd.f32 %v4158, %v4356
    %v4365 = vadd.f32 %v4159, %v4357
    %v4366 = vadd.f32 %v4160, %v4358
    %v4367 = vadd.f32 %v4161, %v4359
    %v4368 = vld [vmem:[%s10] sm:$0xf]
    %v4369 = vlaneseq
    %v4370 = vshrl.u32 %v4369, 7
    %v4371 = vsub.s32 0, %v4370
    %v4372 = vrot.slane %v4368, %v4371
    %4374 = vbcast.lane.b32.xlu0 %v4372, 256
    %v4375 = vpop.permute.xlu0 %4374
    %v4376 = vlaneseq
    %v4377 = vshrl.u32 %v4376, 7
    %v4378 = vsub.s32 1, %v4377
    %v4379 = vrot.slane %v4368, %v4378
    %4381 = vbcast.lane.b32.xlu0 %v4379, 256
    %v4382 = vpop.permute.xlu0 %4381
    %v4383 = vlaneseq
    %v4384 = vshrl.u32 %v4383, 7
    %v4385 = vsub.s32 2, %v4384
    %v4386 = vrot.slane %v4368, %v4385
    %4388 = vbcast.lane.b32.xlu0 %v4386, 256
    %v4389 = vpop.permute.xlu0 %4388
    %v4390 = vlaneseq
    %v4391 = vshrl.u32 %v4390, 7
    %v4392 = vsub.s32 3, %v4391
    %v4393 = vrot.slane %v4368, %v4392
    %4395 = vbcast.lane.b32.xlu0 %v4393, 256
    %v4396 = vpop.permute.xlu0 %4395
    %v4397 = vadd.f32 %v4360, %v4375
    %v4398 = vadd.f32 %v4361, %v4375
    %v4399 = vadd.f32 %v4362, %v4382
    %v4400 = vadd.f32 %v4363, %v4382
    %v4401 = vadd.f32 %v4364, %v4389
    %v4402 = vadd.f32 %v4365, %v4389
    %v4403 = vadd.f32 %v4366, %v4396
    %v4404 = vadd.f32 %v4367, %v4396
    %v4405 = vld [vmem:[%s11] sm:$0xf]
    %v4406 = vlaneseq
    %v4407 = vshrl.u32 %v4406, 7
    %v4408 = vsub.s32 0, %v4407
    %v4409 = vrot.slane %v4405, %v4408
    %4411 = vbcast.lane.b32.xlu0 %v4409, 256
    %v4412 = vpop.permute.xlu0 %4411
    %v4413 = vlaneseq
    %v4414 = vshrl.u32 %v4413, 7
    %v4415 = vsub.s32 1, %v4414
    %v4416 = vrot.slane %v4405, %v4415
    %4418 = vbcast.lane.b32.xlu0 %v4416, 256
    %v4419 = vpop.permute.xlu0 %4418
    %v4420 = vlaneseq
    %v4421 = vshrl.u32 %v4420, 7
    %v4422 = vsub.s32 2, %v4421
    %v4423 = vrot.slane %v4405, %v4422
    %4425 = vbcast.lane.b32.xlu0 %v4423, 256
    %v4426 = vpop.permute.xlu0 %4425
    %v4427 = vlaneseq
    %v4428 = vshrl.u32 %v4427, 7
    %v4429 = vsub.s32 3, %v4428
    %v4430 = vrot.slane %v4405, %v4429
    %4432 = vbcast.lane.b32.xlu0 %v4430, 256
    %v4433 = vpop.permute.xlu0 %4432
    %v4434 = vmul.f32 %v4397, %v4412
    %v4435 = vmul.f32 %v4398, %v4412
    %v4436 = vmul.f32 %v4399, %v4419
    %v4437 = vmul.f32 %v4400, %v4419
    %v4438 = vmul.f32 %v4401, %v4426
    %v4439 = vmul.f32 %v4402, %v4426
    %v4440 = vmul.f32 %v4403, %v4433
    %v4441 = vmul.f32 %v4404, %v4433
    %v4442 = vld [vmem:[%s12] sm:$0xf]
    %v4443 = vlaneseq
    %v4444 = vshrl.u32 %v4443, 7
    %v4445 = vsub.s32 0, %v4444
    %v4446 = vrot.slane %v4442, %v4445
    %4448 = vbcast.lane.b32.xlu0 %v4446, 256
    %v4449 = vpop.permute.xlu0 %4448
    %v4450 = vlaneseq
    %v4451 = vshrl.u32 %v4450, 7
    %v4452 = vsub.s32 1, %v4451
    %v4453 = vrot.slane %v4442, %v4452
    %4455 = vbcast.lane.b32.xlu0 %v4453, 256
    %v4456 = vpop.permute.xlu0 %4455
    %v4457 = vlaneseq
    %v4458 = vshrl.u32 %v4457, 7
    %v4459 = vsub.s32 2, %v4458
    %v4460 = vrot.slane %v4442, %v4459
    %4462 = vbcast.lane.b32.xlu0 %v4460, 256
    %v4463 = vpop.permute.xlu0 %4462
    %v4464 = vlaneseq
    %v4465 = vshrl.u32 %v4464, 7
    %v4466 = vsub.s32 3, %v4465
    %v4467 = vrot.slane %v4442, %v4466
    %4469 = vbcast.lane.b32.xlu0 %v4467, 256
    %v4470 = vpop.permute.xlu0 %4469
    %v4471 = vadd.f32 %v4434, %v4449
    %v4472 = vadd.f32 %v4435, %v4449
    %v4473 = vadd.f32 %v4436, %v4456
    %v4474 = vadd.f32 %v4437, %v4456
    %v4475 = vadd.f32 %v4438, %v4463
    %v4476 = vadd.f32 %v4439, %v4463
    %v4477 = vadd.f32 %v4440, %v4470
    %v4478 = vadd.f32 %v4441, %v4470
    %v4479 = vmax.f32 %v4471, 0.0
    %v4480 = vmax.f32 %v4472, 0.0
    %v4481 = vmax.f32 %v4473, 0.0
    %v4482 = vmax.f32 %v4474, 0.0
    %v4483 = vmax.f32 %v4475, 0.0
    %v4484 = vmax.f32 %v4476, 0.0
    %v4485 = vmax.f32 %v4477, 0.0
    %v4486 = vmax.f32 %v4478, 0.0
    %v4487 = vmul.u32 %v3689, 2
    %vm4488 = vcmp.eq.s32.totalorder %v3684, %v4487
    %vm4489 = vcmp.eq.s32.totalorder %v3685, %v4487
    %vm4490 = vcmp.eq.s32.totalorder %v3686, %v4487
    %vm4491 = vcmp.eq.s32.totalorder %v3687, %v4487
    %v4492 = vsel %vm4488, 1, 0
    %v4493 = vsel %vm4489, 1, 0
    %v4494 = vsel %vm4490, 1, 0
    %v4495 = vsel %vm4491, 1, 0
    %v4496 = vcvt.s32.f32 %v4492
    %v4497 = vcvt.s32.f32 %v4493
    %v4498 = vcvt.s32.f32 %v4494
    %v4499 = vcvt.s32.f32 %v4495
    %v4500 = vadd.s32 %v4487, 1
    %vm4501 = vcmp.eq.s32.totalorder %v3684, %v4500
    %vm4502 = vcmp.eq.s32.totalorder %v3685, %v4500
    %vm4503 = vcmp.eq.s32.totalorder %v3686, %v4500
    %vm4504 = vcmp.eq.s32.totalorder %v3687, %v4500
    %v4505 = vsel %vm4501, 1, 0
    %v4506 = vsel %vm4502, 1, 0
    %v4507 = vsel %vm4503, 1, 0
    %v4508 = vsel %vm4504, 1, 0
    %v4509 = vcvt.s32.f32 %v4505
    %v4510 = vcvt.s32.f32 %v4506
    %v4511 = vcvt.s32.f32 %v4507
    %v4512 = vcvt.s32.f32 %v4508
    %v4514 = vsel %vm78, %v4479, 0
    %v4517 = vsel %vm78, %v4480, 0
    %v4520 = vsel %vm78, %v4481, 0
    %v4523 = vsel %vm78, %v4482, 0
    %v4526 = vsel %vm78, %v4483, 0
    %v4529 = vsel %vm78, %v4484, 0
    %v4532 = vsel %vm78, %v4485, 0
    %v4535 = vsel %vm78, %v4486, 0
    %4537 = vmatprep.subr.mxu0 0.0
    %4538 = vmatpush1.msra.mxu0 0.0
    %4539 = vmatprep.subr.mxu0 0.0
    %4540 = vmatpush1.msra.mxu0 0.0
    %4541 = vmatprep.subr.mxu0 0.0
    %4542 = vmatpush1.msra.mxu0 0.0
    %4543 = vmatprep.subr.mxu0 0.0
    %4544 = vmatpush1.msra.mxu0 0.0
    %4545 = vmatprep.subr.mxu0 0.0
    %4546 = vmatpush1.msra.mxu0 0.0
    %4547 = vmatprep.subr.mxu0 0.0
    %4548 = vmatpush1.msra.mxu0 0.0
    %4549 = vmatprep.subr.mxu0 0.0
    %4550 = vmatpush1.msra.mxu0 0.0
    %4551 = vmatprep.subr.mxu0 0.0
    %4552 = vmatpush1.msra.mxu0 0.0
    %4553 = vmatprep.subr.mxu0 0.0
    %4554 = vmatpush1.msra.mxu0 0.0
    %4555 = vmatprep.subr.mxu0 0.0
    %4556 = vmatpush1.msra.mxu0 0.0
    %4557 = vmatprep.subr.mxu0 0.0
    %4558 = vmatpush1.msra.mxu0 0.0
    %4559 = vmatprep.subr.mxu0 0.0
    %4560 = vmatpush1.msra.mxu0 0.0
    %4561 = vmatprep.subr.mxu0 0.0
    %4562 = vmatpush1.msra.mxu0 %v4499
    %4563 = vmatprep.subr.mxu0 0.0
    %4564 = vmatpush1.msra.mxu0 %v4498
    %4565 = vmatprep.subr.mxu0 0.0
    %4566 = vmatpush1.msra.mxu0 %v4497
    %4567 = vmatprep.subr.mxu0 0.0
    %4568 = vmatpush1.msra.mxu0 %v4496
    %4569 = vmatprep.subr.mxu0 0.0
    %4570 = vmatpush2.msra.mxu0 0.0
    %4571 = vmatprep.subr.mxu0 0.0
    %4572 = vmatpush2.msra.mxu0 0.0
    %4573 = vmatprep.subr.mxu0 0.0
    %4574 = vmatpush2.msra.mxu0 0.0
    %4575 = vmatprep.subr.mxu0 0.0
    %4576 = vmatpush2.msra.mxu0 0.0
    %4577 = vmatprep.subr.mxu0 0.0
    %4578 = vmatpush2.msra.mxu0 0.0
    %4579 = vmatprep.subr.mxu0 0.0
    %4580 = vmatpush2.msra.mxu0 0.0
    %4581 = vmatprep.subr.mxu0 0.0
    %4582 = vmatpush2.msra.mxu0 0.0
    %4583 = vmatprep.subr.mxu0 0.0
    %4584 = vmatpush2.msra.mxu0 0.0
    %4585 = vmatprep.subr.mxu0 0.0
    %4586 = vmatpush2.msra.mxu0 0.0
    %4587 = vmatprep.subr.mxu0 0.0
    %4588 = vmatpush2.msra.mxu0 0.0
    %4589 = vmatprep.subr.mxu0 0.0
    %4590 = vmatpush2.msra.mxu0 0.0
    %4591 = vmatprep.subr.mxu0 0.0
    %4592 = vmatpush2.msra.mxu0 0.0
    %4593 = vmatprep.subr.mxu0 0.0
    %4594 = vmatpush2.msra.mxu0 0.0
    %4595 = vmatprep.subr.mxu0 0.0
    %4596 = vmatpush2.msra.mxu0 0.0
    %4597 = vmatprep.subr.mxu0 0.0
    %4598 = vmatpush2.msra.mxu0 0.0
    %4599 = vmatprep.subr.mxu0 0.0
    %4600 = vmatpush2.msra.mxu0 0.0
    %4601 = vmatprep.mubr.f32.mxu0 0.0
    %4602 = vmatmul.mubr.f32.gmra.mxu0 %v4514
    %v4603 = vpop.f32.mrf.mxu0
    %v4604 = vadd.f32 0.0, %v4603
    %v4605 = vpop.f32.mrf.mxu0
    %4606 = vmatprep.mubr.f32.mxu0 0.0
    %4607 = vmatmul.mubr.f32.gmra.mxu0 %v4517
    %v4608 = vpop.f32.mrf.mxu0
    %v4609 = vadd.f32 0.0, %v4608
    %v4610 = vpop.f32.mrf.mxu0
    %4611 = vmatprep.mubr.f32.mxu0 0.0
    %4612 = vmatmul.mubr.f32.gmra.mxu0 %v4520
    %v4613 = vpop.f32.mrf.mxu0
    %v4614 = vadd.f32 0.0, %v4613
    %v4615 = vpop.f32.mrf.mxu0
    %4616 = vmatprep.mubr.f32.mxu0 0.0
    %4617 = vmatmul.mubr.f32.gmra.mxu0 %v4523
    %v4618 = vpop.f32.mrf.mxu0
    %v4619 = vadd.f32 0.0, %v4618
    %v4620 = vpop.f32.mrf.mxu0
    %4621 = vmatprep.mubr.f32.mxu0 0.0
    %4622 = vmatmul.mubr.f32.gmra.mxu0 %v4526
    %v4623 = vpop.f32.mrf.mxu0
    %v4624 = vadd.f32 0.0, %v4623
    %v4625 = vpop.f32.mrf.mxu0
    %4626 = vmatprep.mubr.f32.mxu0 0.0
    %4627 = vmatmul.mubr.f32.gmra.mxu0 %v4529
    %v4628 = vpop.f32.mrf.mxu0
    %v4629 = vadd.f32 0.0, %v4628
    %v4630 = vpop.f32.mrf.mxu0
    %4631 = vmatprep.mubr.f32.mxu0 0.0
    %4632 = vmatmul.mubr.f32.gmra.mxu0 %v4532
    %v4633 = vpop.f32.mrf.mxu0
    %v4634 = vadd.f32 0.0, %v4633
    %v4635 = vpop.f32.mrf.mxu0
    %4636 = vmatprep.mubr.f32.mxu0 0.0
    %4637 = vmatmul.mubr.f32.gmra.mxu0 %v4535
    %v4638 = vpop.f32.mrf.mxu0
    %v4639 = vadd.f32 0.0, %v4638
    %v4640 = vpop.f32.mrf.mxu0
    %4641 = vdwg.mxu0
    %4642 = vmatprep.subr.mxu0 0.0
    %4643 = vmatpush1.msra.mxu0 0.0
    %4644 = vmatprep.subr.mxu0 0.0
    %4645 = vmatpush1.msra.mxu0 0.0
    %4646 = vmatprep.subr.mxu0 0.0
    %4647 = vmatpush1.msra.mxu0 0.0
    %4648 = vmatprep.subr.mxu0 0.0
    %4649 = vmatpush1.msra.mxu0 0.0
    %4650 = vmatprep.subr.mxu0 0.0
    %4651 = vmatpush1.msra.mxu0 0.0
    %4652 = vmatprep.subr.mxu0 0.0
    %4653 = vmatpush1.msra.mxu0 0.0
    %4654 = vmatprep.subr.mxu0 0.0
    %4655 = vmatpush1.msra.mxu0 0.0
    %4656 = vmatprep.subr.mxu0 0.0
    %4657 = vmatpush1.msra.mxu0 0.0
    %4658 = vmatprep.subr.mxu0 0.0
    %4659 = vmatpush1.msra.mxu0 0.0
    %4660 = vmatprep.subr.mxu0 0.0
    %4661 = vmatpush1.msra.mxu0 0.0
    %4662 = vmatprep.subr.mxu0 0.0
    %4663 = vmatpush1.msra.mxu0 0.0
    %4664 = vmatprep.subr.mxu0 0.0
    %4665 = vmatpush1.msra.mxu0 0.0
    %4666 = vmatprep.subr.mxu0 0.0
    %4667 = vmatpush1.msra.mxu0 %v4512
    %4668 = vmatprep.subr.mxu0 0.0
    %4669 = vmatpush1.msra.mxu0 %v4511
    %4670 = vmatprep.subr.mxu0 0.0
    %4671 = vmatpush1.msra.mxu0 %v4510
    %4672 = vmatprep.subr.mxu0 0.0
    %4673 = vmatpush1.msra.mxu0 %v4509
    %4674 = vmatprep.subr.mxu0 0.0
    %4675 = vmatpush2.msra.mxu0 0.0
    %4676 = vmatprep.subr.mxu0 0.0
    %4677 = vmatpush2.msra.mxu0 0.0
    %4678 = vmatprep.subr.mxu0 0.0
    %4679 = vmatpush2.msra.mxu0 0.0
    %4680 = vmatprep.subr.mxu0 0.0
    %4681 = vmatpush2.msra.mxu0 0.0
    %4682 = vmatprep.subr.mxu0 0.0
    %4683 = vmatpush2.msra.mxu0 0.0
    %4684 = vmatprep.subr.mxu0 0.0
    %4685 = vmatpush2.msra.mxu0 0.0
    %4686 = vmatprep.subr.mxu0 0.0
    %4687 = vmatpush2.msra.mxu0 0.0
    %4688 = vmatprep.subr.mxu0 0.0
    %4689 = vmatpush2.msra.mxu0 0.0
    %4690 = vmatprep.subr.mxu0 0.0
    %4691 = vmatpush2.msra.mxu0 0.0
    %4692 = vmatprep.subr.mxu0 0.0
    %4693 = vmatpush2.msra.mxu0 0.0
    %4694 = vmatprep.subr.mxu0 0.0
    %4695 = vmatpush2.msra.mxu0 0.0
    %4696 = vmatprep.subr.mxu0 0.0
    %4697 = vmatpush2.msra.mxu0 0.0
    %4698 = vmatprep.subr.mxu0 0.0
    %4699 = vmatpush2.msra.mxu0 0.0
    %4700 = vmatprep.subr.mxu0 0.0
    %4701 = vmatpush2.msra.mxu0 0.0
    %4702 = vmatprep.subr.mxu0 0.0
    %4703 = vmatpush2.msra.mxu0 0.0
    %4704 = vmatprep.subr.mxu0 0.0
    %4705 = vmatpush2.msra.mxu0 0.0
    %4706 = vmatprep.mubr.f32.mxu0 0.0
    %4707 = vmatmul.mubr.f32.gmra.mxu0 %v4514
    %v4708 = vpop.f32.mrf.mxu0
    %v4709 = vadd.f32 0.0, %v4708
    %v4710 = vpop.f32.mrf.mxu0
    %4711 = vmatprep.mubr.f32.mxu0 0.0
    %4712 = vmatmul.mubr.f32.gmra.mxu0 %v4517
    %v4713 = vpop.f32.mrf.mxu0
    %v4714 = vadd.f32 0.0, %v4713
    %v4715 = vpop.f32.mrf.mxu0
    %4716 = vmatprep.mubr.f32.mxu0 0.0
    %4717 = vmatmul.mubr.f32.gmra.mxu0 %v4520
    %v4718 = vpop.f32.mrf.mxu0
    %v4719 = vadd.f32 0.0, %v4718
    %v4720 = vpop.f32.mrf.mxu0
    %4721 = vmatprep.mubr.f32.mxu0 0.0
    %4722 = vmatmul.mubr.f32.gmra.mxu0 %v4523
    %v4723 = vpop.f32.mrf.mxu0
    %v4724 = vadd.f32 0.0, %v4723
    %v4725 = vpop.f32.mrf.mxu0
    %4726 = vmatprep.mubr.f32.mxu0 0.0
    %4727 = vmatmul.mubr.f32.gmra.mxu0 %v4526
    %v4728 = vpop.f32.mrf.mxu0
    %v4729 = vadd.f32 0.0, %v4728
    %v4730 = vpop.f32.mrf.mxu0
    %4731 = vmatprep.mubr.f32.mxu0 0.0
    %4732 = vmatmul.mubr.f32.gmra.mxu0 %v4529
    %v4733 = vpop.f32.mrf.mxu0
    %v4734 = vadd.f32 0.0, %v4733
    %v4735 = vpop.f32.mrf.mxu0
    %4736 = vmatprep.mubr.f32.mxu0 0.0
    %4737 = vmatmul.mubr.f32.gmra.mxu0 %v4532
    %v4738 = vpop.f32.mrf.mxu0
    %v4739 = vadd.f32 0.0, %v4738
    %v4740 = vpop.f32.mrf.mxu0
    %4741 = vmatprep.mubr.f32.mxu0 0.0
    %4742 = vmatmul.mubr.f32.gmra.mxu0 %v4535
    %v4743 = vpop.f32.mrf.mxu0
    %v4744 = vadd.f32 0.0, %v4743
    %v4745 = vpop.f32.mrf.mxu0
    %4746 = vdwg.mxu0
    %v4747 = vmax.f32 %v4604, %v4709
    %v4748 = vmax.f32 %v4609, %v4714
    %v4749 = vmax.f32 %v4614, %v4719
    %v4750 = vmax.f32 %v4619, %v4724
    %v4751 = vmax.f32 %v4624, %v4729
    %v4752 = vmax.f32 %v4629, %v4734
    %v4753 = vmax.f32 %v4634, %v4739
    %v4754 = vmax.f32 %v4639, %v4744
    %v4756 = vsel %vm1515, %v4747, 0
    %v4759 = vsel %vm1515, %v4748, 0
    %v4762 = vsel %vm1515, %v4749, 0
    %v4765 = vsel %vm1515, %v4750, 0
    %v4768 = vsel %vm1515, %v4751, 0
    %v4771 = vsel %vm1515, %v4752, 0
    %v4774 = vsel %vm1515, %v4753, 0
    %v4777 = vsel %vm1515, %v4754, 0
    %4779 = vmatprep.subr.mxu0 0.0
    %4780 = vmatpush1.msra.mxu0 0.0
    %4781 = vmatprep.subr.mxu0 0.0
    %4782 = vmatpush1.msra.mxu0 0.0
    %4783 = vmatprep.subr.mxu0 0.0
    %4784 = vmatpush1.msra.mxu0 0.0
    %4785 = vmatprep.subr.mxu0 0.0
    %4786 = vmatpush1.msra.mxu0 0.0
    %4787 = vmatprep.subr.mxu0 0.0
    %4788 = vmatpush1.msra.mxu0 0.0
    %4789 = vmatprep.subr.mxu0 0.0
    %4790 = vmatpush1.msra.mxu0 0.0
    %4791 = vmatprep.subr.mxu0 0.0
    %4792 = vmatpush1.msra.mxu0 0.0
    %4793 = vmatprep.subr.mxu0 0.0
    %4794 = vmatpush1.msra.mxu0 0.0
    %4795 = vmatprep.subr.mxu0 0.0
    %4796 = vmatpush1.msra.mxu0 0.0
    %4797 = vmatprep.subr.mxu0 0.0
    %4798 = vmatpush1.msra.mxu0 0.0
    %4799 = vmatprep.subr.mxu0 0.0
    %4800 = vmatpush1.msra.mxu0 0.0
    %4801 = vmatprep.subr.mxu0 0.0
    %4802 = vmatpush1.msra.mxu0 0.0
    %4803 = vmatprep.subr.mxu0 0.0
    %4804 = vmatpush1.msra.mxu0 0.0
    %4805 = vmatprep.subr.mxu0 0.0
    %4806 = vmatpush1.msra.mxu0 0.0
    %4807 = vmatprep.subr.mxu0 0.0
    %4808 = vmatpush1.msra.mxu0 %v3700
    %4809 = vmatprep.subr.mxu0 0.0
    %4810 = vmatpush1.msra.mxu0 %v3699
    %4811 = vmatprep.subr.mxu0 0.0
    %4812 = vmatpush2.msra.mxu0 0.0
    %4813 = vmatprep.subr.mxu0 0.0
    %4814 = vmatpush2.msra.mxu0 0.0
    %4815 = vmatprep.subr.mxu0 0.0
    %4816 = vmatpush2.msra.mxu0 0.0
    %4817 = vmatprep.subr.mxu0 0.0
    %4818 = vmatpush2.msra.mxu0 0.0
    %4819 = vmatprep.subr.mxu0 0.0
    %4820 = vmatpush2.msra.mxu0 0.0
    %4821 = vmatprep.subr.mxu0 0.0
    %4822 = vmatpush2.msra.mxu0 0.0
    %4823 = vmatprep.subr.mxu0 0.0
    %4824 = vmatpush2.msra.mxu0 0.0
    %4825 = vmatprep.subr.mxu0 0.0
    %4826 = vmatpush2.msra.mxu0 0.0
    %4827 = vmatprep.subr.mxu0 0.0
    %4828 = vmatpush2.msra.mxu0 0.0
    %4829 = vmatprep.subr.mxu0 0.0
    %4830 = vmatpush2.msra.mxu0 0.0
    %4831 = vmatprep.subr.mxu0 0.0
    %4832 = vmatpush2.msra.mxu0 0.0
    %4833 = vmatprep.subr.mxu0 0.0
    %4834 = vmatpush2.msra.mxu0 0.0
    %4835 = vmatprep.subr.mxu0 0.0
    %4836 = vmatpush2.msra.mxu0 0.0
    %4837 = vmatprep.subr.mxu0 0.0
    %4838 = vmatpush2.msra.mxu0 0.0
    %4839 = vmatprep.subr.mxu0 0.0
    %4840 = vmatpush2.msra.mxu0 0.0
    %4841 = vmatprep.subr.mxu0 0.0
    %4842 = vmatpush2.msra.mxu0 0.0
    %4843 = vmatprep.mubr.f32.mxu0 0.0
    %4844 = vmatmul.mubr.f32.gmra.mxu0 %v4756
    %v4845 = vpop.f32.mrf.mxu0
    %v4846 = vadd.f32 0.0, %v4845
    %v4847 = vpop.f32.mrf.mxu0
    %4848 = vmatprep.mubr.f32.mxu0 0.0
    %4849 = vmatmul.mubr.f32.gmra.mxu0 %v4759
    %v4850 = vpop.f32.mrf.mxu0
    %v4851 = vadd.f32 0.0, %v4850
    %v4852 = vpop.f32.mrf.mxu0
    %4853 = vmatprep.mubr.f32.mxu0 0.0
    %4854 = vmatmul.mubr.f32.gmra.mxu0 %v4762
    %v4855 = vpop.f32.mrf.mxu0
    %v4856 = vadd.f32 0.0, %v4855
    %v4857 = vpop.f32.mrf.mxu0
    %4858 = vmatprep.mubr.f32.mxu0 0.0
    %4859 = vmatmul.mubr.f32.gmra.mxu0 %v4765
    %v4860 = vpop.f32.mrf.mxu0
    %v4861 = vadd.f32 0.0, %v4860
    %v4862 = vpop.f32.mrf.mxu0
    %4863 = vmatprep.mubr.f32.mxu0 0.0
    %4864 = vmatmul.mubr.f32.gmra.mxu0 %v4768
    %v4865 = vpop.f32.mrf.mxu0
    %v4866 = vadd.f32 0.0, %v4865
    %v4867 = vpop.f32.mrf.mxu0
    %4868 = vmatprep.mubr.f32.mxu0 0.0
    %4869 = vmatmul.mubr.f32.gmra.mxu0 %v4771
    %v4870 = vpop.f32.mrf.mxu0
    %v4871 = vadd.f32 0.0, %v4870
    %v4872 = vpop.f32.mrf.mxu0
    %4873 = vmatprep.mubr.f32.mxu0 0.0
    %4874 = vmatmul.mubr.f32.gmra.mxu0 %v4774
    %v4875 = vpop.f32.mrf.mxu0
    %v4876 = vadd.f32 0.0, %v4875
    %v4877 = vpop.f32.mrf.mxu0
    %4878 = vmatprep.mubr.f32.mxu0 0.0
    %4879 = vmatmul.mubr.f32.gmra.mxu0 %v4777
    %v4880 = vpop.f32.mrf.mxu0
    %v4881 = vadd.f32 0.0, %v4880
    %v4882 = vpop.f32.mrf.mxu0
    %4883 = vdwg.mxu0
    %v4884 = vld [vmem:[%s13] sm:$0xff]
    %v4885 = vld [vmem:[%s13 + $0x8] sm:$0xff]
    %v4886 = vld [vmem:[%s13 + $0x10] sm:$0xff]
    %v4887 = vld [vmem:[%s13 + $0x18] sm:$0xff]
    %v4888 = vcombine.high %v4846, 0.0
    %v4890 = vunpack.c.l.s4 1983009808
    %v4891 = vunpack.c.0.s8 %v4890
    %v4892 = vlaneseq
    %v4893 = vshrl.u32 %v4892, 7
    %v4894 = vsub.s32 %v4891, %v4893
    %v4895 = vrot.slane %v4846, %v4894
    %v4897 = vunpack.c.l.s4 1983009808
    %v4898 = vunpack.c.0.s8 %v4897
    %v4899 = vlaneseq
    %v4900 = vshrl.u32 %v4899, 7
    %v4901 = vsub.s32 %v4898, %v4900
    %v4902 = vrot.slane %v4888, %v4901
    %v4903 = vcombine.high %v4851, 0.0
    %v4905 = vunpack.c.l.s4 1983009808
    %v4906 = vunpack.c.0.s8 %v4905
    %v4907 = vlaneseq
    %v4908 = vshrl.u32 %v4907, 7
    %v4909 = vsub.s32 %v4906, %v4908
    %v4910 = vrot.slane %v4851, %v4909
    %v4912 = vunpack.c.l.s4 1983009808
    %v4913 = vunpack.c.0.s8 %v4912
    %v4914 = vlaneseq
    %v4915 = vshrl.u32 %v4914, 7
    %v4916 = vsub.s32 %v4913, %v4915
    %v4917 = vrot.slane %v4903, %v4916
    %v4918 = vcombine.low %v4895, %v4910
    %v4919 = vcombine.high %v4895, %v4910
    %v4921 = vunpack.c.l.s4 1934713408
    %v4922 = vunpack.c.0.s8 %v4921
    %v4923 = vlaneseq
    %v4924 = vshrl.u32 %v4923, 7
    %v4925 = vsub.s32 %v4922, %v4924
    %v4926 = vrot.slane %v4918, %v4925
    %v4928 = vunpack.c.l.s4 1934713408
    %v4929 = vunpack.c.0.s8 %v4928
    %v4930 = vlaneseq
    %v4931 = vshrl.u32 %v4930, 7
    %v4932 = vsub.s32 %v4929, %v4931
    %v4933 = vrot.slane %v4919, %v4932
    %v4934 = vcombine.low %v4902, %v4917
    %v4935 = vcombine.high %v4902, %v4917
    %v4937 = vunpack.c.l.s4 1934713408
    %v4938 = vunpack.c.0.s8 %v4937
    %v4939 = vlaneseq
    %v4940 = vshrl.u32 %v4939, 7
    %v4941 = vsub.s32 %v4938, %v4940
    %v4942 = vrot.slane %v4934, %v4941
    %v4944 = vunpack.c.l.s4 1934713408
    %v4945 = vunpack.c.0.s8 %v4944
    %v4946 = vlaneseq
    %v4947 = vshrl.u32 %v4946, 7
    %v4948 = vsub.s32 %v4945, %v4947
    %v4949 = vrot.slane %v4935, %v4948
    %v4950 = vcombine.high %v4926, 0.0
    %v4951 = vcombine.high %v4933, 0.0
    %v4952 = vcombine.high %v4942, 0.0
    %v4953 = vcombine.high %v4949, 0.0
    %v4954 = vcombine.high %v4856, 0.0
    %v4956 = vunpack.c.l.s4 1983009808
    %v4957 = vunpack.c.0.s8 %v4956
    %v4958 = vlaneseq
    %v4959 = vshrl.u32 %v4958, 7
    %v4960 = vsub.s32 %v4957, %v4959
    %v4961 = vrot.slane %v4856, %v4960
    %v4963 = vunpack.c.l.s4 1983009808
    %v4964 = vunpack.c.0.s8 %v4963
    %v4965 = vlaneseq
    %v4966 = vshrl.u32 %v4965, 7
    %v4967 = vsub.s32 %v4964, %v4966
    %v4968 = vrot.slane %v4954, %v4967
    %v4969 = vcombine.high %v4861, 0.0
    %v4971 = vunpack.c.l.s4 1983009808
    %v4972 = vunpack.c.0.s8 %v4971
    %v4973 = vlaneseq
    %v4974 = vshrl.u32 %v4973, 7
    %v4975 = vsub.s32 %v4972, %v4974
    %v4976 = vrot.slane %v4861, %v4975
    %v4978 = vunpack.c.l.s4 1983009808
    %v4979 = vunpack.c.0.s8 %v4978
    %v4980 = vlaneseq
    %v4981 = vshrl.u32 %v4980, 7
    %v4982 = vsub.s32 %v4979, %v4981
    %v4983 = vrot.slane %v4969, %v4982
    %v4984 = vcombine.low %v4961, %v4976
    %v4985 = vcombine.high %v4961, %v4976
    %v4987 = vunpack.c.l.s4 1934713408
    %v4988 = vunpack.c.0.s8 %v4987
    %v4989 = vlaneseq
    %v4990 = vshrl.u32 %v4989, 7
    %v4991 = vsub.s32 %v4988, %v4990
    %v4992 = vrot.slane %v4984, %v4991
    %v4994 = vunpack.c.l.s4 1934713408
    %v4995 = vunpack.c.0.s8 %v4994
    %v4996 = vlaneseq
    %v4997 = vshrl.u32 %v4996, 7
    %v4998 = vsub.s32 %v4995, %v4997
    %v4999 = vrot.slane %v4985, %v4998
    %v5000 = vcombine.low %v4968, %v4983
    %v5001 = vcombine.high %v4968, %v4983
    %v5003 = vunpack.c.l.s4 1934713408
    %v5004 = vunpack.c.0.s8 %v5003
    %v5005 = vlaneseq
    %v5006 = vshrl.u32 %v5005, 7
    %v5007 = vsub.s32 %v5004, %v5006
    %v5008 = vrot.slane %v5000, %v5007
    %v5010 = vunpack.c.l.s4 1934713408
    %v5011 = vunpack.c.0.s8 %v5010
    %v5012 = vlaneseq
    %v5013 = vshrl.u32 %v5012, 7
    %v5014 = vsub.s32 %v5011, %v5013
    %v5015 = vrot.slane %v5001, %v5014
    %v5016 = vcombine.high %v4992, 0.0
    %v5017 = vcombine.high %v4999, 0.0
    %v5018 = vcombine.high %v5008, 0.0
    %v5019 = vcombine.high %v5015, 0.0
    %v5020 = vcombine.high %v4866, 0.0
    %v5022 = vunpack.c.l.s4 1983009808
    %v5023 = vunpack.c.0.s8 %v5022
    %v5024 = vlaneseq
    %v5025 = vshrl.u32 %v5024, 7
    %v5026 = vsub.s32 %v5023, %v5025
    %v5027 = vrot.slane %v4866, %v5026
    %v5029 = vunpack.c.l.s4 1983009808
    %v5030 = vunpack.c.0.s8 %v5029
    %v5031 = vlaneseq
    %v5032 = vshrl.u32 %v5031, 7
    %v5033 = vsub.s32 %v5030, %v5032
    %v5034 = vrot.slane %v5020, %v5033
    %v5035 = vcombine.high %v4871, 0.0
    %v5037 = vunpack.c.l.s4 1983009808
    %v5038 = vunpack.c.0.s8 %v5037
    %v5039 = vlaneseq
    %v5040 = vshrl.u32 %v5039, 7
    %v5041 = vsub.s32 %v5038, %v5040
    %v5042 = vrot.slane %v4871, %v5041
    %v5044 = vunpack.c.l.s4 1983009808
    %v5045 = vunpack.c.0.s8 %v5044
    %v5046 = vlaneseq
    %v5047 = vshrl.u32 %v5046, 7
    %v5048 = vsub.s32 %v5045, %v5047
    %v5049 = vrot.slane %v5035, %v5048
    %v5050 = vcombine.low %v5027, %v5042
    %v5051 = vcombine.high %v5027, %v5042
    %v5053 = vunpack.c.l.s4 1934713408
    %v5054 = vunpack.c.0.s8 %v5053
    %v5055 = vlaneseq
    %v5056 = vshrl.u32 %v5055, 7
    %v5057 = vsub.s32 %v5054, %v5056
    %v5058 = vrot.slane %v5050, %v5057
    %v5060 = vunpack.c.l.s4 1934713408
    %v5061 = vunpack.c.0.s8 %v5060
    %v5062 = vlaneseq
    %v5063 = vshrl.u32 %v5062, 7
    %v5064 = vsub.s32 %v5061, %v5063
    %v5065 = vrot.slane %v5051, %v5064
    %v5066 = vcombine.low %v5034, %v5049
    %v5067 = vcombine.high %v5034, %v5049
    %v5069 = vunpack.c.l.s4 1934713408
    %v5070 = vunpack.c.0.s8 %v5069
    %v5071 = vlaneseq
    %v5072 = vshrl.u32 %v5071, 7
    %v5073 = vsub.s32 %v5070, %v5072
    %v5074 = vrot.slane %v5066, %v5073
    %v5076 = vunpack.c.l.s4 1934713408
    %v5077 = vunpack.c.0.s8 %v5076
    %v5078 = vlaneseq
    %v5079 = vshrl.u32 %v5078, 7
    %v5080 = vsub.s32 %v5077, %v5079
    %v5081 = vrot.slane %v5067, %v5080
    %v5082 = vcombine.high %v5058, 0.0
    %v5083 = vcombine.high %v5065, 0.0
    %v5084 = vcombine.high %v5074, 0.0
    %v5085 = vcombine.high %v5081, 0.0
    %v5086 = vcombine.high %v4876, 0.0
    %v5088 = vunpack.c.l.s4 1983009808
    %v5089 = vunpack.c.0.s8 %v5088
    %v5090 = vlaneseq
    %v5091 = vshrl.u32 %v5090, 7
    %v5092 = vsub.s32 %v5089, %v5091
    %v5093 = vrot.slane %v4876, %v5092
    %v5095 = vunpack.c.l.s4 1983009808
    %v5096 = vunpack.c.0.s8 %v5095
    %v5097 = vlaneseq
    %v5098 = vshrl.u32 %v5097, 7
    %v5099 = vsub.s32 %v5096, %v5098
    %v5100 = vrot.slane %v5086, %v5099
    %v5101 = vcombine.high %v4881, 0.0
    %v5103 = vunpack.c.l.s4 1983009808
    %v5104 = vunpack.c.0.s8 %v5103
    %v5105 = vlaneseq
    %v5106 = vshrl.u32 %v5105, 7
    %v5107 = vsub.s32 %v5104, %v5106
    %v5108 = vrot.slane %v4881, %v5107
    %v5110 = vunpack.c.l.s4 1983009808
    %v5111 = vunpack.c.0.s8 %v5110
    %v5112 = vlaneseq
    %v5113 = vshrl.u32 %v5112, 7
    %v5114 = vsub.s32 %v5111, %v5113
    %v5115 = vrot.slane %v5101, %v5114
    %v5116 = vcombine.low %v5093, %v5108
    %v5117 = vcombine.high %v5093, %v5108
    %v5119 = vunpack.c.l.s4 1934713408
    %v5120 = vunpack.c.0.s8 %v5119
    %v5121 = vlaneseq
    %v5122 = vshrl.u32 %v5121, 7
    %v5123 = vsub.s32 %v5120, %v5122
    %v5124 = vrot.slane %v5116, %v5123
    %v5126 = vunpack.c.l.s4 1934713408
    %v5127 = vunpack.c.0.s8 %v5126
    %v5128 = vlaneseq
    %v5129 = vshrl.u32 %v5128, 7
    %v5130 = vsub.s32 %v5127, %v5129
    %v5131 = vrot.slane %v5117, %v5130
    %v5132 = vcombine.low %v5100, %v5115
    %v5133 = vcombine.high %v5100, %v5115
    %v5135 = vunpack.c.l.s4 1934713408
    %v5136 = vunpack.c.0.s8 %v5135
    %v5137 = vlaneseq
    %v5138 = vshrl.u32 %v5137, 7
    %v5139 = vsub.s32 %v5136, %v5138
    %v5140 = vrot.slane %v5132, %v5139
    %v5142 = vunpack.c.l.s4 1934713408
    %v5143 = vunpack.c.0.s8 %v5142
    %v5144 = vlaneseq
    %v5145 = vshrl.u32 %v5144, 7
    %v5146 = vsub.s32 %v5143, %v5145
    %v5147 = vrot.slane %v5133, %v5146
    %v5148 = vcombine.high %v5124, 0.0
    %v5149 = vcombine.high %v5131, 0.0
    %v5150 = vcombine.high %v5140, 0.0
    %v5151 = vcombine.high %v5147, 0.0
    %v5152 = vcombine.low %v4926, %v4933
    %v5154 = vunpack.c.l.s4 1983009808
    %v5155 = vunpack.c.0.s8 %v5154
    %v5156 = vlaneseq
    %v5157 = vshrl.u32 %v5156, 7
    %v5158 = vsub.s32 %v5155, %v5157
    %v5159 = vrot.slane %v5152, %v5158
    %v5160 = vcombine.low %v4950, %v4951
    %v5162 = vunpack.c.l.s4 1983009808
    %v5163 = vunpack.c.0.s8 %v5162
    %v5164 = vlaneseq
    %v5165 = vshrl.u32 %v5164, 7
    %v5166 = vsub.s32 %v5163, %v5165
    %v5167 = vrot.slane %v5160, %v5166
    %v5168 = vcombine.low %v4942, %v4949
    %v5170 = vunpack.c.l.s4 1983009808
    %v5171 = vunpack.c.0.s8 %v5170
    %v5172 = vlaneseq
    %v5173 = vshrl.u32 %v5172, 7
    %v5174 = vsub.s32 %v5171, %v5173
    %v5175 = vrot.slane %v5168, %v5174
    %v5176 = vcombine.low %v4952, %v4953
    %v5178 = vunpack.c.l.s4 1983009808
    %v5179 = vunpack.c.0.s8 %v5178
    %v5180 = vlaneseq
    %v5181 = vshrl.u32 %v5180, 7
    %v5182 = vsub.s32 %v5179, %v5181
    %v5183 = vrot.slane %v5176, %v5182
    %v5184 = vcombine.low %v5159, %v5167
    %v5186 = vunpack.c.l.s4 1934713408
    %v5187 = vunpack.c.0.s8 %v5186
    %v5188 = vlaneseq
    %v5189 = vshrl.u32 %v5188, 7
    %v5190 = vsub.s32 %v5187, %v5189
    %v5191 = vrot.slane %v5184, %v5190
    %v5192 = vcombine.low %v5175, %v5183
    %v5194 = vunpack.c.l.s4 1934713408
    %v5195 = vunpack.c.0.s8 %v5194
    %v5196 = vlaneseq
    %v5197 = vshrl.u32 %v5196, 7
    %v5198 = vsub.s32 %v5195, %v5197
    %v5199 = vrot.slane %v5192, %v5198
    %v5200 = vcombine.low %v5191, %v5199
    %v5201 = vcombine.high %v5191, %v5199
    %v5202 = vcombine.low %v4992, %v4999
    %v5204 = vunpack.c.l.s4 1983009808
    %v5205 = vunpack.c.0.s8 %v5204
    %v5206 = vlaneseq
    %v5207 = vshrl.u32 %v5206, 7
    %v5208 = vsub.s32 %v5205, %v5207
    %v5209 = vrot.slane %v5202, %v5208
    %v5210 = vcombine.low %v5016, %v5017
    %v5212 = vunpack.c.l.s4 1983009808
    %v5213 = vunpack.c.0.s8 %v5212
    %v5214 = vlaneseq
    %v5215 = vshrl.u32 %v5214, 7
    %v5216 = vsub.s32 %v5213, %v5215
    %v5217 = vrot.slane %v5210, %v5216
    %v5218 = vcombine.low %v5008, %v5015
    %v5220 = vunpack.c.l.s4 1983009808
    %v5221 = vunpack.c.0.s8 %v5220
    %v5222 = vlaneseq
    %v5223 = vshrl.u32 %v5222, 7
    %v5224 = vsub.s32 %v5221, %v5223
    %v5225 = vrot.slane %v5218, %v5224
    %v5226 = vcombine.low %v5018, %v5019
    %v5228 = vunpack.c.l.s4 1983009808
    %v5229 = vunpack.c.0.s8 %v5228
    %v5230 = vlaneseq
    %v5231 = vshrl.u32 %v5230, 7
    %v5232 = vsub.s32 %v5229, %v5231
    %v5233 = vrot.slane %v5226, %v5232
    %v5234 = vcombine.low %v5209, %v5217
    %v5236 = vunpack.c.l.s4 1934713408
    %v5237 = vunpack.c.0.s8 %v5236
    %v5238 = vlaneseq
    %v5239 = vshrl.u32 %v5238, 7
    %v5240 = vsub.s32 %v5237, %v5239
    %v5241 = vrot.slane %v5234, %v5240
    %v5242 = vcombine.low %v5225, %v5233
    %v5244 = vunpack.c.l.s4 1934713408
    %v5245 = vunpack.c.0.s8 %v5244
    %v5246 = vlaneseq
    %v5247 = vshrl.u32 %v5246, 7
    %v5248 = vsub.s32 %v5245, %v5247
    %v5249 = vrot.slane %v5242, %v5248
    %v5250 = vcombine.low %v5241, %v5249
    %v5251 = vcombine.high %v5241, %v5249
    %v5252 = vcombine.low %v5058, %v5065
    %v5254 = vunpack.c.l.s4 1983009808
    %v5255 = vunpack.c.0.s8 %v5254
    %v5256 = vlaneseq
    %v5257 = vshrl.u32 %v5256, 7
    %v5258 = vsub.s32 %v5255, %v5257
    %v5259 = vrot.slane %v5252, %v5258
    %v5260 = vcombine.low %v5082, %v5083
    %v5262 = vunpack.c.l.s4 1983009808
    %v5263 = vunpack.c.0.s8 %v5262
    %v5264 = vlaneseq
    %v5265 = vshrl.u32 %v5264, 7
    %v5266 = vsub.s32 %v5263, %v5265
    %v5267 = vrot.slane %v5260, %v5266
    %v5268 = vcombine.low %v5074, %v5081
    %v5270 = vunpack.c.l.s4 1983009808
    %v5271 = vunpack.c.0.s8 %v5270
    %v5272 = vlaneseq
    %v5273 = vshrl.u32 %v5272, 7
    %v5274 = vsub.s32 %v5271, %v5273
    %v5275 = vrot.slane %v5268, %v5274
    %v5276 = vcombine.low %v5084, %v5085
    %v5278 = vunpack.c.l.s4 1983009808
    %v5279 = vunpack.c.0.s8 %v5278
    %v5280 = vlaneseq
    %v5281 = vshrl.u32 %v5280, 7
    %v5282 = vsub.s32 %v5279, %v5281
    %v5283 = vrot.slane %v5276, %v5282
    %v5284 = vcombine.low %v5259, %v5267
    %v5286 = vunpack.c.l.s4 1934713408
    %v5287 = vunpack.c.0.s8 %v5286
    %v5288 = vlaneseq
    %v5289 = vshrl.u32 %v5288, 7
    %v5290 = vsub.s32 %v5287, %v5289
    %v5291 = vrot.slane %v5284, %v5290
    %v5292 = vcombine.low %v5275, %v5283
    %v5294 = vunpack.c.l.s4 1934713408
    %v5295 = vunpack.c.0.s8 %v5294
    %v5296 = vlaneseq
    %v5297 = vshrl.u32 %v5296, 7
    %v5298 = vsub.s32 %v5295, %v5297
    %v5299 = vrot.slane %v5292, %v5298
    %v5300 = vcombine.low %v5291, %v5299
    %v5301 = vcombine.high %v5291, %v5299
    %v5302 = vcombine.low %v5124, %v5131
    %v5304 = vunpack.c.l.s4 1983009808
    %v5305 = vunpack.c.0.s8 %v5304
    %v5306 = vlaneseq
    %v5307 = vshrl.u32 %v5306, 7
    %v5308 = vsub.s32 %v5305, %v5307
    %v5309 = vrot.slane %v5302, %v5308
    %v5310 = vcombine.low %v5148, %v5149
    %v5312 = vunpack.c.l.s4 1983009808
    %v5313 = vunpack.c.0.s8 %v5312
    %v5314 = vlaneseq
    %v5315 = vshrl.u32 %v5314, 7
    %v5316 = vsub.s32 %v5313, %v5315
    %v5317 = vrot.slane %v5310, %v5316
    %v5318 = vcombine.low %v5140, %v5147
    %v5320 = vunpack.c.l.s4 1983009808
    %v5321 = vunpack.c.0.s8 %v5320
    %v5322 = vlaneseq
    %v5323 = vshrl.u32 %v5322, 7
    %v5324 = vsub.s32 %v5321, %v5323
    %v5325 = vrot.slane %v5318, %v5324
    %v5326 = vcombine.low %v5150, %v5151
    %v5328 = vunpack.c.l.s4 1983009808
    %v5329 = vunpack.c.0.s8 %v5328
    %v5330 = vlaneseq
    %v5331 = vshrl.u32 %v5330, 7
    %v5332 = vsub.s32 %v5329, %v5331
    %v5333 = vrot.slane %v5326, %v5332
    %v5334 = vcombine.low %v5309, %v5317
    %v5336 = vunpack.c.l.s4 1934713408
    %v5337 = vunpack.c.0.s8 %v5336
    %v5338 = vlaneseq
    %v5339 = vshrl.u32 %v5338, 7
    %v5340 = vsub.s32 %v5337, %v5339
    %v5341 = vrot.slane %v5334, %v5340
    %v5342 = vcombine.low %v5325, %v5333
    %v5344 = vunpack.c.l.s4 1934713408
    %v5345 = vunpack.c.0.s8 %v5344
    %v5346 = vlaneseq
    %v5347 = vshrl.u32 %v5346, 7
    %v5348 = vsub.s32 %v5345, %v5347
    %v5349 = vrot.slane %v5342, %v5348
    %v5350 = vcombine.low %v5341, %v5349
    %v5351 = vcombine.high %v5341, %v5349
    %5356 = vrot.lane.b32.xlu0 %v5201, 16
    %v5357 = vpop.permute.xlu0 %5356
    %5358 = vrot.lane.b32.xlu0 %v5251, 16
    %v5359 = vpop.permute.xlu0 %5358
    %5360 = vrot.lane.b32.xlu0 %v5301, 16
    %v5361 = vpop.permute.xlu0 %5360
    %5362 = vrot.lane.b32.xlu0 %v5351, 16
    %v5363 = vpop.permute.xlu0 %5362
    %v5368 = vsel %vm1515, %v5200, %v5357
    %v5369 = vsel %vm1515, %v5250, %v5359
    %v5370 = vsel %vm1515, %v5300, %v5361
    %v5371 = vsel %vm1515, %v5350, %v5363
    %v5372 = vcombine.low 0.0, 0.0
    %v5374 = vunpack.c.l.s4 1983009808
    %v5375 = vunpack.c.0.s8 %v5374
    %v5376 = vlaneseq
    %v5377 = vshrl.u32 %v5376, 7
    %v5378 = vsub.s32 %v5375, %v5377
    %v5379 = vrot.slane %v5372, %v5378
    %v5380 = vcombine.low %v5379, %v5379
    %v5382 = vunpack.c.l.s4 1934713408
    %v5383 = vunpack.c.0.s8 %v5382
    %v5384 = vlaneseq
    %v5385 = vshrl.u32 %v5384, 7
    %v5386 = vsub.s32 %v5383, %v5385
    %v5387 = vrot.slane %v5380, %v5386
    %v5388 = vcombine.low %v5387, %v5387
    %v5389 = vcombine.high %v5387, %v5387
    %5391 = vrot.lane.b32.xlu0 %v5389, 16
    %v5392 = vpop.permute.xlu0 %5391
    %v5394 = vsel %vm1515, %v5388, %v5392
    %v5396 = vsel %vm155, %v4884, 0
    %5398 = vmatprep.subr.mxu0 0.0
    %5399 = vmatpush1.msra.mxu0 0.0
    %5400 = vmatprep.subr.mxu0 0.0
    %5401 = vmatpush1.msra.mxu0 0.0
    %5402 = vmatprep.subr.mxu0 0.0
    %5403 = vmatpush1.msra.mxu0 0.0
    %5404 = vmatprep.subr.mxu0 0.0
    %5405 = vmatpush1.msra.mxu0 0.0
    %5406 = vmatprep.subr.mxu0 0.0
    %5407 = vmatpush1.msra.mxu0 0.0
    %5408 = vmatprep.subr.mxu0 0.0
    %5409 = vmatpush1.msra.mxu0 0.0
    %5410 = vmatprep.subr.mxu0 0.0
    %5411 = vmatpush1.msra.mxu0 0.0
    %5412 = vmatprep.subr.mxu0 0.0
    %5413 = vmatpush1.msra.mxu0 0.0
    %5414 = vmatprep.subr.mxu0 0.0
    %5415 = vmatpush1.msra.mxu0 0.0
    %5416 = vmatprep.subr.mxu0 0.0
    %5417 = vmatpush1.msra.mxu0 0.0
    %5418 = vmatprep.subr.mxu0 0.0
    %5419 = vmatpush1.msra.mxu0 0.0
    %5420 = vmatprep.subr.mxu0 0.0
    %5421 = vmatpush1.msra.mxu0 0.0
    %5422 = vmatprep.subr.mxu0 0.0
    %5423 = vmatpush1.msra.mxu0 0.0
    %5424 = vmatprep.subr.mxu0 0.0
    %5425 = vmatpush1.msra.mxu0 0.0
    %5426 = vmatprep.subr.mxu0 0.0
    %5427 = vmatpush1.msra.mxu0 0.0
    %5428 = vmatprep.subr.mxu0 0.0
    %5429 = vmatpush1.msra.mxu0 %v5368
    %5430 = vmatprep.subr.mxu0 0.0
    %5431 = vmatpush2.msra.mxu0 0.0
    %5432 = vmatprep.subr.mxu0 0.0
    %5433 = vmatpush2.msra.mxu0 0.0
    %5434 = vmatprep.subr.mxu0 0.0
    %5435 = vmatpush2.msra.mxu0 0.0
    %5436 = vmatprep.subr.mxu0 0.0
    %5437 = vmatpush2.msra.mxu0 0.0
    %5438 = vmatprep.subr.mxu0 0.0
    %5439 = vmatpush2.msra.mxu0 0.0
    %5440 = vmatprep.subr.mxu0 0.0
    %5441 = vmatpush2.msra.mxu0 0.0
    %5442 = vmatprep.subr.mxu0 0.0
    %5443 = vmatpush2.msra.mxu0 0.0
    %5444 = vmatprep.subr.mxu0 0.0
    %5445 = vmatpush2.msra.mxu0 0.0
    %5446 = vmatprep.subr.mxu0 0.0
    %5447 = vmatpush2.msra.mxu0 0.0
    %5448 = vmatprep.subr.mxu0 0.0
    %5449 = vmatpush2.msra.mxu0 0.0
    %5450 = vmatprep.subr.mxu0 0.0
    %5451 = vmatpush2.msra.mxu0 0.0
    %5452 = vmatprep.subr.mxu0 0.0
    %5453 = vmatpush2.msra.mxu0 0.0
    %5454 = vmatprep.subr.mxu0 0.0
    %5455 = vmatpush2.msra.mxu0 0.0
    %5456 = vmatprep.subr.mxu0 0.0
    %5457 = vmatpush2.msra.mxu0 0.0
    %5458 = vmatprep.subr.mxu0 0.0
    %5459 = vmatpush2.msra.mxu0 0.0
    %5460 = vmatprep.subr.mxu0 0.0
    %5461 = vmatpush2.msra.mxu0 0.0
    %5462 = vmatprep.mubr.f32.mxu0 0.0
    %5463 = vmatmul.mubr.f32.gmra.mxu0 %v5396
    %v5464 = vpop.f32.mrf.mxu0
    %v5465 = vadd.f32 %v5394, %v5464
    %v5466 = vpop.f32.mrf.mxu0
    %5467 = vdwg.mxu0
    %v5469 = vsel %vm155, %v4885, 0
    %5471 = vmatprep.subr.mxu0 0.0
    %5472 = vmatpush1.msra.mxu0 0.0
    %5473 = vmatprep.subr.mxu0 0.0
    %5474 = vmatpush1.msra.mxu0 0.0
    %5475 = vmatprep.subr.mxu0 0.0
    %5476 = vmatpush1.msra.mxu0 0.0
    %5477 = vmatprep.subr.mxu0 0.0
    %5478 = vmatpush1.msra.mxu0 0.0
    %5479 = vmatprep.subr.mxu0 0.0
    %5480 = vmatpush1.msra.mxu0 0.0
    %5481 = vmatprep.subr.mxu0 0.0
    %5482 = vmatpush1.msra.mxu0 0.0
    %5483 = vmatprep.subr.mxu0 0.0
    %5484 = vmatpush1.msra.mxu0 0.0
    %5485 = vmatprep.subr.mxu0 0.0
    %5486 = vmatpush1.msra.mxu0 0.0
    %5487 = vmatprep.subr.mxu0 0.0
    %5488 = vmatpush1.msra.mxu0 0.0
    %5489 = vmatprep.subr.mxu0 0.0
    %5490 = vmatpush1.msra.mxu0 0.0
    %5491 = vmatprep.subr.mxu0 0.0
    %5492 = vmatpush1.msra.mxu0 0.0
    %5493 = vmatprep.subr.mxu0 0.0
    %5494 = vmatpush1.msra.mxu0 0.0
    %5495 = vmatprep.subr.mxu0 0.0
    %5496 = vmatpush1.msra.mxu0 0.0
    %5497 = vmatprep.subr.mxu0 0.0
    %5498 = vmatpush1.msra.mxu0 0.0
    %5499 = vmatprep.subr.mxu0 0.0
    %5500 = vmatpush1.msra.mxu0 0.0
    %5501 = vmatprep.subr.mxu0 0.0
    %5502 = vmatpush1.msra.mxu0 %v5369
    %5503 = vmatprep.subr.mxu0 0.0
    %5504 = vmatpush2.msra.mxu0 0.0
    %5505 = vmatprep.subr.mxu0 0.0
    %5506 = vmatpush2.msra.mxu0 0.0
    %5507 = vmatprep.subr.mxu0 0.0
    %5508 = vmatpush2.msra.mxu0 0.0
    %5509 = vmatprep.subr.mxu0 0.0
    %5510 = vmatpush2.msra.mxu0 0.0
    %5511 = vmatprep.subr.mxu0 0.0
    %5512 = vmatpush2.msra.mxu0 0.0
    %5513 = vmatprep.subr.mxu0 0.0
    %5514 = vmatpush2.msra.mxu0 0.0
    %5515 = vmatprep.subr.mxu0 0.0
    %5516 = vmatpush2.msra.mxu0 0.0
    %5517 = vmatprep.subr.mxu0 0.0
    %5518 = vmatpush2.msra.mxu0 0.0
    %5519 = vmatprep.subr.mxu0 0.0
    %5520 = vmatpush2.msra.mxu0 0.0
    %5521 = vmatprep.subr.mxu0 0.0
    %5522 = vmatpush2.msra.mxu0 0.0
    %5523 = vmatprep.subr.mxu0 0.0
    %5524 = vmatpush2.msra.mxu0 0.0
    %5525 = vmatprep.subr.mxu0 0.0
    %5526 = vmatpush2.msra.mxu0 0.0
    %5527 = vmatprep.subr.mxu0 0.0
    %5528 = vmatpush2.msra.mxu0 0.0
    %5529 = vmatprep.subr.mxu0 0.0
    %5530 = vmatpush2.msra.mxu0 0.0
    %5531 = vmatprep.subr.mxu0 0.0
    %5532 = vmatpush2.msra.mxu0 0.0
    %5533 = vmatprep.subr.mxu0 0.0
    %5534 = vmatpush2.msra.mxu0 0.0
    %5535 = vmatprep.mubr.f32.mxu0 0.0
    %5536 = vmatmul.mubr.f32.gmra.mxu0 %v5469
    %v5537 = vpop.f32.mrf.mxu0
    %v5538 = vadd.f32 %v5394, %v5537
    %v5539 = vpop.f32.mrf.mxu0
    %5540 = vdwg.mxu0
    %v5542 = vsel %vm155, %v4886, 0
    %5544 = vmatprep.subr.mxu0 0.0
    %5545 = vmatpush1.msra.mxu0 0.0
    %5546 = vmatprep.subr.mxu0 0.0
    %5547 = vmatpush1.msra.mxu0 0.0
    %5548 = vmatprep.subr.mxu0 0.0
    %5549 = vmatpush1.msra.mxu0 0.0
    %5550 = vmatprep.subr.mxu0 0.0
    %5551 = vmatpush1.msra.mxu0 0.0
    %5552 = vmatprep.subr.mxu0 0.0
    %5553 = vmatpush1.msra.mxu0 0.0
    %5554 = vmatprep.subr.mxu0 0.0
    %5555 = vmatpush1.msra.mxu0 0.0
    %5556 = vmatprep.subr.mxu0 0.0
    %5557 = vmatpush1.msra.mxu0 0.0
    %5558 = vmatprep.subr.mxu0 0.0
    %5559 = vmatpush1.msra.mxu0 0.0
    %5560 = vmatprep.subr.mxu0 0.0
    %5561 = vmatpush1.msra.mxu0 0.0
    %5562 = vmatprep.subr.mxu0 0.0
    %5563 = vmatpush1.msra.mxu0 0.0
    %5564 = vmatprep.subr.mxu0 0.0
    %5565 = vmatpush1.msra.mxu0 0.0
    %5566 = vmatprep.subr.mxu0 0.0
    %5567 = vmatpush1.msra.mxu0 0.0
    %5568 = vmatprep.subr.mxu0 0.0
    %5569 = vmatpush1.msra.mxu0 0.0
    %5570 = vmatprep.subr.mxu0 0.0
    %5571 = vmatpush1.msra.mxu0 0.0
    %5572 = vmatprep.subr.mxu0 0.0
    %5573 = vmatpush1.msra.mxu0 0.0
    %5574 = vmatprep.subr.mxu0 0.0
    %5575 = vmatpush1.msra.mxu0 %v5370
    %5576 = vmatprep.subr.mxu0 0.0
    %5577 = vmatpush2.msra.mxu0 0.0
    %5578 = vmatprep.subr.mxu0 0.0
    %5579 = vmatpush2.msra.mxu0 0.0
    %5580 = vmatprep.subr.mxu0 0.0
    %5581 = vmatpush2.msra.mxu0 0.0
    %5582 = vmatprep.subr.mxu0 0.0
    %5583 = vmatpush2.msra.mxu0 0.0
    %5584 = vmatprep.subr.mxu0 0.0
    %5585 = vmatpush2.msra.mxu0 0.0
    %5586 = vmatprep.subr.mxu0 0.0
    %5587 = vmatpush2.msra.mxu0 0.0
    %5588 = vmatprep.subr.mxu0 0.0
    %5589 = vmatpush2.msra.mxu0 0.0
    %5590 = vmatprep.subr.mxu0 0.0
    %5591 = vmatpush2.msra.mxu0 0.0
    %5592 = vmatprep.subr.mxu0 0.0
    %5593 = vmatpush2.msra.mxu0 0.0
    %5594 = vmatprep.subr.mxu0 0.0
    %5595 = vmatpush2.msra.mxu0 0.0
    %5596 = vmatprep.subr.mxu0 0.0
    %5597 = vmatpush2.msra.mxu0 0.0
    %5598 = vmatprep.subr.mxu0 0.0
    %5599 = vmatpush2.msra.mxu0 0.0
    %5600 = vmatprep.subr.mxu0 0.0
    %5601 = vmatpush2.msra.mxu0 0.0
    %5602 = vmatprep.subr.mxu0 0.0
    %5603 = vmatpush2.msra.mxu0 0.0
    %5604 = vmatprep.subr.mxu0 0.0
    %5605 = vmatpush2.msra.mxu0 0.0
    %5606 = vmatprep.subr.mxu0 0.0
    %5607 = vmatpush2.msra.mxu0 0.0
    %5608 = vmatprep.mubr.f32.mxu0 0.0
    %5609 = vmatmul.mubr.f32.gmra.mxu0 %v5542
    %v5610 = vpop.f32.mrf.mxu0
    %v5611 = vadd.f32 %v5394, %v5610
    %v5612 = vpop.f32.mrf.mxu0
    %5613 = vdwg.mxu0
    %v5615 = vsel %vm155, %v4887, 0
    %5617 = vmatprep.subr.mxu0 0.0
    %5618 = vmatpush1.msra.mxu0 0.0
    %5619 = vmatprep.subr.mxu0 0.0
    %5620 = vmatpush1.msra.mxu0 0.0
    %5621 = vmatprep.subr.mxu0 0.0
    %5622 = vmatpush1.msra.mxu0 0.0
    %5623 = vmatprep.subr.mxu0 0.0
    %5624 = vmatpush1.msra.mxu0 0.0
    %5625 = vmatprep.subr.mxu0 0.0
    %5626 = vmatpush1.msra.mxu0 0.0
    %5627 = vmatprep.subr.mxu0 0.0
    %5628 = vmatpush1.msra.mxu0 0.0
    %5629 = vmatprep.subr.mxu0 0.0
    %5630 = vmatpush1.msra.mxu0 0.0
    %5631 = vmatprep.subr.mxu0 0.0
    %5632 = vmatpush1.msra.mxu0 0.0
    %5633 = vmatprep.subr.mxu0 0.0
    %5634 = vmatpush1.msra.mxu0 0.0
    %5635 = vmatprep.subr.mxu0 0.0
    %5636 = vmatpush1.msra.mxu0 0.0
    %5637 = vmatprep.subr.mxu0 0.0
    %5638 = vmatpush1.msra.mxu0 0.0
    %5639 = vmatprep.subr.mxu0 0.0
    %5640 = vmatpush1.msra.mxu0 0.0
    %5641 = vmatprep.subr.mxu0 0.0
    %5642 = vmatpush1.msra.mxu0 0.0
    %5643 = vmatprep.subr.mxu0 0.0
    %5644 = vmatpush1.msra.mxu0 0.0
    %5645 = vmatprep.subr.mxu0 0.0
    %5646 = vmatpush1.msra.mxu0 0.0
    %5647 = vmatprep.subr.mxu0 0.0
    %5648 = vmatpush1.msra.mxu0 %v5371
    %5649 = vmatprep.subr.mxu0 0.0
    %5650 = vmatpush2.msra.mxu0 0.0
    %5651 = vmatprep.subr.mxu0 0.0
    %5652 = vmatpush2.msra.mxu0 0.0
    %5653 = vmatprep.subr.mxu0 0.0
    %5654 = vmatpush2.msra.mxu0 0.0
    %5655 = vmatprep.subr.mxu0 0.0
    %5656 = vmatpush2.msra.mxu0 0.0
    %5657 = vmatprep.subr.mxu0 0.0
    %5658 = vmatpush2.msra.mxu0 0.0
    %5659 = vmatprep.subr.mxu0 0.0
    %5660 = vmatpush2.msra.mxu0 0.0
    %5661 = vmatprep.subr.mxu0 0.0
    %5662 = vmatpush2.msra.mxu0 0.0
    %5663 = vmatprep.subr.mxu0 0.0
    %5664 = vmatpush2.msra.mxu0 0.0
    %5665 = vmatprep.subr.mxu0 0.0
    %5666 = vmatpush2.msra.mxu0 0.0
    %5667 = vmatprep.subr.mxu0 0.0
    %5668 = vmatpush2.msra.mxu0 0.0
    %5669 = vmatprep.subr.mxu0 0.0
    %5670 = vmatpush2.msra.mxu0 0.0
    %5671 = vmatprep.subr.mxu0 0.0
    %5672 = vmatpush2.msra.mxu0 0.0
    %5673 = vmatprep.subr.mxu0 0.0
    %5674 = vmatpush2.msra.mxu0 0.0
    %5675 = vmatprep.subr.mxu0 0.0
    %5676 = vmatpush2.msra.mxu0 0.0
    %5677 = vmatprep.subr.mxu0 0.0
    %5678 = vmatpush2.msra.mxu0 0.0
    %5679 = vmatprep.subr.mxu0 0.0
    %5680 = vmatpush2.msra.mxu0 0.0
    %5681 = vmatprep.mubr.f32.mxu0 0.0
    %5682 = vmatmul.mubr.f32.gmra.mxu0 %v5615
    %v5683 = vpop.f32.mrf.mxu0
    %v5684 = vadd.f32 %v5394, %v5683
    %v5685 = vpop.f32.mrf.mxu0
    %5686 = vdwg.mxu0
    %5691 = vrot.lane.b32.xlu0 %v5465, 112
    %v5692 = vpop.permute.xlu0 %5691
    %5693 = vrot.lane.b32.xlu0 %v5538, 112
    %v5694 = vpop.permute.xlu0 %5693
    %5695 = vrot.lane.b32.xlu0 %v5611, 112
    %v5696 = vpop.permute.xlu0 %5695
    %5697 = vrot.lane.b32.xlu0 %v5684, 112
    %v5698 = vpop.permute.xlu0 %5697
    %v5703 = vcombine.high %v5465, 0.0
    %v5705 = vunpack.c.l.s4 1983009808
    %v5706 = vunpack.c.0.s8 %v5705
    %v5707 = vlaneseq
    %v5708 = vshrl.u32 %v5707, 7
    %v5709 = vsub.s32 %v5706, %v5708
    %v5710 = vrot.slane %v5465, %v5709
    %v5712 = vunpack.c.l.s4 1983009808
    %v5713 = vunpack.c.0.s8 %v5712
    %v5714 = vlaneseq
    %v5715 = vshrl.u32 %v5714, 7
    %v5716 = vsub.s32 %v5713, %v5715
    %v5717 = vrot.slane %v5703, %v5716
    %v5718 = vcombine.high %v5692, 0.0
    %v5720 = vunpack.c.l.s4 1983009808
    %v5721 = vunpack.c.0.s8 %v5720
    %v5722 = vlaneseq
    %v5723 = vshrl.u32 %v5722, 7
    %v5724 = vsub.s32 %v5721, %v5723
    %v5725 = vrot.slane %v5692, %v5724
    %v5727 = vunpack.c.l.s4 1983009808
    %v5728 = vunpack.c.0.s8 %v5727
    %v5729 = vlaneseq
    %v5730 = vshrl.u32 %v5729, 7
    %v5731 = vsub.s32 %v5728, %v5730
    %v5732 = vrot.slane %v5718, %v5731
    %v5733 = vcombine.low %v5710, %v5725
    %v5734 = vcombine.high %v5710, %v5725
    %v5736 = vunpack.c.l.s4 1934713408
    %v5737 = vunpack.c.0.s8 %v5736
    %v5738 = vlaneseq
    %v5739 = vshrl.u32 %v5738, 7
    %v5740 = vsub.s32 %v5737, %v5739
    %v5741 = vrot.slane %v5733, %v5740
    %v5743 = vunpack.c.l.s4 1934713408
    %v5744 = vunpack.c.0.s8 %v5743
    %v5745 = vlaneseq
    %v5746 = vshrl.u32 %v5745, 7
    %v5747 = vsub.s32 %v5744, %v5746
    %v5748 = vrot.slane %v5734, %v5747
    %v5749 = vcombine.low %v5717, %v5732
    %v5750 = vcombine.high %v5717, %v5732
    %v5752 = vunpack.c.l.s4 1934713408
    %v5753 = vunpack.c.0.s8 %v5752
    %v5754 = vlaneseq
    %v5755 = vshrl.u32 %v5754, 7
    %v5756 = vsub.s32 %v5753, %v5755
    %v5757 = vrot.slane %v5749, %v5756
    %v5759 = vunpack.c.l.s4 1934713408
    %v5760 = vunpack.c.0.s8 %v5759
    %v5761 = vlaneseq
    %v5762 = vshrl.u32 %v5761, 7
    %v5763 = vsub.s32 %v5760, %v5762
    %v5764 = vrot.slane %v5750, %v5763
    %v5765 = vcombine.high %v5741, 0.0
    %v5766 = vcombine.high %v5748, 0.0
    %v5767 = vcombine.high %v5757, 0.0
    %v5768 = vcombine.high %v5764, 0.0
    %v5769 = vcombine.high %v5538, 0.0
    %v5771 = vunpack.c.l.s4 1983009808
    %v5772 = vunpack.c.0.s8 %v5771
    %v5773 = vlaneseq
    %v5774 = vshrl.u32 %v5773, 7
    %v5775 = vsub.s32 %v5772, %v5774
    %v5776 = vrot.slane %v5538, %v5775
    %v5778 = vunpack.c.l.s4 1983009808
    %v5779 = vunpack.c.0.s8 %v5778
    %v5780 = vlaneseq
    %v5781 = vshrl.u32 %v5780, 7
    %v5782 = vsub.s32 %v5779, %v5781
    %v5783 = vrot.slane %v5769, %v5782
    %v5784 = vcombine.high %v5694, 0.0
    %v5786 = vunpack.c.l.s4 1983009808
    %v5787 = vunpack.c.0.s8 %v5786
    %v5788 = vlaneseq
    %v5789 = vshrl.u32 %v5788, 7
    %v5790 = vsub.s32 %v5787, %v5789
    %v5791 = vrot.slane %v5694, %v5790
    %v5793 = vunpack.c.l.s4 1983009808
    %v5794 = vunpack.c.0.s8 %v5793
    %v5795 = vlaneseq
    %v5796 = vshrl.u32 %v5795, 7
    %v5797 = vsub.s32 %v5794, %v5796
    %v5798 = vrot.slane %v5784, %v5797
    %v5799 = vcombine.low %v5776, %v5791
    %v5800 = vcombine.high %v5776, %v5791
    %v5802 = vunpack.c.l.s4 1934713408
    %v5803 = vunpack.c.0.s8 %v5802
    %v5804 = vlaneseq
    %v5805 = vshrl.u32 %v5804, 7
    %v5806 = vsub.s32 %v5803, %v5805
    %v5807 = vrot.slane %v5799, %v5806
    %v5809 = vunpack.c.l.s4 1934713408
    %v5810 = vunpack.c.0.s8 %v5809
    %v5811 = vlaneseq
    %v5812 = vshrl.u32 %v5811, 7
    %v5813 = vsub.s32 %v5810, %v5812
    %v5814 = vrot.slane %v5800, %v5813
    %v5815 = vcombine.low %v5783, %v5798
    %v5816 = vcombine.high %v5783, %v5798
    %v5818 = vunpack.c.l.s4 1934713408
    %v5819 = vunpack.c.0.s8 %v5818
    %v5820 = vlaneseq
    %v5821 = vshrl.u32 %v5820, 7
    %v5822 = vsub.s32 %v5819, %v5821
    %v5823 = vrot.slane %v5815, %v5822
    %v5825 = vunpack.c.l.s4 1934713408
    %v5826 = vunpack.c.0.s8 %v5825
    %v5827 = vlaneseq
    %v5828 = vshrl.u32 %v5827, 7
    %v5829 = vsub.s32 %v5826, %v5828
    %v5830 = vrot.slane %v5816, %v5829
    %v5831 = vcombine.high %v5807, 0.0
    %v5832 = vcombine.high %v5814, 0.0
    %v5833 = vcombine.high %v5823, 0.0
    %v5834 = vcombine.high %v5830, 0.0
    %v5835 = vcombine.high %v5611, 0.0
    %v5837 = vunpack.c.l.s4 1983009808
    %v5838 = vunpack.c.0.s8 %v5837
    %v5839 = vlaneseq
    %v5840 = vshrl.u32 %v5839, 7
    %v5841 = vsub.s32 %v5838, %v5840
    %v5842 = vrot.slane %v5611, %v5841
    %v5844 = vunpack.c.l.s4 1983009808
    %v5845 = vunpack.c.0.s8 %v5844
    %v5846 = vlaneseq
    %v5847 = vshrl.u32 %v5846, 7
    %v5848 = vsub.s32 %v5845, %v5847
    %v5849 = vrot.slane %v5835, %v5848
    %v5850 = vcombine.high %v5696, 0.0
    %v5852 = vunpack.c.l.s4 1983009808
    %v5853 = vunpack.c.0.s8 %v5852
    %v5854 = vlaneseq
    %v5855 = vshrl.u32 %v5854, 7
    %v5856 = vsub.s32 %v5853, %v5855
    %v5857 = vrot.slane %v5696, %v5856
    %v5859 = vunpack.c.l.s4 1983009808
    %v5860 = vunpack.c.0.s8 %v5859
    %v5861 = vlaneseq
    %v5862 = vshrl.u32 %v5861, 7
    %v5863 = vsub.s32 %v5860, %v5862
    %v5864 = vrot.slane %v5850, %v5863
    %v5865 = vcombine.low %v5842, %v5857
    %v5866 = vcombine.high %v5842, %v5857
    %v5868 = vunpack.c.l.s4 1934713408
    %v5869 = vunpack.c.0.s8 %v5868
    %v5870 = vlaneseq
    %v5871 = vshrl.u32 %v5870, 7
    %v5872 = vsub.s32 %v5869, %v5871
    %v5873 = vrot.slane %v5865, %v5872
    %v5875 = vunpack.c.l.s4 1934713408
    %v5876 = vunpack.c.0.s8 %v5875
    %v5877 = vlaneseq
    %v5878 = vshrl.u32 %v5877, 7
    %v5879 = vsub.s32 %v5876, %v5878
    %v5880 = vrot.slane %v5866, %v5879
    %v5881 = vcombine.low %v5849, %v5864
    %v5882 = vcombine.high %v5849, %v5864
    %v5884 = vunpack.c.l.s4 1934713408
    %v5885 = vunpack.c.0.s8 %v5884
    %v5886 = vlaneseq
    %v5887 = vshrl.u32 %v5886, 7
    %v5888 = vsub.s32 %v5885, %v5887
    %v5889 = vrot.slane %v5881, %v5888
    %v5891 = vunpack.c.l.s4 1934713408
    %v5892 = vunpack.c.0.s8 %v5891
    %v5893 = vlaneseq
    %v5894 = vshrl.u32 %v5893, 7
    %v5895 = vsub.s32 %v5892, %v5894
    %v5896 = vrot.slane %v5882, %v5895
    %v5897 = vcombine.high %v5873, 0.0
    %v5898 = vcombine.high %v5880, 0.0
    %v5899 = vcombine.high %v5889, 0.0
    %v5900 = vcombine.high %v5896, 0.0
    %v5901 = vcombine.high %v5684, 0.0
    %v5903 = vunpack.c.l.s4 1983009808
    %v5904 = vunpack.c.0.s8 %v5903
    %v5905 = vlaneseq
    %v5906 = vshrl.u32 %v5905, 7
    %v5907 = vsub.s32 %v5904, %v5906
    %v5908 = vrot.slane %v5684, %v5907
    %v5910 = vunpack.c.l.s4 1983009808
    %v5911 = vunpack.c.0.s8 %v5910
    %v5912 = vlaneseq
    %v5913 = vshrl.u32 %v5912, 7
    %v5914 = vsub.s32 %v5911, %v5913
    %v5915 = vrot.slane %v5901, %v5914
    %v5916 = vcombine.high %v5698, 0.0
    %v5918 = vunpack.c.l.s4 1983009808
    %v5919 = vunpack.c.0.s8 %v5918
    %v5920 = vlaneseq
    %v5921 = vshrl.u32 %v5920, 7
    %v5922 = vsub.s32 %v5919, %v5921
    %v5923 = vrot.slane %v5698, %v5922
    %v5925 = vunpack.c.l.s4 1983009808
    %v5926 = vunpack.c.0.s8 %v5925
    %v5927 = vlaneseq
    %v5928 = vshrl.u32 %v5927, 7
    %v5929 = vsub.s32 %v5926, %v5928
    %v5930 = vrot.slane %v5916, %v5929
    %v5931 = vcombine.low %v5908, %v5923
    %v5932 = vcombine.high %v5908, %v5923
    %v5934 = vunpack.c.l.s4 1934713408
    %v5935 = vunpack.c.0.s8 %v5934
    %v5936 = vlaneseq
    %v5937 = vshrl.u32 %v5936, 7
    %v5938 = vsub.s32 %v5935, %v5937
    %v5939 = vrot.slane %v5931, %v5938
    %v5941 = vunpack.c.l.s4 1934713408
    %v5942 = vunpack.c.0.s8 %v5941
    %v5943 = vlaneseq
    %v5944 = vshrl.u32 %v5943, 7
    %v5945 = vsub.s32 %v5942, %v5944
    %v5946 = vrot.slane %v5932, %v5945
    %v5947 = vcombine.low %v5915, %v5930
    %v5948 = vcombine.high %v5915, %v5930
    %v5950 = vunpack.c.l.s4 1934713408
    %v5951 = vunpack.c.0.s8 %v5950
    %v5952 = vlaneseq
    %v5953 = vshrl.u32 %v5952, 7
    %v5954 = vsub.s32 %v5951, %v5953
    %v5955 = vrot.slane %v5947, %v5954
    %v5957 = vunpack.c.l.s4 1934713408
    %v5958 = vunpack.c.0.s8 %v5957
    %v5959 = vlaneseq
    %v5960 = vshrl.u32 %v5959, 7
    %v5961 = vsub.s32 %v5958, %v5960
    %v5962 = vrot.slane %v5948, %v5961
    %v5963 = vcombine.high %v5939, 0.0
    %v5964 = vcombine.high %v5946, 0.0
    %v5965 = vcombine.high %v5955, 0.0
    %v5966 = vcombine.high %v5962, 0.0
    %v5967 = vcombine.low %v5741, %v5748
    %v5969 = vunpack.c.l.s4 1983009808
    %v5970 = vunpack.c.0.s8 %v5969
    %v5971 = vlaneseq
    %v5972 = vshrl.u32 %v5971, 7
    %v5973 = vsub.s32 %v5970, %v5972
    %v5974 = vrot.slane %v5967, %v5973
    %v5975 = vcombine.low %v5765, %v5766
    %v5977 = vunpack.c.l.s4 1983009808
    %v5978 = vunpack.c.0.s8 %v5977
    %v5979 = vlaneseq
    %v5980 = vshrl.u32 %v5979, 7
    %v5981 = vsub.s32 %v5978, %v5980
    %v5982 = vrot.slane %v5975, %v5981
    %v5983 = vcombine.low %v5757, %v5764
    %v5985 = vunpack.c.l.s4 1983009808
    %v5986 = vunpack.c.0.s8 %v5985
    %v5987 = vlaneseq
    %v5988 = vshrl.u32 %v5987, 7
    %v5989 = vsub.s32 %v5986, %v5988
    %v5990 = vrot.slane %v5983, %v5989
    %v5991 = vcombine.low %v5767, %v5768
    %v5993 = vunpack.c.l.s4 1983009808
    %v5994 = vunpack.c.0.s8 %v5993
    %v5995 = vlaneseq
    %v5996 = vshrl.u32 %v5995, 7
    %v5997 = vsub.s32 %v5994, %v5996
    %v5998 = vrot.slane %v5991, %v5997
    %v5999 = vcombine.low %v5974, %v5982
    %v6001 = vunpack.c.l.s4 1934713408
    %v6002 = vunpack.c.0.s8 %v6001
    %v6003 = vlaneseq
    %v6004 = vshrl.u32 %v6003, 7
    %v6005 = vsub.s32 %v6002, %v6004
    %v6006 = vrot.slane %v5999, %v6005
    %v6007 = vcombine.low %v5990, %v5998
    %v6009 = vunpack.c.l.s4 1934713408
    %v6010 = vunpack.c.0.s8 %v6009
    %v6011 = vlaneseq
    %v6012 = vshrl.u32 %v6011, 7
    %v6013 = vsub.s32 %v6010, %v6012
    %v6014 = vrot.slane %v6007, %v6013
    %v6015 = vcombine.low %v6006, %v6014
    %v6016 = vcombine.high %v6006, %v6014
    %v6017 = vcombine.low %v5807, %v5814
    %v6019 = vunpack.c.l.s4 1983009808
    %v6020 = vunpack.c.0.s8 %v6019
    %v6021 = vlaneseq
    %v6022 = vshrl.u32 %v6021, 7
    %v6023 = vsub.s32 %v6020, %v6022
    %v6024 = vrot.slane %v6017, %v6023
    %v6025 = vcombine.low %v5831, %v5832
    %v6027 = vunpack.c.l.s4 1983009808
    %v6028 = vunpack.c.0.s8 %v6027
    %v6029 = vlaneseq
    %v6030 = vshrl.u32 %v6029, 7
    %v6031 = vsub.s32 %v6028, %v6030
    %v6032 = vrot.slane %v6025, %v6031
    %v6033 = vcombine.low %v5823, %v5830
    %v6035 = vunpack.c.l.s4 1983009808
    %v6036 = vunpack.c.0.s8 %v6035
    %v6037 = vlaneseq
    %v6038 = vshrl.u32 %v6037, 7
    %v6039 = vsub.s32 %v6036, %v6038
    %v6040 = vrot.slane %v6033, %v6039
    %v6041 = vcombine.low %v5833, %v5834
    %v6043 = vunpack.c.l.s4 1983009808
    %v6044 = vunpack.c.0.s8 %v6043
    %v6045 = vlaneseq
    %v6046 = vshrl.u32 %v6045, 7
    %v6047 = vsub.s32 %v6044, %v6046
    %v6048 = vrot.slane %v6041, %v6047
    %v6049 = vcombine.low %v6024, %v6032
    %v6051 = vunpack.c.l.s4 1934713408
    %v6052 = vunpack.c.0.s8 %v6051
    %v6053 = vlaneseq
    %v6054 = vshrl.u32 %v6053, 7
    %v6055 = vsub.s32 %v6052, %v6054
    %v6056 = vrot.slane %v6049, %v6055
    %v6057 = vcombine.low %v6040, %v6048
    %v6059 = vunpack.c.l.s4 1934713408
    %v6060 = vunpack.c.0.s8 %v6059
    %v6061 = vlaneseq
    %v6062 = vshrl.u32 %v6061, 7
    %v6063 = vsub.s32 %v6060, %v6062
    %v6064 = vrot.slane %v6057, %v6063
    %v6065 = vcombine.low %v6056, %v6064
    %v6066 = vcombine.high %v6056, %v6064
    %v6067 = vcombine.low %v5873, %v5880
    %v6069 = vunpack.c.l.s4 1983009808
    %v6070 = vunpack.c.0.s8 %v6069
    %v6071 = vlaneseq
    %v6072 = vshrl.u32 %v6071, 7
    %v6073 = vsub.s32 %v6070, %v6072
    %v6074 = vrot.slane %v6067, %v6073
    %v6075 = vcombine.low %v5897, %v5898
    %v6077 = vunpack.c.l.s4 1983009808
    %v6078 = vunpack.c.0.s8 %v6077
    %v6079 = vlaneseq
    %v6080 = vshrl.u32 %v6079, 7
    %v6081 = vsub.s32 %v6078, %v6080
    %v6082 = vrot.slane %v6075, %v6081
    %v6083 = vcombine.low %v5889, %v5896
    %v6085 = vunpack.c.l.s4 1983009808
    %v6086 = vunpack.c.0.s8 %v6085
    %v6087 = vlaneseq
    %v6088 = vshrl.u32 %v6087, 7
    %v6089 = vsub.s32 %v6086, %v6088
    %v6090 = vrot.slane %v6083, %v6089
    %v6091 = vcombine.low %v5899, %v5900
    %v6093 = vunpack.c.l.s4 1983009808
    %v6094 = vunpack.c.0.s8 %v6093
    %v6095 = vlaneseq
    %v6096 = vshrl.u32 %v6095, 7
    %v6097 = vsub.s32 %v6094, %v6096
    %v6098 = vrot.slane %v6091, %v6097
    %v6099 = vcombine.low %v6074, %v6082
    %v6101 = vunpack.c.l.s4 1934713408
    %v6102 = vunpack.c.0.s8 %v6101
    %v6103 = vlaneseq
    %v6104 = vshrl.u32 %v6103, 7
    %v6105 = vsub.s32 %v6102, %v6104
    %v6106 = vrot.slane %v6099, %v6105
    %v6107 = vcombine.low %v6090, %v6098
    %v6109 = vunpack.c.l.s4 1934713408
    %v6110 = vunpack.c.0.s8 %v6109
    %v6111 = vlaneseq
    %v6112 = vshrl.u32 %v6111, 7
    %v6113 = vsub.s32 %v6110, %v6112
    %v6114 = vrot.slane %v6107, %v6113
    %v6115 = vcombine.low %v6106, %v6114
    %v6116 = vcombine.high %v6106, %v6114
    %v6117 = vcombine.low %v5939, %v5946
    %v6119 = vunpack.c.l.s4 1983009808
    %v6120 = vunpack.c.0.s8 %v6119
    %v6121 = vlaneseq
    %v6122 = vshrl.u32 %v6121, 7
    %v6123 = vsub.s32 %v6120, %v6122
    %v6124 = vrot.slane %v6117, %v6123
    %v6125 = vcombine.low %v5963, %v5964
    %v6127 = vunpack.c.l.s4 1983009808
    %v6128 = vunpack.c.0.s8 %v6127
    %v6129 = vlaneseq
    %v6130 = vshrl.u32 %v6129, 7
    %v6131 = vsub.s32 %v6128, %v6130
    %v6132 = vrot.slane %v6125, %v6131
    %v6133 = vcombine.low %v5955, %v5962
    %v6135 = vunpack.c.l.s4 1983009808
    %v6136 = vunpack.c.0.s8 %v6135
    %v6137 = vlaneseq
    %v6138 = vshrl.u32 %v6137, 7
    %v6139 = vsub.s32 %v6136, %v6138
    %v6140 = vrot.slane %v6133, %v6139
    %v6141 = vcombine.low %v5965, %v5966
    %v6143 = vunpack.c.l.s4 1983009808
    %v6144 = vunpack.c.0.s8 %v6143
    %v6145 = vlaneseq
    %v6146 = vshrl.u32 %v6145, 7
    %v6147 = vsub.s32 %v6144, %v6146
    %v6148 = vrot.slane %v6141, %v6147
    %v6149 = vcombine.low %v6124, %v6132
    %v6151 = vunpack.c.l.s4 1934713408
    %v6152 = vunpack.c.0.s8 %v6151
    %v6153 = vlaneseq
    %v6154 = vshrl.u32 %v6153, 7
    %v6155 = vsub.s32 %v6152, %v6154
    %v6156 = vrot.slane %v6149, %v6155
    %v6157 = vcombine.low %v6140, %v6148
    %v6159 = vunpack.c.l.s4 1934713408
    %v6160 = vunpack.c.0.s8 %v6159
    %v6161 = vlaneseq
    %v6162 = vshrl.u32 %v6161, 7
    %v6163 = vsub.s32 %v6160, %v6162
    %v6164 = vrot.slane %v6157, %v6163
    %v6165 = vcombine.low %v6156, %v6164
    %v6166 = vcombine.high %v6156, %v6164
    %v6167 = vadd.f32 %v6015, 0.0
    %v6168 = vadd.f32 %v6016, 0.0
    %v6169 = vadd.f32 %v6065, 0.0
    %v6170 = vadd.f32 %v6066, 0.0
    %v6171 = vadd.f32 %v6115, 0.0
    %v6172 = vadd.f32 %v6116, 0.0
    %v6173 = vadd.f32 %v6165, 0.0
    %v6174 = vadd.f32 %v6166, 0.0
    %6175 = vmatprep.subr.mxu0 0.0
    %6176 = vmatpush1.msra.mxu0 0.0
    %6177 = vmatprep.subr.mxu0 0.0
    %6178 = vmatpush1.msra.mxu0 0.0
    %6179 = vmatprep.subr.mxu0 0.0
    %6180 = vmatpush1.msra.mxu0 0.0
    %6181 = vmatprep.subr.mxu0 0.0
    %6182 = vmatpush1.msra.mxu0 0.0
    %6183 = vmatprep.subr.mxu0 0.0
    %6184 = vmatpush1.msra.mxu0 0.0
    %6185 = vmatprep.subr.mxu0 0.0
    %6186 = vmatpush1.msra.mxu0 0.0
    %6187 = vmatprep.subr.mxu0 0.0
    %6188 = vmatpush1.msra.mxu0 0.0
    %6189 = vmatprep.subr.mxu0 0.0
    %6190 = vmatpush1.msra.mxu0 0.0
    %6191 = vmatprep.subr.mxu0 0.0
    %6192 = vmatpush1.msra.mxu0 0.0
    %6193 = vmatprep.subr.mxu0 0.0
    %6194 = vmatpush1.msra.mxu0 0.0
    %6195 = vmatprep.subr.mxu0 0.0
    %6196 = vmatpush1.msra.mxu0 0.0
    %6197 = vmatprep.subr.mxu0 0.0
    %6198 = vmatpush1.msra.mxu0 0.0
    %6199 = vmatprep.subr.mxu0 0.0
    %6200 = vmatpush1.msra.mxu0 0.0
    %6201 = vmatprep.subr.mxu0 0.0
    %6202 = vmatpush1.msra.mxu0 0.0
    %6203 = vmatprep.subr.mxu0 0.0
    %6204 = vmatpush1.msra.mxu0 %v3712
    %6205 = vmatprep.subr.mxu0 0.0
    %6206 = vmatpush1.msra.mxu0 %v3711
    %6207 = vmatprep.subr.mxu0 0.0
    %6208 = vmatpush2.msra.mxu0 0.0
    %6209 = vmatprep.subr.mxu0 0.0
    %6210 = vmatpush2.msra.mxu0 0.0
    %6211 = vmatprep.subr.mxu0 0.0
    %6212 = vmatpush2.msra.mxu0 0.0
    %6213 = vmatprep.subr.mxu0 0.0
    %6214 = vmatpush2.msra.mxu0 0.0
    %6215 = vmatprep.subr.mxu0 0.0
    %6216 = vmatpush2.msra.mxu0 0.0
    %6217 = vmatprep.subr.mxu0 0.0
    %6218 = vmatpush2.msra.mxu0 0.0
    %6219 = vmatprep.subr.mxu0 0.0
    %6220 = vmatpush2.msra.mxu0 0.0
    %6221 = vmatprep.subr.mxu0 0.0
    %6222 = vmatpush2.msra.mxu0 0.0
    %6223 = vmatprep.subr.mxu0 0.0
    %6224 = vmatpush2.msra.mxu0 0.0
    %6225 = vmatprep.subr.mxu0 0.0
    %6226 = vmatpush2.msra.mxu0 0.0
    %6227 = vmatprep.subr.mxu0 0.0
    %6228 = vmatpush2.msra.mxu0 0.0
    %6229 = vmatprep.subr.mxu0 0.0
    %6230 = vmatpush2.msra.mxu0 0.0
    %6231 = vmatprep.subr.mxu0 0.0
    %6232 = vmatpush2.msra.mxu0 0.0
    %6233 = vmatprep.subr.mxu0 0.0
    %6234 = vmatpush2.msra.mxu0 0.0
    %6235 = vmatprep.subr.mxu0 0.0
    %6236 = vmatpush2.msra.mxu0 0.0
    %6237 = vmatprep.subr.mxu0 0.0
    %6238 = vmatpush2.msra.mxu0 0.0
    %6239 = vmatprep.mubr.f32.mxu0 0.0
    %6240 = vmatmul.mubr.f32.gmra.mxu0 %v4756
    %v6241 = vpop.f32.mrf.mxu0
    %v6242 = vadd.f32 0.0, %v6241
    %v6243 = vpop.f32.mrf.mxu0
    %6244 = vmatprep.mubr.f32.mxu0 0.0
    %6245 = vmatmul.mubr.f32.gmra.mxu0 %v4759
    %v6246 = vpop.f32.mrf.mxu0
    %v6247 = vadd.f32 0.0, %v6246
    %v6248 = vpop.f32.mrf.mxu0
    %6249 = vmatprep.mubr.f32.mxu0 0.0
    %6250 = vmatmul.mubr.f32.gmra.mxu0 %v4762
    %v6251 = vpop.f32.mrf.mxu0
    %v6252 = vadd.f32 0.0, %v6251
    %v6253 = vpop.f32.mrf.mxu0
    %6254 = vmatprep.mubr.f32.mxu0 0.0
    %6255 = vmatmul.mubr.f32.gmra.mxu0 %v4765
    %v6256 = vpop.f32.mrf.mxu0
    %v6257 = vadd.f32 0.0, %v6256
    %v6258 = vpop.f32.mrf.mxu0
    %6259 = vmatprep.mubr.f32.mxu0 0.0
    %6260 = vmatmul.mubr.f32.gmra.mxu0 %v4768
    %v6261 = vpop.f32.mrf.mxu0
    %v6262 = vadd.f32 0.0, %v6261
    %v6263 = vpop.f32.mrf.mxu0
    %6264 = vmatprep.mubr.f32.mxu0 0.0
    %6265 = vmatmul.mubr.f32.gmra.mxu0 %v4771
    %v6266 = vpop.f32.mrf.mxu0
    %v6267 = vadd.f32 0.0, %v6266
    %v6268 = vpop.f32.mrf.mxu0
    %6269 = vmatprep.mubr.f32.mxu0 0.0
    %6270 = vmatmul.mubr.f32.gmra.mxu0 %v4774
    %v6271 = vpop.f32.mrf.mxu0
    %v6272 = vadd.f32 0.0, %v6271
    %v6273 = vpop.f32.mrf.mxu0
    %6274 = vmatprep.mubr.f32.mxu0 0.0
    %6275 = vmatmul.mubr.f32.gmra.mxu0 %v4777
    %v6276 = vpop.f32.mrf.mxu0
    %v6277 = vadd.f32 0.0, %v6276
    %v6278 = vpop.f32.mrf.mxu0
    %6279 = vdwg.mxu0
    %s6280 = scalar_lea.vmem %s13, 32
    %v6281 = vld [vmem:[%s6280] sm:$0xff]
    %v6282 = vld [vmem:[%s6280 + $0x8] sm:$0xff]
    %v6283 = vld [vmem:[%s6280 + $0x10] sm:$0xff]
    %v6284 = vld [vmem:[%s6280 + $0x18] sm:$0xff]
    %v6285 = vcombine.high %v6242, 0.0
    %v6287 = vunpack.c.l.s4 1983009808
    %v6288 = vunpack.c.0.s8 %v6287
    %v6289 = vlaneseq
    %v6290 = vshrl.u32 %v6289, 7
    %v6291 = vsub.s32 %v6288, %v6290
    %v6292 = vrot.slane %v6242, %v6291
    %v6294 = vunpack.c.l.s4 1983009808
    %v6295 = vunpack.c.0.s8 %v6294
    %v6296 = vlaneseq
    %v6297 = vshrl.u32 %v6296, 7
    %v6298 = vsub.s32 %v6295, %v6297
    %v6299 = vrot.slane %v6285, %v6298
    %v6300 = vcombine.high %v6247, 0.0
    %v6302 = vunpack.c.l.s4 1983009808
    %v6303 = vunpack.c.0.s8 %v6302
    %v6304 = vlaneseq
    %v6305 = vshrl.u32 %v6304, 7
    %v6306 = vsub.s32 %v6303, %v6305
    %v6307 = vrot.slane %v6247, %v6306
    %v6309 = vunpack.c.l.s4 1983009808
    %v6310 = vunpack.c.0.s8 %v6309
    %v6311 = vlaneseq
    %v6312 = vshrl.u32 %v6311, 7
    %v6313 = vsub.s32 %v6310, %v6312
    %v6314 = vrot.slane %v6300, %v6313
    %v6315 = vcombine.low %v6292, %v6307
    %v6316 = vcombine.high %v6292, %v6307
    %v6318 = vunpack.c.l.s4 1934713408
    %v6319 = vunpack.c.0.s8 %v6318
    %v6320 = vlaneseq
    %v6321 = vshrl.u32 %v6320, 7
    %v6322 = vsub.s32 %v6319, %v6321
    %v6323 = vrot.slane %v6315, %v6322
    %v6325 = vunpack.c.l.s4 1934713408
    %v6326 = vunpack.c.0.s8 %v6325
    %v6327 = vlaneseq
    %v6328 = vshrl.u32 %v6327, 7
    %v6329 = vsub.s32 %v6326, %v6328
    %v6330 = vrot.slane %v6316, %v6329
    %v6331 = vcombine.low %v6299, %v6314
    %v6332 = vcombine.high %v6299, %v6314
    %v6334 = vunpack.c.l.s4 1934713408
    %v6335 = vunpack.c.0.s8 %v6334
    %v6336 = vlaneseq
    %v6337 = vshrl.u32 %v6336, 7
    %v6338 = vsub.s32 %v6335, %v6337
    %v6339 = vrot.slane %v6331, %v6338
    %v6341 = vunpack.c.l.s4 1934713408
    %v6342 = vunpack.c.0.s8 %v6341
    %v6343 = vlaneseq
    %v6344 = vshrl.u32 %v6343, 7
    %v6345 = vsub.s32 %v6342, %v6344
    %v6346 = vrot.slane %v6332, %v6345
    %v6347 = vcombine.high %v6323, 0.0
    %v6348 = vcombine.high %v6330, 0.0
    %v6349 = vcombine.high %v6339, 0.0
    %v6350 = vcombine.high %v6346, 0.0
    %v6351 = vcombine.high %v6252, 0.0
    %v6353 = vunpack.c.l.s4 1983009808
    %v6354 = vunpack.c.0.s8 %v6353
    %v6355 = vlaneseq
    %v6356 = vshrl.u32 %v6355, 7
    %v6357 = vsub.s32 %v6354, %v6356
    %v6358 = vrot.slane %v6252, %v6357
    %v6360 = vunpack.c.l.s4 1983009808
    %v6361 = vunpack.c.0.s8 %v6360
    %v6362 = vlaneseq
    %v6363 = vshrl.u32 %v6362, 7
    %v6364 = vsub.s32 %v6361, %v6363
    %v6365 = vrot.slane %v6351, %v6364
    %v6366 = vcombine.high %v6257, 0.0
    %v6368 = vunpack.c.l.s4 1983009808
    %v6369 = vunpack.c.0.s8 %v6368
    %v6370 = vlaneseq
    %v6371 = vshrl.u32 %v6370, 7
    %v6372 = vsub.s32 %v6369, %v6371
    %v6373 = vrot.slane %v6257, %v6372
    %v6375 = vunpack.c.l.s4 1983009808
    %v6376 = vunpack.c.0.s8 %v6375
    %v6377 = vlaneseq
    %v6378 = vshrl.u32 %v6377, 7
    %v6379 = vsub.s32 %v6376, %v6378
    %v6380 = vrot.slane %v6366, %v6379
    %v6381 = vcombine.low %v6358, %v6373
    %v6382 = vcombine.high %v6358, %v6373
    %v6384 = vunpack.c.l.s4 1934713408
    %v6385 = vunpack.c.0.s8 %v6384
    %v6386 = vlaneseq
    %v6387 = vshrl.u32 %v6386, 7
    %v6388 = vsub.s32 %v6385, %v6387
    %v6389 = vrot.slane %v6381, %v6388
    %v6391 = vunpack.c.l.s4 1934713408
    %v6392 = vunpack.c.0.s8 %v6391
    %v6393 = vlaneseq
    %v6394 = vshrl.u32 %v6393, 7
    %v6395 = vsub.s32 %v6392, %v6394
    %v6396 = vrot.slane %v6382, %v6395
    %v6397 = vcombine.low %v6365, %v6380
    %v6398 = vcombine.high %v6365, %v6380
    %v6400 = vunpack.c.l.s4 1934713408
    %v6401 = vunpack.c.0.s8 %v6400
    %v6402 = vlaneseq
    %v6403 = vshrl.u32 %v6402, 7
    %v6404 = vsub.s32 %v6401, %v6403
    %v6405 = vrot.slane %v6397, %v6404
    %v6407 = vunpack.c.l.s4 1934713408
    %v6408 = vunpack.c.0.s8 %v6407
    %v6409 = vlaneseq
    %v6410 = vshrl.u32 %v6409, 7
    %v6411 = vsub.s32 %v6408, %v6410
    %v6412 = vrot.slane %v6398, %v6411
    %v6413 = vcombine.high %v6389, 0.0
    %v6414 = vcombine.high %v6396, 0.0
    %v6415 = vcombine.high %v6405, 0.0
    %v6416 = vcombine.high %v6412, 0.0
    %v6417 = vcombine.high %v6262, 0.0
    %v6419 = vunpack.c.l.s4 1983009808
    %v6420 = vunpack.c.0.s8 %v6419
    %v6421 = vlaneseq
    %v6422 = vshrl.u32 %v6421, 7
    %v6423 = vsub.s32 %v6420, %v6422
    %v6424 = vrot.slane %v6262, %v6423
    %v6426 = vunpack.c.l.s4 1983009808
    %v6427 = vunpack.c.0.s8 %v6426
    %v6428 = vlaneseq
    %v6429 = vshrl.u32 %v6428, 7
    %v6430 = vsub.s32 %v6427, %v6429
    %v6431 = vrot.slane %v6417, %v6430
    %v6432 = vcombine.high %v6267, 0.0
    %v6434 = vunpack.c.l.s4 1983009808
    %v6435 = vunpack.c.0.s8 %v6434
    %v6436 = vlaneseq
    %v6437 = vshrl.u32 %v6436, 7
    %v6438 = vsub.s32 %v6435, %v6437
    %v6439 = vrot.slane %v6267, %v6438
    %v6441 = vunpack.c.l.s4 1983009808
    %v6442 = vunpack.c.0.s8 %v6441
    %v6443 = vlaneseq
    %v6444 = vshrl.u32 %v6443, 7
    %v6445 = vsub.s32 %v6442, %v6444
    %v6446 = vrot.slane %v6432, %v6445
    %v6447 = vcombine.low %v6424, %v6439
    %v6448 = vcombine.high %v6424, %v6439
    %v6450 = vunpack.c.l.s4 1934713408
    %v6451 = vunpack.c.0.s8 %v6450
    %v6452 = vlaneseq
    %v6453 = vshrl.u32 %v6452, 7
    %v6454 = vsub.s32 %v6451, %v6453
    %v6455 = vrot.slane %v6447, %v6454
    %v6457 = vunpack.c.l.s4 1934713408
    %v6458 = vunpack.c.0.s8 %v6457
    %v6459 = vlaneseq
    %v6460 = vshrl.u32 %v6459, 7
    %v6461 = vsub.s32 %v6458, %v6460
    %v6462 = vrot.slane %v6448, %v6461
    %v6463 = vcombine.low %v6431, %v6446
    %v6464 = vcombine.high %v6431, %v6446
    %v6466 = vunpack.c.l.s4 1934713408
    %v6467 = vunpack.c.0.s8 %v6466
    %v6468 = vlaneseq
    %v6469 = vshrl.u32 %v6468, 7
    %v6470 = vsub.s32 %v6467, %v6469
    %v6471 = vrot.slane %v6463, %v6470
    %v6473 = vunpack.c.l.s4 1934713408
    %v6474 = vunpack.c.0.s8 %v6473
    %v6475 = vlaneseq
    %v6476 = vshrl.u32 %v6475, 7
    %v6477 = vsub.s32 %v6474, %v6476
    %v6478 = vrot.slane %v6464, %v6477
    %v6479 = vcombine.high %v6455, 0.0
    %v6480 = vcombine.high %v6462, 0.0
    %v6481 = vcombine.high %v6471, 0.0
    %v6482 = vcombine.high %v6478, 0.0
    %v6483 = vcombine.high %v6272, 0.0
    %v6485 = vunpack.c.l.s4 1983009808
    %v6486 = vunpack.c.0.s8 %v6485
    %v6487 = vlaneseq
    %v6488 = vshrl.u32 %v6487, 7
    %v6489 = vsub.s32 %v6486, %v6488
    %v6490 = vrot.slane %v6272, %v6489
    %v6492 = vunpack.c.l.s4 1983009808
    %v6493 = vunpack.c.0.s8 %v6492
    %v6494 = vlaneseq
    %v6495 = vshrl.u32 %v6494, 7
    %v6496 = vsub.s32 %v6493, %v6495
    %v6497 = vrot.slane %v6483, %v6496
    %v6498 = vcombine.high %v6277, 0.0
    %v6500 = vunpack.c.l.s4 1983009808
    %v6501 = vunpack.c.0.s8 %v6500
    %v6502 = vlaneseq
    %v6503 = vshrl.u32 %v6502, 7
    %v6504 = vsub.s32 %v6501, %v6503
    %v6505 = vrot.slane %v6277, %v6504
    %v6507 = vunpack.c.l.s4 1983009808
    %v6508 = vunpack.c.0.s8 %v6507
    %v6509 = vlaneseq
    %v6510 = vshrl.u32 %v6509, 7
    %v6511 = vsub.s32 %v6508, %v6510
    %v6512 = vrot.slane %v6498, %v6511
    %v6513 = vcombine.low %v6490, %v6505
    %v6514 = vcombine.high %v6490, %v6505
    %v6516 = vunpack.c.l.s4 1934713408
    %v6517 = vunpack.c.0.s8 %v6516
    %v6518 = vlaneseq
    %v6519 = vshrl.u32 %v6518, 7
    %v6520 = vsub.s32 %v6517, %v6519
    %v6521 = vrot.slane %v6513, %v6520
    %v6523 = vunpack.c.l.s4 1934713408
    %v6524 = vunpack.c.0.s8 %v6523
    %v6525 = vlaneseq
    %v6526 = vshrl.u32 %v6525, 7
    %v6527 = vsub.s32 %v6524, %v6526
    %v6528 = vrot.slane %v6514, %v6527
    %v6529 = vcombine.low %v6497, %v6512
    %v6530 = vcombine.high %v6497, %v6512
    %v6532 = vunpack.c.l.s4 1934713408
    %v6533 = vunpack.c.0.s8 %v6532
    %v6534 = vlaneseq
    %v6535 = vshrl.u32 %v6534, 7
    %v6536 = vsub.s32 %v6533, %v6535
    %v6537 = vrot.slane %v6529, %v6536
    %v6539 = vunpack.c.l.s4 1934713408
    %v6540 = vunpack.c.0.s8 %v6539
    %v6541 = vlaneseq
    %v6542 = vshrl.u32 %v6541, 7
    %v6543 = vsub.s32 %v6540, %v6542
    %v6544 = vrot.slane %v6530, %v6543
    %v6545 = vcombine.high %v6521, 0.0
    %v6546 = vcombine.high %v6528, 0.0
    %v6547 = vcombine.high %v6537, 0.0
    %v6548 = vcombine.high %v6544, 0.0
    %v6549 = vcombine.low %v6323, %v6330
    %v6551 = vunpack.c.l.s4 1983009808
    %v6552 = vunpack.c.0.s8 %v6551
    %v6553 = vlaneseq
    %v6554 = vshrl.u32 %v6553, 7
    %v6555 = vsub.s32 %v6552, %v6554
    %v6556 = vrot.slane %v6549, %v6555
    %v6557 = vcombine.low %v6347, %v6348
    %v6559 = vunpack.c.l.s4 1983009808
    %v6560 = vunpack.c.0.s8 %v6559
    %v6561 = vlaneseq
    %v6562 = vshrl.u32 %v6561, 7
    %v6563 = vsub.s32 %v6560, %v6562
    %v6564 = vrot.slane %v6557, %v6563
    %v6565 = vcombine.low %v6339, %v6346
    %v6567 = vunpack.c.l.s4 1983009808
    %v6568 = vunpack.c.0.s8 %v6567
    %v6569 = vlaneseq
    %v6570 = vshrl.u32 %v6569, 7
    %v6571 = vsub.s32 %v6568, %v6570
    %v6572 = vrot.slane %v6565, %v6571
    %v6573 = vcombine.low %v6349, %v6350
    %v6575 = vunpack.c.l.s4 1983009808
    %v6576 = vunpack.c.0.s8 %v6575
    %v6577 = vlaneseq
    %v6578 = vshrl.u32 %v6577, 7
    %v6579 = vsub.s32 %v6576, %v6578
    %v6580 = vrot.slane %v6573, %v6579
    %v6581 = vcombine.low %v6556, %v6564
    %v6583 = vunpack.c.l.s4 1934713408
    %v6584 = vunpack.c.0.s8 %v6583
    %v6585 = vlaneseq
    %v6586 = vshrl.u32 %v6585, 7
    %v6587 = vsub.s32 %v6584, %v6586
    %v6588 = vrot.slane %v6581, %v6587
    %v6589 = vcombine.low %v6572, %v6580
    %v6591 = vunpack.c.l.s4 1934713408
    %v6592 = vunpack.c.0.s8 %v6591
    %v6593 = vlaneseq
    %v6594 = vshrl.u32 %v6593, 7
    %v6595 = vsub.s32 %v6592, %v6594
    %v6596 = vrot.slane %v6589, %v6595
    %v6597 = vcombine.low %v6588, %v6596
    %v6598 = vcombine.high %v6588, %v6596
    %v6599 = vcombine.low %v6389, %v6396
    %v6601 = vunpack.c.l.s4 1983009808
    %v6602 = vunpack.c.0.s8 %v6601
    %v6603 = vlaneseq
    %v6604 = vshrl.u32 %v6603, 7
    %v6605 = vsub.s32 %v6602, %v6604
    %v6606 = vrot.slane %v6599, %v6605
    %v6607 = vcombine.low %v6413, %v6414
    %v6609 = vunpack.c.l.s4 1983009808
    %v6610 = vunpack.c.0.s8 %v6609
    %v6611 = vlaneseq
    %v6612 = vshrl.u32 %v6611, 7
    %v6613 = vsub.s32 %v6610, %v6612
    %v6614 = vrot.slane %v6607, %v6613
    %v6615 = vcombine.low %v6405, %v6412
    %v6617 = vunpack.c.l.s4 1983009808
    %v6618 = vunpack.c.0.s8 %v6617
    %v6619 = vlaneseq
    %v6620 = vshrl.u32 %v6619, 7
    %v6621 = vsub.s32 %v6618, %v6620
    %v6622 = vrot.slane %v6615, %v6621
    %v6623 = vcombine.low %v6415, %v6416
    %v6625 = vunpack.c.l.s4 1983009808
    %v6626 = vunpack.c.0.s8 %v6625
    %v6627 = vlaneseq
    %v6628 = vshrl.u32 %v6627, 7
    %v6629 = vsub.s32 %v6626, %v6628
    %v6630 = vrot.slane %v6623, %v6629
    %v6631 = vcombine.low %v6606, %v6614
    %v6633 = vunpack.c.l.s4 1934713408
    %v6634 = vunpack.c.0.s8 %v6633
    %v6635 = vlaneseq
    %v6636 = vshrl.u32 %v6635, 7
    %v6637 = vsub.s32 %v6634, %v6636
    %v6638 = vrot.slane %v6631, %v6637
    %v6639 = vcombine.low %v6622, %v6630
    %v6641 = vunpack.c.l.s4 1934713408
    %v6642 = vunpack.c.0.s8 %v6641
    %v6643 = vlaneseq
    %v6644 = vshrl.u32 %v6643, 7
    %v6645 = vsub.s32 %v6642, %v6644
    %v6646 = vrot.slane %v6639, %v6645
    %v6647 = vcombine.low %v6638, %v6646
    %v6648 = vcombine.high %v6638, %v6646
    %v6649 = vcombine.low %v6455, %v6462
    %v6651 = vunpack.c.l.s4 1983009808
    %v6652 = vunpack.c.0.s8 %v6651
    %v6653 = vlaneseq
    %v6654 = vshrl.u32 %v6653, 7
    %v6655 = vsub.s32 %v6652, %v6654
    %v6656 = vrot.slane %v6649, %v6655
    %v6657 = vcombine.low %v6479, %v6480
    %v6659 = vunpack.c.l.s4 1983009808
    %v6660 = vunpack.c.0.s8 %v6659
    %v6661 = vlaneseq
    %v6662 = vshrl.u32 %v6661, 7
    %v6663 = vsub.s32 %v6660, %v6662
    %v6664 = vrot.slane %v6657, %v6663
    %v6665 = vcombine.low %v6471, %v6478
    %v6667 = vunpack.c.l.s4 1983009808
    %v6668 = vunpack.c.0.s8 %v6667
    %v6669 = vlaneseq
    %v6670 = vshrl.u32 %v6669, 7
    %v6671 = vsub.s32 %v6668, %v6670
    %v6672 = vrot.slane %v6665, %v6671
    %v6673 = vcombine.low %v6481, %v6482
    %v6675 = vunpack.c.l.s4 1983009808
    %v6676 = vunpack.c.0.s8 %v6675
    %v6677 = vlaneseq
    %v6678 = vshrl.u32 %v6677, 7
    %v6679 = vsub.s32 %v6676, %v6678
    %v6680 = vrot.slane %v6673, %v6679
    %v6681 = vcombine.low %v6656, %v6664
    %v6683 = vunpack.c.l.s4 1934713408
    %v6684 = vunpack.c.0.s8 %v6683
    %v6685 = vlaneseq
    %v6686 = vshrl.u32 %v6685, 7
    %v6687 = vsub.s32 %v6684, %v6686
    %v6688 = vrot.slane %v6681, %v6687
    %v6689 = vcombine.low %v6672, %v6680
    %v6691 = vunpack.c.l.s4 1934713408
    %v6692 = vunpack.c.0.s8 %v6691
    %v6693 = vlaneseq
    %v6694 = vshrl.u32 %v6693, 7
    %v6695 = vsub.s32 %v6692, %v6694
    %v6696 = vrot.slane %v6689, %v6695
    %v6697 = vcombine.low %v6688, %v6696
    %v6698 = vcombine.high %v6688, %v6696
    %v6699 = vcombine.low %v6521, %v6528
    %v6701 = vunpack.c.l.s4 1983009808
    %v6702 = vunpack.c.0.s8 %v6701
    %v6703 = vlaneseq
    %v6704 = vshrl.u32 %v6703, 7
    %v6705 = vsub.s32 %v6702, %v6704
    %v6706 = vrot.slane %v6699, %v6705
    %v6707 = vcombine.low %v6545, %v6546
    %v6709 = vunpack.c.l.s4 1983009808
    %v6710 = vunpack.c.0.s8 %v6709
    %v6711 = vlaneseq
    %v6712 = vshrl.u32 %v6711, 7
    %v6713 = vsub.s32 %v6710, %v6712
    %v6714 = vrot.slane %v6707, %v6713
    %v6715 = vcombine.low %v6537, %v6544
    %v6717 = vunpack.c.l.s4 1983009808
    %v6718 = vunpack.c.0.s8 %v6717
    %v6719 = vlaneseq
    %v6720 = vshrl.u32 %v6719, 7
    %v6721 = vsub.s32 %v6718, %v6720
    %v6722 = vrot.slane %v6715, %v6721
    %v6723 = vcombine.low %v6547, %v6548
    %v6725 = vunpack.c.l.s4 1983009808
    %v6726 = vunpack.c.0.s8 %v6725
    %v6727 = vlaneseq
    %v6728 = vshrl.u32 %v6727, 7
    %v6729 = vsub.s32 %v6726, %v6728
    %v6730 = vrot.slane %v6723, %v6729
    %v6731 = vcombine.low %v6706, %v6714
    %v6733 = vunpack.c.l.s4 1934713408
    %v6734 = vunpack.c.0.s8 %v6733
    %v6735 = vlaneseq
    %v6736 = vshrl.u32 %v6735, 7
    %v6737 = vsub.s32 %v6734, %v6736
    %v6738 = vrot.slane %v6731, %v6737
    %v6739 = vcombine.low %v6722, %v6730
    %v6741 = vunpack.c.l.s4 1934713408
    %v6742 = vunpack.c.0.s8 %v6741
    %v6743 = vlaneseq
    %v6744 = vshrl.u32 %v6743, 7
    %v6745 = vsub.s32 %v6742, %v6744
    %v6746 = vrot.slane %v6739, %v6745
    %v6747 = vcombine.low %v6738, %v6746
    %v6748 = vcombine.high %v6738, %v6746
    %6753 = vrot.lane.b32.xlu0 %v6598, 16
    %v6754 = vpop.permute.xlu0 %6753
    %6755 = vrot.lane.b32.xlu0 %v6648, 16
    %v6756 = vpop.permute.xlu0 %6755
    %6757 = vrot.lane.b32.xlu0 %v6698, 16
    %v6758 = vpop.permute.xlu0 %6757
    %6759 = vrot.lane.b32.xlu0 %v6748, 16
    %v6760 = vpop.permute.xlu0 %6759
    %v6765 = vsel %vm1515, %v6597, %v6754
    %v6766 = vsel %vm1515, %v6647, %v6756
    %v6767 = vsel %vm1515, %v6697, %v6758
    %v6768 = vsel %vm1515, %v6747, %v6760
    %v6770 = vsel %vm155, %v6281, 0
    %6772 = vmatprep.subr.mxu0 0.0
    %6773 = vmatpush1.msra.mxu0 0.0
    %6774 = vmatprep.subr.mxu0 0.0
    %6775 = vmatpush1.msra.mxu0 0.0
    %6776 = vmatprep.subr.mxu0 0.0
    %6777 = vmatpush1.msra.mxu0 0.0
    %6778 = vmatprep.subr.mxu0 0.0
    %6779 = vmatpush1.msra.mxu0 0.0
    %6780 = vmatprep.subr.mxu0 0.0
    %6781 = vmatpush1.msra.mxu0 0.0
    %6782 = vmatprep.subr.mxu0 0.0
    %6783 = vmatpush1.msra.mxu0 0.0
    %6784 = vmatprep.subr.mxu0 0.0
    %6785 = vmatpush1.msra.mxu0 0.0
    %6786 = vmatprep.subr.mxu0 0.0
    %6787 = vmatpush1.msra.mxu0 0.0
    %6788 = vmatprep.subr.mxu0 0.0
    %6789 = vmatpush1.msra.mxu0 0.0
    %6790 = vmatprep.subr.mxu0 0.0
    %6791 = vmatpush1.msra.mxu0 0.0
    %6792 = vmatprep.subr.mxu0 0.0
    %6793 = vmatpush1.msra.mxu0 0.0
    %6794 = vmatprep.subr.mxu0 0.0
    %6795 = vmatpush1.msra.mxu0 0.0
    %6796 = vmatprep.subr.mxu0 0.0
    %6797 = vmatpush1.msra.mxu0 0.0
    %6798 = vmatprep.subr.mxu0 0.0
    %6799 = vmatpush1.msra.mxu0 0.0
    %6800 = vmatprep.subr.mxu0 0.0
    %6801 = vmatpush1.msra.mxu0 0.0
    %6802 = vmatprep.subr.mxu0 0.0
    %6803 = vmatpush1.msra.mxu0 %v6765
    %6804 = vmatprep.subr.mxu0 0.0
    %6805 = vmatpush2.msra.mxu0 0.0
    %6806 = vmatprep.subr.mxu0 0.0
    %6807 = vmatpush2.msra.mxu0 0.0
    %6808 = vmatprep.subr.mxu0 0.0
    %6809 = vmatpush2.msra.mxu0 0.0
    %6810 = vmatprep.subr.mxu0 0.0
    %6811 = vmatpush2.msra.mxu0 0.0
    %6812 = vmatprep.subr.mxu0 0.0
    %6813 = vmatpush2.msra.mxu0 0.0
    %6814 = vmatprep.subr.mxu0 0.0
    %6815 = vmatpush2.msra.mxu0 0.0
    %6816 = vmatprep.subr.mxu0 0.0
    %6817 = vmatpush2.msra.mxu0 0.0
    %6818 = vmatprep.subr.mxu0 0.0
    %6819 = vmatpush2.msra.mxu0 0.0
    %6820 = vmatprep.subr.mxu0 0.0
    %6821 = vmatpush2.msra.mxu0 0.0
    %6822 = vmatprep.subr.mxu0 0.0
    %6823 = vmatpush2.msra.mxu0 0.0
    %6824 = vmatprep.subr.mxu0 0.0
    %6825 = vmatpush2.msra.mxu0 0.0
    %6826 = vmatprep.subr.mxu0 0.0
    %6827 = vmatpush2.msra.mxu0 0.0
    %6828 = vmatprep.subr.mxu0 0.0
    %6829 = vmatpush2.msra.mxu0 0.0
    %6830 = vmatprep.subr.mxu0 0.0
    %6831 = vmatpush2.msra.mxu0 0.0
    %6832 = vmatprep.subr.mxu0 0.0
    %6833 = vmatpush2.msra.mxu0 0.0
    %6834 = vmatprep.subr.mxu0 0.0
    %6835 = vmatpush2.msra.mxu0 0.0
    %6836 = vmatprep.mubr.f32.mxu0 0.0
    %6837 = vmatmul.mubr.f32.gmra.mxu0 %v6770
    %v6838 = vpop.f32.mrf.mxu0
    %v6839 = vadd.f32 %v5394, %v6838
    %v6840 = vpop.f32.mrf.mxu0
    %6841 = vdwg.mxu0
    %v6843 = vsel %vm155, %v6282, 0
    %6845 = vmatprep.subr.mxu0 0.0
    %6846 = vmatpush1.msra.mxu0 0.0
    %6847 = vmatprep.subr.mxu0 0.0
    %6848 = vmatpush1.msra.mxu0 0.0
    %6849 = vmatprep.subr.mxu0 0.0
    %6850 = vmatpush1.msra.mxu0 0.0
    %6851 = vmatprep.subr.mxu0 0.0
    %6852 = vmatpush1.msra.mxu0 0.0
    %6853 = vmatprep.subr.mxu0 0.0
    %6854 = vmatpush1.msra.mxu0 0.0
    %6855 = vmatprep.subr.mxu0 0.0
    %6856 = vmatpush1.msra.mxu0 0.0
    %6857 = vmatprep.subr.mxu0 0.0
    %6858 = vmatpush1.msra.mxu0 0.0
    %6859 = vmatprep.subr.mxu0 0.0
    %6860 = vmatpush1.msra.mxu0 0.0
    %6861 = vmatprep.subr.mxu0 0.0
    %6862 = vmatpush1.msra.mxu0 0.0
    %6863 = vmatprep.subr.mxu0 0.0
    %6864 = vmatpush1.msra.mxu0 0.0
    %6865 = vmatprep.subr.mxu0 0.0
    %6866 = vmatpush1.msra.mxu0 0.0
    %6867 = vmatprep.subr.mxu0 0.0
    %6868 = vmatpush1.msra.mxu0 0.0
    %6869 = vmatprep.subr.mxu0 0.0
    %6870 = vmatpush1.msra.mxu0 0.0
    %6871 = vmatprep.subr.mxu0 0.0
    %6872 = vmatpush1.msra.mxu0 0.0
    %6873 = vmatprep.subr.mxu0 0.0
    %6874 = vmatpush1.msra.mxu0 0.0
    %6875 = vmatprep.subr.mxu0 0.0
    %6876 = vmatpush1.msra.mxu0 %v6766
    %6877 = vmatprep.subr.mxu0 0.0
    %6878 = vmatpush2.msra.mxu0 0.0
    %6879 = vmatprep.subr.mxu0 0.0
    %6880 = vmatpush2.msra.mxu0 0.0
    %6881 = vmatprep.subr.mxu0 0.0
    %6882 = vmatpush2.msra.mxu0 0.0
    %6883 = vmatprep.subr.mxu0 0.0
    %6884 = vmatpush2.msra.mxu0 0.0
    %6885 = vmatprep.subr.mxu0 0.0
    %6886 = vmatpush2.msra.mxu0 0.0
    %6887 = vmatprep.subr.mxu0 0.0
    %6888 = vmatpush2.msra.mxu0 0.0
    %6889 = vmatprep.subr.mxu0 0.0
    %6890 = vmatpush2.msra.mxu0 0.0
    %6891 = vmatprep.subr.mxu0 0.0
    %6892 = vmatpush2.msra.mxu0 0.0
    %6893 = vmatprep.subr.mxu0 0.0
    %6894 = vmatpush2.msra.mxu0 0.0
    %6895 = vmatprep.subr.mxu0 0.0
    %6896 = vmatpush2.msra.mxu0 0.0
    %6897 = vmatprep.subr.mxu0 0.0
    %6898 = vmatpush2.msra.mxu0 0.0
    %6899 = vmatprep.subr.mxu0 0.0
    %6900 = vmatpush2.msra.mxu0 0.0
    %6901 = vmatprep.subr.mxu0 0.0
    %6902 = vmatpush2.msra.mxu0 0.0
    %6903 = vmatprep.subr.mxu0 0.0
    %6904 = vmatpush2.msra.mxu0 0.0
    %6905 = vmatprep.subr.mxu0 0.0
    %6906 = vmatpush2.msra.mxu0 0.0
    %6907 = vmatprep.subr.mxu0 0.0
    %6908 = vmatpush2.msra.mxu0 0.0
    %6909 = vmatprep.mubr.f32.mxu0 0.0
    %6910 = vmatmul.mubr.f32.gmra.mxu0 %v6843
    %v6911 = vpop.f32.mrf.mxu0
    %v6912 = vadd.f32 %v5394, %v6911
    %v6913 = vpop.f32.mrf.mxu0
    %6914 = vdwg.mxu0
    %v6916 = vsel %vm155, %v6283, 0
    %6918 = vmatprep.subr.mxu0 0.0
    %6919 = vmatpush1.msra.mxu0 0.0
    %6920 = vmatprep.subr.mxu0 0.0
    %6921 = vmatpush1.msra.mxu0 0.0
    %6922 = vmatprep.subr.mxu0 0.0
    %6923 = vmatpush1.msra.mxu0 0.0
    %6924 = vmatprep.subr.mxu0 0.0
    %6925 = vmatpush1.msra.mxu0 0.0
    %6926 = vmatprep.subr.mxu0 0.0
    %6927 = vmatpush1.msra.mxu0 0.0
    %6928 = vmatprep.subr.mxu0 0.0
    %6929 = vmatpush1.msra.mxu0 0.0
    %6930 = vmatprep.subr.mxu0 0.0
    %6931 = vmatpush1.msra.mxu0 0.0
    %6932 = vmatprep.subr.mxu0 0.0
    %6933 = vmatpush1.msra.mxu0 0.0
    %6934 = vmatprep.subr.mxu0 0.0
    %6935 = vmatpush1.msra.mxu0 0.0
    %6936 = vmatprep.subr.mxu0 0.0
    %6937 = vmatpush1.msra.mxu0 0.0
    %6938 = vmatprep.subr.mxu0 0.0
    %6939 = vmatpush1.msra.mxu0 0.0
    %6940 = vmatprep.subr.mxu0 0.0
    %6941 = vmatpush1.msra.mxu0 0.0
    %6942 = vmatprep.subr.mxu0 0.0
    %6943 = vmatpush1.msra.mxu0 0.0
    %6944 = vmatprep.subr.mxu0 0.0
    %6945 = vmatpush1.msra.mxu0 0.0
    %6946 = vmatprep.subr.mxu0 0.0
    %6947 = vmatpush1.msra.mxu0 0.0
    %6948 = vmatprep.subr.mxu0 0.0
    %6949 = vmatpush1.msra.mxu0 %v6767
    %6950 = vmatprep.subr.mxu0 0.0
    %6951 = vmatpush2.msra.mxu0 0.0
    %6952 = vmatprep.subr.mxu0 0.0
    %6953 = vmatpush2.msra.mxu0 0.0
    %6954 = vmatprep.subr.mxu0 0.0
    %6955 = vmatpush2.msra.mxu0 0.0
    %6956 = vmatprep.subr.mxu0 0.0
    %6957 = vmatpush2.msra.mxu0 0.0
    %6958 = vmatprep.subr.mxu0 0.0
    %6959 = vmatpush2.msra.mxu0 0.0
    %6960 = vmatprep.subr.mxu0 0.0
    %6961 = vmatpush2.msra.mxu0 0.0
    %6962 = vmatprep.subr.mxu0 0.0
    %6963 = vmatpush2.msra.mxu0 0.0
    %6964 = vmatprep.subr.mxu0 0.0
    %6965 = vmatpush2.msra.mxu0 0.0
    %6966 = vmatprep.subr.mxu0 0.0
    %6967 = vmatpush2.msra.mxu0 0.0
    %6968 = vmatprep.subr.mxu0 0.0
    %6969 = vmatpush2.msra.mxu0 0.0
    %6970 = vmatprep.subr.mxu0 0.0
    %6971 = vmatpush2.msra.mxu0 0.0
    %6972 = vmatprep.subr.mxu0 0.0
    %6973 = vmatpush2.msra.mxu0 0.0
    %6974 = vmatprep.subr.mxu0 0.0
    %6975 = vmatpush2.msra.mxu0 0.0
    %6976 = vmatprep.subr.mxu0 0.0
    %6977 = vmatpush2.msra.mxu0 0.0
    %6978 = vmatprep.subr.mxu0 0.0
    %6979 = vmatpush2.msra.mxu0 0.0
    %6980 = vmatprep.subr.mxu0 0.0
    %6981 = vmatpush2.msra.mxu0 0.0
    %6982 = vmatprep.mubr.f32.mxu0 0.0
    %6983 = vmatmul.mubr.f32.gmra.mxu0 %v6916
    %v6984 = vpop.f32.mrf.mxu0
    %v6985 = vadd.f32 %v5394, %v6984
    %v6986 = vpop.f32.mrf.mxu0
    %6987 = vdwg.mxu0
    %v6989 = vsel %vm155, %v6284, 0
    %6991 = vmatprep.subr.mxu0 0.0
    %6992 = vmatpush1.msra.mxu0 0.0
    %6993 = vmatprep.subr.mxu0 0.0
    %6994 = vmatpush1.msra.mxu0 0.0
    %6995 = vmatprep.subr.mxu0 0.0
    %6996 = vmatpush1.msra.mxu0 0.0
    %6997 = vmatprep.subr.mxu0 0.0
    %6998 = vmatpush1.msra.mxu0 0.0
    %6999 = vmatprep.subr.mxu0 0.0
    %7000 = vmatpush1.msra.mxu0 0.0
    %7001 = vmatprep.subr.mxu0 0.0
    %7002 = vmatpush1.msra.mxu0 0.0
    %7003 = vmatprep.subr.mxu0 0.0
    %7004 = vmatpush1.msra.mxu0 0.0
    %7005 = vmatprep.subr.mxu0 0.0
    %7006 = vmatpush1.msra.mxu0 0.0
    %7007 = vmatprep.subr.mxu0 0.0
    %7008 = vmatpush1.msra.mxu0 0.0
    %7009 = vmatprep.subr.mxu0 0.0
    %7010 = vmatpush1.msra.mxu0 0.0
    %7011 = vmatprep.subr.mxu0 0.0
    %7012 = vmatpush1.msra.mxu0 0.0
    %7013 = vmatprep.subr.mxu0 0.0
    %7014 = vmatpush1.msra.mxu0 0.0
    %7015 = vmatprep.subr.mxu0 0.0
    %7016 = vmatpush1.msra.mxu0 0.0
    %7017 = vmatprep.subr.mxu0 0.0
    %7018 = vmatpush1.msra.mxu0 0.0
    %7019 = vmatprep.subr.mxu0 0.0
    %7020 = vmatpush1.msra.mxu0 0.0
    %7021 = vmatprep.subr.mxu0 0.0
    %7022 = vmatpush1.msra.mxu0 %v6768
    %7023 = vmatprep.subr.mxu0 0.0
    %7024 = vmatpush2.msra.mxu0 0.0
    %7025 = vmatprep.subr.mxu0 0.0
    %7026 = vmatpush2.msra.mxu0 0.0
    %7027 = vmatprep.subr.mxu0 0.0
    %7028 = vmatpush2.msra.mxu0 0.0
    %7029 = vmatprep.subr.mxu0 0.0
    %7030 = vmatpush2.msra.mxu0 0.0
    %7031 = vmatprep.subr.mxu0 0.0
    %7032 = vmatpush2.msra.mxu0 0.0
    %7033 = vmatprep.subr.mxu0 0.0
    %7034 = vmatpush2.msra.mxu0 0.0
    %7035 = vmatprep.subr.mxu0 0.0
    %7036 = vmatpush2.msra.mxu0 0.0
    %7037 = vmatprep.subr.mxu0 0.0
    %7038 = vmatpush2.msra.mxu0 0.0
    %7039 = vmatprep.subr.mxu0 0.0
    %7040 = vmatpush2.msra.mxu0 0.0
    %7041 = vmatprep.subr.mxu0 0.0
    %7042 = vmatpush2.msra.mxu0 0.0
    %7043 = vmatprep.subr.mxu0 0.0
    %7044 = vmatpush2.msra.mxu0 0.0
    %7045 = vmatprep.subr.mxu0 0.0
    %7046 = vmatpush2.msra.mxu0 0.0
    %7047 = vmatprep.subr.mxu0 0.0
    %7048 = vmatpush2.msra.mxu0 0.0
    %7049 = vmatprep.subr.mxu0 0.0
    %7050 = vmatpush2.msra.mxu0 0.0
    %7051 = vmatprep.subr.mxu0 0.0
    %7052 = vmatpush2.msra.mxu0 0.0
    %7053 = vmatprep.subr.mxu0 0.0
    %7054 = vmatpush2.msra.mxu0 0.0
    %7055 = vmatprep.mubr.f32.mxu0 0.0
    %7056 = vmatmul.mubr.f32.gmra.mxu0 %v6989
    %v7057 = vpop.f32.mrf.mxu0
    %v7058 = vadd.f32 %v5394, %v7057
    %v7059 = vpop.f32.mrf.mxu0
    %7060 = vdwg.mxu0
    %7065 = vrot.lane.b32.xlu0 %v6839, 112
    %v7066 = vpop.permute.xlu0 %7065
    %7067 = vrot.lane.b32.xlu0 %v6912, 112
    %v7068 = vpop.permute.xlu0 %7067
    %7069 = vrot.lane.b32.xlu0 %v6985, 112
    %v7070 = vpop.permute.xlu0 %7069
    %7071 = vrot.lane.b32.xlu0 %v7058, 112
    %v7072 = vpop.permute.xlu0 %7071
    %v7077 = vcombine.high %v6839, 0.0
    %v7079 = vunpack.c.l.s4 1983009808
    %v7080 = vunpack.c.0.s8 %v7079
    %v7081 = vlaneseq
    %v7082 = vshrl.u32 %v7081, 7
    %v7083 = vsub.s32 %v7080, %v7082
    %v7084 = vrot.slane %v6839, %v7083
    %v7086 = vunpack.c.l.s4 1983009808
    %v7087 = vunpack.c.0.s8 %v7086
    %v7088 = vlaneseq
    %v7089 = vshrl.u32 %v7088, 7
    %v7090 = vsub.s32 %v7087, %v7089
    %v7091 = vrot.slane %v7077, %v7090
    %v7092 = vcombine.high %v7066, 0.0
    %v7094 = vunpack.c.l.s4 1983009808
    %v7095 = vunpack.c.0.s8 %v7094
    %v7096 = vlaneseq
    %v7097 = vshrl.u32 %v7096, 7
    %v7098 = vsub.s32 %v7095, %v7097
    %v7099 = vrot.slane %v7066, %v7098
    %v7101 = vunpack.c.l.s4 1983009808
    %v7102 = vunpack.c.0.s8 %v7101
    %v7103 = vlaneseq
    %v7104 = vshrl.u32 %v7103, 7
    %v7105 = vsub.s32 %v7102, %v7104
    %v7106 = vrot.slane %v7092, %v7105
    %v7107 = vcombine.low %v7084, %v7099
    %v7108 = vcombine.high %v7084, %v7099
    %v7110 = vunpack.c.l.s4 1934713408
    %v7111 = vunpack.c.0.s8 %v7110
    %v7112 = vlaneseq
    %v7113 = vshrl.u32 %v7112, 7
    %v7114 = vsub.s32 %v7111, %v7113
    %v7115 = vrot.slane %v7107, %v7114
    %v7117 = vunpack.c.l.s4 1934713408
    %v7118 = vunpack.c.0.s8 %v7117
    %v7119 = vlaneseq
    %v7120 = vshrl.u32 %v7119, 7
    %v7121 = vsub.s32 %v7118, %v7120
    %v7122 = vrot.slane %v7108, %v7121
    %v7123 = vcombine.low %v7091, %v7106
    %v7124 = vcombine.high %v7091, %v7106
    %v7126 = vunpack.c.l.s4 1934713408
    %v7127 = vunpack.c.0.s8 %v7126
    %v7128 = vlaneseq
    %v7129 = vshrl.u32 %v7128, 7
    %v7130 = vsub.s32 %v7127, %v7129
    %v7131 = vrot.slane %v7123, %v7130
    %v7133 = vunpack.c.l.s4 1934713408
    %v7134 = vunpack.c.0.s8 %v7133
    %v7135 = vlaneseq
    %v7136 = vshrl.u32 %v7135, 7
    %v7137 = vsub.s32 %v7134, %v7136
    %v7138 = vrot.slane %v7124, %v7137
    %v7139 = vcombine.high %v7115, 0.0
    %v7140 = vcombine.high %v7122, 0.0
    %v7141 = vcombine.high %v7131, 0.0
    %v7142 = vcombine.high %v7138, 0.0
    %v7143 = vcombine.high %v6912, 0.0
    %v7145 = vunpack.c.l.s4 1983009808
    %v7146 = vunpack.c.0.s8 %v7145
    %v7147 = vlaneseq
    %v7148 = vshrl.u32 %v7147, 7
    %v7149 = vsub.s32 %v7146, %v7148
    %v7150 = vrot.slane %v6912, %v7149
    %v7152 = vunpack.c.l.s4 1983009808
    %v7153 = vunpack.c.0.s8 %v7152
    %v7154 = vlaneseq
    %v7155 = vshrl.u32 %v7154, 7
    %v7156 = vsub.s32 %v7153, %v7155
    %v7157 = vrot.slane %v7143, %v7156
    %v7158 = vcombine.high %v7068, 0.0
    %v7160 = vunpack.c.l.s4 1983009808
    %v7161 = vunpack.c.0.s8 %v7160
    %v7162 = vlaneseq
    %v7163 = vshrl.u32 %v7162, 7
    %v7164 = vsub.s32 %v7161, %v7163
    %v7165 = vrot.slane %v7068, %v7164
    %v7167 = vunpack.c.l.s4 1983009808
    %v7168 = vunpack.c.0.s8 %v7167
    %v7169 = vlaneseq
    %v7170 = vshrl.u32 %v7169, 7
    %v7171 = vsub.s32 %v7168, %v7170
    %v7172 = vrot.slane %v7158, %v7171
    %v7173 = vcombine.low %v7150, %v7165
    %v7174 = vcombine.high %v7150, %v7165
    %v7176 = vunpack.c.l.s4 1934713408
    %v7177 = vunpack.c.0.s8 %v7176
    %v7178 = vlaneseq
    %v7179 = vshrl.u32 %v7178, 7
    %v7180 = vsub.s32 %v7177, %v7179
    %v7181 = vrot.slane %v7173, %v7180
    %v7183 = vunpack.c.l.s4 1934713408
    %v7184 = vunpack.c.0.s8 %v7183
    %v7185 = vlaneseq
    %v7186 = vshrl.u32 %v7185, 7
    %v7187 = vsub.s32 %v7184, %v7186
    %v7188 = vrot.slane %v7174, %v7187
    %v7189 = vcombine.low %v7157, %v7172
    %v7190 = vcombine.high %v7157, %v7172
    %v7192 = vunpack.c.l.s4 1934713408
    %v7193 = vunpack.c.0.s8 %v7192
    %v7194 = vlaneseq
    %v7195 = vshrl.u32 %v7194, 7
    %v7196 = vsub.s32 %v7193, %v7195
    %v7197 = vrot.slane %v7189, %v7196
    %v7199 = vunpack.c.l.s4 1934713408
    %v7200 = vunpack.c.0.s8 %v7199
    %v7201 = vlaneseq
    %v7202 = vshrl.u32 %v7201, 7
    %v7203 = vsub.s32 %v7200, %v7202
    %v7204 = vrot.slane %v7190, %v7203
    %v7205 = vcombine.high %v7181, 0.0
    %v7206 = vcombine.high %v7188, 0.0
    %v7207 = vcombine.high %v7197, 0.0
    %v7208 = vcombine.high %v7204, 0.0
    %v7209 = vcombine.high %v6985, 0.0
    %v7211 = vunpack.c.l.s4 1983009808
    %v7212 = vunpack.c.0.s8 %v7211
    %v7213 = vlaneseq
    %v7214 = vshrl.u32 %v7213, 7
    %v7215 = vsub.s32 %v7212, %v7214
    %v7216 = vrot.slane %v6985, %v7215
    %v7218 = vunpack.c.l.s4 1983009808
    %v7219 = vunpack.c.0.s8 %v7218
    %v7220 = vlaneseq
    %v7221 = vshrl.u32 %v7220, 7
    %v7222 = vsub.s32 %v7219, %v7221
    %v7223 = vrot.slane %v7209, %v7222
    %v7224 = vcombine.high %v7070, 0.0
    %v7226 = vunpack.c.l.s4 1983009808
    %v7227 = vunpack.c.0.s8 %v7226
    %v7228 = vlaneseq
    %v7229 = vshrl.u32 %v7228, 7
    %v7230 = vsub.s32 %v7227, %v7229
    %v7231 = vrot.slane %v7070, %v7230
    %v7233 = vunpack.c.l.s4 1983009808
    %v7234 = vunpack.c.0.s8 %v7233
    %v7235 = vlaneseq
    %v7236 = vshrl.u32 %v7235, 7
    %v7237 = vsub.s32 %v7234, %v7236
    %v7238 = vrot.slane %v7224, %v7237
    %v7239 = vcombine.low %v7216, %v7231
    %v7240 = vcombine.high %v7216, %v7231
    %v7242 = vunpack.c.l.s4 1934713408
    %v7243 = vunpack.c.0.s8 %v7242
    %v7244 = vlaneseq
    %v7245 = vshrl.u32 %v7244, 7
    %v7246 = vsub.s32 %v7243, %v7245
    %v7247 = vrot.slane %v7239, %v7246
    %v7249 = vunpack.c.l.s4 1934713408
    %v7250 = vunpack.c.0.s8 %v7249
    %v7251 = vlaneseq
    %v7252 = vshrl.u32 %v7251, 7
    %v7253 = vsub.s32 %v7250, %v7252
    %v7254 = vrot.slane %v7240, %v7253
    %v7255 = vcombine.low %v7223, %v7238
    %v7256 = vcombine.high %v7223, %v7238
    %v7258 = vunpack.c.l.s4 1934713408
    %v7259 = vunpack.c.0.s8 %v7258
    %v7260 = vlaneseq
    %v7261 = vshrl.u32 %v7260, 7
    %v7262 = vsub.s32 %v7259, %v7261
    %v7263 = vrot.slane %v7255, %v7262
    %v7265 = vunpack.c.l.s4 1934713408
    %v7266 = vunpack.c.0.s8 %v7265
    %v7267 = vlaneseq
    %v7268 = vshrl.u32 %v7267, 7
    %v7269 = vsub.s32 %v7266, %v7268
    %v7270 = vrot.slane %v7256, %v7269
    %v7271 = vcombine.high %v7247, 0.0
    %v7272 = vcombine.high %v7254, 0.0
    %v7273 = vcombine.high %v7263, 0.0
    %v7274 = vcombine.high %v7270, 0.0
    %v7275 = vcombine.high %v7058, 0.0
    %v7277 = vunpack.c.l.s4 1983009808
    %v7278 = vunpack.c.0.s8 %v7277
    %v7279 = vlaneseq
    %v7280 = vshrl.u32 %v7279, 7
    %v7281 = vsub.s32 %v7278, %v7280
    %v7282 = vrot.slane %v7058, %v7281
    %v7284 = vunpack.c.l.s4 1983009808
    %v7285 = vunpack.c.0.s8 %v7284
    %v7286 = vlaneseq
    %v7287 = vshrl.u32 %v7286, 7
    %v7288 = vsub.s32 %v7285, %v7287
    %v7289 = vrot.slane %v7275, %v7288
    %v7290 = vcombine.high %v7072, 0.0
    %v7292 = vunpack.c.l.s4 1983009808
    %v7293 = vunpack.c.0.s8 %v7292
    %v7294 = vlaneseq
    %v7295 = vshrl.u32 %v7294, 7
    %v7296 = vsub.s32 %v7293, %v7295
    %v7297 = vrot.slane %v7072, %v7296
    %v7299 = vunpack.c.l.s4 1983009808
    %v7300 = vunpack.c.0.s8 %v7299
    %v7301 = vlaneseq
    %v7302 = vshrl.u32 %v7301, 7
    %v7303 = vsub.s32 %v7300, %v7302
    %v7304 = vrot.slane %v7290, %v7303
    %v7305 = vcombine.low %v7282, %v7297
    %v7306 = vcombine.high %v7282, %v7297
    %v7308 = vunpack.c.l.s4 1934713408
    %v7309 = vunpack.c.0.s8 %v7308
    %v7310 = vlaneseq
    %v7311 = vshrl.u32 %v7310, 7
    %v7312 = vsub.s32 %v7309, %v7311
    %v7313 = vrot.slane %v7305, %v7312
    %v7315 = vunpack.c.l.s4 1934713408
    %v7316 = vunpack.c.0.s8 %v7315
    %v7317 = vlaneseq
    %v7318 = vshrl.u32 %v7317, 7
    %v7319 = vsub.s32 %v7316, %v7318
    %v7320 = vrot.slane %v7306, %v7319
    %v7321 = vcombine.low %v7289, %v7304
    %v7322 = vcombine.high %v7289, %v7304
    %v7324 = vunpack.c.l.s4 1934713408
    %v7325 = vunpack.c.0.s8 %v7324
    %v7326 = vlaneseq
    %v7327 = vshrl.u32 %v7326, 7
    %v7328 = vsub.s32 %v7325, %v7327
    %v7329 = vrot.slane %v7321, %v7328
    %v7331 = vunpack.c.l.s4 1934713408
    %v7332 = vunpack.c.0.s8 %v7331
    %v7333 = vlaneseq
    %v7334 = vshrl.u32 %v7333, 7
    %v7335 = vsub.s32 %v7332, %v7334
    %v7336 = vrot.slane %v7322, %v7335
    %v7337 = vcombine.high %v7313, 0.0
    %v7338 = vcombine.high %v7320, 0.0
    %v7339 = vcombine.high %v7329, 0.0
    %v7340 = vcombine.high %v7336, 0.0
    %v7341 = vcombine.low %v7115, %v7122
    %v7343 = vunpack.c.l.s4 1983009808
    %v7344 = vunpack.c.0.s8 %v7343
    %v7345 = vlaneseq
    %v7346 = vshrl.u32 %v7345, 7
    %v7347 = vsub.s32 %v7344, %v7346
    %v7348 = vrot.slane %v7341, %v7347
    %v7349 = vcombine.low %v7139, %v7140
    %v7351 = vunpack.c.l.s4 1983009808
    %v7352 = vunpack.c.0.s8 %v7351
    %v7353 = vlaneseq
    %v7354 = vshrl.u32 %v7353, 7
    %v7355 = vsub.s32 %v7352, %v7354
    %v7356 = vrot.slane %v7349, %v7355
    %v7357 = vcombine.low %v7131, %v7138
    %v7359 = vunpack.c.l.s4 1983009808
    %v7360 = vunpack.c.0.s8 %v7359
    %v7361 = vlaneseq
    %v7362 = vshrl.u32 %v7361, 7
    %v7363 = vsub.s32 %v7360, %v7362
    %v7364 = vrot.slane %v7357, %v7363
    %v7365 = vcombine.low %v7141, %v7142
    %v7367 = vunpack.c.l.s4 1983009808
    %v7368 = vunpack.c.0.s8 %v7367
    %v7369 = vlaneseq
    %v7370 = vshrl.u32 %v7369, 7
    %v7371 = vsub.s32 %v7368, %v7370
    %v7372 = vrot.slane %v7365, %v7371
    %v7373 = vcombine.low %v7348, %v7356
    %v7375 = vunpack.c.l.s4 1934713408
    %v7376 = vunpack.c.0.s8 %v7375
    %v7377 = vlaneseq
    %v7378 = vshrl.u32 %v7377, 7
    %v7379 = vsub.s32 %v7376, %v7378
    %v7380 = vrot.slane %v7373, %v7379
    %v7381 = vcombine.low %v7364, %v7372
    %v7383 = vunpack.c.l.s4 1934713408
    %v7384 = vunpack.c.0.s8 %v7383
    %v7385 = vlaneseq
    %v7386 = vshrl.u32 %v7385, 7
    %v7387 = vsub.s32 %v7384, %v7386
    %v7388 = vrot.slane %v7381, %v7387
    %v7389 = vcombine.low %v7380, %v7388
    %v7390 = vcombine.high %v7380, %v7388
    %v7391 = vcombine.low %v7181, %v7188
    %v7393 = vunpack.c.l.s4 1983009808
    %v7394 = vunpack.c.0.s8 %v7393
    %v7395 = vlaneseq
    %v7396 = vshrl.u32 %v7395, 7
    %v7397 = vsub.s32 %v7394, %v7396
    %v7398 = vrot.slane %v7391, %v7397
    %v7399 = vcombine.low %v7205, %v7206
    %v7401 = vunpack.c.l.s4 1983009808
    %v7402 = vunpack.c.0.s8 %v7401
    %v7403 = vlaneseq
    %v7404 = vshrl.u32 %v7403, 7
    %v7405 = vsub.s32 %v7402, %v7404
    %v7406 = vrot.slane %v7399, %v7405
    %v7407 = vcombine.low %v7197, %v7204
    %v7409 = vunpack.c.l.s4 1983009808
    %v7410 = vunpack.c.0.s8 %v7409
    %v7411 = vlaneseq
    %v7412 = vshrl.u32 %v7411, 7
    %v7413 = vsub.s32 %v7410, %v7412
    %v7414 = vrot.slane %v7407, %v7413
    %v7415 = vcombine.low %v7207, %v7208
    %v7417 = vunpack.c.l.s4 1983009808
    %v7418 = vunpack.c.0.s8 %v7417
    %v7419 = vlaneseq
    %v7420 = vshrl.u32 %v7419, 7
    %v7421 = vsub.s32 %v7418, %v7420
    %v7422 = vrot.slane %v7415, %v7421
    %v7423 = vcombine.low %v7398, %v7406
    %v7425 = vunpack.c.l.s4 1934713408
    %v7426 = vunpack.c.0.s8 %v7425
    %v7427 = vlaneseq
    %v7428 = vshrl.u32 %v7427, 7
    %v7429 = vsub.s32 %v7426, %v7428
    %v7430 = vrot.slane %v7423, %v7429
    %v7431 = vcombine.low %v7414, %v7422
    %v7433 = vunpack.c.l.s4 1934713408
    %v7434 = vunpack.c.0.s8 %v7433
    %v7435 = vlaneseq
    %v7436 = vshrl.u32 %v7435, 7
    %v7437 = vsub.s32 %v7434, %v7436
    %v7438 = vrot.slane %v7431, %v7437
    %v7439 = vcombine.low %v7430, %v7438
    %v7440 = vcombine.high %v7430, %v7438
    %v7441 = vcombine.low %v7247, %v7254
    %v7443 = vunpack.c.l.s4 1983009808
    %v7444 = vunpack.c.0.s8 %v7443
    %v7445 = vlaneseq
    %v7446 = vshrl.u32 %v7445, 7
    %v7447 = vsub.s32 %v7444, %v7446
    %v7448 = vrot.slane %v7441, %v7447
    %v7449 = vcombine.low %v7271, %v7272
    %v7451 = vunpack.c.l.s4 1983009808
    %v7452 = vunpack.c.0.s8 %v7451
    %v7453 = vlaneseq
    %v7454 = vshrl.u32 %v7453, 7
    %v7455 = vsub.s32 %v7452, %v7454
    %v7456 = vrot.slane %v7449, %v7455
    %v7457 = vcombine.low %v7263, %v7270
    %v7459 = vunpack.c.l.s4 1983009808
    %v7460 = vunpack.c.0.s8 %v7459
    %v7461 = vlaneseq
    %v7462 = vshrl.u32 %v7461, 7
    %v7463 = vsub.s32 %v7460, %v7462
    %v7464 = vrot.slane %v7457, %v7463
    %v7465 = vcombine.low %v7273, %v7274
    %v7467 = vunpack.c.l.s4 1983009808
    %v7468 = vunpack.c.0.s8 %v7467
    %v7469 = vlaneseq
    %v7470 = vshrl.u32 %v7469, 7
    %v7471 = vsub.s32 %v7468, %v7470
    %v7472 = vrot.slane %v7465, %v7471
    %v7473 = vcombine.low %v7448, %v7456
    %v7475 = vunpack.c.l.s4 1934713408
    %v7476 = vunpack.c.0.s8 %v7475
    %v7477 = vlaneseq
    %v7478 = vshrl.u32 %v7477, 7
    %v7479 = vsub.s32 %v7476, %v7478
    %v7480 = vrot.slane %v7473, %v7479
    %v7481 = vcombine.low %v7464, %v7472
    %v7483 = vunpack.c.l.s4 1934713408
    %v7484 = vunpack.c.0.s8 %v7483
    %v7485 = vlaneseq
    %v7486 = vshrl.u32 %v7485, 7
    %v7487 = vsub.s32 %v7484, %v7486
    %v7488 = vrot.slane %v7481, %v7487
    %v7489 = vcombine.low %v7480, %v7488
    %v7490 = vcombine.high %v7480, %v7488
    %v7491 = vcombine.low %v7313, %v7320
    %v7493 = vunpack.c.l.s4 1983009808
    %v7494 = vunpack.c.0.s8 %v7493
    %v7495 = vlaneseq
    %v7496 = vshrl.u32 %v7495, 7
    %v7497 = vsub.s32 %v7494, %v7496
    %v7498 = vrot.slane %v7491, %v7497
    %v7499 = vcombine.low %v7337, %v7338
    %v7501 = vunpack.c.l.s4 1983009808
    %v7502 = vunpack.c.0.s8 %v7501
    %v7503 = vlaneseq
    %v7504 = vshrl.u32 %v7503, 7
    %v7505 = vsub.s32 %v7502, %v7504
    %v7506 = vrot.slane %v7499, %v7505
    %v7507 = vcombine.low %v7329, %v7336
    %v7509 = vunpack.c.l.s4 1983009808
    %v7510 = vunpack.c.0.s8 %v7509
    %v7511 = vlaneseq
    %v7512 = vshrl.u32 %v7511, 7
    %v7513 = vsub.s32 %v7510, %v7512
    %v7514 = vrot.slane %v7507, %v7513
    %v7515 = vcombine.low %v7339, %v7340
    %v7517 = vunpack.c.l.s4 1983009808
    %v7518 = vunpack.c.0.s8 %v7517
    %v7519 = vlaneseq
    %v7520 = vshrl.u32 %v7519, 7
    %v7521 = vsub.s32 %v7518, %v7520
    %v7522 = vrot.slane %v7515, %v7521
    %v7523 = vcombine.low %v7498, %v7506
    %v7525 = vunpack.c.l.s4 1934713408
    %v7526 = vunpack.c.0.s8 %v7525
    %v7527 = vlaneseq
    %v7528 = vshrl.u32 %v7527, 7
    %v7529 = vsub.s32 %v7526, %v7528
    %v7530 = vrot.slane %v7523, %v7529
    %v7531 = vcombine.low %v7514, %v7522
    %v7533 = vunpack.c.l.s4 1934713408
    %v7534 = vunpack.c.0.s8 %v7533
    %v7535 = vlaneseq
    %v7536 = vshrl.u32 %v7535, 7
    %v7537 = vsub.s32 %v7534, %v7536
    %v7538 = vrot.slane %v7531, %v7537
    %v7539 = vcombine.low %v7530, %v7538
    %v7540 = vcombine.high %v7530, %v7538
    %v7541 = vadd.f32 %v6167, %v7389
    %v7542 = vadd.f32 %v6168, %v7390
    %v7543 = vadd.f32 %v6169, %v7439
    %v7544 = vadd.f32 %v6170, %v7440
    %v7545 = vadd.f32 %v6171, %v7489
    %v7546 = vadd.f32 %v6172, %v7490
    %v7547 = vadd.f32 %v6173, %v7539
    %v7548 = vadd.f32 %v6174, %v7540
    %7549 = vmatprep.subr.mxu0 0.0
    %7550 = vmatpush1.msra.mxu0 0.0
    %7551 = vmatprep.subr.mxu0 0.0
    %7552 = vmatpush1.msra.mxu0 0.0
    %7553 = vmatprep.subr.mxu0 0.0
    %7554 = vmatpush1.msra.mxu0 0.0
    %7555 = vmatprep.subr.mxu0 0.0
    %7556 = vmatpush1.msra.mxu0 0.0
    %7557 = vmatprep.subr.mxu0 0.0
    %7558 = vmatpush1.msra.mxu0 0.0
    %7559 = vmatprep.subr.mxu0 0.0
    %7560 = vmatpush1.msra.mxu0 0.0
    %7561 = vmatprep.subr.mxu0 0.0
    %7562 = vmatpush1.msra.mxu0 0.0
    %7563 = vmatprep.subr.mxu0 0.0
    %7564 = vmatpush1.msra.mxu0 0.0
    %7565 = vmatprep.subr.mxu0 0.0
    %7566 = vmatpush1.msra.mxu0 0.0
    %7567 = vmatprep.subr.mxu0 0.0
    %7568 = vmatpush1.msra.mxu0 0.0
    %7569 = vmatprep.subr.mxu0 0.0
    %7570 = vmatpush1.msra.mxu0 0.0
    %7571 = vmatprep.subr.mxu0 0.0
    %7572 = vmatpush1.msra.mxu0 0.0
    %7573 = vmatprep.subr.mxu0 0.0
    %7574 = vmatpush1.msra.mxu0 0.0
    %7575 = vmatprep.subr.mxu0 0.0
    %7576 = vmatpush1.msra.mxu0 0.0
    %7577 = vmatprep.subr.mxu0 0.0
    %7578 = vmatpush1.msra.mxu0 %v3725
    %7579 = vmatprep.subr.mxu0 0.0
    %7580 = vmatpush1.msra.mxu0 %v3724
    %7581 = vmatprep.subr.mxu0 0.0
    %7582 = vmatpush2.msra.mxu0 0.0
    %7583 = vmatprep.subr.mxu0 0.0
    %7584 = vmatpush2.msra.mxu0 0.0
    %7585 = vmatprep.subr.mxu0 0.0
    %7586 = vmatpush2.msra.mxu0 0.0
    %7587 = vmatprep.subr.mxu0 0.0
    %7588 = vmatpush2.msra.mxu0 0.0
    %7589 = vmatprep.subr.mxu0 0.0
    %7590 = vmatpush2.msra.mxu0 0.0
    %7591 = vmatprep.subr.mxu0 0.0
    %7592 = vmatpush2.msra.mxu0 0.0
    %7593 = vmatprep.subr.mxu0 0.0
    %7594 = vmatpush2.msra.mxu0 0.0
    %7595 = vmatprep.subr.mxu0 0.0
    %7596 = vmatpush2.msra.mxu0 0.0
    %7597 = vmatprep.subr.mxu0 0.0
    %7598 = vmatpush2.msra.mxu0 0.0
    %7599 = vmatprep.subr.mxu0 0.0
    %7600 = vmatpush2.msra.mxu0 0.0
    %7601 = vmatprep.subr.mxu0 0.0
    %7602 = vmatpush2.msra.mxu0 0.0
    %7603 = vmatprep.subr.mxu0 0.0
    %7604 = vmatpush2.msra.mxu0 0.0
    %7605 = vmatprep.subr.mxu0 0.0
    %7606 = vmatpush2.msra.mxu0 0.0
    %7607 = vmatprep.subr.mxu0 0.0
    %7608 = vmatpush2.msra.mxu0 0.0
    %7609 = vmatprep.subr.mxu0 0.0
    %7610 = vmatpush2.msra.mxu0 0.0
    %7611 = vmatprep.subr.mxu0 0.0
    %7612 = vmatpush2.msra.mxu0 0.0
    %7613 = vmatprep.mubr.f32.mxu0 0.0
    %7614 = vmatmul.mubr.f32.gmra.mxu0 %v4756
    %v7615 = vpop.f32.mrf.mxu0
    %v7616 = vadd.f32 0.0, %v7615
    %v7617 = vpop.f32.mrf.mxu0
    %7618 = vmatprep.mubr.f32.mxu0 0.0
    %7619 = vmatmul.mubr.f32.gmra.mxu0 %v4759
    %v7620 = vpop.f32.mrf.mxu0
    %v7621 = vadd.f32 0.0, %v7620
    %v7622 = vpop.f32.mrf.mxu0
    %7623 = vmatprep.mubr.f32.mxu0 0.0
    %7624 = vmatmul.mubr.f32.gmra.mxu0 %v4762
    %v7625 = vpop.f32.mrf.mxu0
    %v7626 = vadd.f32 0.0, %v7625
    %v7627 = vpop.f32.mrf.mxu0
    %7628 = vmatprep.mubr.f32.mxu0 0.0
    %7629 = vmatmul.mubr.f32.gmra.mxu0 %v4765
    %v7630 = vpop.f32.mrf.mxu0
    %v7631 = vadd.f32 0.0, %v7630
    %v7632 = vpop.f32.mrf.mxu0
    %7633 = vmatprep.mubr.f32.mxu0 0.0
    %7634 = vmatmul.mubr.f32.gmra.mxu0 %v4768
    %v7635 = vpop.f32.mrf.mxu0
    %v7636 = vadd.f32 0.0, %v7635
    %v7637 = vpop.f32.mrf.mxu0
    %7638 = vmatprep.mubr.f32.mxu0 0.0
    %7639 = vmatmul.mubr.f32.gmra.mxu0 %v4771
    %v7640 = vpop.f32.mrf.mxu0
    %v7641 = vadd.f32 0.0, %v7640
    %v7642 = vpop.f32.mrf.mxu0
    %7643 = vmatprep.mubr.f32.mxu0 0.0
    %7644 = vmatmul.mubr.f32.gmra.mxu0 %v4774
    %v7645 = vpop.f32.mrf.mxu0
    %v7646 = vadd.f32 0.0, %v7645
    %v7647 = vpop.f32.mrf.mxu0
    %7648 = vmatprep.mubr.f32.mxu0 0.0
    %7649 = vmatmul.mubr.f32.gmra.mxu0 %v4777
    %v7650 = vpop.f32.mrf.mxu0
    %v7651 = vadd.f32 0.0, %v7650
    %v7652 = vpop.f32.mrf.mxu0
    %7653 = vdwg.mxu0
    %s7654 = scalar_lea.vmem %s13, 64
    %v7655 = vld [vmem:[%s7654] sm:$0xff]
    %v7656 = vld [vmem:[%s7654 + $0x8] sm:$0xff]
    %v7657 = vld [vmem:[%s7654 + $0x10] sm:$0xff]
    %v7658 = vld [vmem:[%s7654 + $0x18] sm:$0xff]
    %v7659 = vcombine.high %v7616, 0.0
    %v7661 = vunpack.c.l.s4 1983009808
    %v7662 = vunpack.c.0.s8 %v7661
    %v7663 = vlaneseq
    %v7664 = vshrl.u32 %v7663, 7
    %v7665 = vsub.s32 %v7662, %v7664
    %v7666 = vrot.slane %v7616, %v7665
    %v7668 = vunpack.c.l.s4 1983009808
    %v7669 = vunpack.c.0.s8 %v7668
    %v7670 = vlaneseq
    %v7671 = vshrl.u32 %v7670, 7
    %v7672 = vsub.s32 %v7669, %v7671
    %v7673 = vrot.slane %v7659, %v7672
    %v7674 = vcombine.high %v7621, 0.0
    %v7676 = vunpack.c.l.s4 1983009808
    %v7677 = vunpack.c.0.s8 %v7676
    %v7678 = vlaneseq
    %v7679 = vshrl.u32 %v7678, 7
    %v7680 = vsub.s32 %v7677, %v7679
    %v7681 = vrot.slane %v7621, %v7680
    %v7683 = vunpack.c.l.s4 1983009808
    %v7684 = vunpack.c.0.s8 %v7683
    %v7685 = vlaneseq
    %v7686 = vshrl.u32 %v7685, 7
    %v7687 = vsub.s32 %v7684, %v7686
    %v7688 = vrot.slane %v7674, %v7687
    %v7689 = vcombine.low %v7666, %v7681
    %v7690 = vcombine.high %v7666, %v7681
    %v7692 = vunpack.c.l.s4 1934713408
    %v7693 = vunpack.c.0.s8 %v7692
    %v7694 = vlaneseq
    %v7695 = vshrl.u32 %v7694, 7
    %v7696 = vsub.s32 %v7693, %v7695
    %v7697 = vrot.slane %v7689, %v7696
    %v7699 = vunpack.c.l.s4 1934713408
    %v7700 = vunpack.c.0.s8 %v7699
    %v7701 = vlaneseq
    %v7702 = vshrl.u32 %v7701, 7
    %v7703 = vsub.s32 %v7700, %v7702
    %v7704 = vrot.slane %v7690, %v7703
    %v7705 = vcombine.low %v7673, %v7688
    %v7706 = vcombine.high %v7673, %v7688
    %v7708 = vunpack.c.l.s4 1934713408
    %v7709 = vunpack.c.0.s8 %v7708
    %v7710 = vlaneseq
    %v7711 = vshrl.u32 %v7710, 7
    %v7712 = vsub.s32 %v7709, %v7711
    %v7713 = vrot.slane %v7705, %v7712
    %v7715 = vunpack.c.l.s4 1934713408
    %v7716 = vunpack.c.0.s8 %v7715
    %v7717 = vlaneseq
    %v7718 = vshrl.u32 %v7717, 7
    %v7719 = vsub.s32 %v7716, %v7718
    %v7720 = vrot.slane %v7706, %v7719
    %v7721 = vcombine.high %v7697, 0.0
    %v7722 = vcombine.high %v7704, 0.0
    %v7723 = vcombine.high %v7713, 0.0
    %v7724 = vcombine.high %v7720, 0.0
    %v7725 = vcombine.high %v7626, 0.0
    %v7727 = vunpack.c.l.s4 1983009808
    %v7728 = vunpack.c.0.s8 %v7727
    %v7729 = vlaneseq
    %v7730 = vshrl.u32 %v7729, 7
    %v7731 = vsub.s32 %v7728, %v7730
    %v7732 = vrot.slane %v7626, %v7731
    %v7734 = vunpack.c.l.s4 1983009808
    %v7735 = vunpack.c.0.s8 %v7734
    %v7736 = vlaneseq
    %v7737 = vshrl.u32 %v7736, 7
    %v7738 = vsub.s32 %v7735, %v7737
    %v7739 = vrot.slane %v7725, %v7738
    %v7740 = vcombine.high %v7631, 0.0
    %v7742 = vunpack.c.l.s4 1983009808
    %v7743 = vunpack.c.0.s8 %v7742
    %v7744 = vlaneseq
    %v7745 = vshrl.u32 %v7744, 7
    %v7746 = vsub.s32 %v7743, %v7745
    %v7747 = vrot.slane %v7631, %v7746
    %v7749 = vunpack.c.l.s4 1983009808
    %v7750 = vunpack.c.0.s8 %v7749
    %v7751 = vlaneseq
    %v7752 = vshrl.u32 %v7751, 7
    %v7753 = vsub.s32 %v7750, %v7752
    %v7754 = vrot.slane %v7740, %v7753
    %v7755 = vcombine.low %v7732, %v7747
    %v7756 = vcombine.high %v7732, %v7747
    %v7758 = vunpack.c.l.s4 1934713408
    %v7759 = vunpack.c.0.s8 %v7758
    %v7760 = vlaneseq
    %v7761 = vshrl.u32 %v7760, 7
    %v7762 = vsub.s32 %v7759, %v7761
    %v7763 = vrot.slane %v7755, %v7762
    %v7765 = vunpack.c.l.s4 1934713408
    %v7766 = vunpack.c.0.s8 %v7765
    %v7767 = vlaneseq
    %v7768 = vshrl.u32 %v7767, 7
    %v7769 = vsub.s32 %v7766, %v7768
    %v7770 = vrot.slane %v7756, %v7769
    %v7771 = vcombine.low %v7739, %v7754
    %v7772 = vcombine.high %v7739, %v7754
    %v7774 = vunpack.c.l.s4 1934713408
    %v7775 = vunpack.c.0.s8 %v7774
    %v7776 = vlaneseq
    %v7777 = vshrl.u32 %v7776, 7
    %v7778 = vsub.s32 %v7775, %v7777
    %v7779 = vrot.slane %v7771, %v7778
    %v7781 = vunpack.c.l.s4 1934713408
    %v7782 = vunpack.c.0.s8 %v7781
    %v7783 = vlaneseq
    %v7784 = vshrl.u32 %v7783, 7
    %v7785 = vsub.s32 %v7782, %v7784
    %v7786 = vrot.slane %v7772, %v7785
    %v7787 = vcombine.high %v7763, 0.0
    %v7788 = vcombine.high %v7770, 0.0
    %v7789 = vcombine.high %v7779, 0.0
    %v7790 = vcombine.high %v7786, 0.0
    %v7791 = vcombine.high %v7636, 0.0
    %v7793 = vunpack.c.l.s4 1983009808
    %v7794 = vunpack.c.0.s8 %v7793
    %v7795 = vlaneseq
    %v7796 = vshrl.u32 %v7795, 7
    %v7797 = vsub.s32 %v7794, %v7796
    %v7798 = vrot.slane %v7636, %v7797
    %v7800 = vunpack.c.l.s4 1983009808
    %v7801 = vunpack.c.0.s8 %v7800
    %v7802 = vlaneseq
    %v7803 = vshrl.u32 %v7802, 7
    %v7804 = vsub.s32 %v7801, %v7803
    %v7805 = vrot.slane %v7791, %v7804
    %v7806 = vcombine.high %v7641, 0.0
    %v7808 = vunpack.c.l.s4 1983009808
    %v7809 = vunpack.c.0.s8 %v7808
    %v7810 = vlaneseq
    %v7811 = vshrl.u32 %v7810, 7
    %v7812 = vsub.s32 %v7809, %v7811
    %v7813 = vrot.slane %v7641, %v7812
    %v7815 = vunpack.c.l.s4 1983009808
    %v7816 = vunpack.c.0.s8 %v7815
    %v7817 = vlaneseq
    %v7818 = vshrl.u32 %v7817, 7
    %v7819 = vsub.s32 %v7816, %v7818
    %v7820 = vrot.slane %v7806, %v7819
    %v7821 = vcombine.low %v7798, %v7813
    %v7822 = vcombine.high %v7798, %v7813
    %v7824 = vunpack.c.l.s4 1934713408
    %v7825 = vunpack.c.0.s8 %v7824
    %v7826 = vlaneseq
    %v7827 = vshrl.u32 %v7826, 7
    %v7828 = vsub.s32 %v7825, %v7827
    %v7829 = vrot.slane %v7821, %v7828
    %v7831 = vunpack.c.l.s4 1934713408
    %v7832 = vunpack.c.0.s8 %v7831
    %v7833 = vlaneseq
    %v7834 = vshrl.u32 %v7833, 7
    %v7835 = vsub.s32 %v7832, %v7834
    %v7836 = vrot.slane %v7822, %v7835
    %v7837 = vcombine.low %v7805, %v7820
    %v7838 = vcombine.high %v7805, %v7820
    %v7840 = vunpack.c.l.s4 1934713408
    %v7841 = vunpack.c.0.s8 %v7840
    %v7842 = vlaneseq
    %v7843 = vshrl.u32 %v7842, 7
    %v7844 = vsub.s32 %v7841, %v7843
    %v7845 = vrot.slane %v7837, %v7844
    %v7847 = vunpack.c.l.s4 1934713408
    %v7848 = vunpack.c.0.s8 %v7847
    %v7849 = vlaneseq
    %v7850 = vshrl.u32 %v7849, 7
    %v7851 = vsub.s32 %v7848, %v7850
    %v7852 = vrot.slane %v7838, %v7851
    %v7853 = vcombine.high %v7829, 0.0
    %v7854 = vcombine.high %v7836, 0.0
    %v7855 = vcombine.high %v7845, 0.0
    %v7856 = vcombine.high %v7852, 0.0
    %v7857 = vcombine.high %v7646, 0.0
    %v7859 = vunpack.c.l.s4 1983009808
    %v7860 = vunpack.c.0.s8 %v7859
    %v7861 = vlaneseq
    %v7862 = vshrl.u32 %v7861, 7
    %v7863 = vsub.s32 %v7860, %v7862
    %v7864 = vrot.slane %v7646, %v7863
    %v7866 = vunpack.c.l.s4 1983009808
    %v7867 = vunpack.c.0.s8 %v7866
    %v7868 = vlaneseq
    %v7869 = vshrl.u32 %v7868, 7
    %v7870 = vsub.s32 %v7867, %v7869
    %v7871 = vrot.slane %v7857, %v7870
    %v7872 = vcombine.high %v7651, 0.0
    %v7874 = vunpack.c.l.s4 1983009808
    %v7875 = vunpack.c.0.s8 %v7874
    %v7876 = vlaneseq
    %v7877 = vshrl.u32 %v7876, 7
    %v7878 = vsub.s32 %v7875, %v7877
    %v7879 = vrot.slane %v7651, %v7878
    %v7881 = vunpack.c.l.s4 1983009808
    %v7882 = vunpack.c.0.s8 %v7881
    %v7883 = vlaneseq
    %v7884 = vshrl.u32 %v7883, 7
    %v7885 = vsub.s32 %v7882, %v7884
    %v7886 = vrot.slane %v7872, %v7885
    %v7887 = vcombine.low %v7864, %v7879
    %v7888 = vcombine.high %v7864, %v7879
    %v7890 = vunpack.c.l.s4 1934713408
    %v7891 = vunpack.c.0.s8 %v7890
    %v7892 = vlaneseq
    %v7893 = vshrl.u32 %v7892, 7
    %v7894 = vsub.s32 %v7891, %v7893
    %v7895 = vrot.slane %v7887, %v7894
    %v7897 = vunpack.c.l.s4 1934713408
    %v7898 = vunpack.c.0.s8 %v7897
    %v7899 = vlaneseq
    %v7900 = vshrl.u32 %v7899, 7
    %v7901 = vsub.s32 %v7898, %v7900
    %v7902 = vrot.slane %v7888, %v7901
    %v7903 = vcombine.low %v7871, %v7886
    %v7904 = vcombine.high %v7871, %v7886
    %v7906 = vunpack.c.l.s4 1934713408
    %v7907 = vunpack.c.0.s8 %v7906
    %v7908 = vlaneseq
    %v7909 = vshrl.u32 %v7908, 7
    %v7910 = vsub.s32 %v7907, %v7909
    %v7911 = vrot.slane %v7903, %v7910
    %v7913 = vunpack.c.l.s4 1934713408
    %v7914 = vunpack.c.0.s8 %v7913
    %v7915 = vlaneseq
    %v7916 = vshrl.u32 %v7915, 7
    %v7917 = vsub.s32 %v7914, %v7916
    %v7918 = vrot.slane %v7904, %v7917
    %v7919 = vcombine.high %v7895, 0.0
    %v7920 = vcombine.high %v7902, 0.0
    %v7921 = vcombine.high %v7911, 0.0
    %v7922 = vcombine.high %v7918, 0.0
    %v7923 = vcombine.low %v7697, %v7704
    %v7925 = vunpack.c.l.s4 1983009808
    %v7926 = vunpack.c.0.s8 %v7925
    %v7927 = vlaneseq
    %v7928 = vshrl.u32 %v7927, 7
    %v7929 = vsub.s32 %v7926, %v7928
    %v7930 = vrot.slane %v7923, %v7929
    %v7931 = vcombine.low %v7721, %v7722
    %v7933 = vunpack.c.l.s4 1983009808
    %v7934 = vunpack.c.0.s8 %v7933
    %v7935 = vlaneseq
    %v7936 = vshrl.u32 %v7935, 7
    %v7937 = vsub.s32 %v7934, %v7936
    %v7938 = vrot.slane %v7931, %v7937
    %v7939 = vcombine.low %v7713, %v7720
    %v7941 = vunpack.c.l.s4 1983009808
    %v7942 = vunpack.c.0.s8 %v7941
    %v7943 = vlaneseq
    %v7944 = vshrl.u32 %v7943, 7
    %v7945 = vsub.s32 %v7942, %v7944
    %v7946 = vrot.slane %v7939, %v7945
    %v7947 = vcombine.low %v7723, %v7724
    %v7949 = vunpack.c.l.s4 1983009808
    %v7950 = vunpack.c.0.s8 %v7949
    %v7951 = vlaneseq
    %v7952 = vshrl.u32 %v7951, 7
    %v7953 = vsub.s32 %v7950, %v7952
    %v7954 = vrot.slane %v7947, %v7953
    %v7955 = vcombine.low %v7930, %v7938
    %v7957 = vunpack.c.l.s4 1934713408
    %v7958 = vunpack.c.0.s8 %v7957
    %v7959 = vlaneseq
    %v7960 = vshrl.u32 %v7959, 7
    %v7961 = vsub.s32 %v7958, %v7960
    %v7962 = vrot.slane %v7955, %v7961
    %v7963 = vcombine.low %v7946, %v7954
    %v7965 = vunpack.c.l.s4 1934713408
    %v7966 = vunpack.c.0.s8 %v7965
    %v7967 = vlaneseq
    %v7968 = vshrl.u32 %v7967, 7
    %v7969 = vsub.s32 %v7966, %v7968
    %v7970 = vrot.slane %v7963, %v7969
    %v7971 = vcombine.low %v7962, %v7970
    %v7972 = vcombine.high %v7962, %v7970
    %v7973 = vcombine.low %v7763, %v7770
    %v7975 = vunpack.c.l.s4 1983009808
    %v7976 = vunpack.c.0.s8 %v7975
    %v7977 = vlaneseq
    %v7978 = vshrl.u32 %v7977, 7
    %v7979 = vsub.s32 %v7976, %v7978
    %v7980 = vrot.slane %v7973, %v7979
    %v7981 = vcombine.low %v7787, %v7788
    %v7983 = vunpack.c.l.s4 1983009808
    %v7984 = vunpack.c.0.s8 %v7983
    %v7985 = vlaneseq
    %v7986 = vshrl.u32 %v7985, 7
    %v7987 = vsub.s32 %v7984, %v7986
    %v7988 = vrot.slane %v7981, %v7987
    %v7989 = vcombine.low %v7779, %v7786
    %v7991 = vunpack.c.l.s4 1983009808
    %v7992 = vunpack.c.0.s8 %v7991
    %v7993 = vlaneseq
    %v7994 = vshrl.u32 %v7993, 7
    %v7995 = vsub.s32 %v7992, %v7994
    %v7996 = vrot.slane %v7989, %v7995
    %v7997 = vcombine.low %v7789, %v7790
    %v7999 = vunpack.c.l.s4 1983009808
    %v8000 = vunpack.c.0.s8 %v7999
    %v8001 = vlaneseq
    %v8002 = vshrl.u32 %v8001, 7
    %v8003 = vsub.s32 %v8000, %v8002
    %v8004 = vrot.slane %v7997, %v8003
    %v8005 = vcombine.low %v7980, %v7988
    %v8007 = vunpack.c.l.s4 1934713408
    %v8008 = vunpack.c.0.s8 %v8007
    %v8009 = vlaneseq
    %v8010 = vshrl.u32 %v8009, 7
    %v8011 = vsub.s32 %v8008, %v8010
    %v8012 = vrot.slane %v8005, %v8011
    %v8013 = vcombine.low %v7996, %v8004
    %v8015 = vunpack.c.l.s4 1934713408
    %v8016 = vunpack.c.0.s8 %v8015
    %v8017 = vlaneseq
    %v8018 = vshrl.u32 %v8017, 7
    %v8019 = vsub.s32 %v8016, %v8018
    %v8020 = vrot.slane %v8013, %v8019
    %v8021 = vcombine.low %v8012, %v8020
    %v8022 = vcombine.high %v8012, %v8020
    %v8023 = vcombine.low %v7829, %v7836
    %v8025 = vunpack.c.l.s4 1983009808
    %v8026 = vunpack.c.0.s8 %v8025
    %v8027 = vlaneseq
    %v8028 = vshrl.u32 %v8027, 7
    %v8029 = vsub.s32 %v8026, %v8028
    %v8030 = vrot.slane %v8023, %v8029
    %v8031 = vcombine.low %v7853, %v7854
    %v8033 = vunpack.c.l.s4 1983009808
    %v8034 = vunpack.c.0.s8 %v8033
    %v8035 = vlaneseq
    %v8036 = vshrl.u32 %v8035, 7
    %v8037 = vsub.s32 %v8034, %v8036
    %v8038 = vrot.slane %v8031, %v8037
    %v8039 = vcombine.low %v7845, %v7852
    %v8041 = vunpack.c.l.s4 1983009808
    %v8042 = vunpack.c.0.s8 %v8041
    %v8043 = vlaneseq
    %v8044 = vshrl.u32 %v8043, 7
    %v8045 = vsub.s32 %v8042, %v8044
    %v8046 = vrot.slane %v8039, %v8045
    %v8047 = vcombine.low %v7855, %v7856
    %v8049 = vunpack.c.l.s4 1983009808
    %v8050 = vunpack.c.0.s8 %v8049
    %v8051 = vlaneseq
    %v8052 = vshrl.u32 %v8051, 7
    %v8053 = vsub.s32 %v8050, %v8052
    %v8054 = vrot.slane %v8047, %v8053
    %v8055 = vcombine.low %v8030, %v8038
    %v8057 = vunpack.c.l.s4 1934713408
    %v8058 = vunpack.c.0.s8 %v8057
    %v8059 = vlaneseq
    %v8060 = vshrl.u32 %v8059, 7
    %v8061 = vsub.s32 %v8058, %v8060
    %v8062 = vrot.slane %v8055, %v8061
    %v8063 = vcombine.low %v8046, %v8054
    %v8065 = vunpack.c.l.s4 1934713408
    %v8066 = vunpack.c.0.s8 %v8065
    %v8067 = vlaneseq
    %v8068 = vshrl.u32 %v8067, 7
    %v8069 = vsub.s32 %v8066, %v8068
    %v8070 = vrot.slane %v8063, %v8069
    %v8071 = vcombine.low %v8062, %v8070
    %v8072 = vcombine.high %v8062, %v8070
    %v8073 = vcombine.low %v7895, %v7902
    %v8075 = vunpack.c.l.s4 1983009808
    %v8076 = vunpack.c.0.s8 %v8075
    %v8077 = vlaneseq
    %v8078 = vshrl.u32 %v8077, 7
    %v8079 = vsub.s32 %v8076, %v8078
    %v8080 = vrot.slane %v8073, %v8079
    %v8081 = vcombine.low %v7919, %v7920
    %v8083 = vunpack.c.l.s4 1983009808
    %v8084 = vunpack.c.0.s8 %v8083
    %v8085 = vlaneseq
    %v8086 = vshrl.u32 %v8085, 7
    %v8087 = vsub.s32 %v8084, %v8086
    %v8088 = vrot.slane %v8081, %v8087
    %v8089 = vcombine.low %v7911, %v7918
    %v8091 = vunpack.c.l.s4 1983009808
    %v8092 = vunpack.c.0.s8 %v8091
    %v8093 = vlaneseq
    %v8094 = vshrl.u32 %v8093, 7
    %v8095 = vsub.s32 %v8092, %v8094
    %v8096 = vrot.slane %v8089, %v8095
    %v8097 = vcombine.low %v7921, %v7922
    %v8099 = vunpack.c.l.s4 1983009808
    %v8100 = vunpack.c.0.s8 %v8099
    %v8101 = vlaneseq
    %v8102 = vshrl.u32 %v8101, 7
    %v8103 = vsub.s32 %v8100, %v8102
    %v8104 = vrot.slane %v8097, %v8103
    %v8105 = vcombine.low %v8080, %v8088
    %v8107 = vunpack.c.l.s4 1934713408
    %v8108 = vunpack.c.0.s8 %v8107
    %v8109 = vlaneseq
    %v8110 = vshrl.u32 %v8109, 7
    %v8111 = vsub.s32 %v8108, %v8110
    %v8112 = vrot.slane %v8105, %v8111
    %v8113 = vcombine.low %v8096, %v8104
    %v8115 = vunpack.c.l.s4 1934713408
    %v8116 = vunpack.c.0.s8 %v8115
    %v8117 = vlaneseq
    %v8118 = vshrl.u32 %v8117, 7
    %v8119 = vsub.s32 %v8116, %v8118
    %v8120 = vrot.slane %v8113, %v8119
    %v8121 = vcombine.low %v8112, %v8120
    %v8122 = vcombine.high %v8112, %v8120
    %8127 = vrot.lane.b32.xlu0 %v7972, 16
    %v8128 = vpop.permute.xlu0 %8127
    %8129 = vrot.lane.b32.xlu0 %v8022, 16
    %v8130 = vpop.permute.xlu0 %8129
    %8131 = vrot.lane.b32.xlu0 %v8072, 16
    %v8132 = vpop.permute.xlu0 %8131
    %8133 = vrot.lane.b32.xlu0 %v8122, 16
    %v8134 = vpop.permute.xlu0 %8133
    %v8139 = vsel %vm1515, %v7971, %v8128
    %v8140 = vsel %vm1515, %v8021, %v8130
    %v8141 = vsel %vm1515, %v8071, %v8132
    %v8142 = vsel %vm1515, %v8121, %v8134
    %v8144 = vsel %vm155, %v7655, 0
    %8146 = vmatprep.subr.mxu0 0.0
    %8147 = vmatpush1.msra.mxu0 0.0
    %8148 = vmatprep.subr.mxu0 0.0
    %8149 = vmatpush1.msra.mxu0 0.0
    %8150 = vmatprep.subr.mxu0 0.0
    %8151 = vmatpush1.msra.mxu0 0.0
    %8152 = vmatprep.subr.mxu0 0.0
    %8153 = vmatpush1.msra.mxu0 0.0
    %8154 = vmatprep.subr.mxu0 0.0
    %8155 = vmatpush1.msra.mxu0 0.0
    %8156 = vmatprep.subr.mxu0 0.0
    %8157 = vmatpush1.msra.mxu0 0.0
    %8158 = vmatprep.subr.mxu0 0.0
    %8159 = vmatpush1.msra.mxu0 0.0
    %8160 = vmatprep.subr.mxu0 0.0
    %8161 = vmatpush1.msra.mxu0 0.0
    %8162 = vmatprep.subr.mxu0 0.0
    %8163 = vmatpush1.msra.mxu0 0.0
    %8164 = vmatprep.subr.mxu0 0.0
    %8165 = vmatpush1.msra.mxu0 0.0
    %8166 = vmatprep.subr.mxu0 0.0
    %8167 = vmatpush1.msra.mxu0 0.0
    %8168 = vmatprep.subr.mxu0 0.0
    %8169 = vmatpush1.msra.mxu0 0.0
    %8170 = vmatprep.subr.mxu0 0.0
    %8171 = vmatpush1.msra.mxu0 0.0
    %8172 = vmatprep.subr.mxu0 0.0
    %8173 = vmatpush1.msra.mxu0 0.0
    %8174 = vmatprep.subr.mxu0 0.0
    %8175 = vmatpush1.msra.mxu0 0.0
    %8176 = vmatprep.subr.mxu0 0.0
    %8177 = vmatpush1.msra.mxu0 %v8139
    %8178 = vmatprep.subr.mxu0 0.0
    %8179 = vmatpush2.msra.mxu0 0.0
    %8180 = vmatprep.subr.mxu0 0.0
    %8181 = vmatpush2.msra.mxu0 0.0
    %8182 = vmatprep.subr.mxu0 0.0
    %8183 = vmatpush2.msra.mxu0 0.0
    %8184 = vmatprep.subr.mxu0 0.0
    %8185 = vmatpush2.msra.mxu0 0.0
    %8186 = vmatprep.subr.mxu0 0.0
    %8187 = vmatpush2.msra.mxu0 0.0
    %8188 = vmatprep.subr.mxu0 0.0
    %8189 = vmatpush2.msra.mxu0 0.0
    %8190 = vmatprep.subr.mxu0 0.0
    %8191 = vmatpush2.msra.mxu0 0.0
    %8192 = vmatprep.subr.mxu0 0.0
    %8193 = vmatpush2.msra.mxu0 0.0
    %8194 = vmatprep.subr.mxu0 0.0
    %8195 = vmatpush2.msra.mxu0 0.0
    %8196 = vmatprep.subr.mxu0 0.0
    %8197 = vmatpush2.msra.mxu0 0.0
    %8198 = vmatprep.subr.mxu0 0.0
    %8199 = vmatpush2.msra.mxu0 0.0
    %8200 = vmatprep.subr.mxu0 0.0
    %8201 = vmatpush2.msra.mxu0 0.0
    %8202 = vmatprep.subr.mxu0 0.0
    %8203 = vmatpush2.msra.mxu0 0.0
    %8204 = vmatprep.subr.mxu0 0.0
    %8205 = vmatpush2.msra.mxu0 0.0
    %8206 = vmatprep.subr.mxu0 0.0
    %8207 = vmatpush2.msra.mxu0 0.0
    %8208 = vmatprep.subr.mxu0 0.0
    %8209 = vmatpush2.msra.mxu0 0.0
    %8210 = vmatprep.mubr.f32.mxu0 0.0
    %8211 = vmatmul.mubr.f32.gmra.mxu0 %v8144
    %v8212 = vpop.f32.mrf.mxu0
    %v8213 = vadd.f32 %v5394, %v8212
    %v8214 = vpop.f32.mrf.mxu0
    %8215 = vdwg.mxu0
    %v8217 = vsel %vm155, %v7656, 0
    %8219 = vmatprep.subr.mxu0 0.0
    %8220 = vmatpush1.msra.mxu0 0.0
    %8221 = vmatprep.subr.mxu0 0.0
    %8222 = vmatpush1.msra.mxu0 0.0
    %8223 = vmatprep.subr.mxu0 0.0
    %8224 = vmatpush1.msra.mxu0 0.0
    %8225 = vmatprep.subr.mxu0 0.0
    %8226 = vmatpush1.msra.mxu0 0.0
    %8227 = vmatprep.subr.mxu0 0.0
    %8228 = vmatpush1.msra.mxu0 0.0
    %8229 = vmatprep.subr.mxu0 0.0
    %8230 = vmatpush1.msra.mxu0 0.0
    %8231 = vmatprep.subr.mxu0 0.0
    %8232 = vmatpush1.msra.mxu0 0.0
    %8233 = vmatprep.subr.mxu0 0.0
    %8234 = vmatpush1.msra.mxu0 0.0
    %8235 = vmatprep.subr.mxu0 0.0
    %8236 = vmatpush1.msra.mxu0 0.0
    %8237 = vmatprep.subr.mxu0 0.0
    %8238 = vmatpush1.msra.mxu0 0.0
    %8239 = vmatprep.subr.mxu0 0.0
    %8240 = vmatpush1.msra.mxu0 0.0
    %8241 = vmatprep.subr.mxu0 0.0
    %8242 = vmatpush1.msra.mxu0 0.0
    %8243 = vmatprep.subr.mxu0 0.0
    %8244 = vmatpush1.msra.mxu0 0.0
    %8245 = vmatprep.subr.mxu0 0.0
    %8246 = vmatpush1.msra.mxu0 0.0
    %8247 = vmatprep.subr.mxu0 0.0
    %8248 = vmatpush1.msra.mxu0 0.0
    %8249 = vmatprep.subr.mxu0 0.0
    %8250 = vmatpush1.msra.mxu0 %v8140
    %8251 = vmatprep.subr.mxu0 0.0
    %8252 = vmatpush2.msra.mxu0 0.0
    %8253 = vmatprep.subr.mxu0 0.0
    %8254 = vmatpush2.msra.mxu0 0.0
    %8255 = vmatprep.subr.mxu0 0.0
    %8256 = vmatpush2.msra.mxu0 0.0
    %8257 = vmatprep.subr.mxu0 0.0
    %8258 = vmatpush2.msra.mxu0 0.0
    %8259 = vmatprep.subr.mxu0 0.0
    %8260 = vmatpush2.msra.mxu0 0.0
    %8261 = vmatprep.subr.mxu0 0.0
    %8262 = vmatpush2.msra.mxu0 0.0
    %8263 = vmatprep.subr.mxu0 0.0
    %8264 = vmatpush2.msra.mxu0 0.0
    %8265 = vmatprep.subr.mxu0 0.0
    %8266 = vmatpush2.msra.mxu0 0.0
    %8267 = vmatprep.subr.mxu0 0.0
    %8268 = vmatpush2.msra.mxu0 0.0
    %8269 = vmatprep.subr.mxu0 0.0
    %8270 = vmatpush2.msra.mxu0 0.0
    %8271 = vmatprep.subr.mxu0 0.0
    %8272 = vmatpush2.msra.mxu0 0.0
    %8273 = vmatprep.subr.mxu0 0.0
    %8274 = vmatpush2.msra.mxu0 0.0
    %8275 = vmatprep.subr.mxu0 0.0
    %8276 = vmatpush2.msra.mxu0 0.0
    %8277 = vmatprep.subr.mxu0 0.0
    %8278 = vmatpush2.msra.mxu0 0.0
    %8279 = vmatprep.subr.mxu0 0.0
    %8280 = vmatpush2.msra.mxu0 0.0
    %8281 = vmatprep.subr.mxu0 0.0
    %8282 = vmatpush2.msra.mxu0 0.0
    %8283 = vmatprep.mubr.f32.mxu0 0.0
    %8284 = vmatmul.mubr.f32.gmra.mxu0 %v8217
    %v8285 = vpop.f32.mrf.mxu0
    %v8286 = vadd.f32 %v5394, %v8285
    %v8287 = vpop.f32.mrf.mxu0
    %8288 = vdwg.mxu0
    %v8290 = vsel %vm155, %v7657, 0
    %8292 = vmatprep.subr.mxu0 0.0
    %8293 = vmatpush1.msra.mxu0 0.0
    %8294 = vmatprep.subr.mxu0 0.0
    %8295 = vmatpush1.msra.mxu0 0.0
    %8296 = vmatprep.subr.mxu0 0.0
    %8297 = vmatpush1.msra.mxu0 0.0
    %8298 = vmatprep.subr.mxu0 0.0
    %8299 = vmatpush1.msra.mxu0 0.0
    %8300 = vmatprep.subr.mxu0 0.0
    %8301 = vmatpush1.msra.mxu0 0.0
    %8302 = vmatprep.subr.mxu0 0.0
    %8303 = vmatpush1.msra.mxu0 0.0
    %8304 = vmatprep.subr.mxu0 0.0
    %8305 = vmatpush1.msra.mxu0 0.0
    %8306 = vmatprep.subr.mxu0 0.0
    %8307 = vmatpush1.msra.mxu0 0.0
    %8308 = vmatprep.subr.mxu0 0.0
    %8309 = vmatpush1.msra.mxu0 0.0
    %8310 = vmatprep.subr.mxu0 0.0
    %8311 = vmatpush1.msra.mxu0 0.0
    %8312 = vmatprep.subr.mxu0 0.0
    %8313 = vmatpush1.msra.mxu0 0.0
    %8314 = vmatprep.subr.mxu0 0.0
    %8315 = vmatpush1.msra.mxu0 0.0
    %8316 = vmatprep.subr.mxu0 0.0
    %8317 = vmatpush1.msra.mxu0 0.0
    %8318 = vmatprep.subr.mxu0 0.0
    %8319 = vmatpush1.msra.mxu0 0.0
    %8320 = vmatprep.subr.mxu0 0.0
    %8321 = vmatpush1.msra.mxu0 0.0
    %8322 = vmatprep.subr.mxu0 0.0
    %8323 = vmatpush1.msra.mxu0 %v8141
    %8324 = vmatprep.subr.mxu0 0.0
    %8325 = vmatpush2.msra.mxu0 0.0
    %8326 = vmatprep.subr.mxu0 0.0
    %8327 = vmatpush2.msra.mxu0 0.0
    %8328 = vmatprep.subr.mxu0 0.0
    %8329 = vmatpush2.msra.mxu0 0.0
    %8330 = vmatprep.subr.mxu0 0.0
    %8331 = vmatpush2.msra.mxu0 0.0
    %8332 = vmatprep.subr.mxu0 0.0
    %8333 = vmatpush2.msra.mxu0 0.0
    %8334 = vmatprep.subr.mxu0 0.0
    %8335 = vmatpush2.msra.mxu0 0.0
    %8336 = vmatprep.subr.mxu0 0.0
    %8337 = vmatpush2.msra.mxu0 0.0
    %8338 = vmatprep.subr.mxu0 0.0
    %8339 = vmatpush2.msra.mxu0 0.0
    %8340 = vmatprep.subr.mxu0 0.0
    %8341 = vmatpush2.msra.mxu0 0.0
    %8342 = vmatprep.subr.mxu0 0.0
    %8343 = vmatpush2.msra.mxu0 0.0
    %8344 = vmatprep.subr.mxu0 0.0
    %8345 = vmatpush2.msra.mxu0 0.0
    %8346 = vmatprep.subr.mxu0 0.0
    %8347 = vmatpush2.msra.mxu0 0.0
    %8348 = vmatprep.subr.mxu0 0.0
    %8349 = vmatpush2.msra.mxu0 0.0
    %8350 = vmatprep.subr.mxu0 0.0
    %8351 = vmatpush2.msra.mxu0 0.0
    %8352 = vmatprep.subr.mxu0 0.0
    %8353 = vmatpush2.msra.mxu0 0.0
    %8354 = vmatprep.subr.mxu0 0.0
    %8355 = vmatpush2.msra.mxu0 0.0
    %8356 = vmatprep.mubr.f32.mxu0 0.0
    %8357 = vmatmul.mubr.f32.gmra.mxu0 %v8290
    %v8358 = vpop.f32.mrf.mxu0
    %v8359 = vadd.f32 %v5394, %v8358
    %v8360 = vpop.f32.mrf.mxu0
    %8361 = vdwg.mxu0
    %v8363 = vsel %vm155, %v7658, 0
    %8365 = vmatprep.subr.mxu0 0.0
    %8366 = vmatpush1.msra.mxu0 0.0
    %8367 = vmatprep.subr.mxu0 0.0
    %8368 = vmatpush1.msra.mxu0 0.0
    %8369 = vmatprep.subr.mxu0 0.0
    %8370 = vmatpush1.msra.mxu0 0.0
    %8371 = vmatprep.subr.mxu0 0.0
    %8372 = vmatpush1.msra.mxu0 0.0
    %8373 = vmatprep.subr.mxu0 0.0
    %8374 = vmatpush1.msra.mxu0 0.0
    %8375 = vmatprep.subr.mxu0 0.0
    %8376 = vmatpush1.msra.mxu0 0.0
    %8377 = vmatprep.subr.mxu0 0.0
    %8378 = vmatpush1.msra.mxu0 0.0
    %8379 = vmatprep.subr.mxu0 0.0
    %8380 = vmatpush1.msra.mxu0 0.0
    %8381 = vmatprep.subr.mxu0 0.0
    %8382 = vmatpush1.msra.mxu0 0.0
    %8383 = vmatprep.subr.mxu0 0.0
    %8384 = vmatpush1.msra.mxu0 0.0
    %8385 = vmatprep.subr.mxu0 0.0
    %8386 = vmatpush1.msra.mxu0 0.0
    %8387 = vmatprep.subr.mxu0 0.0
    %8388 = vmatpush1.msra.mxu0 0.0
    %8389 = vmatprep.subr.mxu0 0.0
    %8390 = vmatpush1.msra.mxu0 0.0
    %8391 = vmatprep.subr.mxu0 0.0
    %8392 = vmatpush1.msra.mxu0 0.0
    %8393 = vmatprep.subr.mxu0 0.0
    %8394 = vmatpush1.msra.mxu0 0.0
    %8395 = vmatprep.subr.mxu0 0.0
    %8396 = vmatpush1.msra.mxu0 %v8142
    %8397 = vmatprep.subr.mxu0 0.0
    %8398 = vmatpush2.msra.mxu0 0.0
    %8399 = vmatprep.subr.mxu0 0.0
    %8400 = vmatpush2.msra.mxu0 0.0
    %8401 = vmatprep.subr.mxu0 0.0
    %8402 = vmatpush2.msra.mxu0 0.0
    %8403 = vmatprep.subr.mxu0 0.0
    %8404 = vmatpush2.msra.mxu0 0.0
    %8405 = vmatprep.subr.mxu0 0.0
    %8406 = vmatpush2.msra.mxu0 0.0
    %8407 = vmatprep.subr.mxu0 0.0
    %8408 = vmatpush2.msra.mxu0 0.0
    %8409 = vmatprep.subr.mxu0 0.0
    %8410 = vmatpush2.msra.mxu0 0.0
    %8411 = vmatprep.subr.mxu0 0.0
    %8412 = vmatpush2.msra.mxu0 0.0
    %8413 = vmatprep.subr.mxu0 0.0
    %8414 = vmatpush2.msra.mxu0 0.0
    %8415 = vmatprep.subr.mxu0 0.0
    %8416 = vmatpush2.msra.mxu0 0.0
    %8417 = vmatprep.subr.mxu0 0.0
    %8418 = vmatpush2.msra.mxu0 0.0
    %8419 = vmatprep.subr.mxu0 0.0
    %8420 = vmatpush2.msra.mxu0 0.0
    %8421 = vmatprep.subr.mxu0 0.0
    %8422 = vmatpush2.msra.mxu0 0.0
    %8423 = vmatprep.subr.mxu0 0.0
    %8424 = vmatpush2.msra.mxu0 0.0
    %8425 = vmatprep.subr.mxu0 0.0
    %8426 = vmatpush2.msra.mxu0 0.0
    %8427 = vmatprep.subr.mxu0 0.0
    %8428 = vmatpush2.msra.mxu0 0.0
    %8429 = vmatprep.mubr.f32.mxu0 0.0
    %8430 = vmatmul.mubr.f32.gmra.mxu0 %v8363
    %v8431 = vpop.f32.mrf.mxu0
    %v8432 = vadd.f32 %v5394, %v8431
    %v8433 = vpop.f32.mrf.mxu0
    %8434 = vdwg.mxu0
    %8439 = vrot.lane.b32.xlu0 %v8213, 112
    %v8440 = vpop.permute.xlu0 %8439
    %8441 = vrot.lane.b32.xlu0 %v8286, 112
    %v8442 = vpop.permute.xlu0 %8441
    %8443 = vrot.lane.b32.xlu0 %v8359, 112
    %v8444 = vpop.permute.xlu0 %8443
    %8445 = vrot.lane.b32.xlu0 %v8432, 112
    %v8446 = vpop.permute.xlu0 %8445
    %v8451 = vcombine.high %v8213, 0.0
    %v8453 = vunpack.c.l.s4 1983009808
    %v8454 = vunpack.c.0.s8 %v8453
    %v8455 = vlaneseq
    %v8456 = vshrl.u32 %v8455, 7
    %v8457 = vsub.s32 %v8454, %v8456
    %v8458 = vrot.slane %v8213, %v8457
    %v8460 = vunpack.c.l.s4 1983009808
    %v8461 = vunpack.c.0.s8 %v8460
    %v8462 = vlaneseq
    %v8463 = vshrl.u32 %v8462, 7
    %v8464 = vsub.s32 %v8461, %v8463
    %v8465 = vrot.slane %v8451, %v8464
    %v8466 = vcombine.high %v8440, 0.0
    %v8468 = vunpack.c.l.s4 1983009808
    %v8469 = vunpack.c.0.s8 %v8468
    %v8470 = vlaneseq
    %v8471 = vshrl.u32 %v8470, 7
    %v8472 = vsub.s32 %v8469, %v8471
    %v8473 = vrot.slane %v8440, %v8472
    %v8475 = vunpack.c.l.s4 1983009808
    %v8476 = vunpack.c.0.s8 %v8475
    %v8477 = vlaneseq
    %v8478 = vshrl.u32 %v8477, 7
    %v8479 = vsub.s32 %v8476, %v8478
    %v8480 = vrot.slane %v8466, %v8479
    %v8481 = vcombine.low %v8458, %v8473
    %v8482 = vcombine.high %v8458, %v8473
    %v8484 = vunpack.c.l.s4 1934713408
    %v8485 = vunpack.c.0.s8 %v8484
    %v8486 = vlaneseq
    %v8487 = vshrl.u32 %v8486, 7
    %v8488 = vsub.s32 %v8485, %v8487
    %v8489 = vrot.slane %v8481, %v8488
    %v8491 = vunpack.c.l.s4 1934713408
    %v8492 = vunpack.c.0.s8 %v8491
    %v8493 = vlaneseq
    %v8494 = vshrl.u32 %v8493, 7
    %v8495 = vsub.s32 %v8492, %v8494
    %v8496 = vrot.slane %v8482, %v8495
    %v8497 = vcombine.low %v8465, %v8480
    %v8498 = vcombine.high %v8465, %v8480
    %v8500 = vunpack.c.l.s4 1934713408
    %v8501 = vunpack.c.0.s8 %v8500
    %v8502 = vlaneseq
    %v8503 = vshrl.u32 %v8502, 7
    %v8504 = vsub.s32 %v8501, %v8503
    %v8505 = vrot.slane %v8497, %v8504
    %v8507 = vunpack.c.l.s4 1934713408
    %v8508 = vunpack.c.0.s8 %v8507
    %v8509 = vlaneseq
    %v8510 = vshrl.u32 %v8509, 7
    %v8511 = vsub.s32 %v8508, %v8510
    %v8512 = vrot.slane %v8498, %v8511
    %v8513 = vcombine.high %v8489, 0.0
    %v8514 = vcombine.high %v8496, 0.0
    %v8515 = vcombine.high %v8505, 0.0
    %v8516 = vcombine.high %v8512, 0.0
    %v8517 = vcombine.high %v8286, 0.0
    %v8519 = vunpack.c.l.s4 1983009808
    %v8520 = vunpack.c.0.s8 %v8519
    %v8521 = vlaneseq
    %v8522 = vshrl.u32 %v8521, 7
    %v8523 = vsub.s32 %v8520, %v8522
    %v8524 = vrot.slane %v8286, %v8523
    %v8526 = vunpack.c.l.s4 1983009808
    %v8527 = vunpack.c.0.s8 %v8526
    %v8528 = vlaneseq
    %v8529 = vshrl.u32 %v8528, 7
    %v8530 = vsub.s32 %v8527, %v8529
    %v8531 = vrot.slane %v8517, %v8530
    %v8532 = vcombine.high %v8442, 0.0
    %v8534 = vunpack.c.l.s4 1983009808
    %v8535 = vunpack.c.0.s8 %v8534
    %v8536 = vlaneseq
    %v8537 = vshrl.u32 %v8536, 7
    %v8538 = vsub.s32 %v8535, %v8537
    %v8539 = vrot.slane %v8442, %v8538
    %v8541 = vunpack.c.l.s4 1983009808
    %v8542 = vunpack.c.0.s8 %v8541
    %v8543 = vlaneseq
    %v8544 = vshrl.u32 %v8543, 7
    %v8545 = vsub.s32 %v8542, %v8544
    %v8546 = vrot.slane %v8532, %v8545
    %v8547 = vcombine.low %v8524, %v8539
    %v8548 = vcombine.high %v8524, %v8539
    %v8550 = vunpack.c.l.s4 1934713408
    %v8551 = vunpack.c.0.s8 %v8550
    %v8552 = vlaneseq
    %v8553 = vshrl.u32 %v8552, 7
    %v8554 = vsub.s32 %v8551, %v8553
    %v8555 = vrot.slane %v8547, %v8554
    %v8557 = vunpack.c.l.s4 1934713408
    %v8558 = vunpack.c.0.s8 %v8557
    %v8559 = vlaneseq
    %v8560 = vshrl.u32 %v8559, 7
    %v8561 = vsub.s32 %v8558, %v8560
    %v8562 = vrot.slane %v8548, %v8561
    %v8563 = vcombine.low %v8531, %v8546
    %v8564 = vcombine.high %v8531, %v8546
    %v8566 = vunpack.c.l.s4 1934713408
    %v8567 = vunpack.c.0.s8 %v8566
    %v8568 = vlaneseq
    %v8569 = vshrl.u32 %v8568, 7
    %v8570 = vsub.s32 %v8567, %v8569
    %v8571 = vrot.slane %v8563, %v8570
    %v8573 = vunpack.c.l.s4 1934713408
    %v8574 = vunpack.c.0.s8 %v8573
    %v8575 = vlaneseq
    %v8576 = vshrl.u32 %v8575, 7
    %v8577 = vsub.s32 %v8574, %v8576
    %v8578 = vrot.slane %v8564, %v8577
    %v8579 = vcombine.high %v8555, 0.0
    %v8580 = vcombine.high %v8562, 0.0
    %v8581 = vcombine.high %v8571, 0.0
    %v8582 = vcombine.high %v8578, 0.0
    %v8583 = vcombine.high %v8359, 0.0
    %v8585 = vunpack.c.l.s4 1983009808
    %v8586 = vunpack.c.0.s8 %v8585
    %v8587 = vlaneseq
    %v8588 = vshrl.u32 %v8587, 7
    %v8589 = vsub.s32 %v8586, %v8588
    %v8590 = vrot.slane %v8359, %v8589
    %v8592 = vunpack.c.l.s4 1983009808
    %v8593 = vunpack.c.0.s8 %v8592
    %v8594 = vlaneseq
    %v8595 = vshrl.u32 %v8594, 7
    %v8596 = vsub.s32 %v8593, %v8595
    %v8597 = vrot.slane %v8583, %v8596
    %v8598 = vcombine.high %v8444, 0.0
    %v8600 = vunpack.c.l.s4 1983009808
    %v8601 = vunpack.c.0.s8 %v8600
    %v8602 = vlaneseq
    %v8603 = vshrl.u32 %v8602, 7
    %v8604 = vsub.s32 %v8601, %v8603
    %v8605 = vrot.slane %v8444, %v8604
    %v8607 = vunpack.c.l.s4 1983009808
    %v8608 = vunpack.c.0.s8 %v8607
    %v8609 = vlaneseq
    %v8610 = vshrl.u32 %v8609, 7
    %v8611 = vsub.s32 %v8608, %v8610
    %v8612 = vrot.slane %v8598, %v8611
    %v8613 = vcombine.low %v8590, %v8605
    %v8614 = vcombine.high %v8590, %v8605
    %v8616 = vunpack.c.l.s4 1934713408
    %v8617 = vunpack.c.0.s8 %v8616
    %v8618 = vlaneseq
    %v8619 = vshrl.u32 %v8618, 7
    %v8620 = vsub.s32 %v8617, %v8619
    %v8621 = vrot.slane %v8613, %v8620
    %v8623 = vunpack.c.l.s4 1934713408
    %v8624 = vunpack.c.0.s8 %v8623
    %v8625 = vlaneseq
    %v8626 = vshrl.u32 %v8625, 7
    %v8627 = vsub.s32 %v8624, %v8626
    %v8628 = vrot.slane %v8614, %v8627
    %v8629 = vcombine.low %v8597, %v8612
    %v8630 = vcombine.high %v8597, %v8612
    %v8632 = vunpack.c.l.s4 1934713408
    %v8633 = vunpack.c.0.s8 %v8632
    %v8634 = vlaneseq
    %v8635 = vshrl.u32 %v8634, 7
    %v8636 = vsub.s32 %v8633, %v8635
    %v8637 = vrot.slane %v8629, %v8636
    %v8639 = vunpack.c.l.s4 1934713408
    %v8640 = vunpack.c.0.s8 %v8639
    %v8641 = vlaneseq
    %v8642 = vshrl.u32 %v8641, 7
    %v8643 = vsub.s32 %v8640, %v8642
    %v8644 = vrot.slane %v8630, %v8643
    %v8645 = vcombine.high %v8621, 0.0
    %v8646 = vcombine.high %v8628, 0.0
    %v8647 = vcombine.high %v8637, 0.0
    %v8648 = vcombine.high %v8644, 0.0
    %v8649 = vcombine.high %v8432, 0.0
    %v8651 = vunpack.c.l.s4 1983009808
    %v8652 = vunpack.c.0.s8 %v8651
    %v8653 = vlaneseq
    %v8654 = vshrl.u32 %v8653, 7
    %v8655 = vsub.s32 %v8652, %v8654
    %v8656 = vrot.slane %v8432, %v8655
    %v8658 = vunpack.c.l.s4 1983009808
    %v8659 = vunpack.c.0.s8 %v8658
    %v8660 = vlaneseq
    %v8661 = vshrl.u32 %v8660, 7
    %v8662 = vsub.s32 %v8659, %v8661
    %v8663 = vrot.slane %v8649, %v8662
    %v8664 = vcombine.high %v8446, 0.0
    %v8666 = vunpack.c.l.s4 1983009808
    %v8667 = vunpack.c.0.s8 %v8666
    %v8668 = vlaneseq
    %v8669 = vshrl.u32 %v8668, 7
    %v8670 = vsub.s32 %v8667, %v8669
    %v8671 = vrot.slane %v8446, %v8670
    %v8673 = vunpack.c.l.s4 1983009808
    %v8674 = vunpack.c.0.s8 %v8673
    %v8675 = vlaneseq
    %v8676 = vshrl.u32 %v8675, 7
    %v8677 = vsub.s32 %v8674, %v8676
    %v8678 = vrot.slane %v8664, %v8677
    %v8679 = vcombine.low %v8656, %v8671
    %v8680 = vcombine.high %v8656, %v8671
    %v8682 = vunpack.c.l.s4 1934713408
    %v8683 = vunpack.c.0.s8 %v8682
    %v8684 = vlaneseq
    %v8685 = vshrl.u32 %v8684, 7
    %v8686 = vsub.s32 %v8683, %v8685
    %v8687 = vrot.slane %v8679, %v8686
    %v8689 = vunpack.c.l.s4 1934713408
    %v8690 = vunpack.c.0.s8 %v8689
    %v8691 = vlaneseq
    %v8692 = vshrl.u32 %v8691, 7
    %v8693 = vsub.s32 %v8690, %v8692
    %v8694 = vrot.slane %v8680, %v8693
    %v8695 = vcombine.low %v8663, %v8678
    %v8696 = vcombine.high %v8663, %v8678
    %v8698 = vunpack.c.l.s4 1934713408
    %v8699 = vunpack.c.0.s8 %v8698
    %v8700 = vlaneseq
    %v8701 = vshrl.u32 %v8700, 7
    %v8702 = vsub.s32 %v8699, %v8701
    %v8703 = vrot.slane %v8695, %v8702
    %v8705 = vunpack.c.l.s4 1934713408
    %v8706 = vunpack.c.0.s8 %v8705
    %v8707 = vlaneseq
    %v8708 = vshrl.u32 %v8707, 7
    %v8709 = vsub.s32 %v8706, %v8708
    %v8710 = vrot.slane %v8696, %v8709
    %v8711 = vcombine.high %v8687, 0.0
    %v8712 = vcombine.high %v8694, 0.0
    %v8713 = vcombine.high %v8703, 0.0
    %v8714 = vcombine.high %v8710, 0.0
    %v8715 = vcombine.low %v8489, %v8496
    %v8717 = vunpack.c.l.s4 1983009808
    %v8718 = vunpack.c.0.s8 %v8717
    %v8719 = vlaneseq
    %v8720 = vshrl.u32 %v8719, 7
    %v8721 = vsub.s32 %v8718, %v8720
    %v8722 = vrot.slane %v8715, %v8721
    %v8723 = vcombine.low %v8513, %v8514
    %v8725 = vunpack.c.l.s4 1983009808
    %v8726 = vunpack.c.0.s8 %v8725
    %v8727 = vlaneseq
    %v8728 = vshrl.u32 %v8727, 7
    %v8729 = vsub.s32 %v8726, %v8728
    %v8730 = vrot.slane %v8723, %v8729
    %v8731 = vcombine.low %v8505, %v8512
    %v8733 = vunpack.c.l.s4 1983009808
    %v8734 = vunpack.c.0.s8 %v8733
    %v8735 = vlaneseq
    %v8736 = vshrl.u32 %v8735, 7
    %v8737 = vsub.s32 %v8734, %v8736
    %v8738 = vrot.slane %v8731, %v8737
    %v8739 = vcombine.low %v8515, %v8516
    %v8741 = vunpack.c.l.s4 1983009808
    %v8742 = vunpack.c.0.s8 %v8741
    %v8743 = vlaneseq
    %v8744 = vshrl.u32 %v8743, 7
    %v8745 = vsub.s32 %v8742, %v8744
    %v8746 = vrot.slane %v8739, %v8745
    %v8747 = vcombine.low %v8722, %v8730
    %v8749 = vunpack.c.l.s4 1934713408
    %v8750 = vunpack.c.0.s8 %v8749
    %v8751 = vlaneseq
    %v8752 = vshrl.u32 %v8751, 7
    %v8753 = vsub.s32 %v8750, %v8752
    %v8754 = vrot.slane %v8747, %v8753
    %v8755 = vcombine.low %v8738, %v8746
    %v8757 = vunpack.c.l.s4 1934713408
    %v8758 = vunpack.c.0.s8 %v8757
    %v8759 = vlaneseq
    %v8760 = vshrl.u32 %v8759, 7
    %v8761 = vsub.s32 %v8758, %v8760
    %v8762 = vrot.slane %v8755, %v8761
    %v8763 = vcombine.low %v8754, %v8762
    %v8764 = vcombine.high %v8754, %v8762
    %v8765 = vcombine.low %v8555, %v8562
    %v8767 = vunpack.c.l.s4 1983009808
    %v8768 = vunpack.c.0.s8 %v8767
    %v8769 = vlaneseq
    %v8770 = vshrl.u32 %v8769, 7
    %v8771 = vsub.s32 %v8768, %v8770
    %v8772 = vrot.slane %v8765, %v8771
    %v8773 = vcombine.low %v8579, %v8580
    %v8775 = vunpack.c.l.s4 1983009808
    %v8776 = vunpack.c.0.s8 %v8775
    %v8777 = vlaneseq
    %v8778 = vshrl.u32 %v8777, 7
    %v8779 = vsub.s32 %v8776, %v8778
    %v8780 = vrot.slane %v8773, %v8779
    %v8781 = vcombine.low %v8571, %v8578
    %v8783 = vunpack.c.l.s4 1983009808
    %v8784 = vunpack.c.0.s8 %v8783
    %v8785 = vlaneseq
    %v8786 = vshrl.u32 %v8785, 7
    %v8787 = vsub.s32 %v8784, %v8786
    %v8788 = vrot.slane %v8781, %v8787
    %v8789 = vcombine.low %v8581, %v8582
    %v8791 = vunpack.c.l.s4 1983009808
    %v8792 = vunpack.c.0.s8 %v8791
    %v8793 = vlaneseq
    %v8794 = vshrl.u32 %v8793, 7
    %v8795 = vsub.s32 %v8792, %v8794
    %v8796 = vrot.slane %v8789, %v8795
    %v8797 = vcombine.low %v8772, %v8780
    %v8799 = vunpack.c.l.s4 1934713408
    %v8800 = vunpack.c.0.s8 %v8799
    %v8801 = vlaneseq
    %v8802 = vshrl.u32 %v8801, 7
    %v8803 = vsub.s32 %v8800, %v8802
    %v8804 = vrot.slane %v8797, %v8803
    %v8805 = vcombine.low %v8788, %v8796
    %v8807 = vunpack.c.l.s4 1934713408
    %v8808 = vunpack.c.0.s8 %v8807
    %v8809 = vlaneseq
    %v8810 = vshrl.u32 %v8809, 7
    %v8811 = vsub.s32 %v8808, %v8810
    %v8812 = vrot.slane %v8805, %v8811
    %v8813 = vcombine.low %v8804, %v8812
    %v8814 = vcombine.high %v8804, %v8812
    %v8815 = vcombine.low %v8621, %v8628
    %v8817 = vunpack.c.l.s4 1983009808
    %v8818 = vunpack.c.0.s8 %v8817
    %v8819 = vlaneseq
    %v8820 = vshrl.u32 %v8819, 7
    %v8821 = vsub.s32 %v8818, %v8820
    %v8822 = vrot.slane %v8815, %v8821
    %v8823 = vcombine.low %v8645, %v8646
    %v8825 = vunpack.c.l.s4 1983009808
    %v8826 = vunpack.c.0.s8 %v8825
    %v8827 = vlaneseq
    %v8828 = vshrl.u32 %v8827, 7
    %v8829 = vsub.s32 %v8826, %v8828
    %v8830 = vrot.slane %v8823, %v8829
    %v8831 = vcombine.low %v8637, %v8644
    %v8833 = vunpack.c.l.s4 1983009808
    %v8834 = vunpack.c.0.s8 %v8833
    %v8835 = vlaneseq
    %v8836 = vshrl.u32 %v8835, 7
    %v8837 = vsub.s32 %v8834, %v8836
    %v8838 = vrot.slane %v8831, %v8837
    %v8839 = vcombine.low %v8647, %v8648
    %v8841 = vunpack.c.l.s4 1983009808
    %v8842 = vunpack.c.0.s8 %v8841
    %v8843 = vlaneseq
    %v8844 = vshrl.u32 %v8843, 7
    %v8845 = vsub.s32 %v8842, %v8844
    %v8846 = vrot.slane %v8839, %v8845
    %v8847 = vcombine.low %v8822, %v8830
    %v8849 = vunpack.c.l.s4 1934713408
    %v8850 = vunpack.c.0.s8 %v8849
    %v8851 = vlaneseq
    %v8852 = vshrl.u32 %v8851, 7
    %v8853 = vsub.s32 %v8850, %v8852
    %v8854 = vrot.slane %v8847, %v8853
    %v8855 = vcombine.low %v8838, %v8846
    %v8857 = vunpack.c.l.s4 1934713408
    %v8858 = vunpack.c.0.s8 %v8857
    %v8859 = vlaneseq
    %v8860 = vshrl.u32 %v8859, 7
    %v8861 = vsub.s32 %v8858, %v8860
    %v8862 = vrot.slane %v8855, %v8861
    %v8863 = vcombine.low %v8854, %v8862
    %v8864 = vcombine.high %v8854, %v8862
    %v8865 = vcombine.low %v8687, %v8694
    %v8867 = vunpack.c.l.s4 1983009808
    %v8868 = vunpack.c.0.s8 %v8867
    %v8869 = vlaneseq
    %v8870 = vshrl.u32 %v8869, 7
    %v8871 = vsub.s32 %v8868, %v8870
    %v8872 = vrot.slane %v8865, %v8871
    %v8873 = vcombine.low %v8711, %v8712
    %v8875 = vunpack.c.l.s4 1983009808
    %v8876 = vunpack.c.0.s8 %v8875
    %v8877 = vlaneseq
    %v8878 = vshrl.u32 %v8877, 7
    %v8879 = vsub.s32 %v8876, %v8878
    %v8880 = vrot.slane %v8873, %v8879
    %v8881 = vcombine.low %v8703, %v8710
    %v8883 = vunpack.c.l.s4 1983009808
    %v8884 = vunpack.c.0.s8 %v8883
    %v8885 = vlaneseq
    %v8886 = vshrl.u32 %v8885, 7
    %v8887 = vsub.s32 %v8884, %v8886
    %v8888 = vrot.slane %v8881, %v8887
    %v8889 = vcombine.low %v8713, %v8714
    %v8891 = vunpack.c.l.s4 1983009808
    %v8892 = vunpack.c.0.s8 %v8891
    %v8893 = vlaneseq
    %v8894 = vshrl.u32 %v8893, 7
    %v8895 = vsub.s32 %v8892, %v8894
    %v8896 = vrot.slane %v8889, %v8895
    %v8897 = vcombine.low %v8872, %v8880
    %v8899 = vunpack.c.l.s4 1934713408
    %v8900 = vunpack.c.0.s8 %v8899
    %v8901 = vlaneseq
    %v8902 = vshrl.u32 %v8901, 7
    %v8903 = vsub.s32 %v8900, %v8902
    %v8904 = vrot.slane %v8897, %v8903
    %v8905 = vcombine.low %v8888, %v8896
    %v8907 = vunpack.c.l.s4 1934713408
    %v8908 = vunpack.c.0.s8 %v8907
    %v8909 = vlaneseq
    %v8910 = vshrl.u32 %v8909, 7
    %v8911 = vsub.s32 %v8908, %v8910
    %v8912 = vrot.slane %v8905, %v8911
    %v8913 = vcombine.low %v8904, %v8912
    %v8914 = vcombine.high %v8904, %v8912
    %v8915 = vadd.f32 %v7541, %v8763
    %v8916 = vadd.f32 %v7542, %v8764
    %v8917 = vadd.f32 %v7543, %v8813
    %v8918 = vadd.f32 %v7544, %v8814
    %v8919 = vadd.f32 %v7545, %v8863
    %v8920 = vadd.f32 %v7546, %v8864
    %v8921 = vadd.f32 %v7547, %v8913
    %v8922 = vadd.f32 %v7548, %v8914
    %v8923 = vld [vmem:[%s14] sm:$0xf]
    %v8924 = vlaneseq
    %v8925 = vshrl.u32 %v8924, 7
    %v8926 = vsub.s32 0, %v8925
    %v8927 = vrot.slane %v8923, %v8926
    %8929 = vbcast.lane.b32.xlu0 %v8927, 256
    %v8930 = vpop.permute.xlu0 %8929
    %v8931 = vlaneseq
    %v8932 = vshrl.u32 %v8931, 7
    %v8933 = vsub.s32 1, %v8932
    %v8934 = vrot.slane %v8923, %v8933
    %8936 = vbcast.lane.b32.xlu0 %v8934, 256
    %v8937 = vpop.permute.xlu0 %8936
    %v8938 = vlaneseq
    %v8939 = vshrl.u32 %v8938, 7
    %v8940 = vsub.s32 2, %v8939
    %v8941 = vrot.slane %v8923, %v8940
    %8943 = vbcast.lane.b32.xlu0 %v8941, 256
    %v8944 = vpop.permute.xlu0 %8943
    %v8945 = vlaneseq
    %v8946 = vshrl.u32 %v8945, 7
    %v8947 = vsub.s32 3, %v8946
    %v8948 = vrot.slane %v8923, %v8947
    %8950 = vbcast.lane.b32.xlu0 %v8948, 256
    %v8951 = vpop.permute.xlu0 %8950
    %v8952 = vadd.f32 %v8915, %v8930
    %v8953 = vadd.f32 %v8916, %v8930
    %v8954 = vadd.f32 %v8917, %v8937
    %v8955 = vadd.f32 %v8918, %v8937
    %v8956 = vadd.f32 %v8919, %v8944
    %v8957 = vadd.f32 %v8920, %v8944
    %v8958 = vadd.f32 %v8921, %v8951
    %v8959 = vadd.f32 %v8922, %v8951
    %v8960 = vld [vmem:[%s15] sm:$0xf]
    %v8961 = vlaneseq
    %v8962 = vshrl.u32 %v8961, 7
    %v8963 = vsub.s32 0, %v8962
    %v8964 = vrot.slane %v8960, %v8963
    %8966 = vbcast.lane.b32.xlu0 %v8964, 256
    %v8967 = vpop.permute.xlu0 %8966
    %v8968 = vlaneseq
    %v8969 = vshrl.u32 %v8968, 7
    %v8970 = vsub.s32 1, %v8969
    %v8971 = vrot.slane %v8960, %v8970
    %8973 = vbcast.lane.b32.xlu0 %v8971, 256
    %v8974 = vpop.permute.xlu0 %8973
    %v8975 = vlaneseq
    %v8976 = vshrl.u32 %v8975, 7
    %v8977 = vsub.s32 2, %v8976
    %v8978 = vrot.slane %v8960, %v8977
    %8980 = vbcast.lane.b32.xlu0 %v8978, 256
    %v8981 = vpop.permute.xlu0 %8980
    %v8982 = vlaneseq
    %v8983 = vshrl.u32 %v8982, 7
    %v8984 = vsub.s32 3, %v8983
    %v8985 = vrot.slane %v8960, %v8984
    %8987 = vbcast.lane.b32.xlu0 %v8985, 256
    %v8988 = vpop.permute.xlu0 %8987
    %v8989 = vmul.f32 %v8952, %v8967
    %v8990 = vmul.f32 %v8953, %v8967
    %v8991 = vmul.f32 %v8954, %v8974
    %v8992 = vmul.f32 %v8955, %v8974
    %v8993 = vmul.f32 %v8956, %v8981
    %v8994 = vmul.f32 %v8957, %v8981
    %v8995 = vmul.f32 %v8958, %v8988
    %v8996 = vmul.f32 %v8959, %v8988
    %v8997 = vld [vmem:[%s16] sm:$0xf]
    %v8998 = vlaneseq
    %v8999 = vshrl.u32 %v8998, 7
    %v9000 = vsub.s32 0, %v8999
    %v9001 = vrot.slane %v8997, %v9000
    %9003 = vbcast.lane.b32.xlu0 %v9001, 256
    %v9004 = vpop.permute.xlu0 %9003
    %v9005 = vlaneseq
    %v9006 = vshrl.u32 %v9005, 7
    %v9007 = vsub.s32 1, %v9006
    %v9008 = vrot.slane %v8997, %v9007
    %9010 = vbcast.lane.b32.xlu0 %v9008, 256
    %v9011 = vpop.permute.xlu0 %9010
    %v9012 = vlaneseq
    %v9013 = vshrl.u32 %v9012, 7
    %v9014 = vsub.s32 2, %v9013
    %v9015 = vrot.slane %v8997, %v9014
    %9017 = vbcast.lane.b32.xlu0 %v9015, 256
    %v9018 = vpop.permute.xlu0 %9017
    %v9019 = vlaneseq
    %v9020 = vshrl.u32 %v9019, 7
    %v9021 = vsub.s32 3, %v9020
    %v9022 = vrot.slane %v8997, %v9021
    %9024 = vbcast.lane.b32.xlu0 %v9022, 256
    %v9025 = vpop.permute.xlu0 %9024
    %v9026 = vadd.f32 %v8989, %v9004
    %v9027 = vadd.f32 %v8990, %v9004
    %v9028 = vadd.f32 %v8991, %v9011
    %v9029 = vadd.f32 %v8992, %v9011
    %v9030 = vadd.f32 %v8993, %v9018
    %v9031 = vadd.f32 %v8994, %v9018
    %v9032 = vadd.f32 %v8995, %v9025
    %v9033 = vadd.f32 %v8996, %v9025
    %v9034 = vmax.f32 %v9026, 0.0
    %v9035 = vmax.f32 %v9027, 0.0
    %v9036 = vmax.f32 %v9028, 0.0
    %v9037 = vmax.f32 %v9029, 0.0
    %v9038 = vmax.f32 %v9030, 0.0
    %v9039 = vmax.f32 %v9031, 0.0
    %v9040 = vmax.f32 %v9032, 0.0
    %v9041 = vmax.f32 %v9033, 0.0
    %v9043 = vsel %vm1515, %v9034, 0
    %v9046 = vsel %vm1515, %v9035, 0
    %v9049 = vsel %vm1515, %v9036, 0
    %v9052 = vsel %vm1515, %v9037, 0
    %v9055 = vsel %vm1515, %v9038, 0
    %v9058 = vsel %vm1515, %v9039, 0
    %v9061 = vsel %vm1515, %v9040, 0
    %v9064 = vsel %vm1515, %v9041, 0
    %9066 = vmatprep.subr.mxu0 0.0
    %9067 = vmatpush1.msra.mxu0 0.0
    %9068 = vmatprep.subr.mxu0 0.0
    %9069 = vmatpush1.msra.mxu0 0.0
    %9070 = vmatprep.subr.mxu0 0.0
    %9071 = vmatpush1.msra.mxu0 0.0
    %9072 = vmatprep.subr.mxu0 0.0
    %9073 = vmatpush1.msra.mxu0 0.0
    %9074 = vmatprep.subr.mxu0 0.0
    %9075 = vmatpush1.msra.mxu0 0.0
    %9076 = vmatprep.subr.mxu0 0.0
    %9077 = vmatpush1.msra.mxu0 0.0
    %9078 = vmatprep.subr.mxu0 0.0
    %9079 = vmatpush1.msra.mxu0 0.0
    %9080 = vmatprep.subr.mxu0 0.0
    %9081 = vmatpush1.msra.mxu0 0.0
    %9082 = vmatprep.subr.mxu0 0.0
    %9083 = vmatpush1.msra.mxu0 0.0
    %9084 = vmatprep.subr.mxu0 0.0
    %9085 = vmatpush1.msra.mxu0 0.0
    %9086 = vmatprep.subr.mxu0 0.0
    %9087 = vmatpush1.msra.mxu0 0.0
    %9088 = vmatprep.subr.mxu0 0.0
    %9089 = vmatpush1.msra.mxu0 0.0
    %9090 = vmatprep.subr.mxu0 0.0
    %9091 = vmatpush1.msra.mxu0 0.0
    %9092 = vmatprep.subr.mxu0 0.0
    %9093 = vmatpush1.msra.mxu0 0.0
    %9094 = vmatprep.subr.mxu0 0.0
    %9095 = vmatpush1.msra.mxu0 %v4497
    %9096 = vmatprep.subr.mxu0 0.0
    %9097 = vmatpush1.msra.mxu0 %v4496
    %9098 = vmatprep.subr.mxu0 0.0
    %9099 = vmatpush2.msra.mxu0 0.0
    %9100 = vmatprep.subr.mxu0 0.0
    %9101 = vmatpush2.msra.mxu0 0.0
    %9102 = vmatprep.subr.mxu0 0.0
    %9103 = vmatpush2.msra.mxu0 0.0
    %9104 = vmatprep.subr.mxu0 0.0
    %9105 = vmatpush2.msra.mxu0 0.0
    %9106 = vmatprep.subr.mxu0 0.0
    %9107 = vmatpush2.msra.mxu0 0.0
    %9108 = vmatprep.subr.mxu0 0.0
    %9109 = vmatpush2.msra.mxu0 0.0
    %9110 = vmatprep.subr.mxu0 0.0
    %9111 = vmatpush2.msra.mxu0 0.0
    %9112 = vmatprep.subr.mxu0 0.0
    %9113 = vmatpush2.msra.mxu0 0.0
    %9114 = vmatprep.subr.mxu0 0.0
    %9115 = vmatpush2.msra.mxu0 0.0
    %9116 = vmatprep.subr.mxu0 0.0
    %9117 = vmatpush2.msra.mxu0 0.0
    %9118 = vmatprep.subr.mxu0 0.0
    %9119 = vmatpush2.msra.mxu0 0.0
    %9120 = vmatprep.subr.mxu0 0.0
    %9121 = vmatpush2.msra.mxu0 0.0
    %9122 = vmatprep.subr.mxu0 0.0
    %9123 = vmatpush2.msra.mxu0 0.0
    %9124 = vmatprep.subr.mxu0 0.0
    %9125 = vmatpush2.msra.mxu0 0.0
    %9126 = vmatprep.subr.mxu0 0.0
    %9127 = vmatpush2.msra.mxu0 0.0
    %9128 = vmatprep.subr.mxu0 0.0
    %9129 = vmatpush2.msra.mxu0 0.0
    %9130 = vmatprep.mubr.f32.mxu0 0.0
    %9131 = vmatmul.mubr.f32.gmra.mxu0 %v9043
    %v9132 = vpop.f32.mrf.mxu0
    %v9133 = vadd.f32 0.0, %v9132
    %v9134 = vpop.f32.mrf.mxu0
    %9135 = vmatprep.mubr.f32.mxu0 0.0
    %9136 = vmatmul.mubr.f32.gmra.mxu0 %v9046
    %v9137 = vpop.f32.mrf.mxu0
    %v9138 = vadd.f32 0.0, %v9137
    %v9139 = vpop.f32.mrf.mxu0
    %9140 = vmatprep.mubr.f32.mxu0 0.0
    %9141 = vmatmul.mubr.f32.gmra.mxu0 %v9049
    %v9142 = vpop.f32.mrf.mxu0
    %v9143 = vadd.f32 0.0, %v9142
    %v9144 = vpop.f32.mrf.mxu0
    %9145 = vmatprep.mubr.f32.mxu0 0.0
    %9146 = vmatmul.mubr.f32.gmra.mxu0 %v9052
    %v9147 = vpop.f32.mrf.mxu0
    %v9148 = vadd.f32 0.0, %v9147
    %v9149 = vpop.f32.mrf.mxu0
    %9150 = vmatprep.mubr.f32.mxu0 0.0
    %9151 = vmatmul.mubr.f32.gmra.mxu0 %v9055
    %v9152 = vpop.f32.mrf.mxu0
    %v9153 = vadd.f32 0.0, %v9152
    %v9154 = vpop.f32.mrf.mxu0
    %9155 = vmatprep.mubr.f32.mxu0 0.0
    %9156 = vmatmul.mubr.f32.gmra.mxu0 %v9058
    %v9157 = vpop.f32.mrf.mxu0
    %v9158 = vadd.f32 0.0, %v9157
    %v9159 = vpop.f32.mrf.mxu0
    %9160 = vmatprep.mubr.f32.mxu0 0.0
    %9161 = vmatmul.mubr.f32.gmra.mxu0 %v9061
    %v9162 = vpop.f32.mrf.mxu0
    %v9163 = vadd.f32 0.0, %v9162
    %v9164 = vpop.f32.mrf.mxu0
    %9165 = vmatprep.mubr.f32.mxu0 0.0
    %9166 = vmatmul.mubr.f32.gmra.mxu0 %v9064
    %v9167 = vpop.f32.mrf.mxu0
    %v9168 = vadd.f32 0.0, %v9167
    %v9169 = vpop.f32.mrf.mxu0
    %9170 = vdwg.mxu0
    %9171 = vmatprep.subr.mxu0 0.0
    %9172 = vmatpush1.msra.mxu0 0.0
    %9173 = vmatprep.subr.mxu0 0.0
    %9174 = vmatpush1.msra.mxu0 0.0
    %9175 = vmatprep.subr.mxu0 0.0
    %9176 = vmatpush1.msra.mxu0 0.0
    %9177 = vmatprep.subr.mxu0 0.0
    %9178 = vmatpush1.msra.mxu0 0.0
    %9179 = vmatprep.subr.mxu0 0.0
    %9180 = vmatpush1.msra.mxu0 0.0
    %9181 = vmatprep.subr.mxu0 0.0
    %9182 = vmatpush1.msra.mxu0 0.0
    %9183 = vmatprep.subr.mxu0 0.0
    %9184 = vmatpush1.msra.mxu0 0.0
    %9185 = vmatprep.subr.mxu0 0.0
    %9186 = vmatpush1.msra.mxu0 0.0
    %9187 = vmatprep.subr.mxu0 0.0
    %9188 = vmatpush1.msra.mxu0 0.0
    %9189 = vmatprep.subr.mxu0 0.0
    %9190 = vmatpush1.msra.mxu0 0.0
    %9191 = vmatprep.subr.mxu0 0.0
    %9192 = vmatpush1.msra.mxu0 0.0
    %9193 = vmatprep.subr.mxu0 0.0
    %9194 = vmatpush1.msra.mxu0 0.0
    %9195 = vmatprep.subr.mxu0 0.0
    %9196 = vmatpush1.msra.mxu0 0.0
    %9197 = vmatprep.subr.mxu0 0.0
    %9198 = vmatpush1.msra.mxu0 0.0
    %9199 = vmatprep.subr.mxu0 0.0
    %9200 = vmatpush1.msra.mxu0 %v4510
    %9201 = vmatprep.subr.mxu0 0.0
    %9202 = vmatpush1.msra.mxu0 %v4509
    %9203 = vmatprep.subr.mxu0 0.0
    %9204 = vmatpush2.msra.mxu0 0.0
    %9205 = vmatprep.subr.mxu0 0.0
    %9206 = vmatpush2.msra.mxu0 0.0
    %9207 = vmatprep.subr.mxu0 0.0
    %9208 = vmatpush2.msra.mxu0 0.0
    %9209 = vmatprep.subr.mxu0 0.0
    %9210 = vmatpush2.msra.mxu0 0.0
    %9211 = vmatprep.subr.mxu0 0.0
    %9212 = vmatpush2.msra.mxu0 0.0
    %9213 = vmatprep.subr.mxu0 0.0
    %9214 = vmatpush2.msra.mxu0 0.0
    %9215 = vmatprep.subr.mxu0 0.0
    %9216 = vmatpush2.msra.mxu0 0.0
    %9217 = vmatprep.subr.mxu0 0.0
    %9218 = vmatpush2.msra.mxu0 0.0
    %9219 = vmatprep.subr.mxu0 0.0
    %9220 = vmatpush2.msra.mxu0 0.0
    %9221 = vmatprep.subr.mxu0 0.0
    %9222 = vmatpush2.msra.mxu0 0.0
    %9223 = vmatprep.subr.mxu0 0.0
    %9224 = vmatpush2.msra.mxu0 0.0
    %9225 = vmatprep.subr.mxu0 0.0
    %9226 = vmatpush2.msra.mxu0 0.0
    %9227 = vmatprep.subr.mxu0 0.0
    %9228 = vmatpush2.msra.mxu0 0.0
    %9229 = vmatprep.subr.mxu0 0.0
    %9230 = vmatpush2.msra.mxu0 0.0
    %9231 = vmatprep.subr.mxu0 0.0
    %9232 = vmatpush2.msra.mxu0 0.0
    %9233 = vmatprep.subr.mxu0 0.0
    %9234 = vmatpush2.msra.mxu0 0.0
    %9235 = vmatprep.mubr.f32.mxu0 0.0
    %9236 = vmatmul.mubr.f32.gmra.mxu0 %v9043
    %v9237 = vpop.f32.mrf.mxu0
    %v9238 = vadd.f32 0.0, %v9237
    %v9239 = vpop.f32.mrf.mxu0
    %9240 = vmatprep.mubr.f32.mxu0 0.0
    %9241 = vmatmul.mubr.f32.gmra.mxu0 %v9046
    %v9242 = vpop.f32.mrf.mxu0
    %v9243 = vadd.f32 0.0, %v9242
    %v9244 = vpop.f32.mrf.mxu0
    %9245 = vmatprep.mubr.f32.mxu0 0.0
    %9246 = vmatmul.mubr.f32.gmra.mxu0 %v9049
    %v9247 = vpop.f32.mrf.mxu0
    %v9248 = vadd.f32 0.0, %v9247
    %v9249 = vpop.f32.mrf.mxu0
    %9250 = vmatprep.mubr.f32.mxu0 0.0
    %9251 = vmatmul.mubr.f32.gmra.mxu0 %v9052
    %v9252 = vpop.f32.mrf.mxu0
    %v9253 = vadd.f32 0.0, %v9252
    %v9254 = vpop.f32.mrf.mxu0
    %9255 = vmatprep.mubr.f32.mxu0 0.0
    %9256 = vmatmul.mubr.f32.gmra.mxu0 %v9055
    %v9257 = vpop.f32.mrf.mxu0
    %v9258 = vadd.f32 0.0, %v9257
    %v9259 = vpop.f32.mrf.mxu0
    %9260 = vmatprep.mubr.f32.mxu0 0.0
    %9261 = vmatmul.mubr.f32.gmra.mxu0 %v9058
    %v9262 = vpop.f32.mrf.mxu0
    %v9263 = vadd.f32 0.0, %v9262
    %v9264 = vpop.f32.mrf.mxu0
    %9265 = vmatprep.mubr.f32.mxu0 0.0
    %9266 = vmatmul.mubr.f32.gmra.mxu0 %v9061
    %v9267 = vpop.f32.mrf.mxu0
    %v9268 = vadd.f32 0.0, %v9267
    %v9269 = vpop.f32.mrf.mxu0
    %9270 = vmatprep.mubr.f32.mxu0 0.0
    %9271 = vmatmul.mubr.f32.gmra.mxu0 %v9064
    %v9272 = vpop.f32.mrf.mxu0
    %v9273 = vadd.f32 0.0, %v9272
    %v9274 = vpop.f32.mrf.mxu0
    %9275 = vdwg.mxu0
    %v9276 = vmax.f32 %v9133, %v9238
    %v9277 = vmax.f32 %v9138, %v9243
    %v9278 = vmax.f32 %v9143, %v9248
    %v9279 = vmax.f32 %v9148, %v9253
    %v9280 = vmax.f32 %v9153, %v9258
    %v9281 = vmax.f32 %v9158, %v9263
    %v9282 = vmax.f32 %v9163, %v9268
    %v9283 = vmax.f32 %v9168, %v9273
    %v9286 = vrot.slane %v9277, 7
    %v9287 = vsel %vm3729, %v9286, %v9276
    %v9289 = vrot.slane %v9276, 1
    %v9290 = vsel %vm3729, %v9277, %v9289
    %9291 = vrot.lane.b32.xlu0 %v9290, 8
    %v9292 = vpop.permute.xlu0 %9291
    %v9294 = vrot.slane %v9276, 2
    %v9295 = vrot.slane %v9277, 1
    %v9296 = vsel %vm3729, %v9295, %v9294
    %9297 = vrot.lane.b32.xlu0 %v9296, 16
    %v9298 = vpop.permute.xlu0 %9297
    %v9300 = vrot.slane %v9276, 3
    %v9301 = vrot.slane %v9277, 2
    %v9302 = vsel %vm3729, %v9301, %v9300
    %9303 = vrot.lane.b32.xlu0 %v9302, 24
    %v9304 = vpop.permute.xlu0 %9303
    %v9306 = vrot.slane %v9276, 4
    %v9307 = vrot.slane %v9277, 3
    %v9308 = vsel %vm3729, %v9307, %v9306
    %9309 = vrot.lane.b32.xlu0 %v9308, 32
    %v9310 = vpop.permute.xlu0 %9309
    %v9312 = vrot.slane %v9276, 5
    %v9313 = vrot.slane %v9277, 4
    %v9314 = vsel %vm3729, %v9313, %v9312
    %9315 = vrot.lane.b32.xlu0 %v9314, 40
    %v9316 = vpop.permute.xlu0 %9315
    %v9318 = vrot.slane %v9276, 6
    %v9319 = vrot.slane %v9277, 5
    %v9320 = vsel %vm3729, %v9319, %v9318
    %9321 = vrot.lane.b32.xlu0 %v9320, 48
    %v9322 = vpop.permute.xlu0 %9321
    %v9324 = vrot.slane %v9276, 7
    %v9325 = vrot.slane %v9277, 6
    %v9326 = vsel %vm3729, %v9325, %v9324
    %9327 = vrot.lane.b32.xlu0 %v9326, 56
    %v9328 = vpop.permute.xlu0 %9327
    %v9332 = vrot.slane %v9279, 7
    %v9333 = vsel %vm3729, %v9332, %v9278
    %9334 = vrot.lane.b32.xlu0 %v9333, 64
    %v9335 = vpop.permute.xlu0 %9334
    %v9337 = vrot.slane %v9278, 1
    %v9338 = vsel %vm3729, %v9279, %v9337
    %9339 = vrot.lane.b32.xlu0 %v9338, 72
    %v9340 = vpop.permute.xlu0 %9339
    %v9342 = vrot.slane %v9278, 2
    %v9343 = vrot.slane %v9279, 1
    %v9344 = vsel %vm3729, %v9343, %v9342
    %9345 = vrot.lane.b32.xlu0 %v9344, 80
    %v9346 = vpop.permute.xlu0 %9345
    %v9348 = vrot.slane %v9278, 3
    %v9349 = vrot.slane %v9279, 2
    %v9350 = vsel %vm3729, %v9349, %v9348
    %9351 = vrot.lane.b32.xlu0 %v9350, 88
    %v9352 = vpop.permute.xlu0 %9351
    %v9354 = vrot.slane %v9278, 4
    %v9355 = vrot.slane %v9279, 3
    %v9356 = vsel %vm3729, %v9355, %v9354
    %9357 = vrot.lane.b32.xlu0 %v9356, 96
    %v9358 = vpop.permute.xlu0 %9357
    %v9360 = vrot.slane %v9278, 5
    %v9361 = vrot.slane %v9279, 4
    %v9362 = vsel %vm3729, %v9361, %v9360
    %9363 = vrot.lane.b32.xlu0 %v9362, 104
    %v9364 = vpop.permute.xlu0 %9363
    %v9366 = vrot.slane %v9278, 6
    %v9367 = vrot.slane %v9279, 5
    %v9368 = vsel %vm3729, %v9367, %v9366
    %9369 = vrot.lane.b32.xlu0 %v9368, 112
    %v9370 = vpop.permute.xlu0 %9369
    %v9372 = vrot.slane %v9278, 7
    %v9373 = vrot.slane %v9279, 6
    %v9374 = vsel %vm3729, %v9373, %v9372
    %9375 = vrot.lane.b32.xlu0 %v9374, 120
    %v9376 = vpop.permute.xlu0 %9375
    %v9378 = vsel %vm155, %v9287, %v9292
    %v9379 = vsel %vm1515, %v9378, %v9298
    %v9380 = vsel %vm1518, %v9379, %v9304
    %v9381 = vsel %vm78, %v9380, %v9310
    %vm9382 = vcmask 326656
    %v9383 = vsel %vm9382, %v9381, %v9316
    %vm9384 = vcmask 392192
    %v9385 = vsel %vm9384, %v9383, %v9322
    %vm9386 = vcmask 457728
    %v9387 = vsel %vm9386, %v9385, %v9328
    %v9388 = vsel %vm1757, %v9387, %v9335
    %vm9389 = vcmask 588800
    %v9390 = vsel %vm9389, %v9388, %v9340
    %vm9391 = vcmask 654336
    %v9392 = vsel %vm9391, %v9390, %v9346
    %vm9393 = vcmask 719872
    %v9394 = vsel %vm9393, %v9392, %v9352
    %vm9395 = vcmask 785408
    %v9396 = vsel %vm9395, %v9394, %v9358
    %vm9397 = vcmask 850944
    %v9398 = vsel %vm9397, %v9396, %v9364
    %vm9399 = vcmask 916480
    %v9400 = vsel %vm9399, %v9398, %v9370
    %vm9401 = vcmask 982016
    %v9402 = vsel %vm9401, %v9400, %v9376
    %v9405 = vrot.slane %v9281, 7
    %v9406 = vsel %vm3729, %v9405, %v9280
    %v9408 = vrot.slane %v9280, 1
    %v9409 = vsel %vm3729, %v9281, %v9408
    %9410 = vrot.lane.b32.xlu0 %v9409, 8
    %v9411 = vpop.permute.xlu0 %9410
    %v9413 = vrot.slane %v9280, 2
    %v9414 = vrot.slane %v9281, 1
    %v9415 = vsel %vm3729, %v9414, %v9413
    %9416 = vrot.lane.b32.xlu0 %v9415, 16
    %v9417 = vpop.permute.xlu0 %9416
    %v9419 = vrot.slane %v9280, 3
    %v9420 = vrot.slane %v9281, 2
    %v9421 = vsel %vm3729, %v9420, %v9419
    %9422 = vrot.lane.b32.xlu0 %v9421, 24
    %v9423 = vpop.permute.xlu0 %9422
    %v9425 = vrot.slane %v9280, 4
    %v9426 = vrot.slane %v9281, 3
    %v9427 = vsel %vm3729, %v9426, %v9425
    %9428 = vrot.lane.b32.xlu0 %v9427, 32
    %v9429 = vpop.permute.xlu0 %9428
    %v9431 = vrot.slane %v9280, 5
    %v9432 = vrot.slane %v9281, 4
    %v9433 = vsel %vm3729, %v9432, %v9431
    %9434 = vrot.lane.b32.xlu0 %v9433, 40
    %v9435 = vpop.permute.xlu0 %9434
    %v9437 = vrot.slane %v9280, 6
    %v9438 = vrot.slane %v9281, 5
    %v9439 = vsel %vm3729, %v9438, %v9437
    %9440 = vrot.lane.b32.xlu0 %v9439, 48
    %v9441 = vpop.permute.xlu0 %9440
    %v9443 = vrot.slane %v9280, 7
    %v9444 = vrot.slane %v9281, 6
    %v9445 = vsel %vm3729, %v9444, %v9443
    %9446 = vrot.lane.b32.xlu0 %v9445, 56
    %v9447 = vpop.permute.xlu0 %9446
    %v9451 = vrot.slane %v9283, 7
    %v9452 = vsel %vm3729, %v9451, %v9282
    %9453 = vrot.lane.b32.xlu0 %v9452, 64
    %v9454 = vpop.permute.xlu0 %9453
    %v9456 = vrot.slane %v9282, 1
    %v9457 = vsel %vm3729, %v9283, %v9456
    %9458 = vrot.lane.b32.xlu0 %v9457, 72
    %v9459 = vpop.permute.xlu0 %9458
    %v9461 = vrot.slane %v9282, 2
    %v9462 = vrot.slane %v9283, 1
    %v9463 = vsel %vm3729, %v9462, %v9461
    %9464 = vrot.lane.b32.xlu0 %v9463, 80
    %v9465 = vpop.permute.xlu0 %9464
    %v9467 = vrot.slane %v9282, 3
    %v9468 = vrot.slane %v9283, 2
    %v9469 = vsel %vm3729, %v9468, %v9467
    %9470 = vrot.lane.b32.xlu0 %v9469, 88
    %v9471 = vpop.permute.xlu0 %9470
    %v9473 = vrot.slane %v9282, 4
    %v9474 = vrot.slane %v9283, 3
    %v9475 = vsel %vm3729, %v9474, %v9473
    %9476 = vrot.lane.b32.xlu0 %v9475, 96
    %v9477 = vpop.permute.xlu0 %9476
    %v9479 = vrot.slane %v9282, 5
    %v9480 = vrot.slane %v9283, 4
    %v9481 = vsel %vm3729, %v9480, %v9479
    %9482 = vrot.lane.b32.xlu0 %v9481, 104
    %v9483 = vpop.permute.xlu0 %9482
    %v9485 = vrot.slane %v9282, 6
    %v9486 = vrot.slane %v9283, 5
    %v9487 = vsel %vm3729, %v9486, %v9485
    %9488 = vrot.lane.b32.xlu0 %v9487, 112
    %v9489 = vpop.permute.xlu0 %9488
    %v9491 = vrot.slane %v9282, 7
    %v9492 = vrot.slane %v9283, 6
    %v9493 = vsel %vm3729, %v9492, %v9491
    %9494 = vrot.lane.b32.xlu0 %v9493, 120
    %v9495 = vpop.permute.xlu0 %9494
    %v9497 = vsel %vm155, %v9406, %v9411
    %v9498 = vsel %vm1515, %v9497, %v9417
    %v9499 = vsel %vm1518, %v9498, %v9423
    %v9500 = vsel %vm78, %v9499, %v9429
    %v9501 = vsel %vm9382, %v9500, %v9435
    %v9502 = vsel %vm9384, %v9501, %v9441
    %v9503 = vsel %vm9386, %v9502, %v9447
    %v9504 = vsel %vm1757, %v9503, %v9454
    %v9505 = vsel %vm9389, %v9504, %v9459
    %v9506 = vsel %vm9391, %v9505, %v9465
    %v9507 = vsel %vm9393, %v9506, %v9471
    %v9508 = vsel %vm9395, %v9507, %v9477
    %v9509 = vsel %vm9397, %v9508, %v9483
    %v9510 = vsel %vm9399, %v9509, %v9489
    %v9511 = vsel %vm9401, %v9510, %v9495
    %v9512 = vld [vmem:[%s17] sm:$0xff]
    %v9513 = vld [vmem:[%s17 + $0x8] sm:$0xff]
    %v9514 = vld [vmem:[%s17 + $0x10] sm:$0xff]
    %v9515 = vld [vmem:[%s17 + $0x18] sm:$0xff]
    %v9516 = vld [vmem:[%s17 + $0x20] sm:$0xff]
    %v9517 = vld [vmem:[%s17 + $0x28] sm:$0xff]
    %v9518 = vld [vmem:[%s17 + $0x30] sm:$0xff]
    %v9519 = vld [vmem:[%s17 + $0x38] sm:$0xff]
    %v9520 = vld [vmem:[%s17 + $0x40] sm:$0xff]
    %v9521 = vld [vmem:[%s17 + $0x48] sm:$0xff]
    %v9522 = vld [vmem:[%s17 + $0x50] sm:$0xff]
    %v9523 = vld [vmem:[%s17 + $0x58] sm:$0xff]
    %v9524 = vld [vmem:[%s17 + $0x60] sm:$0xff]
    %v9525 = vld [vmem:[%s17 + $0x68] sm:$0xff]
    %v9526 = vld [vmem:[%s17 + $0x70] sm:$0xff]
    %v9527 = vld [vmem:[%s17 + $0x78] sm:$0xff]
    %v9528 = vld [vmem:[%s17 + $0x80] sm:$0xff]
    %v9529 = vld [vmem:[%s17 + $0x88] sm:$0xff]
    %v9530 = vld [vmem:[%s17 + $0x90] sm:$0xff]
    %v9531 = vld [vmem:[%s17 + $0x98] sm:$0xff]
    %v9532 = vld [vmem:[%s17 + $0xa0] sm:$0xff]
    %v9533 = vld [vmem:[%s17 + $0xa8] sm:$0xff]
    %v9534 = vld [vmem:[%s17 + $0xb0] sm:$0xff]
    %v9535 = vld [vmem:[%s17 + $0xb8] sm:$0xff]
    %v9536 = vld [vmem:[%s17 + $0xc0] sm:$0xff]
    %v9537 = vld [vmem:[%s17 + $0xc8] sm:$0xff]
    %v9538 = vld [vmem:[%s17 + $0xd0] sm:$0xff]
    %v9539 = vld [vmem:[%s17 + $0xd8] sm:$0xff]
    %v9540 = vld [vmem:[%s17 + $0xe0] sm:$0xff]
    %v9541 = vld [vmem:[%s17 + $0xe8] sm:$0xff]
    %v9542 = vld [vmem:[%s17 + $0xf0] sm:$0xff]
    %v9543 = vld [vmem:[%s17 + $0xf8] sm:$0xff]
    %v9544 = vld [vmem:[%s18] sm:$0x1]
    %v9546 = vlaneseq
    %v9547 = vshrl.u32 %v9546, 7
    %v9548 = vsub.s32 0, %v9547
    %v9549 = vrot.slane %v9544, %v9548
    %9551 = vmatprep.subr.mxu0 0.0
    %9552 = vmatpush1.msra.mxu0 %v9527
    %9553 = vmatprep.subr.mxu0 0.0
    %9554 = vmatpush1.msra.mxu0 %v9526
    %9555 = vmatprep.subr.mxu0 0.0
    %9556 = vmatpush1.msra.mxu0 %v9525
    %9557 = vmatprep.subr.mxu0 0.0
    %9558 = vmatpush1.msra.mxu0 %v9524
    %9559 = vmatprep.subr.mxu0 0.0
    %9560 = vmatpush1.msra.mxu0 %v9523
    %9561 = vmatprep.subr.mxu0 0.0
    %9562 = vmatpush1.msra.mxu0 %v9522
    %9563 = vmatprep.subr.mxu0 0.0
    %9564 = vmatpush1.msra.mxu0 %v9521
    %9565 = vmatprep.subr.mxu0 0.0
    %9566 = vmatpush1.msra.mxu0 %v9520
    %9567 = vmatprep.subr.mxu0 0.0
    %9568 = vmatpush1.msra.mxu0 %v9519
    %9569 = vmatprep.subr.mxu0 0.0
    %9570 = vmatpush1.msra.mxu0 %v9518
    %9571 = vmatprep.subr.mxu0 0.0
    %9572 = vmatpush1.msra.mxu0 %v9517
    %9573 = vmatprep.subr.mxu0 0.0
    %9574 = vmatpush1.msra.mxu0 %v9516
    %9575 = vmatprep.subr.mxu0 0.0
    %9576 = vmatpush1.msra.mxu0 %v9515
    %9577 = vmatprep.subr.mxu0 0.0
    %9578 = vmatpush1.msra.mxu0 %v9514
    %9579 = vmatprep.subr.mxu0 0.0
    %9580 = vmatpush1.msra.mxu0 %v9513
    %9581 = vmatprep.subr.mxu0 0.0
    %9582 = vmatpush1.msra.mxu0 %v9512
    %9583 = vmatprep.subr.mxu0 0.0
    %9584 = vmatpush2.msra.mxu0 %v9543
    %9585 = vmatprep.subr.mxu0 0.0
    %9586 = vmatpush2.msra.mxu0 %v9542
    %9587 = vmatprep.subr.mxu0 0.0
    %9588 = vmatpush2.msra.mxu0 %v9541
    %9589 = vmatprep.subr.mxu0 0.0
    %9590 = vmatpush2.msra.mxu0 %v9540
    %9591 = vmatprep.subr.mxu0 0.0
    %9592 = vmatpush2.msra.mxu0 %v9539
    %9593 = vmatprep.subr.mxu0 0.0
    %9594 = vmatpush2.msra.mxu0 %v9538
    %9595 = vmatprep.subr.mxu0 0.0
    %9596 = vmatpush2.msra.mxu0 %v9537
    %9597 = vmatprep.subr.mxu0 0.0
    %9598 = vmatpush2.msra.mxu0 %v9536
    %9599 = vmatprep.subr.mxu0 0.0
    %9600 = vmatpush2.msra.mxu0 %v9535
    %9601 = vmatprep.subr.mxu0 0.0
    %9602 = vmatpush2.msra.mxu0 %v9534
    %9603 = vmatprep.subr.mxu0 0.0
    %9604 = vmatpush2.msra.mxu0 %v9533
    %9605 = vmatprep.subr.mxu0 0.0
    %9606 = vmatpush2.msra.mxu0 %v9532
    %9607 = vmatprep.subr.mxu0 0.0
    %9608 = vmatpush2.msra.mxu0 %v9531
    %9609 = vmatprep.subr.mxu0 0.0
    %9610 = vmatpush2.msra.mxu0 %v9530
    %9611 = vmatprep.subr.mxu0 0.0
    %9612 = vmatpush2.msra.mxu0 %v9529
    %9613 = vmatprep.subr.mxu0 0.0
    %9614 = vmatpush2.msra.mxu0 %v9528
    %9615 = vmatprep.mubr.f32.mxu0 %v9511
    %9616 = vmatmul.mubr.f32.gmra.mxu0 %v9402
    %v9617 = vpop.f32.mrf.mxu0
    %v9618 = vadd.f32 %v9549, %v9617
    %v9619 = vpop.f32.mrf.mxu0
    %9620 = vdwg.mxu0
    %v9621 = vmax.f32 %v9618, 0.0
    %v9622 = vld [vmem:[%s19] sm:$0xff]
    %v9623 = vld [vmem:[%s19 + $0x8] sm:$0xff]
    %v9624 = vld [vmem:[%s20] sm:$0x1]
    %v9626 = vlaneseq
    %v9627 = vshrl.u32 %v9626, 7
    %v9628 = vsub.s32 0, %v9627
    %v9629 = vrot.slane %v9624, %v9628
    %v9632 = vsel %vm1515, %v9621, 0
    %9634 = vmatprep.subr.mxu0 0.0
    %9635 = vmatpush1.msra.mxu0 0.0
    %9636 = vmatprep.subr.mxu0 0.0
    %9637 = vmatpush1.msra.mxu0 0.0
    %9638 = vmatprep.subr.mxu0 0.0
    %9639 = vmatpush1.msra.mxu0 0.0
    %9640 = vmatprep.subr.mxu0 0.0
    %9641 = vmatpush1.msra.mxu0 0.0
    %9642 = vmatprep.subr.mxu0 0.0
    %9643 = vmatpush1.msra.mxu0 0.0
    %9644 = vmatprep.subr.mxu0 0.0
    %9645 = vmatpush1.msra.mxu0 0.0
    %9646 = vmatprep.subr.mxu0 0.0
    %9647 = vmatpush1.msra.mxu0 0.0
    %9648 = vmatprep.subr.mxu0 0.0
    %9649 = vmatpush1.msra.mxu0 0.0
    %9650 = vmatprep.subr.mxu0 0.0
    %9651 = vmatpush1.msra.mxu0 0.0
    %9652 = vmatprep.subr.mxu0 0.0
    %9653 = vmatpush1.msra.mxu0 0.0
    %9654 = vmatprep.subr.mxu0 0.0
    %9655 = vmatpush1.msra.mxu0 0.0
    %9656 = vmatprep.subr.mxu0 0.0
    %9657 = vmatpush1.msra.mxu0 0.0
    %9658 = vmatprep.subr.mxu0 0.0
    %9659 = vmatpush1.msra.mxu0 0.0
    %9660 = vmatprep.subr.mxu0 0.0
    %9661 = vmatpush1.msra.mxu0 0.0
    %9662 = vmatprep.subr.mxu0 0.0
    %9663 = vmatpush1.msra.mxu0 %v9623
    %9664 = vmatprep.subr.mxu0 0.0
    %9665 = vmatpush1.msra.mxu0 %v9622
    %9666 = vmatprep.subr.mxu0 0.0
    %9667 = vmatpush2.msra.mxu0 0.0
    %9668 = vmatprep.subr.mxu0 0.0
    %9669 = vmatpush2.msra.mxu0 0.0
    %9670 = vmatprep.subr.mxu0 0.0
    %9671 = vmatpush2.msra.mxu0 0.0
    %9672 = vmatprep.subr.mxu0 0.0
    %9673 = vmatpush2.msra.mxu0 0.0
    %9674 = vmatprep.subr.mxu0 0.0
    %9675 = vmatpush2.msra.mxu0 0.0
    %9676 = vmatprep.subr.mxu0 0.0
    %9677 = vmatpush2.msra.mxu0 0.0
    %9678 = vmatprep.subr.mxu0 0.0
    %9679 = vmatpush2.msra.mxu0 0.0
    %9680 = vmatprep.subr.mxu0 0.0
    %9681 = vmatpush2.msra.mxu0 0.0
    %9682 = vmatprep.subr.mxu0 0.0
    %9683 = vmatpush2.msra.mxu0 0.0
    %9684 = vmatprep.subr.mxu0 0.0
    %9685 = vmatpush2.msra.mxu0 0.0
    %9686 = vmatprep.subr.mxu0 0.0
    %9687 = vmatpush2.msra.mxu0 0.0
    %9688 = vmatprep.subr.mxu0 0.0
    %9689 = vmatpush2.msra.mxu0 0.0
    %9690 = vmatprep.subr.mxu0 0.0
    %9691 = vmatpush2.msra.mxu0 0.0
    %9692 = vmatprep.subr.mxu0 0.0
    %9693 = vmatpush2.msra.mxu0 0.0
    %9694 = vmatprep.subr.mxu0 0.0
    %9695 = vmatpush2.msra.mxu0 0.0
    %9696 = vmatprep.subr.mxu0 0.0
    %9697 = vmatpush2.msra.mxu0 0.0
    %9698 = vmatprep.mubr.f32.mxu0 0.0
    %9699 = vmatmul.mubr.f32.gmra.mxu0 %v9632
    %v9700 = vpop.f32.mrf.mxu0
    %v9701 = vadd.f32 %v9629, %v9700
    %v9702 = vpop.f32.mrf.mxu0
    %9703 = vdwg.mxu0
    %vm9704 = vcmask 33792
    %v9705 = vsel %vm9704, %v9701, -inf
    %9706 = vmax.xlane.f32.xlu0 %v9705
    %v9707 = vpop.xlane.xlu0 %9706
    %v9708 = vsub.f32 %v9701, %v9707
    %v9709 = vmul.f32 %v9708, 1.442695
    %v9710 = vpow.pop %v9709
    %v9711 = vsel %vm9704, %v9710, 0.0
    %9712 = vadd.xlane.f32.xlu0 %v9711
    %v9713 = vpop.xlane.xlu0 %9712
    %v9714 = vlog2.pop %v9713
    %v9715 = vmul.f32 %v9714, 0.6931472
    %v9716 = vadd.f32 %v9707, %v9715
    %v9717 = vsub.f32 %v9701, %v9716
    %9718 = vst.msk [vmem:[#allocation2] sm:$0x3] %vm9704, %v9717
    // Predicated region
    $region86: #{montage_model_forward.1} parent=1 // pred_check
      _
    $region87: #{montage_model_forward.1} parent=1 // pred_check_branch
      %9720 = sbr.rel (0) target = $region89
    $region88: #{montage_model_forward.1} parent=1 // pred_region
      %s9722 = ssub.s32 32, 32
      %9723 = vsyncadd [#allocation3], %s9722
      %s9725 = sshll.u32 [#allocation2], 4
      %s9726 = int_to_ptr.vmem [resolvable:$true] %s9725
      %9728 = dma.vmem_to_hbm [thread:$0]  %s9726, 32, %s21, [#allocation3]
    $region89: #{montage_model_forward.1} parent=1 // pred_fallthru
      _
    // Predicated region
    $region90: #{montage_model_forward.1} parent=1 // pred_check
      _
    $region91: #{montage_model_forward.1} parent=1 // pred_check_branch
      %9730 = sbr.rel (0) target = $region93
    $region92: #{montage_model_forward.1} parent=1 // pred_region
      %9731 = dma.done [#allocation3], 32
    $region93: #{montage_model_forward.1} parent=1 // pred_fallthru
      _
    %9732 = vsyncpa [#allocation3], 1

</llo_original>
